<compile_context>
chip_gen: v5e
topology: v5e:2x2
jax: 0.10.0
libtpu: 0.0.40
codegen_flags: <defaults>
</compile_context>

<pallas_src>
import functools
import numpy as np
import jax
import jax.numpy as jnp
from jax.experimental import pallas as pl
from jax.experimental.pallas import tpu as pltpu

# ----------------------------- problem sizes --------------------------------
N_POINTS = 10          # n_points in the reference module
N_VIEWS = 8            # default forward() uses the 8 registered cameras
H = 64                 # small stand-ins for height=1000 / width=1000
W = 64
HW = H * W
N_LANE = 128           # lane width of a vreg — last dim of the compute tile
N_SUB = HW // N_LANE   # 32 sublane rows per view (multiple of 8)
VALS_PER_PT = 8        # [cx_s, cy_s, rad2_s, weight, col_r, col_g, col_b, pad]
GAMMA = 1.0
MAX_DEPTH = 45.0
BG_EPS = 1e-5          # background weight (black background)
SHARPNESS = 4.0        # softness of the sphere silhouette (squared space)
SQRT_SHARP = float(np.sqrt(SHARPNESS))
# Smoothstep half-width in sharpened squared-distance units; ~matches the width
# over which sigmoid(e) transitions 0.05 -> 0.95 (e in [-3, 3]).
SMOOTH_HALF_WIDTH = 3.0
EDGE_INV = 0.5 / SMOOTH_HALF_WIDTH

assert W & (W - 1) == 0, "W must be a power of two for the flat-index shift"
_W_SHIFT = W.bit_length() - 1


# ------------------------------ Pallas kernel --------------------------------
def render_kernel(pt_ref, out_ref, *, views_per_step):
    """Render `views_per_step` views per grid step into lane-dense slabs.

    pt_ref : SMEM (n_views, N_POINTS*VALS_PER_PT) f32 packed per-point scalars
             (coordinates / radius already pre-scaled by sqrt(SHARPNESS),
              opacity * depth-weight pre-folded into one scalar).
    out_ref: VMEM (views_per_step, 4, N_SUB, 128) f32
             channels = [r, g, b, blend denominator]
    """
    step = pl.program_id(0)

    # Flat pixel index over a fully-packed (32, 128) tile; recover image coords.
    # Computed once per grid step and shared by all views in this step.
    sub = jax.lax.broadcasted_iota(jnp.int32, (N_SUB, N_LANE), 0)
    lane = jax.lax.broadcasted_iota(jnp.int32, (N_SUB, N_LANE), 1)
    flat = sub * N_LANE + lane
    rows_s = (flat >> _W_SHIFT).astype(jnp.float32) * SQRT_SHARP
    cols_s = (flat & (W - 1)).astype(jnp.float32) * SQRT_SHARP

    for vv in range(views_per_step):            # static unroll over views
        v = step * views_per_step + vv

        num_r = jnp.zeros((N_SUB, N_LANE), jnp.float32)
        num_g = jnp.zeros((N_SUB, N_LANE), jnp.float32)
        num_b = jnp.zeros((N_SUB, N_LANE), jnp.float32)
        den = jnp.full((N_SUB, N_LANE), BG_EPS, jnp.float32)

        # n_points is tiny (10): statically unrolled VPU-only accumulation.
        # Coverage is a clamped smoothstep of (sharpened) squared distance —
        # no transcendentals, so the single EUP slot stays idle for the
        # approx-reciprocal at the end.  Behind-camera points have weight == 0.
        for i in range(N_POINTS):
            base = i * VALS_PER_PT
            cx_s = pt_ref[v, base + 0]
            cy_s = pt_ref[v, base + 1]
            r2_s = pt_ref[v, base + 2]
            w_s = pt_ref[v, base + 3]
            cr = pt_ref[v, base + 4]
            cg = pt_ref[v, base + 5]
            cb = pt_ref[v, base + 6]

            dx = cols_s - cx_s
            dy = rows_s - cy_s
            e = r2_s - (dx * dx + dy * dy)        # sharpened signed sq. distance
            t = jnp.clip(e * EDGE_INV + 0.5, 0.0, 1.0)
            cov = t * t * (3.0 - 2.0 * t)          # VPU-only soft silhouette
            w = w_s * cov

            num_r = num_r + w * cr
            num_g = num_g + w * cg
            num_b = num_b + w * cb
            den = den + w

        # Approx reciprocal: one EUP push per vreg (EUP is idle here).  For
        # background pixels den == BG_EPS -> recip ~1e5, but the numerators are
        # exactly 0 there, so the image stays at the black background.
        inv = pl.reciprocal(den, approx=True)
        out_ref[vv, 0, :, :] = num_r * inv
        out_ref[vv, 1, :, :] = num_g * inv
        out_ref[vv, 2, :, :] = num_b * inv
        out_ref[vv, 3, :, :] = den


def _pallas_render(packed, views_per_step):
    n_views = packed.shape[0]
    assert n_views % views_per_step == 0
    n_steps = n_views // views_per_step
    kernel = functools.partial(render_kernel, views_per_step=views_per_step)
    return pl.pallas_call(
        kernel,
        out_shape=jax.ShapeDtypeStruct((n_views, 4, N_SUB, N_LANE), jnp.float32),
        grid=(n_steps,),
        in_specs=[pl.BlockSpec(memory_space=pltpu.MemorySpace.SMEM)],
        out_specs=pl.BlockSpec(
            (views_per_step, 4, N_SUB, N_LANE), lambda s: (s, 0, 0, 0)
        ),
        compiler_params=pltpu.CompilerParams(
            dimension_semantics=("parallel",)
        ),
    )(packed)


# ------------------------------- JAX glue ------------------------------------
def _rodrigues(rvec):
    theta = jnp.sqrt(jnp.sum(rvec * rvec) + 1e-12)
    k = rvec / theta
    K = jnp.array(
        [[0.0, -k[2], k[1]], [k[2], 0.0, -k[0]], [-k[1], k[0], 0.0]],
        dtype=jnp.float32,
    )
    return (
        jnp.eye(3, dtype=jnp.float32)
        + jnp.sin(theta) * K
        + (1.0 - jnp.cos(theta)) * (K @ K)
    )


def _project(vert_pos, vert_col, vert_rad, vert_opy, cam, gamma, max_depth):
    """Project spheres into pixel space for every view; pack per-point scalars.

    vert_pos: (V, P, 3)  vert_col: (V, P, 3)  vert_rad/vert_opy: (V, P)
    cam: (V, 8) = [tx, ty, tz, rx, ry, rz, focal, sensor_width]
    returns (V, P*VALS_PER_PT) float32 with sharpness folded into coords/radius
    and opacity * depth-weight folded into one scalar per point.
    """
    t = cam[:, 0:3]                              # (V, 3)
    rvec = cam[:, 3:6]                           # (V, 3)
    focal = cam[:, 6:7]                          # (V, 1)
    sensor_w = cam[:, 7:8]                       # (V, 1)
    sensor_h = sensor_w * (H / W)

    R = jax.vmap(_rodrigues)(rvec)               # (V, 3, 3)
    p_rel = vert_pos - t[:, None, :]             # (V, P, 3)
    p_cam = jnp.einsum("vij,vpj->vpi", R, p_rel)  # (V, P, 3)

    x, y, z = p_cam[..., 0], p_cam[..., 1], p_cam[..., 2]
    z_safe = jnp.where(z > 1e-3, z, 1.0)
    x_ndc = focal * x / z_safe / (sensor_w * 0.5)
    y_ndc = focal * y / z_safe / (sensor_h * 0.5)
    cx = (x_ndc + 1.0) * (W * 0.5) - 0.5
    cy = (y_ndc + 1.0) * (H * 0.5) - 0.5
    rad_px = focal * vert_rad / z_safe / (sensor_w * 0.5) * (W * 0.5)

    valid = (z > 1e-3).astype(jnp.float32)
    depth_w = valid * jnp.exp((max_depth - z) / (gamma * max_depth))

    # Fold sqrt(SHARPNESS) into coordinates/radius and opacity*depth_w into one
    # scalar so the kernel's per-point vector math is minimal (pure VPU).
    cx_s = cx * SQRT_SHARP
    cy_s = cy * SQRT_SHARP
    rad2_s = (rad_px * SQRT_SHARP) ** 2          # = SHARPNESS * rad_px^2
    w_s = vert_opy * depth_w
    pad = jnp.zeros_like(w_s)

    packed = jnp.stack(
        [cx_s, cy_s, rad2_s, w_s,
         vert_col[..., 0], vert_col[..., 1], vert_col[..., 2], pad],
        axis=-1,
    )                                            # (V, P, 8)
    return packed.reshape(packed.shape[0], -1).astype(jnp.float32)


class SceneModelPallas:
    """JAX/Pallas port of the reference SceneModel."""

    def __init__(self, key):
        self.gamma = GAMMA
        kp, = jax.random.split(key, 1)
        vert_pos = jax.random.uniform(kp, (1, N_POINTS, 3), jnp.float32) * 10.0
        vert_pos = vert_pos.at[:, :, 2].add(25.0)
        vert_pos = vert_pos.at[:, :, :2].add(-5.0)
        self.vert_pos = vert_pos
        self.vert_col = jnp.zeros((1, N_POINTS, 3), jnp.float32)
        self.vert_rad = jnp.ones((1, N_POINTS), jnp.float32) * 0.001
        self.vert_opy = jnp.ones((1, N_POINTS), jnp.float32)
        angles = [-1.5, -0.8, -0.4, -0.1, 0.1, 0.4, 0.8, 1.5]
        self.cam_params = jnp.asarray(
            [[np.sin(a) * 35.0, 0.0, 30.0 - np.cos(a) * 35.0,
              0.0, -a, 0.0, 5.0, 2.0] for a in angles],
            dtype=jnp.float32,
        )

    @functools.partial(jax.jit, static_argnums=0)
    def _render(self, cam):
        n_views = cam.shape[0]
        vp = jnp.broadcast_to(self.vert_pos, (n_views, N_POINTS, 3))
        vc = jnp.broadcast_to(self.vert_col, (n_views, N_POINTS, 3))
        vr = jnp.broadcast_to(self.vert_rad, (n_views, N_POINTS))
        vo = jnp.broadcast_to(self.vert_opy, (n_views, N_POINTS))
        packed = _project(vp, vc, vr, vo, cam, self.gamma, MAX_DEPTH)

        # 4 views/step keeps grid=(2,) "parallel" for v7x's two TensorCores
        # while nearly eliminating per-step overhead on v5e/v6e (single TC).
        vps = 4 if n_views % 4 == 0 else 1
        out = _pallas_render(packed, vps)                 # (V, 4, 32, 128)
        out = out.reshape(n_views, 4, H, W)               # lane-flat -> (H, W)
        # Channels-last transpose kept only to preserve pulsar's (V, H, W, 3)
        # output semantics; consumers that accept (V, 3, H, W) should take
        # out[:, :3] directly and skip this HBM rewrite.
        image = jnp.transpose(out[:, :3], (0, 2, 3, 1))   # pulsar (V, H, W, 3)
        info = out[:, 3:4]                                # (V, 1, H, W)
        return image, info

    def forward(self, cam=None):
        if cam is None:
            cam = self.cam_params
        return self._render(cam)


# --------------------------------- main ---------------------------------------
if __name__ == "__main__":
    key = jax.random.PRNGKey(0)
    model = SceneModelPallas(key)
    image, forward_info = model.forward()   # cam=None -> 8 registered views
    image = jax.block_until_ready(image)
    forward_info = jax.block_until_ready(forward_info)
    assert image.shape == (N_VIEWS, H, W, 3)
    assert forward_info.shape == (N_VIEWS, 1, H, W)
    assert bool(jnp.all(jnp.isfinite(image)))
    assert bool(jnp.all(jnp.isfinite(forward_info)))
    print("KERNEL_OK")
</pallas_src>

<mosaic_0001>
module attributes {stable_mosaic.version = 11 : i64} {
  func.func @render_kernel(%arg0: i32, %arg1: memref<8x80xf32, #tpu.memory_space<smem>>, %arg2: memref<4x4x32x128xf32, #tpu.memory_space<vmem>>) attributes {dimension_semantics = [#tpu.dimension_semantics<parallel>], iteration_bounds = array<i64: 2>, scalar_prefetch = 0 : i64, scratch_operands = 0 : i64, tpu.core_type = #tpu.core_type<tc>, window_params = [{transform_indices = @transform_0, window_bounds = array<i64: 8, 80>}, {transform_indices = @transform_1, window_bounds = array<i64: 4, 4, 32, 128>}]} {
    %0 = tpu.iota {dimensions = array<i32: 0>} : vector<32x128xi32>
    %1 = tpu.iota {dimensions = array<i32: 1>} : vector<32x128xi32>
    %c128_i32 = arith.constant 128 : i32
    %2 = vector.broadcast %c128_i32 : i32 to vector<32x128xi32>
    %3 = arith.muli %0, %2 : vector<32x128xi32>
    %4 = arith.addi %3, %1 : vector<32x128xi32>
    %c6_i32 = arith.constant 6 : i32
    %5 = vector.broadcast %c6_i32 : i32 to vector<32x128xi32>
    %6 = arith.shrsi %4, %5 : vector<32x128xi32>
    %7 = arith.sitofp %6 : vector<32x128xi32> to vector<32x128xf32>
    %cst = arith.constant 2.000000e+00 : f32
    %8 = vector.broadcast %cst : f32 to vector<32x128xf32>
    %9 = arith.mulf %7, %8 : vector<32x128xf32>
    %c63_i32 = arith.constant 63 : i32
    %10 = vector.broadcast %c63_i32 : i32 to vector<32x128xi32>
    %11 = arith.andi %4, %10 : vector<32x128xi32>
    %12 = arith.sitofp %11 : vector<32x128xi32> to vector<32x128xf32>
    %cst_0 = arith.constant 2.000000e+00 : f32
    %13 = vector.broadcast %cst_0 : f32 to vector<32x128xf32>
    %14 = arith.mulf %12, %13 : vector<32x128xf32>
    %c4_i32 = arith.constant 4 : i32
    %15 = arith.muli %arg0, %c4_i32 : i32
    %c0_i32 = arith.constant 0 : i32
    %16 = arith.addi %15, %c0_i32 : i32
    %cst_1 = arith.constant 0.000000e+00 : f32
    %17 = vector.broadcast %cst_1 : f32 to vector<32x128xf32>
    %cst_2 = arith.constant 0.000000e+00 : f32
    %18 = vector.broadcast %cst_2 : f32 to vector<32x128xf32>
    %cst_3 = arith.constant 0.000000e+00 : f32
    %19 = vector.broadcast %cst_3 : f32 to vector<32x128xf32>
    %cst_4 = arith.constant 9.99999974E-6 : f32
    %20 = vector.broadcast %cst_4 : f32 to vector<32x128xf32>
    %21 = arith.index_cast %16 : i32 to index
    %c0 = arith.constant 0 : index
    %22 = memref.load %arg1[%21, %c0] : memref<8x80xf32, #tpu.memory_space<smem>>
    %23 = arith.index_cast %16 : i32 to index
    %c1 = arith.constant 1 : index
    %24 = memref.load %arg1[%23, %c1] : memref<8x80xf32, #tpu.memory_space<smem>>
    %25 = arith.index_cast %16 : i32 to index
    %c2 = arith.constant 2 : index
    %26 = memref.load %arg1[%25, %c2] : memref<8x80xf32, #tpu.memory_space<smem>>
    %27 = arith.index_cast %16 : i32 to index
    %c3 = arith.constant 3 : index
    %28 = memref.load %arg1[%27, %c3] : memref<8x80xf32, #tpu.memory_space<smem>>
    %29 = arith.index_cast %16 : i32 to index
    %c4 = arith.constant 4 : index
    %30 = memref.load %arg1[%29, %c4] : memref<8x80xf32, #tpu.memory_space<smem>>
    %31 = arith.index_cast %16 : i32 to index
    %c5 = arith.constant 5 : index
    %32 = memref.load %arg1[%31, %c5] : memref<8x80xf32, #tpu.memory_space<smem>>
    %33 = arith.index_cast %16 : i32 to index
    %c6 = arith.constant 6 : index
    %34 = memref.load %arg1[%33, %c6] : memref<8x80xf32, #tpu.memory_space<smem>>
    %35 = vector.broadcast %22 : f32 to vector<32x128xf32>
    %36 = arith.subf %14, %35 : vector<32x128xf32>
    %37 = vector.broadcast %24 : f32 to vector<32x128xf32>
    %38 = arith.subf %9, %37 : vector<32x128xf32>
    %39 = arith.mulf %36, %36 : vector<32x128xf32>
    %40 = arith.mulf %38, %38 : vector<32x128xf32>
    %41 = arith.addf %39, %40 : vector<32x128xf32>
    %42 = vector.broadcast %26 : f32 to vector<32x128xf32>
    %43 = arith.subf %42, %41 : vector<32x128xf32>
    %cst_5 = arith.constant 0.166666672 : f32
    %44 = vector.broadcast %cst_5 : f32 to vector<32x128xf32>
    %45 = arith.mulf %43, %44 : vector<32x128xf32>
    %cst_6 = arith.constant 5.000000e-01 : f32
    %46 = vector.broadcast %cst_6 : f32 to vector<32x128xf32>
    %47 = arith.addf %45, %46 : vector<32x128xf32>
    %cst_7 = arith.constant 0.000000e+00 : f32
    %cst_8 = arith.constant 1.000000e+00 : f32
    %48 = vector.broadcast %cst_7 : f32 to vector<32x128xf32>
    %49 = arith.maximumf %48, %47 : vector<32x128xf32>
    %50 = vector.broadcast %cst_8 : f32 to vector<32x128xf32>
    %51 = arith.minimumf %50, %49 : vector<32x128xf32>
    %52 = arith.mulf %51, %51 : vector<32x128xf32>
    %cst_9 = arith.constant 2.000000e+00 : f32
    %53 = vector.broadcast %cst_9 : f32 to vector<32x128xf32>
    %54 = arith.mulf %53, %51 : vector<32x128xf32>
    %cst_10 = arith.constant 3.000000e+00 : f32
    %55 = vector.broadcast %cst_10 : f32 to vector<32x128xf32>
    %56 = arith.subf %55, %54 : vector<32x128xf32>
    %57 = arith.mulf %52, %56 : vector<32x128xf32>
    %58 = vector.broadcast %28 : f32 to vector<32x128xf32>
    %59 = arith.mulf %58, %57 : vector<32x128xf32>
    %60 = vector.broadcast %30 : f32 to vector<32x128xf32>
    %61 = arith.mulf %59, %60 : vector<32x128xf32>
    %62 = arith.addf %17, %61 : vector<32x128xf32>
    %63 = vector.broadcast %32 : f32 to vector<32x128xf32>
    %64 = arith.mulf %59, %63 : vector<32x128xf32>
    %65 = arith.addf %18, %64 : vector<32x128xf32>
    %66 = vector.broadcast %34 : f32 to vector<32x128xf32>
    %67 = arith.mulf %59, %66 : vector<32x128xf32>
    %68 = arith.addf %19, %67 : vector<32x128xf32>
    %69 = arith.addf %20, %59 : vector<32x128xf32>
    %70 = arith.index_cast %16 : i32 to index
    %c8 = arith.constant 8 : index
    %71 = memref.load %arg1[%70, %c8] : memref<8x80xf32, #tpu.memory_space<smem>>
    %72 = arith.index_cast %16 : i32 to index
    %c9 = arith.constant 9 : index
    %73 = memref.load %arg1[%72, %c9] : memref<8x80xf32, #tpu.memory_space<smem>>
    %74 = arith.index_cast %16 : i32 to index
    %c10 = arith.constant 10 : index
    %75 = memref.load %arg1[%74, %c10] : memref<8x80xf32, #tpu.memory_space<smem>>
    %76 = arith.index_cast %16 : i32 to index
    %c11 = arith.constant 11 : index
    %77 = memref.load %arg1[%76, %c11] : memref<8x80xf32, #tpu.memory_space<smem>>
    %78 = arith.index_cast %16 : i32 to index
    %c12 = arith.constant 12 : index
    %79 = memref.load %arg1[%78, %c12] : memref<8x80xf32, #tpu.memory_space<smem>>
    %80 = arith.index_cast %16 : i32 to index
    %c13 = arith.constant 13 : index
    %81 = memref.load %arg1[%80, %c13] : memref<8x80xf32, #tpu.memory_space<smem>>
    %82 = arith.index_cast %16 : i32 to index
    %c14 = arith.constant 14 : index
    %83 = memref.load %arg1[%82, %c14] : memref<8x80xf32, #tpu.memory_space<smem>>
    %84 = vector.broadcast %71 : f32 to vector<32x128xf32>
    %85 = arith.subf %14, %84 : vector<32x128xf32>
    %86 = vector.broadcast %73 : f32 to vector<32x128xf32>
    %87 = arith.subf %9, %86 : vector<32x128xf32>
    %88 = arith.mulf %85, %85 : vector<32x128xf32>
    %89 = arith.mulf %87, %87 : vector<32x128xf32>
    %90 = arith.addf %88, %89 : vector<32x128xf32>
    %91 = vector.broadcast %75 : f32 to vector<32x128xf32>
    %92 = arith.subf %91, %90 : vector<32x128xf32>
    %cst_11 = arith.constant 0.166666672 : f32
    %93 = vector.broadcast %cst_11 : f32 to vector<32x128xf32>
    %94 = arith.mulf %92, %93 : vector<32x128xf32>
    %cst_12 = arith.constant 5.000000e-01 : f32
    %95 = vector.broadcast %cst_12 : f32 to vector<32x128xf32>
    %96 = arith.addf %94, %95 : vector<32x128xf32>
    %cst_13 = arith.constant 0.000000e+00 : f32
    %cst_14 = arith.constant 1.000000e+00 : f32
    %97 = vector.broadcast %cst_13 : f32 to vector<32x128xf32>
    %98 = arith.maximumf %97, %96 : vector<32x128xf32>
    %99 = vector.broadcast %cst_14 : f32 to vector<32x128xf32>
    %100 = arith.minimumf %99, %98 : vector<32x128xf32>
    %101 = arith.mulf %100, %100 : vector<32x128xf32>
    %cst_15 = arith.constant 2.000000e+00 : f32
    %102 = vector.broadcast %cst_15 : f32 to vector<32x128xf32>
    %103 = arith.mulf %102, %100 : vector<32x128xf32>
    %cst_16 = arith.constant 3.000000e+00 : f32
    %104 = vector.broadcast %cst_16 : f32 to vector<32x128xf32>
    %105 = arith.subf %104, %103 : vector<32x128xf32>
    %106 = arith.mulf %101, %105 : vector<32x128xf32>
    %107 = vector.broadcast %77 : f32 to vector<32x128xf32>
    %108 = arith.mulf %107, %106 : vector<32x128xf32>
    %109 = vector.broadcast %79 : f32 to vector<32x128xf32>
    %110 = arith.mulf %108, %109 : vector<32x128xf32>
    %111 = arith.addf %62, %110 : vector<32x128xf32>
    %112 = vector.broadcast %81 : f32 to vector<32x128xf32>
    %113 = arith.mulf %108, %112 : vector<32x128xf32>
    %114 = arith.addf %65, %113 : vector<32x128xf32>
    %115 = vector.broadcast %83 : f32 to vector<32x128xf32>
    %116 = arith.mulf %108, %115 : vector<32x128xf32>
    %117 = arith.addf %68, %116 : vector<32x128xf32>
    %118 = arith.addf %69, %108 : vector<32x128xf32>
    %119 = arith.index_cast %16 : i32 to index
    %c16 = arith.constant 16 : index
    %120 = memref.load %arg1[%119, %c16] : memref<8x80xf32, #tpu.memory_space<smem>>
    %121 = arith.index_cast %16 : i32 to index
    %c17 = arith.constant 17 : index
    %122 = memref.load %arg1[%121, %c17] : memref<8x80xf32, #tpu.memory_space<smem>>
    %123 = arith.index_cast %16 : i32 to index
    %c18 = arith.constant 18 : index
    %124 = memref.load %arg1[%123, %c18] : memref<8x80xf32, #tpu.memory_space<smem>>
    %125 = arith.index_cast %16 : i32 to index
    %c19 = arith.constant 19 : index
    %126 = memref.load %arg1[%125, %c19] : memref<8x80xf32, #tpu.memory_space<smem>>
    %127 = arith.index_cast %16 : i32 to index
    %c20 = arith.constant 20 : index
    %128 = memref.load %arg1[%127, %c20] : memref<8x80xf32, #tpu.memory_space<smem>>
    %129 = arith.index_cast %16 : i32 to index
    %c21 = arith.constant 21 : index
    %130 = memref.load %arg1[%129, %c21] : memref<8x80xf32, #tpu.memory_space<smem>>
    %131 = arith.index_cast %16 : i32 to index
    %c22 = arith.constant 22 : index
    %132 = memref.load %arg1[%131, %c22] : memref<8x80xf32, #tpu.memory_space<smem>>
    %133 = vector.broadcast %120 : f32 to vector<32x128xf32>
    %134 = arith.subf %14, %133 : vector<32x128xf32>
    %135 = vector.broadcast %122 : f32 to vector<32x128xf32>
    %136 = arith.subf %9, %135 : vector<32x128xf32>
    %137 = arith.mulf %134, %134 : vector<32x128xf32>
    %138 = arith.mulf %136, %136 : vector<32x128xf32>
    %139 = arith.addf %137, %138 : vector<32x128xf32>
    %140 = vector.broadcast %124 : f32 to vector<32x128xf32>
    %141 = arith.subf %140, %139 : vector<32x128xf32>
    %cst_17 = arith.constant 0.166666672 : f32
    %142 = vector.broadcast %cst_17 : f32 to vector<32x128xf32>
    %143 = arith.mulf %141, %142 : vector<32x128xf32>
    %cst_18 = arith.constant 5.000000e-01 : f32
    %144 = vector.broadcast %cst_18 : f32 to vector<32x128xf32>
    %145 = arith.addf %143, %144 : vector<32x128xf32>
    %cst_19 = arith.constant 0.000000e+00 : f32
    %cst_20 = arith.constant 1.000000e+00 : f32
    %146 = vector.broadcast %cst_19 : f32 to vector<32x128xf32>
    %147 = arith.maximumf %146, %145 : vector<32x128xf32>
    %148 = vector.broadcast %cst_20 : f32 to vector<32x128xf32>
    %149 = arith.minimumf %148, %147 : vector<32x128xf32>
    %150 = arith.mulf %149, %149 : vector<32x128xf32>
    %cst_21 = arith.constant 2.000000e+00 : f32
    %151 = vector.broadcast %cst_21 : f32 to vector<32x128xf32>
    %152 = arith.mulf %151, %149 : vector<32x128xf32>
    %cst_22 = arith.constant 3.000000e+00 : f32
    %153 = vector.broadcast %cst_22 : f32 to vector<32x128xf32>
    %154 = arith.subf %153, %152 : vector<32x128xf32>
    %155 = arith.mulf %150, %154 : vector<32x128xf32>
    %156 = vector.broadcast %126 : f32 to vector<32x128xf32>
    %157 = arith.mulf %156, %155 : vector<32x128xf32>
    %158 = vector.broadcast %128 : f32 to vector<32x128xf32>
    %159 = arith.mulf %157, %158 : vector<32x128xf32>
    %160 = arith.addf %111, %159 : vector<32x128xf32>
    %161 = vector.broadcast %130 : f32 to vector<32x128xf32>
    %162 = arith.mulf %157, %161 : vector<32x128xf32>
    %163 = arith.addf %114, %162 : vector<32x128xf32>
    %164 = vector.broadcast %132 : f32 to vector<32x128xf32>
    %165 = arith.mulf %157, %164 : vector<32x128xf32>
    %166 = arith.addf %117, %165 : vector<32x128xf32>
    %167 = arith.addf %118, %157 : vector<32x128xf32>
    %168 = arith.index_cast %16 : i32 to index
    %c24 = arith.constant 24 : index
    %169 = memref.load %arg1[%168, %c24] : memref<8x80xf32, #tpu.memory_space<smem>>
    %170 = arith.index_cast %16 : i32 to index
    %c25 = arith.constant 25 : index
    %171 = memref.load %arg1[%170, %c25] : memref<8x80xf32, #tpu.memory_space<smem>>
    %172 = arith.index_cast %16 : i32 to index
    %c26 = arith.constant 26 : index
    %173 = memref.load %arg1[%172, %c26] : memref<8x80xf32, #tpu.memory_space<smem>>
    %174 = arith.index_cast %16 : i32 to index
    %c27 = arith.constant 27 : index
    %175 = memref.load %arg1[%174, %c27] : memref<8x80xf32, #tpu.memory_space<smem>>
    %176 = arith.index_cast %16 : i32 to index
    %c28 = arith.constant 28 : index
    %177 = memref.load %arg1[%176, %c28] : memref<8x80xf32, #tpu.memory_space<smem>>
    %178 = arith.index_cast %16 : i32 to index
    %c29 = arith.constant 29 : index
    %179 = memref.load %arg1[%178, %c29] : memref<8x80xf32, #tpu.memory_space<smem>>
    %180 = arith.index_cast %16 : i32 to index
    %c30 = arith.constant 30 : index
    %181 = memref.load %arg1[%180, %c30] : memref<8x80xf32, #tpu.memory_space<smem>>
    %182 = vector.broadcast %169 : f32 to vector<32x128xf32>
    %183 = arith.subf %14, %182 : vector<32x128xf32>
    %184 = vector.broadcast %171 : f32 to vector<32x128xf32>
    %185 = arith.subf %9, %184 : vector<32x128xf32>
    %186 = arith.mulf %183, %183 : vector<32x128xf32>
    %187 = arith.mulf %185, %185 : vector<32x128xf32>
    %188 = arith.addf %186, %187 : vector<32x128xf32>
    %189 = vector.broadcast %173 : f32 to vector<32x128xf32>
    %190 = arith.subf %189, %188 : vector<32x128xf32>
    %cst_23 = arith.constant 0.166666672 : f32
    %191 = vector.broadcast %cst_23 : f32 to vector<32x128xf32>
    %192 = arith.mulf %190, %191 : vector<32x128xf32>
    %cst_24 = arith.constant 5.000000e-01 : f32
    %193 = vector.broadcast %cst_24 : f32 to vector<32x128xf32>
    %194 = arith.addf %192, %193 : vector<32x128xf32>
    %cst_25 = arith.constant 0.000000e+00 : f32
    %cst_26 = arith.constant 1.000000e+00 : f32
    %195 = vector.broadcast %cst_25 : f32 to vector<32x128xf32>
    %196 = arith.maximumf %195, %194 : vector<32x128xf32>
    %197 = vector.broadcast %cst_26 : f32 to vector<32x128xf32>
    %198 = arith.minimumf %197, %196 : vector<32x128xf32>
    %199 = arith.mulf %198, %198 : vector<32x128xf32>
    %cst_27 = arith.constant 2.000000e+00 : f32
    %200 = vector.broadcast %cst_27 : f32 to vector<32x128xf32>
    %201 = arith.mulf %200, %198 : vector<32x128xf32>
    %cst_28 = arith.constant 3.000000e+00 : f32
    %202 = vector.broadcast %cst_28 : f32 to vector<32x128xf32>
    %203 = arith.subf %202, %201 : vector<32x128xf32>
    %204 = arith.mulf %199, %203 : vector<32x128xf32>
    %205 = vector.broadcast %175 : f32 to vector<32x128xf32>
    %206 = arith.mulf %205, %204 : vector<32x128xf32>
    %207 = vector.broadcast %177 : f32 to vector<32x128xf32>
    %208 = arith.mulf %206, %207 : vector<32x128xf32>
    %209 = arith.addf %160, %208 : vector<32x128xf32>
    %210 = vector.broadcast %179 : f32 to vector<32x128xf32>
    %211 = arith.mulf %206, %210 : vector<32x128xf32>
    %212 = arith.addf %163, %211 : vector<32x128xf32>
    %213 = vector.broadcast %181 : f32 to vector<32x128xf32>
    %214 = arith.mulf %206, %213 : vector<32x128xf32>
    %215 = arith.addf %166, %214 : vector<32x128xf32>
    %216 = arith.addf %167, %206 : vector<32x128xf32>
    %217 = arith.index_cast %16 : i32 to index
    %c32 = arith.constant 32 : index
    %218 = memref.load %arg1[%217, %c32] : memref<8x80xf32, #tpu.memory_space<smem>>
    %219 = arith.index_cast %16 : i32 to index
    %c33 = arith.constant 33 : index
    %220 = memref.load %arg1[%219, %c33] : memref<8x80xf32, #tpu.memory_space<smem>>
    %221 = arith.index_cast %16 : i32 to index
    %c34 = arith.constant 34 : index
    %222 = memref.load %arg1[%221, %c34] : memref<8x80xf32, #tpu.memory_space<smem>>
    %223 = arith.index_cast %16 : i32 to index
    %c35 = arith.constant 35 : index
    %224 = memref.load %arg1[%223, %c35] : memref<8x80xf32, #tpu.memory_space<smem>>
    %225 = arith.index_cast %16 : i32 to index
    %c36 = arith.constant 36 : index
    %226 = memref.load %arg1[%225, %c36] : memref<8x80xf32, #tpu.memory_space<smem>>
    %227 = arith.index_cast %16 : i32 to index
    %c37 = arith.constant 37 : index
    %228 = memref.load %arg1[%227, %c37] : memref<8x80xf32, #tpu.memory_space<smem>>
    %229 = arith.index_cast %16 : i32 to index
    %c38 = arith.constant 38 : index
    %230 = memref.load %arg1[%229, %c38] : memref<8x80xf32, #tpu.memory_space<smem>>
    %231 = vector.broadcast %218 : f32 to vector<32x128xf32>
    %232 = arith.subf %14, %231 : vector<32x128xf32>
    %233 = vector.broadcast %220 : f32 to vector<32x128xf32>
    %234 = arith.subf %9, %233 : vector<32x128xf32>
    %235 = arith.mulf %232, %232 : vector<32x128xf32>
    %236 = arith.mulf %234, %234 : vector<32x128xf32>
    %237 = arith.addf %235, %236 : vector<32x128xf32>
    %238 = vector.broadcast %222 : f32 to vector<32x128xf32>
    %239 = arith.subf %238, %237 : vector<32x128xf32>
    %cst_29 = arith.constant 0.166666672 : f32
    %240 = vector.broadcast %cst_29 : f32 to vector<32x128xf32>
    %241 = arith.mulf %239, %240 : vector<32x128xf32>
    %cst_30 = arith.constant 5.000000e-01 : f32
    %242 = vector.broadcast %cst_30 : f32 to vector<32x128xf32>
    %243 = arith.addf %241, %242 : vector<32x128xf32>
    %cst_31 = arith.constant 0.000000e+00 : f32
    %cst_32 = arith.constant 1.000000e+00 : f32
    %244 = vector.broadcast %cst_31 : f32 to vector<32x128xf32>
    %245 = arith.maximumf %244, %243 : vector<32x128xf32>
    %246 = vector.broadcast %cst_32 : f32 to vector<32x128xf32>
    %247 = arith.minimumf %246, %245 : vector<32x128xf32>
    %248 = arith.mulf %247, %247 : vector<32x128xf32>
    %cst_33 = arith.constant 2.000000e+00 : f32
    %249 = vector.broadcast %cst_33 : f32 to vector<32x128xf32>
    %250 = arith.mulf %249, %247 : vector<32x128xf32>
    %cst_34 = arith.constant 3.000000e+00 : f32
    %251 = vector.broadcast %cst_34 : f32 to vector<32x128xf32>
    %252 = arith.subf %251, %250 : vector<32x128xf32>
    %253 = arith.mulf %248, %252 : vector<32x128xf32>
    %254 = vector.broadcast %224 : f32 to vector<32x128xf32>
    %255 = arith.mulf %254, %253 : vector<32x128xf32>
    %256 = vector.broadcast %226 : f32 to vector<32x128xf32>
    %257 = arith.mulf %255, %256 : vector<32x128xf32>
    %258 = arith.addf %209, %257 : vector<32x128xf32>
    %259 = vector.broadcast %228 : f32 to vector<32x128xf32>
    %260 = arith.mulf %255, %259 : vector<32x128xf32>
    %261 = arith.addf %212, %260 : vector<32x128xf32>
    %262 = vector.broadcast %230 : f32 to vector<32x128xf32>
    %263 = arith.mulf %255, %262 : vector<32x128xf32>
    %264 = arith.addf %215, %263 : vector<32x128xf32>
    %265 = arith.addf %216, %255 : vector<32x128xf32>
    %266 = arith.index_cast %16 : i32 to index
    %c40 = arith.constant 40 : index
    %267 = memref.load %arg1[%266, %c40] : memref<8x80xf32, #tpu.memory_space<smem>>
    %268 = arith.index_cast %16 : i32 to index
    %c41 = arith.constant 41 : index
    %269 = memref.load %arg1[%268, %c41] : memref<8x80xf32, #tpu.memory_space<smem>>
    %270 = arith.index_cast %16 : i32 to index
    %c42 = arith.constant 42 : index
    %271 = memref.load %arg1[%270, %c42] : memref<8x80xf32, #tpu.memory_space<smem>>
    %272 = arith.index_cast %16 : i32 to index
    %c43 = arith.constant 43 : index
    %273 = memref.load %arg1[%272, %c43] : memref<8x80xf32, #tpu.memory_space<smem>>
    %274 = arith.index_cast %16 : i32 to index
    %c44 = arith.constant 44 : index
    %275 = memref.load %arg1[%274, %c44] : memref<8x80xf32, #tpu.memory_space<smem>>
    %276 = arith.index_cast %16 : i32 to index
    %c45 = arith.constant 45 : index
    %277 = memref.load %arg1[%276, %c45] : memref<8x80xf32, #tpu.memory_space<smem>>
    %278 = arith.index_cast %16 : i32 to index
    %c46 = arith.constant 46 : index
    %279 = memref.load %arg1[%278, %c46] : memref<8x80xf32, #tpu.memory_space<smem>>
    %280 = vector.broadcast %267 : f32 to vector<32x128xf32>
    %281 = arith.subf %14, %280 : vector<32x128xf32>
    %282 = vector.broadcast %269 : f32 to vector<32x128xf32>
    %283 = arith.subf %9, %282 : vector<32x128xf32>
    %284 = arith.mulf %281, %281 : vector<32x128xf32>
    %285 = arith.mulf %283, %283 : vector<32x128xf32>
    %286 = arith.addf %284, %285 : vector<32x128xf32>
    %287 = vector.broadcast %271 : f32 to vector<32x128xf32>
    %288 = arith.subf %287, %286 : vector<32x128xf32>
    %cst_35 = arith.constant 0.166666672 : f32
    %289 = vector.broadcast %cst_35 : f32 to vector<32x128xf32>
    %290 = arith.mulf %288, %289 : vector<32x128xf32>
    %cst_36 = arith.constant 5.000000e-01 : f32
    %291 = vector.broadcast %cst_36 : f32 to vector<32x128xf32>
    %292 = arith.addf %290, %291 : vector<32x128xf32>
    %cst_37 = arith.constant 0.000000e+00 : f32
    %cst_38 = arith.constant 1.000000e+00 : f32
    %293 = vector.broadcast %cst_37 : f32 to vector<32x128xf32>
    %294 = arith.maximumf %293, %292 : vector<32x128xf32>
    %295 = vector.broadcast %cst_38 : f32 to vector<32x128xf32>
    %296 = arith.minimumf %295, %294 : vector<32x128xf32>
    %297 = arith.mulf %296, %296 : vector<32x128xf32>
    %cst_39 = arith.constant 2.000000e+00 : f32
    %298 = vector.broadcast %cst_39 : f32 to vector<32x128xf32>
    %299 = arith.mulf %298, %296 : vector<32x128xf32>
    %cst_40 = arith.constant 3.000000e+00 : f32
    %300 = vector.broadcast %cst_40 : f32 to vector<32x128xf32>
    %301 = arith.subf %300, %299 : vector<32x128xf32>
    %302 = arith.mulf %297, %301 : vector<32x128xf32>
    %303 = vector.broadcast %273 : f32 to vector<32x128xf32>
    %304 = arith.mulf %303, %302 : vector<32x128xf32>
    %305 = vector.broadcast %275 : f32 to vector<32x128xf32>
    %306 = arith.mulf %304, %305 : vector<32x128xf32>
    %307 = arith.addf %258, %306 : vector<32x128xf32>
    %308 = vector.broadcast %277 : f32 to vector<32x128xf32>
    %309 = arith.mulf %304, %308 : vector<32x128xf32>
    %310 = arith.addf %261, %309 : vector<32x128xf32>
    %311 = vector.broadcast %279 : f32 to vector<32x128xf32>
    %312 = arith.mulf %304, %311 : vector<32x128xf32>
    %313 = arith.addf %264, %312 : vector<32x128xf32>
    %314 = arith.addf %265, %304 : vector<32x128xf32>
    %315 = arith.index_cast %16 : i32 to index
    %c48 = arith.constant 48 : index
    %316 = memref.load %arg1[%315, %c48] : memref<8x80xf32, #tpu.memory_space<smem>>
    %317 = arith.index_cast %16 : i32 to index
    %c49 = arith.constant 49 : index
    %318 = memref.load %arg1[%317, %c49] : memref<8x80xf32, #tpu.memory_space<smem>>
    %319 = arith.index_cast %16 : i32 to index
    %c50 = arith.constant 50 : index
    %320 = memref.load %arg1[%319, %c50] : memref<8x80xf32, #tpu.memory_space<smem>>
    %321 = arith.index_cast %16 : i32 to index
    %c51 = arith.constant 51 : index
    %322 = memref.load %arg1[%321, %c51] : memref<8x80xf32, #tpu.memory_space<smem>>
    %323 = arith.index_cast %16 : i32 to index
    %c52 = arith.constant 52 : index
    %324 = memref.load %arg1[%323, %c52] : memref<8x80xf32, #tpu.memory_space<smem>>
    %325 = arith.index_cast %16 : i32 to index
    %c53 = arith.constant 53 : index
    %326 = memref.load %arg1[%325, %c53] : memref<8x80xf32, #tpu.memory_space<smem>>
    %327 = arith.index_cast %16 : i32 to index
    %c54 = arith.constant 54 : index
    %328 = memref.load %arg1[%327, %c54] : memref<8x80xf32, #tpu.memory_space<smem>>
    %329 = vector.broadcast %316 : f32 to vector<32x128xf32>
    %330 = arith.subf %14, %329 : vector<32x128xf32>
    %331 = vector.broadcast %318 : f32 to vector<32x128xf32>
    %332 = arith.subf %9, %331 : vector<32x128xf32>
    %333 = arith.mulf %330, %330 : vector<32x128xf32>
    %334 = arith.mulf %332, %332 : vector<32x128xf32>
    %335 = arith.addf %333, %334 : vector<32x128xf32>
    %336 = vector.broadcast %320 : f32 to vector<32x128xf32>
    %337 = arith.subf %336, %335 : vector<32x128xf32>
    %cst_41 = arith.constant 0.166666672 : f32
    %338 = vector.broadcast %cst_41 : f32 to vector<32x128xf32>
    %339 = arith.mulf %337, %338 : vector<32x128xf32>
    %cst_42 = arith.constant 5.000000e-01 : f32
    %340 = vector.broadcast %cst_42 : f32 to vector<32x128xf32>
    %341 = arith.addf %339, %340 : vector<32x128xf32>
    %cst_43 = arith.constant 0.000000e+00 : f32
    %cst_44 = arith.constant 1.000000e+00 : f32
    %342 = vector.broadcast %cst_43 : f32 to vector<32x128xf32>
    %343 = arith.maximumf %342, %341 : vector<32x128xf32>
    %344 = vector.broadcast %cst_44 : f32 to vector<32x128xf32>
    %345 = arith.minimumf %344, %343 : vector<32x128xf32>
    %346 = arith.mulf %345, %345 : vector<32x128xf32>
    %cst_45 = arith.constant 2.000000e+00 : f32
    %347 = vector.broadcast %cst_45 : f32 to vector<32x128xf32>
    %348 = arith.mulf %347, %345 : vector<32x128xf32>
    %cst_46 = arith.constant 3.000000e+00 : f32
    %349 = vector.broadcast %cst_46 : f32 to vector<32x128xf32>
    %350 = arith.subf %349, %348 : vector<32x128xf32>
    %351 = arith.mulf %346, %350 : vector<32x128xf32>
    %352 = vector.broadcast %322 : f32 to vector<32x128xf32>
    %353 = arith.mulf %352, %351 : vector<32x128xf32>
    %354 = vector.broadcast %324 : f32 to vector<32x128xf32>
    %355 = arith.mulf %353, %354 : vector<32x128xf32>
    %356 = arith.addf %307, %355 : vector<32x128xf32>
    %357 = vector.broadcast %326 : f32 to vector<32x128xf32>
    %358 = arith.mulf %353, %357 : vector<32x128xf32>
    %359 = arith.addf %310, %358 : vector<32x128xf32>
    %360 = vector.broadcast %328 : f32 to vector<32x128xf32>
    %361 = arith.mulf %353, %360 : vector<32x128xf32>
    %362 = arith.addf %313, %361 : vector<32x128xf32>
    %363 = arith.addf %314, %353 : vector<32x128xf32>
    %364 = arith.index_cast %16 : i32 to index
    %c56 = arith.constant 56 : index
    %365 = memref.load %arg1[%364, %c56] : memref<8x80xf32, #tpu.memory_space<smem>>
    %366 = arith.index_cast %16 : i32 to index
    %c57 = arith.constant 57 : index
    %367 = memref.load %arg1[%366, %c57] : memref<8x80xf32, #tpu.memory_space<smem>>
    %368 = arith.index_cast %16 : i32 to index
    %c58 = arith.constant 58 : index
    %369 = memref.load %arg1[%368, %c58] : memref<8x80xf32, #tpu.memory_space<smem>>
    %370 = arith.index_cast %16 : i32 to index
    %c59 = arith.constant 59 : index
    %371 = memref.load %arg1[%370, %c59] : memref<8x80xf32, #tpu.memory_space<smem>>
    %372 = arith.index_cast %16 : i32 to index
    %c60 = arith.constant 60 : index
    %373 = memref.load %arg1[%372, %c60] : memref<8x80xf32, #tpu.memory_space<smem>>
    %374 = arith.index_cast %16 : i32 to index
    %c61 = arith.constant 61 : index
    %375 = memref.load %arg1[%374, %c61] : memref<8x80xf32, #tpu.memory_space<smem>>
    %376 = arith.index_cast %16 : i32 to index
    %c62 = arith.constant 62 : index
    %377 = memref.load %arg1[%376, %c62] : memref<8x80xf32, #tpu.memory_space<smem>>
    %378 = vector.broadcast %365 : f32 to vector<32x128xf32>
    %379 = arith.subf %14, %378 : vector<32x128xf32>
    %380 = vector.broadcast %367 : f32 to vector<32x128xf32>
    %381 = arith.subf %9, %380 : vector<32x128xf32>
    %382 = arith.mulf %379, %379 : vector<32x128xf32>
    %383 = arith.mulf %381, %381 : vector<32x128xf32>
    %384 = arith.addf %382, %383 : vector<32x128xf32>
    %385 = vector.broadcast %369 : f32 to vector<32x128xf32>
    %386 = arith.subf %385, %384 : vector<32x128xf32>
    %cst_47 = arith.constant 0.166666672 : f32
    %387 = vector.broadcast %cst_47 : f32 to vector<32x128xf32>
    %388 = arith.mulf %386, %387 : vector<32x128xf32>
    %cst_48 = arith.constant 5.000000e-01 : f32
    %389 = vector.broadcast %cst_48 : f32 to vector<32x128xf32>
    %390 = arith.addf %388, %389 : vector<32x128xf32>
    %cst_49 = arith.constant 0.000000e+00 : f32
    %cst_50 = arith.constant 1.000000e+00 : f32
    %391 = vector.broadcast %cst_49 : f32 to vector<32x128xf32>
    %392 = arith.maximumf %391, %390 : vector<32x128xf32>
    %393 = vector.broadcast %cst_50 : f32 to vector<32x128xf32>
    %394 = arith.minimumf %393, %392 : vector<32x128xf32>
    %395 = arith.mulf %394, %394 : vector<32x128xf32>
    %cst_51 = arith.constant 2.000000e+00 : f32
    %396 = vector.broadcast %cst_51 : f32 to vector<32x128xf32>
    %397 = arith.mulf %396, %394 : vector<32x128xf32>
    %cst_52 = arith.constant 3.000000e+00 : f32
    %398 = vector.broadcast %cst_52 : f32 to vector<32x128xf32>
    %399 = arith.subf %398, %397 : vector<32x128xf32>
    %400 = arith.mulf %395, %399 : vector<32x128xf32>
    %401 = vector.broadcast %371 : f32 to vector<32x128xf32>
    %402 = arith.mulf %401, %400 : vector<32x128xf32>
    %403 = vector.broadcast %373 : f32 to vector<32x128xf32>
    %404 = arith.mulf %402, %403 : vector<32x128xf32>
    %405 = arith.addf %356, %404 : vector<32x128xf32>
    %406 = vector.broadcast %375 : f32 to vector<32x128xf32>
    %407 = arith.mulf %402, %406 : vector<32x128xf32>
    %408 = arith.addf %359, %407 : vector<32x128xf32>
    %409 = vector.broadcast %377 : f32 to vector<32x128xf32>
    %410 = arith.mulf %402, %409 : vector<32x128xf32>
    %411 = arith.addf %362, %410 : vector<32x128xf32>
    %412 = arith.addf %363, %402 : vector<32x128xf32>
    %413 = arith.index_cast %16 : i32 to index
    %c64 = arith.constant 64 : index
    %414 = memref.load %arg1[%413, %c64] : memref<8x80xf32, #tpu.memory_space<smem>>
    %415 = arith.index_cast %16 : i32 to index
    %c65 = arith.constant 65 : index
    %416 = memref.load %arg1[%415, %c65] : memref<8x80xf32, #tpu.memory_space<smem>>
    %417 = arith.index_cast %16 : i32 to index
    %c66 = arith.constant 66 : index
    %418 = memref.load %arg1[%417, %c66] : memref<8x80xf32, #tpu.memory_space<smem>>
    %419 = arith.index_cast %16 : i32 to index
    %c67 = arith.constant 67 : index
    %420 = memref.load %arg1[%419, %c67] : memref<8x80xf32, #tpu.memory_space<smem>>
    %421 = arith.index_cast %16 : i32 to index
    %c68 = arith.constant 68 : index
    %422 = memref.load %arg1[%421, %c68] : memref<8x80xf32, #tpu.memory_space<smem>>
    %423 = arith.index_cast %16 : i32 to index
    %c69 = arith.constant 69 : index
    %424 = memref.load %arg1[%423, %c69] : memref<8x80xf32, #tpu.memory_space<smem>>
    %425 = arith.index_cast %16 : i32 to index
    %c70 = arith.constant 70 : index
    %426 = memref.load %arg1[%425, %c70] : memref<8x80xf32, #tpu.memory_space<smem>>
    %427 = vector.broadcast %414 : f32 to vector<32x128xf32>
    %428 = arith.subf %14, %427 : vector<32x128xf32>
    %429 = vector.broadcast %416 : f32 to vector<32x128xf32>
    %430 = arith.subf %9, %429 : vector<32x128xf32>
    %431 = arith.mulf %428, %428 : vector<32x128xf32>
    %432 = arith.mulf %430, %430 : vector<32x128xf32>
    %433 = arith.addf %431, %432 : vector<32x128xf32>
    %434 = vector.broadcast %418 : f32 to vector<32x128xf32>
    %435 = arith.subf %434, %433 : vector<32x128xf32>
    %cst_53 = arith.constant 0.166666672 : f32
    %436 = vector.broadcast %cst_53 : f32 to vector<32x128xf32>
    %437 = arith.mulf %435, %436 : vector<32x128xf32>
    %cst_54 = arith.constant 5.000000e-01 : f32
    %438 = vector.broadcast %cst_54 : f32 to vector<32x128xf32>
    %439 = arith.addf %437, %438 : vector<32x128xf32>
    %cst_55 = arith.constant 0.000000e+00 : f32
    %cst_56 = arith.constant 1.000000e+00 : f32
    %440 = vector.broadcast %cst_55 : f32 to vector<32x128xf32>
    %441 = arith.maximumf %440, %439 : vector<32x128xf32>
    %442 = vector.broadcast %cst_56 : f32 to vector<32x128xf32>
    %443 = arith.minimumf %442, %441 : vector<32x128xf32>
    %444 = arith.mulf %443, %443 : vector<32x128xf32>
    %cst_57 = arith.constant 2.000000e+00 : f32
    %445 = vector.broadcast %cst_57 : f32 to vector<32x128xf32>
    %446 = arith.mulf %445, %443 : vector<32x128xf32>
    %cst_58 = arith.constant 3.000000e+00 : f32
    %447 = vector.broadcast %cst_58 : f32 to vector<32x128xf32>
    %448 = arith.subf %447, %446 : vector<32x128xf32>
    %449 = arith.mulf %444, %448 : vector<32x128xf32>
    %450 = vector.broadcast %420 : f32 to vector<32x128xf32>
    %451 = arith.mulf %450, %449 : vector<32x128xf32>
    %452 = vector.broadcast %422 : f32 to vector<32x128xf32>
    %453 = arith.mulf %451, %452 : vector<32x128xf32>
    %454 = arith.addf %405, %453 : vector<32x128xf32>
    %455 = vector.broadcast %424 : f32 to vector<32x128xf32>
    %456 = arith.mulf %451, %455 : vector<32x128xf32>
    %457 = arith.addf %408, %456 : vector<32x128xf32>
    %458 = vector.broadcast %426 : f32 to vector<32x128xf32>
    %459 = arith.mulf %451, %458 : vector<32x128xf32>
    %460 = arith.addf %411, %459 : vector<32x128xf32>
    %461 = arith.addf %412, %451 : vector<32x128xf32>
    %462 = arith.index_cast %16 : i32 to index
    %c72 = arith.constant 72 : index
    %463 = memref.load %arg1[%462, %c72] : memref<8x80xf32, #tpu.memory_space<smem>>
    %464 = arith.index_cast %16 : i32 to index
    %c73 = arith.constant 73 : index
    %465 = memref.load %arg1[%464, %c73] : memref<8x80xf32, #tpu.memory_space<smem>>
    %466 = arith.index_cast %16 : i32 to index
    %c74 = arith.constant 74 : index
    %467 = memref.load %arg1[%466, %c74] : memref<8x80xf32, #tpu.memory_space<smem>>
    %468 = arith.index_cast %16 : i32 to index
    %c75 = arith.constant 75 : index
    %469 = memref.load %arg1[%468, %c75] : memref<8x80xf32, #tpu.memory_space<smem>>
    %470 = arith.index_cast %16 : i32 to index
    %c76 = arith.constant 76 : index
    %471 = memref.load %arg1[%470, %c76] : memref<8x80xf32, #tpu.memory_space<smem>>
    %472 = arith.index_cast %16 : i32 to index
    %c77 = arith.constant 77 : index
    %473 = memref.load %arg1[%472, %c77] : memref<8x80xf32, #tpu.memory_space<smem>>
    %474 = arith.index_cast %16 : i32 to index
    %c78 = arith.constant 78 : index
    %475 = memref.load %arg1[%474, %c78] : memref<8x80xf32, #tpu.memory_space<smem>>
    %476 = vector.broadcast %463 : f32 to vector<32x128xf32>
    %477 = arith.subf %14, %476 : vector<32x128xf32>
    %478 = vector.broadcast %465 : f32 to vector<32x128xf32>
    %479 = arith.subf %9, %478 : vector<32x128xf32>
    %480 = arith.mulf %477, %477 : vector<32x128xf32>
    %481 = arith.mulf %479, %479 : vector<32x128xf32>
    %482 = arith.addf %480, %481 : vector<32x128xf32>
    %483 = vector.broadcast %467 : f32 to vector<32x128xf32>
    %484 = arith.subf %483, %482 : vector<32x128xf32>
    %cst_59 = arith.constant 0.166666672 : f32
    %485 = vector.broadcast %cst_59 : f32 to vector<32x128xf32>
    %486 = arith.mulf %484, %485 : vector<32x128xf32>
    %cst_60 = arith.constant 5.000000e-01 : f32
    %487 = vector.broadcast %cst_60 : f32 to vector<32x128xf32>
    %488 = arith.addf %486, %487 : vector<32x128xf32>
    %cst_61 = arith.constant 0.000000e+00 : f32
    %cst_62 = arith.constant 1.000000e+00 : f32
    %489 = vector.broadcast %cst_61 : f32 to vector<32x128xf32>
    %490 = arith.maximumf %489, %488 : vector<32x128xf32>
    %491 = vector.broadcast %cst_62 : f32 to vector<32x128xf32>
    %492 = arith.minimumf %491, %490 : vector<32x128xf32>
    %493 = arith.mulf %492, %492 : vector<32x128xf32>
    %cst_63 = arith.constant 2.000000e+00 : f32
    %494 = vector.broadcast %cst_63 : f32 to vector<32x128xf32>
    %495 = arith.mulf %494, %492 : vector<32x128xf32>
    %cst_64 = arith.constant 3.000000e+00 : f32
    %496 = vector.broadcast %cst_64 : f32 to vector<32x128xf32>
    %497 = arith.subf %496, %495 : vector<32x128xf32>
    %498 = arith.mulf %493, %497 : vector<32x128xf32>
    %499 = vector.broadcast %469 : f32 to vector<32x128xf32>
    %500 = arith.mulf %499, %498 : vector<32x128xf32>
    %501 = vector.broadcast %471 : f32 to vector<32x128xf32>
    %502 = arith.mulf %500, %501 : vector<32x128xf32>
    %503 = arith.addf %454, %502 : vector<32x128xf32>
    %504 = vector.broadcast %473 : f32 to vector<32x128xf32>
    %505 = arith.mulf %500, %504 : vector<32x128xf32>
    %506 = arith.addf %457, %505 : vector<32x128xf32>
    %507 = vector.broadcast %475 : f32 to vector<32x128xf32>
    %508 = arith.mulf %500, %507 : vector<32x128xf32>
    %509 = arith.addf %460, %508 : vector<32x128xf32>
    %510 = arith.addf %461, %500 : vector<32x128xf32>
    %511 = tpu.reciprocal %510 {approx = true} : vector<32x128xf32> -> vector<32x128xf32>
    %512 = arith.mulf %503, %511 : vector<32x128xf32>
    %c0_65 = arith.constant 0 : index
    %c0_66 = arith.constant 0 : index
    %c0_67 = arith.constant 0 : index
    %c0_68 = arith.constant 0 : index
    %513 = vector.load %arg2[%c0_65, %c0_66, %c0_67, %c0_68] : memref<4x4x32x128xf32, #tpu.memory_space<vmem>>, vector<1x1x32x128xf32>
    %514 = vector.shape_cast %513 : vector<1x1x32x128xf32> to vector<32x128xf32>
    %515 = vector.shape_cast %512 : vector<32x128xf32> to vector<1x1x32x128xf32>
    tpu.vector_store %arg2[%c0_65, %c0_66, %c0_67, %c0_68], %515 {strides = array<i32>} : memref<4x4x32x128xf32, #tpu.memory_space<vmem>>, vector<1x1x32x128xf32>,
    %516 = arith.mulf %506, %511 : vector<32x128xf32>
    %c0_69 = arith.constant 0 : index
    %c1_70 = arith.constant 1 : index
    %c0_71 = arith.constant 0 : index
    %c0_72 = arith.constant 0 : index
    %517 = vector.load %arg2[%c0_69, %c1_70, %c0_71, %c0_72] : memref<4x4x32x128xf32, #tpu.memory_space<vmem>>, vector<1x1x32x128xf32>
    %518 = vector.shape_cast %517 : vector<1x1x32x128xf32> to vector<32x128xf32>
    %519 = vector.shape_cast %516 : vector<32x128xf32> to vector<1x1x32x128xf32>
    tpu.vector_store %arg2[%c0_69, %c1_70, %c0_71, %c0_72], %519 {strides = array<i32>} : memref<4x4x32x128xf32, #tpu.memory_space<vmem>>, vector<1x1x32x128xf32>,
    %520 = arith.mulf %509, %511 : vector<32x128xf32>
    %c0_73 = arith.constant 0 : index
    %c2_74 = arith.constant 2 : index
    %c0_75 = arith.constant 0 : index
    %c0_76 = arith.constant 0 : index
    %521 = vector.load %arg2[%c0_73, %c2_74, %c0_75, %c0_76] : memref<4x4x32x128xf32, #tpu.memory_space<vmem>>, vector<1x1x32x128xf32>
    %522 = vector.shape_cast %521 : vector<1x1x32x128xf32> to vector<32x128xf32>
    %523 = vector.shape_cast %520 : vector<32x128xf32> to vector<1x1x32x128xf32>
    tpu.vector_store %arg2[%c0_73, %c2_74, %c0_75, %c0_76], %523 {strides = array<i32>} : memref<4x4x32x128xf32, #tpu.memory_space<vmem>>, vector<1x1x32x128xf32>,
    %c0_77 = arith.constant 0 : index
    %c3_78 = arith.constant 3 : index
    %c0_79 = arith.constant 0 : index
    %c0_80 = arith.constant 0 : index
    %524 = vector.load %arg2[%c0_77, %c3_78, %c0_79, %c0_80] : memref<4x4x32x128xf32, #tpu.memory_space<vmem>>, vector<1x1x32x128xf32>
    %525 = vector.shape_cast %524 : vector<1x1x32x128xf32> to vector<32x128xf32>
    %526 = vector.shape_cast %510 : vector<32x128xf32> to vector<1x1x32x128xf32>
    tpu.vector_store %arg2[%c0_77, %c3_78, %c0_79, %c0_80], %526 {strides = array<i32>} : memref<4x4x32x128xf32, #tpu.memory_space<vmem>>, vector<1x1x32x128xf32>,
    %c4_i32_81 = arith.constant 4 : i32
    %527 = arith.muli %arg0, %c4_i32_81 : i32
    %c1_i32 = arith.constant 1 : i32
    %528 = arith.addi %527, %c1_i32 : i32
    %cst_82 = arith.constant 0.000000e+00 : f32
    %529 = vector.broadcast %cst_82 : f32 to vector<32x128xf32>
    %cst_83 = arith.constant 0.000000e+00 : f32
    %530 = vector.broadcast %cst_83 : f32 to vector<32x128xf32>
    %cst_84 = arith.constant 0.000000e+00 : f32
    %531 = vector.broadcast %cst_84 : f32 to vector<32x128xf32>
    %cst_85 = arith.constant 9.99999974E-6 : f32
    %532 = vector.broadcast %cst_85 : f32 to vector<32x128xf32>
    %533 = arith.index_cast %528 : i32 to index
    %c0_86 = arith.constant 0 : index
    %534 = memref.load %arg1[%533, %c0_86] : memref<8x80xf32, #tpu.memory_space<smem>>
    %535 = arith.index_cast %528 : i32 to index
    %c1_87 = arith.constant 1 : index
    %536 = memref.load %arg1[%535, %c1_87] : memref<8x80xf32, #tpu.memory_space<smem>>
    %537 = arith.index_cast %528 : i32 to index
    %c2_88 = arith.constant 2 : index
    %538 = memref.load %arg1[%537, %c2_88] : memref<8x80xf32, #tpu.memory_space<smem>>
    %539 = arith.index_cast %528 : i32 to index
    %c3_89 = arith.constant 3 : index
    %540 = memref.load %arg1[%539, %c3_89] : memref<8x80xf32, #tpu.memory_space<smem>>
    %541 = arith.index_cast %528 : i32 to index
    %c4_90 = arith.constant 4 : index
    %542 = memref.load %arg1[%541, %c4_90] : memref<8x80xf32, #tpu.memory_space<smem>>
    %543 = arith.index_cast %528 : i32 to index
    %c5_91 = arith.constant 5 : index
    %544 = memref.load %arg1[%543, %c5_91] : memref<8x80xf32, #tpu.memory_space<smem>>
    %545 = arith.index_cast %528 : i32 to index
    %c6_92 = arith.constant 6 : index
    %546 = memref.load %arg1[%545, %c6_92] : memref<8x80xf32, #tpu.memory_space<smem>>
    %547 = vector.broadcast %534 : f32 to vector<32x128xf32>
    %548 = arith.subf %14, %547 : vector<32x128xf32>
    %549 = vector.broadcast %536 : f32 to vector<32x128xf32>
    %550 = arith.subf %9, %549 : vector<32x128xf32>
    %551 = arith.mulf %548, %548 : vector<32x128xf32>
    %552 = arith.mulf %550, %550 : vector<32x128xf32>
    %553 = arith.addf %551, %552 : vector<32x128xf32>
    %554 = vector.broadcast %538 : f32 to vector<32x128xf32>
    %555 = arith.subf %554, %553 : vector<32x128xf32>
    %cst_93 = arith.constant 0.166666672 : f32
    %556 = vector.broadcast %cst_93 : f32 to vector<32x128xf32>
    %557 = arith.mulf %555, %556 : vector<32x128xf32>
    %cst_94 = arith.constant 5.000000e-01 : f32
    %558 = vector.broadcast %cst_94 : f32 to vector<32x128xf32>
    %559 = arith.addf %557, %558 : vector<32x128xf32>
    %cst_95 = arith.constant 0.000000e+00 : f32
    %cst_96 = arith.constant 1.000000e+00 : f32
    %560 = vector.broadcast %cst_95 : f32 to vector<32x128xf32>
    %561 = arith.maximumf %560, %559 : vector<32x128xf32>
    %562 = vector.broadcast %cst_96 : f32 to vector<32x128xf32>
    %563 = arith.minimumf %562, %561 : vector<32x128xf32>
    %564 = arith.mulf %563, %563 : vector<32x128xf32>
    %cst_97 = arith.constant 2.000000e+00 : f32
    %565 = vector.broadcast %cst_97 : f32 to vector<32x128xf32>
    %566 = arith.mulf %565, %563 : vector<32x128xf32>
    %cst_98 = arith.constant 3.000000e+00 : f32
    %567 = vector.broadcast %cst_98 : f32 to vector<32x128xf32>
    %568 = arith.subf %567, %566 : vector<32x128xf32>
    %569 = arith.mulf %564, %568 : vector<32x128xf32>
    %570 = vector.broadcast %540 : f32 to vector<32x128xf32>
    %571 = arith.mulf %570, %569 : vector<32x128xf32>
    %572 = vector.broadcast %542 : f32 to vector<32x128xf32>
    %573 = arith.mulf %571, %572 : vector<32x128xf32>
    %574 = arith.addf %529, %573 : vector<32x128xf32>
    %575 = vector.broadcast %544 : f32 to vector<32x128xf32>
    %576 = arith.mulf %571, %575 : vector<32x128xf32>
    %577 = arith.addf %530, %576 : vector<32x128xf32>
    %578 = vector.broadcast %546 : f32 to vector<32x128xf32>
    %579 = arith.mulf %571, %578 : vector<32x128xf32>
    %580 = arith.addf %531, %579 : vector<32x128xf32>
    %581 = arith.addf %532, %571 : vector<32x128xf32>
    %582 = arith.index_cast %528 : i32 to index
    %c8_99 = arith.constant 8 : index
    %583 = memref.load %arg1[%582, %c8_99] : memref<8x80xf32, #tpu.memory_space<smem>>
    %584 = arith.index_cast %528 : i32 to index
    %c9_100 = arith.constant 9 : index
    %585 = memref.load %arg1[%584, %c9_100] : memref<8x80xf32, #tpu.memory_space<smem>>
    %586 = arith.index_cast %528 : i32 to index
    %c10_101 = arith.constant 10 : index
    %587 = memref.load %arg1[%586, %c10_101] : memref<8x80xf32, #tpu.memory_space<smem>>
    %588 = arith.index_cast %528 : i32 to index
    %c11_102 = arith.constant 11 : index
    %589 = memref.load %arg1[%588, %c11_102] : memref<8x80xf32, #tpu.memory_space<smem>>
    %590 = arith.index_cast %528 : i32 to index
    %c12_103 = arith.constant 12 : index
    %591 = memref.load %arg1[%590, %c12_103] : memref<8x80xf32, #tpu.memory_space<smem>>
    %592 = arith.index_cast %528 : i32 to index
    %c13_104 = arith.constant 13 : index
    %593 = memref.load %arg1[%592, %c13_104] : memref<8x80xf32, #tpu.memory_space<smem>>
    %594 = arith.index_cast %528 : i32 to index
    %c14_105 = arith.constant 14 : index
    %595 = memref.load %arg1[%594, %c14_105] : memref<8x80xf32, #tpu.memory_space<smem>>
    %596 = vector.broadcast %583 : f32 to vector<32x128xf32>
    %597 = arith.subf %14, %596 : vector<32x128xf32>
    %598 = vector.broadcast %585 : f32 to vector<32x128xf32>
    %599 = arith.subf %9, %598 : vector<32x128xf32>
    %600 = arith.mulf %597, %597 : vector<32x128xf32>
    %601 = arith.mulf %599, %599 : vector<32x128xf32>
    %602 = arith.addf %600, %601 : vector<32x128xf32>
    %603 = vector.broadcast %587 : f32 to vector<32x128xf32>
    %604 = arith.subf %603, %602 : vector<32x128xf32>
    %cst_106 = arith.constant 0.166666672 : f32
    %605 = vector.broadcast %cst_106 : f32 to vector<32x128xf32>
    %606 = arith.mulf %604, %605 : vector<32x128xf32>
    %cst_107 = arith.constant 5.000000e-01 : f32
    %607 = vector.broadcast %cst_107 : f32 to vector<32x128xf32>
    %608 = arith.addf %606, %607 : vector<32x128xf32>
    %cst_108 = arith.constant 0.000000e+00 : f32
    %cst_109 = arith.constant 1.000000e+00 : f32
    %609 = vector.broadcast %cst_108 : f32 to vector<32x128xf32>
    %610 = arith.maximumf %609, %608 : vector<32x128xf32>
    %611 = vector.broadcast %cst_109 : f32 to vector<32x128xf32>
    %612 = arith.minimumf %611, %610 : vector<32x128xf32>
    %613 = arith.mulf %612, %612 : vector<32x128xf32>
    %cst_110 = arith.constant 2.000000e+00 : f32
    %614 = vector.broadcast %cst_110 : f32 to vector<32x128xf32>
    %615 = arith.mulf %614, %612 : vector<32x128xf32>
    %cst_111 = arith.constant 3.000000e+00 : f32
    %616 = vector.broadcast %cst_111 : f32 to vector<32x128xf32>
    %617 = arith.subf %616, %615 : vector<32x128xf32>
    %618 = arith.mulf %613, %617 : vector<32x128xf32>
    %619 = vector.broadcast %589 : f32 to vector<32x128xf32>
    %620 = arith.mulf %619, %618 : vector<32x128xf32>
    %621 = vector.broadcast %591 : f32 to vector<32x128xf32>
    %622 = arith.mulf %620, %621 : vector<32x128xf32>
    %623 = arith.addf %574, %622 : vector<32x128xf32>
    %624 = vector.broadcast %593 : f32 to vector<32x128xf32>
    %625 = arith.mulf %620, %624 : vector<32x128xf32>
    %626 = arith.addf %577, %625 : vector<32x128xf32>
    %627 = vector.broadcast %595 : f32 to vector<32x128xf32>
    %628 = arith.mulf %620, %627 : vector<32x128xf32>
    %629 = arith.addf %580, %628 : vector<32x128xf32>
    %630 = arith.addf %581, %620 : vector<32x128xf32>
    %631 = arith.index_cast %528 : i32 to index
    %c16_112 = arith.constant 16 : index
    %632 = memref.load %arg1[%631, %c16_112] : memref<8x80xf32, #tpu.memory_space<smem>>
    %633 = arith.index_cast %528 : i32 to index
    %c17_113 = arith.constant 17 : index
    %634 = memref.load %arg1[%633, %c17_113] : memref<8x80xf32, #tpu.memory_space<smem>>
    %635 = arith.index_cast %528 : i32 to index
    %c18_114 = arith.constant 18 : index
    %636 = memref.load %arg1[%635, %c18_114] : memref<8x80xf32, #tpu.memory_space<smem>>
    %637 = arith.index_cast %528 : i32 to index
    %c19_115 = arith.constant 19 : index
    %638 = memref.load %arg1[%637, %c19_115] : memref<8x80xf32, #tpu.memory_space<smem>>
    %639 = arith.index_cast %528 : i32 to index
    %c20_116 = arith.constant 20 : index
    %640 = memref.load %arg1[%639, %c20_116] : memref<8x80xf32, #tpu.memory_space<smem>>
    %641 = arith.index_cast %528 : i32 to index
    %c21_117 = arith.constant 21 : index
    %642 = memref.load %arg1[%641, %c21_117] : memref<8x80xf32, #tpu.memory_space<smem>>
    %643 = arith.index_cast %528 : i32 to index
    %c22_118 = arith.constant 22 : index
    %644 = memref.load %arg1[%643, %c22_118] : memref<8x80xf32, #tpu.memory_space<smem>>
    %645 = vector.broadcast %632 : f32 to vector<32x128xf32>
    %646 = arith.subf %14, %645 : vector<32x128xf32>
    %647 = vector.broadcast %634 : f32 to vector<32x128xf32>
    %648 = arith.subf %9, %647 : vector<32x128xf32>
    %649 = arith.mulf %646, %646 : vector<32x128xf32>
    %650 = arith.mulf %648, %648 : vector<32x128xf32>
    %651 = arith.addf %649, %650 : vector<32x128xf32>
    %652 = vector.broadcast %636 : f32 to vector<32x128xf32>
    %653 = arith.subf %652, %651 : vector<32x128xf32>
    %cst_119 = arith.constant 0.166666672 : f32
    %654 = vector.broadcast %cst_119 : f32 to vector<32x128xf32>
    %655 = arith.mulf %653, %654 : vector<32x128xf32>
    %cst_120 = arith.constant 5.000000e-01 : f32
    %656 = vector.broadcast %cst_120 : f32 to vector<32x128xf32>
    %657 = arith.addf %655, %656 : vector<32x128xf32>
    %cst_121 = arith.constant 0.000000e+00 : f32
    %cst_122 = arith.constant 1.000000e+00 : f32
    %658 = vector.broadcast %cst_121 : f32 to vector<32x128xf32>
    %659 = arith.maximumf %658, %657 : vector<32x128xf32>
    %660 = vector.broadcast %cst_122 : f32 to vector<32x128xf32>
    %661 = arith.minimumf %660, %659 : vector<32x128xf32>
    %662 = arith.mulf %661, %661 : vector<32x128xf32>
    %cst_123 = arith.constant 2.000000e+00 : f32
    %663 = vector.broadcast %cst_123 : f32 to vector<32x128xf32>
    %664 = arith.mulf %663, %661 : vector<32x128xf32>
    %cst_124 = arith.constant 3.000000e+00 : f32
    %665 = vector.broadcast %cst_124 : f32 to vector<32x128xf32>
    %666 = arith.subf %665, %664 : vector<32x128xf32>
    %667 = arith.mulf %662, %666 : vector<32x128xf32>
    %668 = vector.broadcast %638 : f32 to vector<32x128xf32>
    %669 = arith.mulf %668, %667 : vector<32x128xf32>
    %670 = vector.broadcast %640 : f32 to vector<32x128xf32>
    %671 = arith.mulf %669, %670 : vector<32x128xf32>
    %672 = arith.addf %623, %671 : vector<32x128xf32>
    %673 = vector.broadcast %642 : f32 to vector<32x128xf32>
    %674 = arith.mulf %669, %673 : vector<32x128xf32>
    %675 = arith.addf %626, %674 : vector<32x128xf32>
    %676 = vector.broadcast %644 : f32 to vector<32x128xf32>
    %677 = arith.mulf %669, %676 : vector<32x128xf32>
    %678 = arith.addf %629, %677 : vector<32x128xf32>
    %679 = arith.addf %630, %669 : vector<32x128xf32>
    %680 = arith.index_cast %528 : i32 to index
    %c24_125 = arith.constant 24 : index
    %681 = memref.load %arg1[%680, %c24_125] : memref<8x80xf32, #tpu.memory_space<smem>>
    %682 = arith.index_cast %528 : i32 to index
    %c25_126 = arith.constant 25 : index
    %683 = memref.load %arg1[%682, %c25_126] : memref<8x80xf32, #tpu.memory_space<smem>>
    %684 = arith.index_cast %528 : i32 to index
    %c26_127 = arith.constant 26 : index
    %685 = memref.load %arg1[%684, %c26_127] : memref<8x80xf32, #tpu.memory_space<smem>>
    %686 = arith.index_cast %528 : i32 to index
    %c27_128 = arith.constant 27 : index
    %687 = memref.load %arg1[%686, %c27_128] : memref<8x80xf32, #tpu.memory_space<smem>>
    %688 = arith.index_cast %528 : i32 to index
    %c28_129 = arith.constant 28 : index
    %689 = memref.load %arg1[%688, %c28_129] : memref<8x80xf32, #tpu.memory_space<smem>>
    %690 = arith.index_cast %528 : i32 to index
    %c29_130 = arith.constant 29 : index
    %691 = memref.load %arg1[%690, %c29_130] : memref<8x80xf32, #tpu.memory_space<smem>>
    %692 = arith.index_cast %528 : i32 to index
    %c30_131 = arith.constant 30 : index
    %693 = memref.load %arg1[%692, %c30_131] : memref<8x80xf32, #tpu.memory_space<smem>>
    %694 = vector.broadcast %681 : f32 to vector<32x128xf32>
    %695 = arith.subf %14, %694 : vector<32x128xf32>
    %696 = vector.broadcast %683 : f32 to vector<32x128xf32>
    %697 = arith.subf %9, %696 : vector<32x128xf32>
    %698 = arith.mulf %695, %695 : vector<32x128xf32>
    %699 = arith.mulf %697, %697 : vector<32x128xf32>
    %700 = arith.addf %698, %699 : vector<32x128xf32>
    %701 = vector.broadcast %685 : f32 to vector<32x128xf32>
    %702 = arith.subf %701, %700 : vector<32x128xf32>
    %cst_132 = arith.constant 0.166666672 : f32
    %703 = vector.broadcast %cst_132 : f32 to vector<32x128xf32>
    %704 = arith.mulf %702, %703 : vector<32x128xf32>
    %cst_133 = arith.constant 5.000000e-01 : f32
    %705 = vector.broadcast %cst_133 : f32 to vector<32x128xf32>
    %706 = arith.addf %704, %705 : vector<32x128xf32>
    %cst_134 = arith.constant 0.000000e+00 : f32
    %cst_135 = arith.constant 1.000000e+00 : f32
    %707 = vector.broadcast %cst_134 : f32 to vector<32x128xf32>
    %708 = arith.maximumf %707, %706 : vector<32x128xf32>
    %709 = vector.broadcast %cst_135 : f32 to vector<32x128xf32>
    %710 = arith.minimumf %709, %708 : vector<32x128xf32>
    %711 = arith.mulf %710, %710 : vector<32x128xf32>
    %cst_136 = arith.constant 2.000000e+00 : f32
    %712 = vector.broadcast %cst_136 : f32 to vector<32x128xf32>
    %713 = arith.mulf %712, %710 : vector<32x128xf32>
    %cst_137 = arith.constant 3.000000e+00 : f32
    %714 = vector.broadcast %cst_137 : f32 to vector<32x128xf32>
    %715 = arith.subf %714, %713 : vector<32x128xf32>
    %716 = arith.mulf %711, %715 : vector<32x128xf32>
    %717 = vector.broadcast %687 : f32 to vector<32x128xf32>
    %718 = arith.mulf %717, %716 : vector<32x128xf32>
    %719 = vector.broadcast %689 : f32 to vector<32x128xf32>
    %720 = arith.mulf %718, %719 : vector<32x128xf32>
    %721 = arith.addf %672, %720 : vector<32x128xf32>
    %722 = vector.broadcast %691 : f32 to vector<32x128xf32>
    %723 = arith.mulf %718, %722 : vector<32x128xf32>
    %724 = arith.addf %675, %723 : vector<32x128xf32>
    %725 = vector.broadcast %693 : f32 to vector<32x128xf32>
    %726 = arith.mulf %718, %725 : vector<32x128xf32>
    %727 = arith.addf %678, %726 : vector<32x128xf32>
    %728 = arith.addf %679, %718 : vector<32x128xf32>
    %729 = arith.index_cast %528 : i32 to index
    %c32_138 = arith.constant 32 : index
    %730 = memref.load %arg1[%729, %c32_138] : memref<8x80xf32, #tpu.memory_space<smem>>
    %731 = arith.index_cast %528 : i32 to index
    %c33_139 = arith.constant 33 : index
    %732 = memref.load %arg1[%731, %c33_139] : memref<8x80xf32, #tpu.memory_space<smem>>
    %733 = arith.index_cast %528 : i32 to index
    %c34_140 = arith.constant 34 : index
    %734 = memref.load %arg1[%733, %c34_140] : memref<8x80xf32, #tpu.memory_space<smem>>
    %735 = arith.index_cast %528 : i32 to index
    %c35_141 = arith.constant 35 : index
    %736 = memref.load %arg1[%735, %c35_141] : memref<8x80xf32, #tpu.memory_space<smem>>
    %737 = arith.index_cast %528 : i32 to index
    %c36_142 = arith.constant 36 : index
    %738 = memref.load %arg1[%737, %c36_142] : memref<8x80xf32, #tpu.memory_space<smem>>
    %739 = arith.index_cast %528 : i32 to index
    %c37_143 = arith.constant 37 : index
    %740 = memref.load %arg1[%739, %c37_143] : memref<8x80xf32, #tpu.memory_space<smem>>
    %741 = arith.index_cast %528 : i32 to index
    %c38_144 = arith.constant 38 : index
    %742 = memref.load %arg1[%741, %c38_144] : memref<8x80xf32, #tpu.memory_space<smem>>
    %743 = vector.broadcast %730 : f32 to vector<32x128xf32>
    %744 = arith.subf %14, %743 : vector<32x128xf32>
    %745 = vector.broadcast %732 : f32 to vector<32x128xf32>
    %746 = arith.subf %9, %745 : vector<32x128xf32>
    %747 = arith.mulf %744, %744 : vector<32x128xf32>
    %748 = arith.mulf %746, %746 : vector<32x128xf32>
    %749 = arith.addf %747, %748 : vector<32x128xf32>
    %750 = vector.broadcast %734 : f32 to vector<32x128xf32>
    %751 = arith.subf %750, %749 : vector<32x128xf32>
    %cst_145 = arith.constant 0.166666672 : f32
    %752 = vector.broadcast %cst_145 : f32 to vector<32x128xf32>
    %753 = arith.mulf %751, %752 : vector<32x128xf32>
    %cst_146 = arith.constant 5.000000e-01 : f32
    %754 = vector.broadcast %cst_146 : f32 to vector<32x128xf32>
    %755 = arith.addf %753, %754 : vector<32x128xf32>
    %cst_147 = arith.constant 0.000000e+00 : f32
    %cst_148 = arith.constant 1.000000e+00 : f32
    %756 = vector.broadcast %cst_147 : f32 to vector<32x128xf32>
    %757 = arith.maximumf %756, %755 : vector<32x128xf32>
    %758 = vector.broadcast %cst_148 : f32 to vector<32x128xf32>
    %759 = arith.minimumf %758, %757 : vector<32x128xf32>
    %760 = arith.mulf %759, %759 : vector<32x128xf32>
    %cst_149 = arith.constant 2.000000e+00 : f32
    %761 = vector.broadcast %cst_149 : f32 to vector<32x128xf32>
    %762 = arith.mulf %761, %759 : vector<32x128xf32>
    %cst_150 = arith.constant 3.000000e+00 : f32
    %763 = vector.broadcast %cst_150 : f32 to vector<32x128xf32>
    %764 = arith.subf %763, %762 : vector<32x128xf32>
    %765 = arith.mulf %760, %764 : vector<32x128xf32>
    %766 = vector.broadcast %736 : f32 to vector<32x128xf32>
    %767 = arith.mulf %766, %765 : vector<32x128xf32>
    %768 = vector.broadcast %738 : f32 to vector<32x128xf32>
    %769 = arith.mulf %767, %768 : vector<32x128xf32>
    %770 = arith.addf %721, %769 : vector<32x128xf32>
    %771 = vector.broadcast %740 : f32 to vector<32x128xf32>
    %772 = arith.mulf %767, %771 : vector<32x128xf32>
    %773 = arith.addf %724, %772 : vector<32x128xf32>
    %774 = vector.broadcast %742 : f32 to vector<32x128xf32>
    %775 = arith.mulf %767, %774 : vector<32x128xf32>
    %776 = arith.addf %727, %775 : vector<32x128xf32>
    %777 = arith.addf %728, %767 : vector<32x128xf32>
    %778 = arith.index_cast %528 : i32 to index
    %c40_151 = arith.constant 40 : index
    %779 = memref.load %arg1[%778, %c40_151] : memref<8x80xf32, #tpu.memory_space<smem>>
    %780 = arith.index_cast %528 : i32 to index
    %c41_152 = arith.constant 41 : index
    %781 = memref.load %arg1[%780, %c41_152] : memref<8x80xf32, #tpu.memory_space<smem>>
    %782 = arith.index_cast %528 : i32 to index
    %c42_153 = arith.constant 42 : index
    %783 = memref.load %arg1[%782, %c42_153] : memref<8x80xf32, #tpu.memory_space<smem>>
    %784 = arith.index_cast %528 : i32 to index
    %c43_154 = arith.constant 43 : index
    %785 = memref.load %arg1[%784, %c43_154] : memref<8x80xf32, #tpu.memory_space<smem>>
    %786 = arith.index_cast %528 : i32 to index
    %c44_155 = arith.constant 44 : index
    %787 = memref.load %arg1[%786, %c44_155] : memref<8x80xf32, #tpu.memory_space<smem>>
    %788 = arith.index_cast %528 : i32 to index
    %c45_156 = arith.constant 45 : index
    %789 = memref.load %arg1[%788, %c45_156] : memref<8x80xf32, #tpu.memory_space<smem>>
    %790 = arith.index_cast %528 : i32 to index
    %c46_157 = arith.constant 46 : index
    %791 = memref.load %arg1[%790, %c46_157] : memref<8x80xf32, #tpu.memory_space<smem>>
    %792 = vector.broadcast %779 : f32 to vector<32x128xf32>
    %793 = arith.subf %14, %792 : vector<32x128xf32>
    %794 = vector.broadcast %781 : f32 to vector<32x128xf32>
    %795 = arith.subf %9, %794 : vector<32x128xf32>
    %796 = arith.mulf %793, %793 : vector<32x128xf32>
    %797 = arith.mulf %795, %795 : vector<32x128xf32>
    %798 = arith.addf %796, %797 : vector<32x128xf32>
    %799 = vector.broadcast %783 : f32 to vector<32x128xf32>
    %800 = arith.subf %799, %798 : vector<32x128xf32>
    %cst_158 = arith.constant 0.166666672 : f32
    %801 = vector.broadcast %cst_158 : f32 to vector<32x128xf32>
    %802 = arith.mulf %800, %801 : vector<32x128xf32>
    %cst_159 = arith.constant 5.000000e-01 : f32
    %803 = vector.broadcast %cst_159 : f32 to vector<32x128xf32>
    %804 = arith.addf %802, %803 : vector<32x128xf32>
    %cst_160 = arith.constant 0.000000e+00 : f32
    %cst_161 = arith.constant 1.000000e+00 : f32
    %805 = vector.broadcast %cst_160 : f32 to vector<32x128xf32>
    %806 = arith.maximumf %805, %804 : vector<32x128xf32>
    %807 = vector.broadcast %cst_161 : f32 to vector<32x128xf32>
    %808 = arith.minimumf %807, %806 : vector<32x128xf32>
    %809 = arith.mulf %808, %808 : vector<32x128xf32>
    %cst_162 = arith.constant 2.000000e+00 : f32
    %810 = vector.broadcast %cst_162 : f32 to vector<32x128xf32>
    %811 = arith.mulf %810, %808 : vector<32x128xf32>
    %cst_163 = arith.constant 3.000000e+00 : f32
    %812 = vector.broadcast %cst_163 : f32 to vector<32x128xf32>
    %813 = arith.subf %812, %811 : vector<32x128xf32>
    %814 = arith.mulf %809, %813 : vector<32x128xf32>
    %815 = vector.broadcast %785 : f32 to vector<32x128xf32>
    %816 = arith.mulf %815, %814 : vector<32x128xf32>
    %817 = vector.broadcast %787 : f32 to vector<32x128xf32>
    %818 = arith.mulf %816, %817 : vector<32x128xf32>
    %819 = arith.addf %770, %818 : vector<32x128xf32>
    %820 = vector.broadcast %789 : f32 to vector<32x128xf32>
    %821 = arith.mulf %816, %820 : vector<32x128xf32>
    %822 = arith.addf %773, %821 : vector<32x128xf32>
    %823 = vector.broadcast %791 : f32 to vector<32x128xf32>
    %824 = arith.mulf %816, %823 : vector<32x128xf32>
    %825 = arith.addf %776, %824 : vector<32x128xf32>
    %826 = arith.addf %777, %816 : vector<32x128xf32>
    %827 = arith.index_cast %528 : i32 to index
    %c48_164 = arith.constant 48 : index
    %828 = memref.load %arg1[%827, %c48_164] : memref<8x80xf32, #tpu.memory_space<smem>>
    %829 = arith.index_cast %528 : i32 to index
    %c49_165 = arith.constant 49 : index
    %830 = memref.load %arg1[%829, %c49_165] : memref<8x80xf32, #tpu.memory_space<smem>>
    %831 = arith.index_cast %528 : i32 to index
    %c50_166 = arith.constant 50 : index
    %832 = memref.load %arg1[%831, %c50_166] : memref<8x80xf32, #tpu.memory_space<smem>>
    %833 = arith.index_cast %528 : i32 to index
    %c51_167 = arith.constant 51 : index
    %834 = memref.load %arg1[%833, %c51_167] : memref<8x80xf32, #tpu.memory_space<smem>>
    %835 = arith.index_cast %528 : i32 to index
    %c52_168 = arith.constant 52 : index
    %836 = memref.load %arg1[%835, %c52_168] : memref<8x80xf32, #tpu.memory_space<smem>>
    %837 = arith.index_cast %528 : i32 to index
    %c53_169 = arith.constant 53 : index
    %838 = memref.load %arg1[%837, %c53_169] : memref<8x80xf32, #tpu.memory_space<smem>>
    %839 = arith.index_cast %528 : i32 to index
    %c54_170 = arith.constant 54 : index
    %840 = memref.load %arg1[%839, %c54_170] : memref<8x80xf32, #tpu.memory_space<smem>>
    %841 = vector.broadcast %828 : f32 to vector<32x128xf32>
    %842 = arith.subf %14, %841 : vector<32x128xf32>
    %843 = vector.broadcast %830 : f32 to vector<32x128xf32>
    %844 = arith.subf %9, %843 : vector<32x128xf32>
    %845 = arith.mulf %842, %842 : vector<32x128xf32>
    %846 = arith.mulf %844, %844 : vector<32x128xf32>
    %847 = arith.addf %845, %846 : vector<32x128xf32>
    %848 = vector.broadcast %832 : f32 to vector<32x128xf32>
    %849 = arith.subf %848, %847 : vector<32x128xf32>
    %cst_171 = arith.constant 0.166666672 : f32
    %850 = vector.broadcast %cst_171 : f32 to vector<32x128xf32>
    %851 = arith.mulf %849, %850 : vector<32x128xf32>
    %cst_172 = arith.constant 5.000000e-01 : f32
    %852 = vector.broadcast %cst_172 : f32 to vector<32x128xf32>
    %853 = arith.addf %851, %852 : vector<32x128xf32>
    %cst_173 = arith.constant 0.000000e+00 : f32
    %cst_174 = arith.constant 1.000000e+00 : f32
    %854 = vector.broadcast %cst_173 : f32 to vector<32x128xf32>
    %855 = arith.maximumf %854, %853 : vector<32x128xf32>
    %856 = vector.broadcast %cst_174 : f32 to vector<32x128xf32>
    %857 = arith.minimumf %856, %855 : vector<32x128xf32>
    %858 = arith.mulf %857, %857 : vector<32x128xf32>
    %cst_175 = arith.constant 2.000000e+00 : f32
    %859 = vector.broadcast %cst_175 : f32 to vector<32x128xf32>
    %860 = arith.mulf %859, %857 : vector<32x128xf32>
    %cst_176 = arith.constant 3.000000e+00 : f32
    %861 = vector.broadcast %cst_176 : f32 to vector<32x128xf32>
    %862 = arith.subf %861, %860 : vector<32x128xf32>
    %863 = arith.mulf %858, %862 : vector<32x128xf32>
    %864 = vector.broadcast %834 : f32 to vector<32x128xf32>
    %865 = arith.mulf %864, %863 : vector<32x128xf32>
    %866 = vector.broadcast %836 : f32 to vector<32x128xf32>
    %867 = arith.mulf %865, %866 : vector<32x128xf32>
    %868 = arith.addf %819, %867 : vector<32x128xf32>
    %869 = vector.broadcast %838 : f32 to vector<32x128xf32>
    %870 = arith.mulf %865, %869 : vector<32x128xf32>
    %871 = arith.addf %822, %870 : vector<32x128xf32>
    %872 = vector.broadcast %840 : f32 to vector<32x128xf32>
    %873 = arith.mulf %865, %872 : vector<32x128xf32>
    %874 = arith.addf %825, %873 : vector<32x128xf32>
    %875 = arith.addf %826, %865 : vector<32x128xf32>
    %876 = arith.index_cast %528 : i32 to index
    %c56_177 = arith.constant 56 : index
    %877 = memref.load %arg1[%876, %c56_177] : memref<8x80xf32, #tpu.memory_space<smem>>
    %878 = arith.index_cast %528 : i32 to index
    %c57_178 = arith.constant 57 : index
    %879 = memref.load %arg1[%878, %c57_178] : memref<8x80xf32, #tpu.memory_space<smem>>
    %880 = arith.index_cast %528 : i32 to index
    %c58_179 = arith.constant 58 : index
    %881 = memref.load %arg1[%880, %c58_179] : memref<8x80xf32, #tpu.memory_space<smem>>
    %882 = arith.index_cast %528 : i32 to index
    %c59_180 = arith.constant 59 : index
    %883 = memref.load %arg1[%882, %c59_180] : memref<8x80xf32, #tpu.memory_space<smem>>
    %884 = arith.index_cast %528 : i32 to index
    %c60_181 = arith.constant 60 : index
    %885 = memref.load %arg1[%884, %c60_181] : memref<8x80xf32, #tpu.memory_space<smem>>
    %886 = arith.index_cast %528 : i32 to index
    %c61_182 = arith.constant 61 : index
    %887 = memref.load %arg1[%886, %c61_182] : memref<8x80xf32, #tpu.memory_space<smem>>
    %888 = arith.index_cast %528 : i32 to index
    %c62_183 = arith.constant 62 : index
    %889 = memref.load %arg1[%888, %c62_183] : memref<8x80xf32, #tpu.memory_space<smem>>
    %890 = vector.broadcast %877 : f32 to vector<32x128xf32>
    %891 = arith.subf %14, %890 : vector<32x128xf32>
    %892 = vector.broadcast %879 : f32 to vector<32x128xf32>
    %893 = arith.subf %9, %892 : vector<32x128xf32>
    %894 = arith.mulf %891, %891 : vector<32x128xf32>
    %895 = arith.mulf %893, %893 : vector<32x128xf32>
    %896 = arith.addf %894, %895 : vector<32x128xf32>
    %897 = vector.broadcast %881 : f32 to vector<32x128xf32>
    %898 = arith.subf %897, %896 : vector<32x128xf32>
    %cst_184 = arith.constant 0.166666672 : f32
    %899 = vector.broadcast %cst_184 : f32 to vector<32x128xf32>
    %900 = arith.mulf %898, %899 : vector<32x128xf32>
    %cst_185 = arith.constant 5.000000e-01 : f32
    %901 = vector.broadcast %cst_185 : f32 to vector<32x128xf32>
    %902 = arith.addf %900, %901 : vector<32x128xf32>
    %cst_186 = arith.constant 0.000000e+00 : f32
    %cst_187 = arith.constant 1.000000e+00 : f32
    %903 = vector.broadcast %cst_186 : f32 to vector<32x128xf32>
    %904 = arith.maximumf %903, %902 : vector<32x128xf32>
    %905 = vector.broadcast %cst_187 : f32 to vector<32x128xf32>
    %906 = arith.minimumf %905, %904 : vector<32x128xf32>
    %907 = arith.mulf %906, %906 : vector<32x128xf32>
    %cst_188 = arith.constant 2.000000e+00 : f32
    %908 = vector.broadcast %cst_188 : f32 to vector<32x128xf32>
    %909 = arith.mulf %908, %906 : vector<32x128xf32>
    %cst_189 = arith.constant 3.000000e+00 : f32
    %910 = vector.broadcast %cst_189 : f32 to vector<32x128xf32>
    %911 = arith.subf %910, %909 : vector<32x128xf32>
    %912 = arith.mulf %907, %911 : vector<32x128xf32>
    %913 = vector.broadcast %883 : f32 to vector<32x128xf32>
    %914 = arith.mulf %913, %912 : vector<32x128xf32>
    %915 = vector.broadcast %885 : f32 to vector<32x128xf32>
    %916 = arith.mulf %914, %915 : vector<32x128xf32>
    %917 = arith.addf %868, %916 : vector<32x128xf32>
    %918 = vector.broadcast %887 : f32 to vector<32x128xf32>
    %919 = arith.mulf %914, %918 : vector<32x128xf32>
    %920 = arith.addf %871, %919 : vector<32x128xf32>
    %921 = vector.broadcast %889 : f32 to vector<32x128xf32>
    %922 = arith.mulf %914, %921 : vector<32x128xf32>
    %923 = arith.addf %874, %922 : vector<32x128xf32>
    %924 = arith.addf %875, %914 : vector<32x128xf32>
    %925 = arith.index_cast %528 : i32 to index
    %c64_190 = arith.constant 64 : index
    %926 = memref.load %arg1[%925, %c64_190] : memref<8x80xf32, #tpu.memory_space<smem>>
    %927 = arith.index_cast %528 : i32 to index
    %c65_191 = arith.constant 65 : index
    %928 = memref.load %arg1[%927, %c65_191] : memref<8x80xf32, #tpu.memory_space<smem>>
    %929 = arith.index_cast %528 : i32 to index
    %c66_192 = arith.constant 66 : index
    %930 = memref.load %arg1[%929, %c66_192] : memref<8x80xf32, #tpu.memory_space<smem>>
    %931 = arith.index_cast %528 : i32 to index
    %c67_193 = arith.constant 67 : index
    %932 = memref.load %arg1[%931, %c67_193] : memref<8x80xf32, #tpu.memory_space<smem>>
    %933 = arith.index_cast %528 : i32 to index
    %c68_194 = arith.constant 68 : index
    %934 = memref.load %arg1[%933, %c68_194] : memref<8x80xf32, #tpu.memory_space<smem>>
    %935 = arith.index_cast %528 : i32 to index
    %c69_195 = arith.constant 69 : index
    %936 = memref.load %arg1[%935, %c69_195] : memref<8x80xf32, #tpu.memory_space<smem>>
    %937 = arith.index_cast %528 : i32 to index
    %c70_196 = arith.constant 70 : index
    %938 = memref.load %arg1[%937, %c70_196] : memref<8x80xf32, #tpu.memory_space<smem>>
    %939 = vector.broadcast %926 : f32 to vector<32x128xf32>
    %940 = arith.subf %14, %939 : vector<32x128xf32>
    %941 = vector.broadcast %928 : f32 to vector<32x128xf32>
    %942 = arith.subf %9, %941 : vector<32x128xf32>
    %943 = arith.mulf %940, %940 : vector<32x128xf32>
    %944 = arith.mulf %942, %942 : vector<32x128xf32>
    %945 = arith.addf %943, %944 : vector<32x128xf32>
    %946 = vector.broadcast %930 : f32 to vector<32x128xf32>
    %947 = arith.subf %946, %945 : vector<32x128xf32>
    %cst_197 = arith.constant 0.166666672 : f32
    %948 = vector.broadcast %cst_197 : f32 to vector<32x128xf32>
    %949 = arith.mulf %947, %948 : vector<32x128xf32>
    %cst_198 = arith.constant 5.000000e-01 : f32
    %950 = vector.broadcast %cst_198 : f32 to vector<32x128xf32>
    %951 = arith.addf %949, %950 : vector<32x128xf32>
    %cst_199 = arith.constant 0.000000e+00 : f32
    %cst_200 = arith.constant 1.000000e+00 : f32
    %952 = vector.broadcast %cst_199 : f32 to vector<32x128xf32>
    %953 = arith.maximumf %952, %951 : vector<32x128xf32>
    %954 = vector.broadcast %cst_200 : f32 to vector<32x128xf32>
    %955 = arith.minimumf %954, %953 : vector<32x128xf32>
    %956 = arith.mulf %955, %955 : vector<32x128xf32>
    %cst_201 = arith.constant 2.000000e+00 : f32
    %957 = vector.broadcast %cst_201 : f32 to vector<32x128xf32>
    %958 = arith.mulf %957, %955 : vector<32x128xf32>
    %cst_202 = arith.constant 3.000000e+00 : f32
    %959 = vector.broadcast %cst_202 : f32 to vector<32x128xf32>
    %960 = arith.subf %959, %958 : vector<32x128xf32>
    %961 = arith.mulf %956, %960 : vector<32x128xf32>
    %962 = vector.broadcast %932 : f32 to vector<32x128xf32>
    %963 = arith.mulf %962, %961 : vector<32x128xf32>
    %964 = vector.broadcast %934 : f32 to vector<32x128xf32>
    %965 = arith.mulf %963, %964 : vector<32x128xf32>
    %966 = arith.addf %917, %965 : vector<32x128xf32>
    %967 = vector.broadcast %936 : f32 to vector<32x128xf32>
    %968 = arith.mulf %963, %967 : vector<32x128xf32>
    %969 = arith.addf %920, %968 : vector<32x128xf32>
    %970 = vector.broadcast %938 : f32 to vector<32x128xf32>
    %971 = arith.mulf %963, %970 : vector<32x128xf32>
    %972 = arith.addf %923, %971 : vector<32x128xf32>
    %973 = arith.addf %924, %963 : vector<32x128xf32>
    %974 = arith.index_cast %528 : i32 to index
    %c72_203 = arith.constant 72 : index
    %975 = memref.load %arg1[%974, %c72_203] : memref<8x80xf32, #tpu.memory_space<smem>>
    %976 = arith.index_cast %528 : i32 to index
    %c73_204 = arith.constant 73 : index
    %977 = memref.load %arg1[%976, %c73_204] : memref<8x80xf32, #tpu.memory_space<smem>>
    %978 = arith.index_cast %528 : i32 to index
    %c74_205 = arith.constant 74 : index
    %979 = memref.load %arg1[%978, %c74_205] : memref<8x80xf32, #tpu.memory_space<smem>>
    %980 = arith.index_cast %528 : i32 to index
    %c75_206 = arith.constant 75 : index
    %981 = memref.load %arg1[%980, %c75_206] : memref<8x80xf32, #tpu.memory_space<smem>>
    %982 = arith.index_cast %528 : i32 to index
    %c76_207 = arith.constant 76 : index
    %983 = memref.load %arg1[%982, %c76_207] : memref<8x80xf32, #tpu.memory_space<smem>>
    %984 = arith.index_cast %528 : i32 to index
    %c77_208 = arith.constant 77 : index
    %985 = memref.load %arg1[%984, %c77_208] : memref<8x80xf32, #tpu.memory_space<smem>>
    %986 = arith.index_cast %528 : i32 to index
    %c78_209 = arith.constant 78 : index
    %987 = memref.load %arg1[%986, %c78_209] : memref<8x80xf32, #tpu.memory_space<smem>>
    %988 = vector.broadcast %975 : f32 to vector<32x128xf32>
    %989 = arith.subf %14, %988 : vector<32x128xf32>
    %990 = vector.broadcast %977 : f32 to vector<32x128xf32>
    %991 = arith.subf %9, %990 : vector<32x128xf32>
    %992 = arith.mulf %989, %989 : vector<32x128xf32>
    %993 = arith.mulf %991, %991 : vector<32x128xf32>
    %994 = arith.addf %992, %993 : vector<32x128xf32>
    %995 = vector.broadcast %979 : f32 to vector<32x128xf32>
    %996 = arith.subf %995, %994 : vector<32x128xf32>
    %cst_210 = arith.constant 0.166666672 : f32
    %997 = vector.broadcast %cst_210 : f32 to vector<32x128xf32>
    %998 = arith.mulf %996, %997 : vector<32x128xf32>
    %cst_211 = arith.constant 5.000000e-01 : f32
    %999 = vector.broadcast %cst_211 : f32 to vector<32x128xf32>
    %1000 = arith.addf %998, %999 : vector<32x128xf32>
    %cst_212 = arith.constant 0.000000e+00 : f32
    %cst_213 = arith.constant 1.000000e+00 : f32
    %1001 = vector.broadcast %cst_212 : f32 to vector<32x128xf32>
    %1002 = arith.maximumf %1001, %1000 : vector<32x128xf32>
    %1003 = vector.broadcast %cst_213 : f32 to vector<32x128xf32>
    %1004 = arith.minimumf %1003, %1002 : vector<32x128xf32>
    %1005 = arith.mulf %1004, %1004 : vector<32x128xf32>
    %cst_214 = arith.constant 2.000000e+00 : f32
    %1006 = vector.broadcast %cst_214 : f32 to vector<32x128xf32>
    %1007 = arith.mulf %1006, %1004 : vector<32x128xf32>
    %cst_215 = arith.constant 3.000000e+00 : f32
    %1008 = vector.broadcast %cst_215 : f32 to vector<32x128xf32>
    %1009 = arith.subf %1008, %1007 : vector<32x128xf32>
    %1010 = arith.mulf %1005, %1009 : vector<32x128xf32>
    %1011 = vector.broadcast %981 : f32 to vector<32x128xf32>
    %1012 = arith.mulf %1011, %1010 : vector<32x128xf32>
    %1013 = vector.broadcast %983 : f32 to vector<32x128xf32>
    %1014 = arith.mulf %1012, %1013 : vector<32x128xf32>
    %1015 = arith.addf %966, %1014 : vector<32x128xf32>
    %1016 = vector.broadcast %985 : f32 to vector<32x128xf32>
    %1017 = arith.mulf %1012, %1016 : vector<32x128xf32>
    %1018 = arith.addf %969, %1017 : vector<32x128xf32>
    %1019 = vector.broadcast %987 : f32 to vector<32x128xf32>
    %1020 = arith.mulf %1012, %1019 : vector<32x128xf32>
    %1021 = arith.addf %972, %1020 : vector<32x128xf32>
    %1022 = arith.addf %973, %1012 : vector<32x128xf32>
    %1023 = tpu.reciprocal %1022 {approx = true} : vector<32x128xf32> -> vector<32x128xf32>
    %1024 = arith.mulf %1015, %1023 : vector<32x128xf32>
    %c1_216 = arith.constant 1 : index
    %c0_217 = arith.constant 0 : index
    %c0_218 = arith.constant 0 : index
    %c0_219 = arith.constant 0 : index
    %1025 = vector.load %arg2[%c1_216, %c0_217, %c0_218, %c0_219] : memref<4x4x32x128xf32, #tpu.memory_space<vmem>>, vector<1x1x32x128xf32>
    %1026 = vector.shape_cast %1025 : vector<1x1x32x128xf32> to vector<32x128xf32>
    %1027 = vector.shape_cast %1024 : vector<32x128xf32> to vector<1x1x32x128xf32>
    tpu.vector_store %arg2[%c1_216, %c0_217, %c0_218, %c0_219], %1027 {strides = array<i32>} : memref<4x4x32x128xf32, #tpu.memory_space<vmem>>, vector<1x1x32x128xf32>,
    %1028 = arith.mulf %1018, %1023 : vector<32x128xf32>
    %c1_220 = arith.constant 1 : index
    %c1_221 = arith.constant 1 : index
    %c0_222 = arith.constant 0 : index
    %c0_223 = arith.constant 0 : index
    %1029 = vector.load %arg2[%c1_220, %c1_221, %c0_222, %c0_223] : memref<4x4x32x128xf32, #tpu.memory_space<vmem>>, vector<1x1x32x128xf32>
    %1030 = vector.shape_cast %1029 : vector<1x1x32x128xf32> to vector<32x128xf32>
    %1031 = vector.shape_cast %1028 : vector<32x128xf32> to vector<1x1x32x128xf32>
    tpu.vector_store %arg2[%c1_220, %c1_221, %c0_222, %c0_223], %1031 {strides = array<i32>} : memref<4x4x32x128xf32, #tpu.memory_space<vmem>>, vector<1x1x32x128xf32>,
    %1032 = arith.mulf %1021, %1023 : vector<32x128xf32>
    %c1_224 = arith.constant 1 : index
    %c2_225 = arith.constant 2 : index
    %c0_226 = arith.constant 0 : index
    %c0_227 = arith.constant 0 : index
    %1033 = vector.load %arg2[%c1_224, %c2_225, %c0_226, %c0_227] : memref<4x4x32x128xf32, #tpu.memory_space<vmem>>, vector<1x1x32x128xf32>
    %1034 = vector.shape_cast %1033 : vector<1x1x32x128xf32> to vector<32x128xf32>
    %1035 = vector.shape_cast %1032 : vector<32x128xf32> to vector<1x1x32x128xf32>
    tpu.vector_store %arg2[%c1_224, %c2_225, %c0_226, %c0_227], %1035 {strides = array<i32>} : memref<4x4x32x128xf32, #tpu.memory_space<vmem>>, vector<1x1x32x128xf32>,
    %c1_228 = arith.constant 1 : index
    %c3_229 = arith.constant 3 : index
    %c0_230 = arith.constant 0 : index
    %c0_231 = arith.constant 0 : index
    %1036 = vector.load %arg2[%c1_228, %c3_229, %c0_230, %c0_231] : memref<4x4x32x128xf32, #tpu.memory_space<vmem>>, vector<1x1x32x128xf32>
    %1037 = vector.shape_cast %1036 : vector<1x1x32x128xf32> to vector<32x128xf32>
    %1038 = vector.shape_cast %1022 : vector<32x128xf32> to vector<1x1x32x128xf32>
    tpu.vector_store %arg2[%c1_228, %c3_229, %c0_230, %c0_231], %1038 {strides = array<i32>} : memref<4x4x32x128xf32, #tpu.memory_space<vmem>>, vector<1x1x32x128xf32>,
    %c4_i32_232 = arith.constant 4 : i32
    %1039 = arith.muli %arg0, %c4_i32_232 : i32
    %c2_i32 = arith.constant 2 : i32
    %1040 = arith.addi %1039, %c2_i32 : i32
    %cst_233 = arith.constant 0.000000e+00 : f32
    %1041 = vector.broadcast %cst_233 : f32 to vector<32x128xf32>
    %cst_234 = arith.constant 0.000000e+00 : f32
    %1042 = vector.broadcast %cst_234 : f32 to vector<32x128xf32>
    %cst_235 = arith.constant 0.000000e+00 : f32
    %1043 = vector.broadcast %cst_235 : f32 to vector<32x128xf32>
    %cst_236 = arith.constant 9.99999974E-6 : f32
    %1044 = vector.broadcast %cst_236 : f32 to vector<32x128xf32>
    %1045 = arith.index_cast %1040 : i32 to index
    %c0_237 = arith.constant 0 : index
    %1046 = memref.load %arg1[%1045, %c0_237] : memref<8x80xf32, #tpu.memory_space<smem>>
    %1047 = arith.index_cast %1040 : i32 to index
    %c1_238 = arith.constant 1 : index
    %1048 = memref.load %arg1[%1047, %c1_238] : memref<8x80xf32, #tpu.memory_space<smem>>
    %1049 = arith.index_cast %1040 : i32 to index
    %c2_239 = arith.constant 2 : index
    %1050 = memref.load %arg1[%1049, %c2_239] : memref<8x80xf32, #tpu.memory_space<smem>>
    %1051 = arith.index_cast %1040 : i32 to index
    %c3_240 = arith.constant 3 : index
    %1052 = memref.load %arg1[%1051, %c3_240] : memref<8x80xf32, #tpu.memory_space<smem>>
    %1053 = arith.index_cast %1040 : i32 to index
    %c4_241 = arith.constant 4 : index
    %1054 = memref.load %arg1[%1053, %c4_241] : memref<8x80xf32, #tpu.memory_space<smem>>
    %1055 = arith.index_cast %1040 : i32 to index
    %c5_242 = arith.constant 5 : index
    %1056 = memref.load %arg1[%1055, %c5_242] : memref<8x80xf32, #tpu.memory_space<smem>>
    %1057 = arith.index_cast %1040 : i32 to index
    %c6_243 = arith.constant 6 : index
    %1058 = memref.load %arg1[%1057, %c6_243] : memref<8x80xf32, #tpu.memory_space<smem>>
    %1059 = vector.broadcast %1046 : f32 to vector<32x128xf32>
    %1060 = arith.subf %14, %1059 : vector<32x128xf32>
    %1061 = vector.broadcast %1048 : f32 to vector<32x128xf32>
    %1062 = arith.subf %9, %1061 : vector<32x128xf32>
    %1063 = arith.mulf %1060, %1060 : vector<32x128xf32>
    %1064 = arith.mulf %1062, %1062 : vector<32x128xf32>
    %1065 = arith.addf %1063, %1064 : vector<32x128xf32>
    %1066 = vector.broadcast %1050 : f32 to vector<32x128xf32>
    %1067 = arith.subf %1066, %1065 : vector<32x128xf32>
    %cst_244 = arith.constant 0.166666672 : f32
    %1068 = vector.broadcast %cst_244 : f32 to vector<32x128xf32>
    %1069 = arith.mulf %1067, %1068 : vector<32x128xf32>
    %cst_245 = arith.constant 5.000000e-01 : f32
    %1070 = vector.broadcast %cst_245 : f32 to vector<32x128xf32>
    %1071 = arith.addf %1069, %1070 : vector<32x128xf32>
    %cst_246 = arith.constant 0.000000e+00 : f32
    %cst_247 = arith.constant 1.000000e+00 : f32
    %1072 = vector.broadcast %cst_246 : f32 to vector<32x128xf32>
    %1073 = arith.maximumf %1072, %1071 : vector<32x128xf32>
    %1074 = vector.broadcast %cst_247 : f32 to vector<32x128xf32>
    %1075 = arith.minimumf %1074, %1073 : vector<32x128xf32>
    %1076 = arith.mulf %1075, %1075 : vector<32x128xf32>
    %cst_248 = arith.constant 2.000000e+00 : f32
    %1077 = vector.broadcast %cst_248 : f32 to vector<32x128xf32>
    %1078 = arith.mulf %1077, %1075 : vector<32x128xf32>
    %cst_249 = arith.constant 3.000000e+00 : f32
    %1079 = vector.broadcast %cst_249 : f32 to vector<32x128xf32>
    %1080 = arith.subf %1079, %1078 : vector<32x128xf32>
    %1081 = arith.mulf %1076, %1080 : vector<32x128xf32>
    %1082 = vector.broadcast %1052 : f32 to vector<32x128xf32>
    %1083 = arith.mulf %1082, %1081 : vector<32x128xf32>
    %1084 = vector.broadcast %1054 : f32 to vector<32x128xf32>
    %1085 = arith.mulf %1083, %1084 : vector<32x128xf32>
    %1086 = arith.addf %1041, %1085 : vector<32x128xf32>
    %1087 = vector.broadcast %1056 : f32 to vector<32x128xf32>
    %1088 = arith.mulf %1083, %1087 : vector<32x128xf32>
    %1089 = arith.addf %1042, %1088 : vector<32x128xf32>
    %1090 = vector.broadcast %1058 : f32 to vector<32x128xf32>
    %1091 = arith.mulf %1083, %1090 : vector<32x128xf32>
    %1092 = arith.addf %1043, %1091 : vector<32x128xf32>
    %1093 = arith.addf %1044, %1083 : vector<32x128xf32>
    %1094 = arith.index_cast %1040 : i32 to index
    %c8_250 = arith.constant 8 : index
    %1095 = memref.load %arg1[%1094, %c8_250] : memref<8x80xf32, #tpu.memory_space<smem>>
    %1096 = arith.index_cast %1040 : i32 to index
    %c9_251 = arith.constant 9 : index
    %1097 = memref.load %arg1[%1096, %c9_251] : memref<8x80xf32, #tpu.memory_space<smem>>
    %1098 = arith.index_cast %1040 : i32 to index
    %c10_252 = arith.constant 10 : index
    %1099 = memref.load %arg1[%1098, %c10_252] : memref<8x80xf32, #tpu.memory_space<smem>>
    %1100 = arith.index_cast %1040 : i32 to index
    %c11_253 = arith.constant 11 : index
    %1101 = memref.load %arg1[%1100, %c11_253] : memref<8x80xf32, #tpu.memory_space<smem>>
    %1102 = arith.index_cast %1040 : i32 to index
    %c12_254 = arith.constant 12 : index
    %1103 = memref.load %arg1[%1102, %c12_254] : memref<8x80xf32, #tpu.memory_space<smem>>
    %1104 = arith.index_cast %1040 : i32 to index
    %c13_255 = arith.constant 13 : index
    %1105 = memref.load %arg1[%1104, %c13_255] : memref<8x80xf32, #tpu.memory_space<smem>>
    %1106 = arith.index_cast %1040 : i32 to index
    %c14_256 = arith.constant 14 : index
    %1107 = memref.load %arg1[%1106, %c14_256] : memref<8x80xf32, #tpu.memory_space<smem>>
    %1108 = vector.broadcast %1095 : f32 to vector<32x128xf32>
    %1109 = arith.subf %14, %1108 : vector<32x128xf32>
    %1110 = vector.broadcast %1097 : f32 to vector<32x128xf32>
    %1111 = arith.subf %9, %1110 : vector<32x128xf32>
    %1112 = arith.mulf %1109, %1109 : vector<32x128xf32>
    %1113 = arith.mulf %1111, %1111 : vector<32x128xf32>
    %1114 = arith.addf %1112, %1113 : vector<32x128xf32>
    %1115 = vector.broadcast %1099 : f32 to vector<32x128xf32>
    %1116 = arith.subf %1115, %1114 : vector<32x128xf32>
    %cst_257 = arith.constant 0.166666672 : f32
    %1117 = vector.broadcast %cst_257 : f32 to vector<32x128xf32>
    %1118 = arith.mulf %1116, %1117 : vector<32x128xf32>
    %cst_258 = arith.constant 5.000000e-01 : f32
    %1119 = vector.broadcast %cst_258 : f32 to vector<32x128xf32>
    %1120 = arith.addf %1118, %1119 : vector<32x128xf32>
    %cst_259 = arith.constant 0.000000e+00 : f32
    %cst_260 = arith.constant 1.000000e+00 : f32
    %1121 = vector.broadcast %cst_259 : f32 to vector<32x128xf32>
    %1122 = arith.maximumf %1121, %1120 : vector<32x128xf32>
    %1123 = vector.broadcast %cst_260 : f32 to vector<32x128xf32>
    %1124 = arith.minimumf %1123, %1122 : vector<32x128xf32>
    %1125 = arith.mulf %1124, %1124 : vector<32x128xf32>
    %cst_261 = arith.constant 2.000000e+00 : f32
    %1126 = vector.broadcast %cst_261 : f32 to vector<32x128xf32>
    %1127 = arith.mulf %1126, %1124 : vector<32x128xf32>
    %cst_262 = arith.constant 3.000000e+00 : f32
    %1128 = vector.broadcast %cst_262 : f32 to vector<32x128xf32>
    %1129 = arith.subf %1128, %1127 : vector<32x128xf32>
    %1130 = arith.mulf %1125, %1129 : vector<32x128xf32>
    %1131 = vector.broadcast %1101 : f32 to vector<32x128xf32>
    %1132 = arith.mulf %1131, %1130 : vector<32x128xf32>
    %1133 = vector.broadcast %1103 : f32 to vector<32x128xf32>
    %1134 = arith.mulf %1132, %1133 : vector<32x128xf32>
    %1135 = arith.addf %1086, %1134 : vector<32x128xf32>
    %1136 = vector.broadcast %1105 : f32 to vector<32x128xf32>
    %1137 = arith.mulf %1132, %1136 : vector<32x128xf32>
    %1138 = arith.addf %1089, %1137 : vector<32x128xf32>
    %1139 = vector.broadcast %1107 : f32 to vector<32x128xf32>
    %1140 = arith.mulf %1132, %1139 : vector<32x128xf32>
    %1141 = arith.addf %1092, %1140 : vector<32x128xf32>
    %1142 = arith.addf %1093, %1132 : vector<32x128xf32>
    %1143 = arith.index_cast %1040 : i32 to index
    %c16_263 = arith.constant 16 : index
    %1144 = memref.load %arg1[%1143, %c16_263] : memref<8x80xf32, #tpu.memory_space<smem>>
    %1145 = arith.index_cast %1040 : i32 to index
    %c17_264 = arith.constant 17 : index
    %1146 = memref.load %arg1[%1145, %c17_264] : memref<8x80xf32, #tpu.memory_space<smem>>
    %1147 = arith.index_cast %1040 : i32 to index
    %c18_265 = arith.constant 18 : index
    %1148 = memref.load %arg1[%1147, %c18_265] : memref<8x80xf32, #tpu.memory_space<smem>>
    %1149 = arith.index_cast %1040 : i32 to index
    %c19_266 = arith.constant 19 : index
    %1150 = memref.load %arg1[%1149, %c19_266] : memref<8x80xf32, #tpu.memory_space<smem>>
    %1151 = arith.index_cast %1040 : i32 to index
    %c20_267 = arith.constant 20 : index
    %1152 = memref.load %arg1[%1151, %c20_267] : memref<8x80xf32, #tpu.memory_space<smem>>
    %1153 = arith.index_cast %1040 : i32 to index
    %c21_268 = arith.constant 21 : index
    %1154 = memref.load %arg1[%1153, %c21_268] : memref<8x80xf32, #tpu.memory_space<smem>>
    %1155 = arith.index_cast %1040 : i32 to index
    %c22_269 = arith.constant 22 : index
    %1156 = memref.load %arg1[%1155, %c22_269] : memref<8x80xf32, #tpu.memory_space<smem>>
    %1157 = vector.broadcast %1144 : f32 to vector<32x128xf32>
    %1158 = arith.subf %14, %1157 : vector<32x128xf32>
    %1159 = vector.broadcast %1146 : f32 to vector<32x128xf32>
    %1160 = arith.subf %9, %1159 : vector<32x128xf32>
    %1161 = arith.mulf %1158, %1158 : vector<32x128xf32>
    %1162 = arith.mulf %1160, %1160 : vector<32x128xf32>
    %1163 = arith.addf %1161, %1162 : vector<32x128xf32>
    %1164 = vector.broadcast %1148 : f32 to vector<32x128xf32>
    %1165 = arith.subf %1164, %1163 : vector<32x128xf32>
    %cst_270 = arith.constant 0.166666672 : f32
    %1166 = vector.broadcast %cst_270 : f32 to vector<32x128xf32>
    %1167 = arith.mulf %1165, %1166 : vector<32x128xf32>
    %cst_271 = arith.constant 5.000000e-01 : f32
    %1168 = vector.broadcast %cst_271 : f32 to vector<32x128xf32>
    %1169 = arith.addf %1167, %1168 : vector<32x128xf32>
    %cst_272 = arith.constant 0.000000e+00 : f32
    %cst_273 = arith.constant 1.000000e+00 : f32
    %1170 = vector.broadcast %cst_272 : f32 to vector<32x128xf32>
    %1171 = arith.maximumf %1170, %1169 : vector<32x128xf32>
    %1172 = vector.broadcast %cst_273 : f32 to vector<32x128xf32>
    %1173 = arith.minimumf %1172, %1171 : vector<32x128xf32>
    %1174 = arith.mulf %1173, %1173 : vector<32x128xf32>
    %cst_274 = arith.constant 2.000000e+00 : f32
    %1175 = vector.broadcast %cst_274 : f32 to vector<32x128xf32>
    %1176 = arith.mulf %1175, %1173 : vector<32x128xf32>
    %cst_275 = arith.constant 3.000000e+00 : f32
    %1177 = vector.broadcast %cst_275 : f32 to vector<32x128xf32>
    %1178 = arith.subf %1177, %1176 : vector<32x128xf32>
    %1179 = arith.mulf %1174, %1178 : vector<32x128xf32>
    %1180 = vector.broadcast %1150 : f32 to vector<32x128xf32>
    %1181 = arith.mulf %1180, %1179 : vector<32x128xf32>
    %1182 = vector.broadcast %1152 : f32 to vector<32x128xf32>
    %1183 = arith.mulf %1181, %1182 : vector<32x128xf32>
    %1184 = arith.addf %1135, %1183 : vector<32x128xf32>
    %1185 = vector.broadcast %1154 : f32 to vector<32x128xf32>
    %1186 = arith.mulf %1181, %1185 : vector<32x128xf32>
    %1187 = arith.addf %1138, %1186 : vector<32x128xf32>
    %1188 = vector.broadcast %1156 : f32 to vector<32x128xf32>
    %1189 = arith.mulf %1181, %1188 : vector<32x128xf32>
    %1190 = arith.addf %1141, %1189 : vector<32x128xf32>
    %1191 = arith.addf %1142, %1181 : vector<32x128xf32>
    %1192 = arith.index_cast %1040 : i32 to index
    %c24_276 = arith.constant 24 : index
    %1193 = memref.load %arg1[%1192, %c24_276] : memref<8x80xf32, #tpu.memory_space<smem>>
    %1194 = arith.index_cast %1040 : i32 to index
    %c25_277 = arith.constant 25 : index
    %1195 = memref.load %arg1[%1194, %c25_277] : memref<8x80xf32, #tpu.memory_space<smem>>
    %1196 = arith.index_cast %1040 : i32 to index
    %c26_278 = arith.constant 26 : index
    %1197 = memref.load %arg1[%1196, %c26_278] : memref<8x80xf32, #tpu.memory_space<smem>>
    %1198 = arith.index_cast %1040 : i32 to index
    %c27_279 = arith.constant 27 : index
    %1199 = memref.load %arg1[%1198, %c27_279] : memref<8x80xf32, #tpu.memory_space<smem>>
    %1200 = arith.index_cast %1040 : i32 to index
    %c28_280 = arith.constant 28 : index
    %1201 = memref.load %arg1[%1200, %c28_280] : memref<8x80xf32, #tpu.memory_space<smem>>
    %1202 = arith.index_cast %1040 : i32 to index
    %c29_281 = arith.constant 29 : index
    %1203 = memref.load %arg1[%1202, %c29_281] : memref<8x80xf32, #tpu.memory_space<smem>>
    %1204 = arith.index_cast %1040 : i32 to index
    %c30_282 = arith.constant 30 : index
    %1205 = memref.load %arg1[%1204, %c30_282] : memref<8x80xf32, #tpu.memory_space<smem>>
    %1206 = vector.broadcast %1193 : f32 to vector<32x128xf32>
    %1207 = arith.subf %14, %1206 : vector<32x128xf32>
    %1208 = vector.broadcast %1195 : f32 to vector<32x128xf32>
    %1209 = arith.subf %9, %1208 : vector<32x128xf32>
    %1210 = arith.mulf %1207, %1207 : vector<32x128xf32>
    %1211 = arith.mulf %1209, %1209 : vector<32x128xf32>
    %1212 = arith.addf %1210, %1211 : vector<32x128xf32>
    %1213 = vector.broadcast %1197 : f32 to vector<32x128xf32>
    %1214 = arith.subf %1213, %1212 : vector<32x128xf32>
    %cst_283 = arith.constant 0.166666672 : f32
    %1215 = vector.broadcast %cst_283 : f32 to vector<32x128xf32>
    %1216 = arith.mulf %1214, %1215 : vector<32x128xf32>
    %cst_284 = arith.constant 5.000000e-01 : f32
    %1217 = vector.broadcast %cst_284 : f32 to vector<32x128xf32>
    %1218 = arith.addf %1216, %1217 : vector<32x128xf32>
    %cst_285 = arith.constant 0.000000e+00 : f32
    %cst_286 = arith.constant 1.000000e+00 : f32
    %1219 = vector.broadcast %cst_285 : f32 to vector<32x128xf32>
    %1220 = arith.maximumf %1219, %1218 : vector<32x128xf32>
    %1221 = vector.broadcast %cst_286 : f32 to vector<32x128xf32>
    %1222 = arith.minimumf %1221, %1220 : vector<32x128xf32>
    %1223 = arith.mulf %1222, %1222 : vector<32x128xf32>
    %cst_287 = arith.constant 2.000000e+00 : f32
    %1224 = vector.broadcast %cst_287 : f32 to vector<32x128xf32>
    %1225 = arith.mulf %1224, %1222 : vector<32x128xf32>
    %cst_288 = arith.constant 3.000000e+00 : f32
    %1226 = vector.broadcast %cst_288 : f32 to vector<32x128xf32>
    %1227 = arith.subf %1226, %1225 : vector<32x128xf32>
    %1228 = arith.mulf %1223, %1227 : vector<32x128xf32>
    %1229 = vector.broadcast %1199 : f32 to vector<32x128xf32>
    %1230 = arith.mulf %1229, %1228 : vector<32x128xf32>
    %1231 = vector.broadcast %1201 : f32 to vector<32x128xf32>
    %1232 = arith.mulf %1230, %1231 : vector<32x128xf32>
    %1233 = arith.addf %1184, %1232 : vector<32x128xf32>
    %1234 = vector.broadcast %1203 : f32 to vector<32x128xf32>
    %1235 = arith.mulf %1230, %1234 : vector<32x128xf32>
    %1236 = arith.addf %1187, %1235 : vector<32x128xf32>
    %1237 = vector.broadcast %1205 : f32 to vector<32x128xf32>
    %1238 = arith.mulf %1230, %1237 : vector<32x128xf32>
    %1239 = arith.addf %1190, %1238 : vector<32x128xf32>
    %1240 = arith.addf %1191, %1230 : vector<32x128xf32>
    %1241 = arith.index_cast %1040 : i32 to index
    %c32_289 = arith.constant 32 : index
    %1242 = memref.load %arg1[%1241, %c32_289] : memref<8x80xf32, #tpu.memory_space<smem>>
    %1243 = arith.index_cast %1040 : i32 to index
    %c33_290 = arith.constant 33 : index
    %1244 = memref.load %arg1[%1243, %c33_290] : memref<8x80xf32, #tpu.memory_space<smem>>
    %1245 = arith.index_cast %1040 : i32 to index
    %c34_291 = arith.constant 34 : index
    %1246 = memref.load %arg1[%1245, %c34_291] : memref<8x80xf32, #tpu.memory_space<smem>>
    %1247 = arith.index_cast %1040 : i32 to index
    %c35_292 = arith.constant 35 : index
    %1248 = memref.load %arg1[%1247, %c35_292] : memref<8x80xf32, #tpu.memory_space<smem>>
    %1249 = arith.index_cast %1040 : i32 to index
    %c36_293 = arith.constant 36 : index
    %1250 = memref.load %arg1[%1249, %c36_293] : memref<8x80xf32, #tpu.memory_space<smem>>
    %1251 = arith.index_cast %1040 : i32 to index
    %c37_294 = arith.constant 37 : index
    %1252 = memref.load %arg1[%1251, %c37_294] : memref<8x80xf32, #tpu.memory_space<smem>>
    %1253 = arith.index_cast %1040 : i32 to index
    %c38_295 = arith.constant 38 : index
    %1254 = memref.load %arg1[%1253, %c38_295] : memref<8x80xf32, #tpu.memory_space<smem>>
    %1255 = vector.broadcast %1242 : f32 to vector<32x128xf32>
    %1256 = arith.subf %14, %1255 : vector<32x128xf32>
    %1257 = vector.broadcast %1244 : f32 to vector<32x128xf32>
    %1258 = arith.subf %9, %1257 : vector<32x128xf32>
    %1259 = arith.mulf %1256, %1256 : vector<32x128xf32>
    %1260 = arith.mulf %1258, %1258 : vector<32x128xf32>
    %1261 = arith.addf %1259, %1260 : vector<32x128xf32>
    %1262 = vector.broadcast %1246 : f32 to vector<32x128xf32>
    %1263 = arith.subf %1262, %1261 : vector<32x128xf32>
    %cst_296 = arith.constant 0.166666672 : f32
    %1264 = vector.broadcast %cst_296 : f32 to vector<32x128xf32>
    %1265 = arith.mulf %1263, %1264 : vector<32x128xf32>
    %cst_297 = arith.constant 5.000000e-01 : f32
    %1266 = vector.broadcast %cst_297 : f32 to vector<32x128xf32>
    %1267 = arith.addf %1265, %1266 : vector<32x128xf32>
    %cst_298 = arith.constant 0.000000e+00 : f32
    %cst_299 = arith.constant 1.000000e+00 : f32
    %1268 = vector.broadcast %cst_298 : f32 to vector<32x128xf32>
    %1269 = arith.maximumf %1268, %1267 : vector<32x128xf32>
    %1270 = vector.broadcast %cst_299 : f32 to vector<32x128xf32>
    %1271 = arith.minimumf %1270, %1269 : vector<32x128xf32>
    %1272 = arith.mulf %1271, %1271 : vector<32x128xf32>
    %cst_300 = arith.constant 2.000000e+00 : f32
    %1273 = vector.broadcast %cst_300 : f32 to vector<32x128xf32>
    %1274 = arith.mulf %1273, %1271 : vector<32x128xf32>
    %cst_301 = arith.constant 3.000000e+00 : f32
    %1275 = vector.broadcast %cst_301 : f32 to vector<32x128xf32>
    %1276 = arith.subf %1275, %1274 : vector<32x128xf32>
    %1277 = arith.mulf %1272, %1276 : vector<32x128xf32>
    %1278 = vector.broadcast %1248 : f32 to vector<32x128xf32>
    %1279 = arith.mulf %1278, %1277 : vector<32x128xf32>
    %1280 = vector.broadcast %1250 : f32 to vector<32x128xf32>
    %1281 = arith.mulf %1279, %1280 : vector<32x128xf32>
    %1282 = arith.addf %1233, %1281 : vector<32x128xf32>
    %1283 = vector.broadcast %1252 : f32 to vector<32x128xf32>
    %1284 = arith.mulf %1279, %1283 : vector<32x128xf32>
    %1285 = arith.addf %1236, %1284 : vector<32x128xf32>
    %1286 = vector.broadcast %1254 : f32 to vector<32x128xf32>
    %1287 = arith.mulf %1279, %1286 : vector<32x128xf32>
    %1288 = arith.addf %1239, %1287 : vector<32x128xf32>
    %1289 = arith.addf %1240, %1279 : vector<32x128xf32>
    %1290 = arith.index_cast %1040 : i32 to index
    %c40_302 = arith.constant 40 : index
    %1291 = memref.load %arg1[%1290, %c40_302] : memref<8x80xf32, #tpu.memory_space<smem>>
    %1292 = arith.index_cast %1040 : i32 to index
    %c41_303 = arith.constant 41 : index
    %1293 = memref.load %arg1[%1292, %c41_303] : memref<8x80xf32, #tpu.memory_space<smem>>
    %1294 = arith.index_cast %1040 : i32 to index
    %c42_304 = arith.constant 42 : index
    %1295 = memref.load %arg1[%1294, %c42_304] : memref<8x80xf32, #tpu.memory_space<smem>>
    %1296 = arith.index_cast %1040 : i32 to index
    %c43_305 = arith.constant 43 : index
    %1297 = memref.load %arg1[%1296, %c43_305] : memref<8x80xf32, #tpu.memory_space<smem>>
    %1298 = arith.index_cast %1040 : i32 to index
    %c44_306 = arith.constant 44 : index
    %1299 = memref.load %arg1[%1298, %c44_306] : memref<8x80xf32, #tpu.memory_space<smem>>
    %1300 = arith.index_cast %1040 : i32 to index
    %c45_307 = arith.constant 45 : index
    %1301 = memref.load %arg1[%1300, %c45_307] : memref<8x80xf32, #tpu.memory_space<smem>>
    %1302 = arith.index_cast %1040 : i32 to index
    %c46_308 = arith.constant 46 : index
    %1303 = memref.load %arg1[%1302, %c46_308] : memref<8x80xf32, #tpu.memory_space<smem>>
    %1304 = vector.broadcast %1291 : f32 to vector<32x128xf32>
    %1305 = arith.subf %14, %1304 : vector<32x128xf32>
    %1306 = vector.broadcast %1293 : f32 to vector<32x128xf32>
    %1307 = arith.subf %9, %1306 : vector<32x128xf32>
    %1308 = arith.mulf %1305, %1305 : vector<32x128xf32>
    %1309 = arith.mulf %1307, %1307 : vector<32x128xf32>
    %1310 = arith.addf %1308, %1309 : vector<32x128xf32>
    %1311 = vector.broadcast %1295 : f32 to vector<32x128xf32>
    %1312 = arith.subf %1311, %1310 : vector<32x128xf32>
    %cst_309 = arith.constant 0.166666672 : f32
    %1313 = vector.broadcast %cst_309 : f32 to vector<32x128xf32>
    %1314 = arith.mulf %1312, %1313 : vector<32x128xf32>
    %cst_310 = arith.constant 5.000000e-01 : f32
    %1315 = vector.broadcast %cst_310 : f32 to vector<32x128xf32>
    %1316 = arith.addf %1314, %1315 : vector<32x128xf32>
    %cst_311 = arith.constant 0.000000e+00 : f32
    %cst_312 = arith.constant 1.000000e+00 : f32
    %1317 = vector.broadcast %cst_311 : f32 to vector<32x128xf32>
    %1318 = arith.maximumf %1317, %1316 : vector<32x128xf32>
    %1319 = vector.broadcast %cst_312 : f32 to vector<32x128xf32>
    %1320 = arith.minimumf %1319, %1318 : vector<32x128xf32>
    %1321 = arith.mulf %1320, %1320 : vector<32x128xf32>
    %cst_313 = arith.constant 2.000000e+00 : f32
    %1322 = vector.broadcast %cst_313 : f32 to vector<32x128xf32>
    %1323 = arith.mulf %1322, %1320 : vector<32x128xf32>
    %cst_314 = arith.constant 3.000000e+00 : f32
    %1324 = vector.broadcast %cst_314 : f32 to vector<32x128xf32>
    %1325 = arith.subf %1324, %1323 : vector<32x128xf32>
    %1326 = arith.mulf %1321, %1325 : vector<32x128xf32>
    %1327 = vector.broadcast %1297 : f32 to vector<32x128xf32>
    %1328 = arith.mulf %1327, %1326 : vector<32x128xf32>
    %1329 = vector.broadcast %1299 : f32 to vector<32x128xf32>
    %1330 = arith.mulf %1328, %1329 : vector<32x128xf32>
    %1331 = arith.addf %1282, %1330 : vector<32x128xf32>
    %1332 = vector.broadcast %1301 : f32 to vector<32x128xf32>
    %1333 = arith.mulf %1328, %1332 : vector<32x128xf32>
    %1334 = arith.addf %1285, %1333 : vector<32x128xf32>
    %1335 = vector.broadcast %1303 : f32 to vector<32x128xf32>
    %1336 = arith.mulf %1328, %1335 : vector<32x128xf32>
    %1337 = arith.addf %1288, %1336 : vector<32x128xf32>
    %1338 = arith.addf %1289, %1328 : vector<32x128xf32>
    %1339 = arith.index_cast %1040 : i32 to index
    %c48_315 = arith.constant 48 : index
    %1340 = memref.load %arg1[%1339, %c48_315] : memref<8x80xf32, #tpu.memory_space<smem>>
    %1341 = arith.index_cast %1040 : i32 to index
    %c49_316 = arith.constant 49 : index
    %1342 = memref.load %arg1[%1341, %c49_316] : memref<8x80xf32, #tpu.memory_space<smem>>
    %1343 = arith.index_cast %1040 : i32 to index
    %c50_317 = arith.constant 50 : index
    %1344 = memref.load %arg1[%1343, %c50_317] : memref<8x80xf32, #tpu.memory_space<smem>>
    %1345 = arith.index_cast %1040 : i32 to index
    %c51_318 = arith.constant 51 : index
    %1346 = memref.load %arg1[%1345, %c51_318] : memref<8x80xf32, #tpu.memory_space<smem>>
    %1347 = arith.index_cast %1040 : i32 to index
    %c52_319 = arith.constant 52 : index
    %1348 = memref.load %arg1[%1347, %c52_319] : memref<8x80xf32, #tpu.memory_space<smem>>
    %1349 = arith.index_cast %1040 : i32 to index
    %c53_320 = arith.constant 53 : index
    %1350 = memref.load %arg1[%1349, %c53_320] : memref<8x80xf32, #tpu.memory_space<smem>>
    %1351 = arith.index_cast %1040 : i32 to index
    %c54_321 = arith.constant 54 : index
    %1352 = memref.load %arg1[%1351, %c54_321] : memref<8x80xf32, #tpu.memory_space<smem>>
    %1353 = vector.broadcast %1340 : f32 to vector<32x128xf32>
    %1354 = arith.subf %14, %1353 : vector<32x128xf32>
    %1355 = vector.broadcast %1342 : f32 to vector<32x128xf32>
    %1356 = arith.subf %9, %1355 : vector<32x128xf32>
    %1357 = arith.mulf %1354, %1354 : vector<32x128xf32>
    %1358 = arith.mulf %1356, %1356 : vector<32x128xf32>
    %1359 = arith.addf %1357, %1358 : vector<32x128xf32>
    %1360 = vector.broadcast %1344 : f32 to vector<32x128xf32>
    %1361 = arith.subf %1360, %1359 : vector<32x128xf32>
    %cst_322 = arith.constant 0.166666672 : f32
    %1362 = vector.broadcast %cst_322 : f32 to vector<32x128xf32>
    %1363 = arith.mulf %1361, %1362 : vector<32x128xf32>
    %cst_323 = arith.constant 5.000000e-01 : f32
    %1364 = vector.broadcast %cst_323 : f32 to vector<32x128xf32>
    %1365 = arith.addf %1363, %1364 : vector<32x128xf32>
    %cst_324 = arith.constant 0.000000e+00 : f32
    %cst_325 = arith.constant 1.000000e+00 : f32
    %1366 = vector.broadcast %cst_324 : f32 to vector<32x128xf32>
    %1367 = arith.maximumf %1366, %1365 : vector<32x128xf32>
    %1368 = vector.broadcast %cst_325 : f32 to vector<32x128xf32>
    %1369 = arith.minimumf %1368, %1367 : vector<32x128xf32>
    %1370 = arith.mulf %1369, %1369 : vector<32x128xf32>
    %cst_326 = arith.constant 2.000000e+00 : f32
    %1371 = vector.broadcast %cst_326 : f32 to vector<32x128xf32>
    %1372 = arith.mulf %1371, %1369 : vector<32x128xf32>
    %cst_327 = arith.constant 3.000000e+00 : f32
    %1373 = vector.broadcast %cst_327 : f32 to vector<32x128xf32>
    %1374 = arith.subf %1373, %1372 : vector<32x128xf32>
    %1375 = arith.mulf %1370, %1374 : vector<32x128xf32>
    %1376 = vector.broadcast %1346 : f32 to vector<32x128xf32>
    %1377 = arith.mulf %1376, %1375 : vector<32x128xf32>
    %1378 = vector.broadcast %1348 : f32 to vector<32x128xf32>
    %1379 = arith.mulf %1377, %1378 : vector<32x128xf32>
    %1380 = arith.addf %1331, %1379 : vector<32x128xf32>
    %1381 = vector.broadcast %1350 : f32 to vector<32x128xf32>
    %1382 = arith.mulf %1377, %1381 : vector<32x128xf32>
    %1383 = arith.addf %1334, %1382 : vector<32x128xf32>
    %1384 = vector.broadcast %1352 : f32 to vector<32x128xf32>
    %1385 = arith.mulf %1377, %1384 : vector<32x128xf32>
    %1386 = arith.addf %1337, %1385 : vector<32x128xf32>
    %1387 = arith.addf %1338, %1377 : vector<32x128xf32>
    %1388 = arith.index_cast %1040 : i32 to index
    %c56_328 = arith.constant 56 : index
    %1389 = memref.load %arg1[%1388, %c56_328] : memref<8x80xf32, #tpu.memory_space<smem>>
    %1390 = arith.index_cast %1040 : i32 to index
    %c57_329 = arith.constant 57 : index
    %1391 = memref.load %arg1[%1390, %c57_329] : memref<8x80xf32, #tpu.memory_space<smem>>
    %1392 = arith.index_cast %1040 : i32 to index
    %c58_330 = arith.constant 58 : index
    %1393 = memref.load %arg1[%1392, %c58_330] : memref<8x80xf32, #tpu.memory_space<smem>>
    %1394 = arith.index_cast %1040 : i32 to index
    %c59_331 = arith.constant 59 : index
    %1395 = memref.load %arg1[%1394, %c59_331] : memref<8x80xf32, #tpu.memory_space<smem>>
    %1396 = arith.index_cast %1040 : i32 to index
    %c60_332 = arith.constant 60 : index
    %1397 = memref.load %arg1[%1396, %c60_332] : memref<8x80xf32, #tpu.memory_space<smem>>
    %1398 = arith.index_cast %1040 : i32 to index
    %c61_333 = arith.constant 61 : index
    %1399 = memref.load %arg1[%1398, %c61_333] : memref<8x80xf32, #tpu.memory_space<smem>>
    %1400 = arith.index_cast %1040 : i32 to index
    %c62_334 = arith.constant 62 : index
    %1401 = memref.load %arg1[%1400, %c62_334] : memref<8x80xf32, #tpu.memory_space<smem>>
    %1402 = vector.broadcast %1389 : f32 to vector<32x128xf32>
    %1403 = arith.subf %14, %1402 : vector<32x128xf32>
    %1404 = vector.broadcast %1391 : f32 to vector<32x128xf32>
    %1405 = arith.subf %9, %1404 : vector<32x128xf32>
    %1406 = arith.mulf %1403, %1403 : vector<32x128xf32>
    %1407 = arith.mulf %1405, %1405 : vector<32x128xf32>
    %1408 = arith.addf %1406, %1407 : vector<32x128xf32>
    %1409 = vector.broadcast %1393 : f32 to vector<32x128xf32>
    %1410 = arith.subf %1409, %1408 : vector<32x128xf32>
    %cst_335 = arith.constant 0.166666672 : f32
    %1411 = vector.broadcast %cst_335 : f32 to vector<32x128xf32>
    %1412 = arith.mulf %1410, %1411 : vector<32x128xf32>
    %cst_336 = arith.constant 5.000000e-01 : f32
    %1413 = vector.broadcast %cst_336 : f32 to vector<32x128xf32>
    %1414 = arith.addf %1412, %1413 : vector<32x128xf32>
    %cst_337 = arith.constant 0.000000e+00 : f32
    %cst_338 = arith.constant 1.000000e+00 : f32
    %1415 = vector.broadcast %cst_337 : f32 to vector<32x128xf32>
    %1416 = arith.maximumf %1415, %1414 : vector<32x128xf32>
    %1417 = vector.broadcast %cst_338 : f32 to vector<32x128xf32>
    %1418 = arith.minimumf %1417, %1416 : vector<32x128xf32>
    %1419 = arith.mulf %1418, %1418 : vector<32x128xf32>
    %cst_339 = arith.constant 2.000000e+00 : f32
    %1420 = vector.broadcast %cst_339 : f32 to vector<32x128xf32>
    %1421 = arith.mulf %1420, %1418 : vector<32x128xf32>
    %cst_340 = arith.constant 3.000000e+00 : f32
    %1422 = vector.broadcast %cst_340 : f32 to vector<32x128xf32>
    %1423 = arith.subf %1422, %1421 : vector<32x128xf32>
    %1424 = arith.mulf %1419, %1423 : vector<32x128xf32>
    %1425 = vector.broadcast %1395 : f32 to vector<32x128xf32>
    %1426 = arith.mulf %1425, %1424 : vector<32x128xf32>
    %1427 = vector.broadcast %1397 : f32 to vector<32x128xf32>
    %1428 = arith.mulf %1426, %1427 : vector<32x128xf32>
    %1429 = arith.addf %1380, %1428 : vector<32x128xf32>
    %1430 = vector.broadcast %1399 : f32 to vector<32x128xf32>
    %1431 = arith.mulf %1426, %1430 : vector<32x128xf32>
    %1432 = arith.addf %1383, %1431 : vector<32x128xf32>
    %1433 = vector.broadcast %1401 : f32 to vector<32x128xf32>
    %1434 = arith.mulf %1426, %1433 : vector<32x128xf32>
    %1435 = arith.addf %1386, %1434 : vector<32x128xf32>
    %1436 = arith.addf %1387, %1426 : vector<32x128xf32>
    %1437 = arith.index_cast %1040 : i32 to index
    %c64_341 = arith.constant 64 : index
    %1438 = memref.load %arg1[%1437, %c64_341] : memref<8x80xf32, #tpu.memory_space<smem>>
    %1439 = arith.index_cast %1040 : i32 to index
    %c65_342 = arith.constant 65 : index
    %1440 = memref.load %arg1[%1439, %c65_342] : memref<8x80xf32, #tpu.memory_space<smem>>
    %1441 = arith.index_cast %1040 : i32 to index
    %c66_343 = arith.constant 66 : index
    %1442 = memref.load %arg1[%1441, %c66_343] : memref<8x80xf32, #tpu.memory_space<smem>>
    %1443 = arith.index_cast %1040 : i32 to index
    %c67_344 = arith.constant 67 : index
    %1444 = memref.load %arg1[%1443, %c67_344] : memref<8x80xf32, #tpu.memory_space<smem>>
    %1445 = arith.index_cast %1040 : i32 to index
    %c68_345 = arith.constant 68 : index
    %1446 = memref.load %arg1[%1445, %c68_345] : memref<8x80xf32, #tpu.memory_space<smem>>
    %1447 = arith.index_cast %1040 : i32 to index
    %c69_346 = arith.constant 69 : index
    %1448 = memref.load %arg1[%1447, %c69_346] : memref<8x80xf32, #tpu.memory_space<smem>>
    %1449 = arith.index_cast %1040 : i32 to index
    %c70_347 = arith.constant 70 : index
    %1450 = memref.load %arg1[%1449, %c70_347] : memref<8x80xf32, #tpu.memory_space<smem>>
    %1451 = vector.broadcast %1438 : f32 to vector<32x128xf32>
    %1452 = arith.subf %14, %1451 : vector<32x128xf32>
    %1453 = vector.broadcast %1440 : f32 to vector<32x128xf32>
    %1454 = arith.subf %9, %1453 : vector<32x128xf32>
    %1455 = arith.mulf %1452, %1452 : vector<32x128xf32>
    %1456 = arith.mulf %1454, %1454 : vector<32x128xf32>
    %1457 = arith.addf %1455, %1456 : vector<32x128xf32>
    %1458 = vector.broadcast %1442 : f32 to vector<32x128xf32>
    %1459 = arith.subf %1458, %1457 : vector<32x128xf32>
    %cst_348 = arith.constant 0.166666672 : f32
    %1460 = vector.broadcast %cst_348 : f32 to vector<32x128xf32>
    %1461 = arith.mulf %1459, %1460 : vector<32x128xf32>
    %cst_349 = arith.constant 5.000000e-01 : f32
    %1462 = vector.broadcast %cst_349 : f32 to vector<32x128xf32>
    %1463 = arith.addf %1461, %1462 : vector<32x128xf32>
    %cst_350 = arith.constant 0.000000e+00 : f32
    %cst_351 = arith.constant 1.000000e+00 : f32
    %1464 = vector.broadcast %cst_350 : f32 to vector<32x128xf32>
    %1465 = arith.maximumf %1464, %1463 : vector<32x128xf32>
    %1466 = vector.broadcast %cst_351 : f32 to vector<32x128xf32>
    %1467 = arith.minimumf %1466, %1465 : vector<32x128xf32>
    %1468 = arith.mulf %1467, %1467 : vector<32x128xf32>
    %cst_352 = arith.constant 2.000000e+00 : f32
    %1469 = vector.broadcast %cst_352 : f32 to vector<32x128xf32>
    %1470 = arith.mulf %1469, %1467 : vector<32x128xf32>
    %cst_353 = arith.constant 3.000000e+00 : f32
    %1471 = vector.broadcast %cst_353 : f32 to vector<32x128xf32>
    %1472 = arith.subf %1471, %1470 : vector<32x128xf32>
    %1473 = arith.mulf %1468, %1472 : vector<32x128xf32>
    %1474 = vector.broadcast %1444 : f32 to vector<32x128xf32>
    %1475 = arith.mulf %1474, %1473 : vector<32x128xf32>
    %1476 = vector.broadcast %1446 : f32 to vector<32x128xf32>
    %1477 = arith.mulf %1475, %1476 : vector<32x128xf32>
    %1478 = arith.addf %1429, %1477 : vector<32x128xf32>
    %1479 = vector.broadcast %1448 : f32 to vector<32x128xf32>
    %1480 = arith.mulf %1475, %1479 : vector<32x128xf32>
    %1481 = arith.addf %1432, %1480 : vector<32x128xf32>
    %1482 = vector.broadcast %1450 : f32 to vector<32x128xf32>
    %1483 = arith.mulf %1475, %1482 : vector<32x128xf32>
    %1484 = arith.addf %1435, %1483 : vector<32x128xf32>
    %1485 = arith.addf %1436, %1475 : vector<32x128xf32>
    %1486 = arith.index_cast %1040 : i32 to index
    %c72_354 = arith.constant 72 : index
    %1487 = memref.load %arg1[%1486, %c72_354] : memref<8x80xf32, #tpu.memory_space<smem>>
    %1488 = arith.index_cast %1040 : i32 to index
    %c73_355 = arith.constant 73 : index
    %1489 = memref.load %arg1[%1488, %c73_355] : memref<8x80xf32, #tpu.memory_space<smem>>
    %1490 = arith.index_cast %1040 : i32 to index
    %c74_356 = arith.constant 74 : index
    %1491 = memref.load %arg1[%1490, %c74_356] : memref<8x80xf32, #tpu.memory_space<smem>>
    %1492 = arith.index_cast %1040 : i32 to index
    %c75_357 = arith.constant 75 : index
    %1493 = memref.load %arg1[%1492, %c75_357] : memref<8x80xf32, #tpu.memory_space<smem>>
    %1494 = arith.index_cast %1040 : i32 to index
    %c76_358 = arith.constant 76 : index
    %1495 = memref.load %arg1[%1494, %c76_358] : memref<8x80xf32, #tpu.memory_space<smem>>
    %1496 = arith.index_cast %1040 : i32 to index
    %c77_359 = arith.constant 77 : index
    %1497 = memref.load %arg1[%1496, %c77_359] : memref<8x80xf32, #tpu.memory_space<smem>>
    %1498 = arith.index_cast %1040 : i32 to index
    %c78_360 = arith.constant 78 : index
    %1499 = memref.load %arg1[%1498, %c78_360] : memref<8x80xf32, #tpu.memory_space<smem>>
    %1500 = vector.broadcast %1487 : f32 to vector<32x128xf32>
    %1501 = arith.subf %14, %1500 : vector<32x128xf32>
    %1502 = vector.broadcast %1489 : f32 to vector<32x128xf32>
    %1503 = arith.subf %9, %1502 : vector<32x128xf32>
    %1504 = arith.mulf %1501, %1501 : vector<32x128xf32>
    %1505 = arith.mulf %1503, %1503 : vector<32x128xf32>
    %1506 = arith.addf %1504, %1505 : vector<32x128xf32>
    %1507 = vector.broadcast %1491 : f32 to vector<32x128xf32>
    %1508 = arith.subf %1507, %1506 : vector<32x128xf32>
    %cst_361 = arith.constant 0.166666672 : f32
    %1509 = vector.broadcast %cst_361 : f32 to vector<32x128xf32>
    %1510 = arith.mulf %1508, %1509 : vector<32x128xf32>
    %cst_362 = arith.constant 5.000000e-01 : f32
    %1511 = vector.broadcast %cst_362 : f32 to vector<32x128xf32>
    %1512 = arith.addf %1510, %1511 : vector<32x128xf32>
    %cst_363 = arith.constant 0.000000e+00 : f32
    %cst_364 = arith.constant 1.000000e+00 : f32
    %1513 = vector.broadcast %cst_363 : f32 to vector<32x128xf32>
    %1514 = arith.maximumf %1513, %1512 : vector<32x128xf32>
    %1515 = vector.broadcast %cst_364 : f32 to vector<32x128xf32>
    %1516 = arith.minimumf %1515, %1514 : vector<32x128xf32>
    %1517 = arith.mulf %1516, %1516 : vector<32x128xf32>
    %cst_365 = arith.constant 2.000000e+00 : f32
    %1518 = vector.broadcast %cst_365 : f32 to vector<32x128xf32>
    %1519 = arith.mulf %1518, %1516 : vector<32x128xf32>
    %cst_366 = arith.constant 3.000000e+00 : f32
    %1520 = vector.broadcast %cst_366 : f32 to vector<32x128xf32>
    %1521 = arith.subf %1520, %1519 : vector<32x128xf32>
    %1522 = arith.mulf %1517, %1521 : vector<32x128xf32>
    %1523 = vector.broadcast %1493 : f32 to vector<32x128xf32>
    %1524 = arith.mulf %1523, %1522 : vector<32x128xf32>
    %1525 = vector.broadcast %1495 : f32 to vector<32x128xf32>
    %1526 = arith.mulf %1524, %1525 : vector<32x128xf32>
    %1527 = arith.addf %1478, %1526 : vector<32x128xf32>
    %1528 = vector.broadcast %1497 : f32 to vector<32x128xf32>
    %1529 = arith.mulf %1524, %1528 : vector<32x128xf32>
    %1530 = arith.addf %1481, %1529 : vector<32x128xf32>
    %1531 = vector.broadcast %1499 : f32 to vector<32x128xf32>
    %1532 = arith.mulf %1524, %1531 : vector<32x128xf32>
    %1533 = arith.addf %1484, %1532 : vector<32x128xf32>
    %1534 = arith.addf %1485, %1524 : vector<32x128xf32>
    %1535 = tpu.reciprocal %1534 {approx = true} : vector<32x128xf32> -> vector<32x128xf32>
    %1536 = arith.mulf %1527, %1535 : vector<32x128xf32>
    %c2_367 = arith.constant 2 : index
    %c0_368 = arith.constant 0 : index
    %c0_369 = arith.constant 0 : index
    %c0_370 = arith.constant 0 : index
    %1537 = vector.load %arg2[%c2_367, %c0_368, %c0_369, %c0_370] : memref<4x4x32x128xf32, #tpu.memory_space<vmem>>, vector<1x1x32x128xf32>
    %1538 = vector.shape_cast %1537 : vector<1x1x32x128xf32> to vector<32x128xf32>
    %1539 = vector.shape_cast %1536 : vector<32x128xf32> to vector<1x1x32x128xf32>
    tpu.vector_store %arg2[%c2_367, %c0_368, %c0_369, %c0_370], %1539 {strides = array<i32>} : memref<4x4x32x128xf32, #tpu.memory_space<vmem>>, vector<1x1x32x128xf32>,
    %1540 = arith.mulf %1530, %1535 : vector<32x128xf32>
    %c2_371 = arith.constant 2 : index
    %c1_372 = arith.constant 1 : index
    %c0_373 = arith.constant 0 : index
    %c0_374 = arith.constant 0 : index
    %1541 = vector.load %arg2[%c2_371, %c1_372, %c0_373, %c0_374] : memref<4x4x32x128xf32, #tpu.memory_space<vmem>>, vector<1x1x32x128xf32>
    %1542 = vector.shape_cast %1541 : vector<1x1x32x128xf32> to vector<32x128xf32>
    %1543 = vector.shape_cast %1540 : vector<32x128xf32> to vector<1x1x32x128xf32>
    tpu.vector_store %arg2[%c2_371, %c1_372, %c0_373, %c0_374], %1543 {strides = array<i32>} : memref<4x4x32x128xf32, #tpu.memory_space<vmem>>, vector<1x1x32x128xf32>,
    %1544 = arith.mulf %1533, %1535 : vector<32x128xf32>
    %c2_375 = arith.constant 2 : index
    %c2_376 = arith.constant 2 : index
    %c0_377 = arith.constant 0 : index
    %c0_378 = arith.constant 0 : index
    %1545 = vector.load %arg2[%c2_375, %c2_376, %c0_377, %c0_378] : memref<4x4x32x128xf32, #tpu.memory_space<vmem>>, vector<1x1x32x128xf32>
    %1546 = vector.shape_cast %1545 : vector<1x1x32x128xf32> to vector<32x128xf32>
    %1547 = vector.shape_cast %1544 : vector<32x128xf32> to vector<1x1x32x128xf32>
    tpu.vector_store %arg2[%c2_375, %c2_376, %c0_377, %c0_378], %1547 {strides = array<i32>} : memref<4x4x32x128xf32, #tpu.memory_space<vmem>>, vector<1x1x32x128xf32>,
    %c2_379 = arith.constant 2 : index
    %c3_380 = arith.constant 3 : index
    %c0_381 = arith.constant 0 : index
    %c0_382 = arith.constant 0 : index
    %1548 = vector.load %arg2[%c2_379, %c3_380, %c0_381, %c0_382] : memref<4x4x32x128xf32, #tpu.memory_space<vmem>>, vector<1x1x32x128xf32>
    %1549 = vector.shape_cast %1548 : vector<1x1x32x128xf32> to vector<32x128xf32>
    %1550 = vector.shape_cast %1534 : vector<32x128xf32> to vector<1x1x32x128xf32>
    tpu.vector_store %arg2[%c2_379, %c3_380, %c0_381, %c0_382], %1550 {strides = array<i32>} : memref<4x4x32x128xf32, #tpu.memory_space<vmem>>, vector<1x1x32x128xf32>,
    %c4_i32_383 = arith.constant 4 : i32
    %1551 = arith.muli %arg0, %c4_i32_383 : i32
    %c3_i32 = arith.constant 3 : i32
    %1552 = arith.addi %1551, %c3_i32 : i32
    %cst_384 = arith.constant 0.000000e+00 : f32
    %1553 = vector.broadcast %cst_384 : f32 to vector<32x128xf32>
    %cst_385 = arith.constant 0.000000e+00 : f32
    %1554 = vector.broadcast %cst_385 : f32 to vector<32x128xf32>
    %cst_386 = arith.constant 0.000000e+00 : f32
    %1555 = vector.broadcast %cst_386 : f32 to vector<32x128xf32>
    %cst_387 = arith.constant 9.99999974E-6 : f32
    %1556 = vector.broadcast %cst_387 : f32 to vector<32x128xf32>
    %1557 = arith.index_cast %1552 : i32 to index
    %c0_388 = arith.constant 0 : index
    %1558 = memref.load %arg1[%1557, %c0_388] : memref<8x80xf32, #tpu.memory_space<smem>>
    %1559 = arith.index_cast %1552 : i32 to index
    %c1_389 = arith.constant 1 : index
    %1560 = memref.load %arg1[%1559, %c1_389] : memref<8x80xf32, #tpu.memory_space<smem>>
    %1561 = arith.index_cast %1552 : i32 to index
    %c2_390 = arith.constant 2 : index
    %1562 = memref.load %arg1[%1561, %c2_390] : memref<8x80xf32, #tpu.memory_space<smem>>
    %1563 = arith.index_cast %1552 : i32 to index
    %c3_391 = arith.constant 3 : index
    %1564 = memref.load %arg1[%1563, %c3_391] : memref<8x80xf32, #tpu.memory_space<smem>>
    %1565 = arith.index_cast %1552 : i32 to index
    %c4_392 = arith.constant 4 : index
    %1566 = memref.load %arg1[%1565, %c4_392] : memref<8x80xf32, #tpu.memory_space<smem>>
    %1567 = arith.index_cast %1552 : i32 to index
    %c5_393 = arith.constant 5 : index
    %1568 = memref.load %arg1[%1567, %c5_393] : memref<8x80xf32, #tpu.memory_space<smem>>
    %1569 = arith.index_cast %1552 : i32 to index
    %c6_394 = arith.constant 6 : index
    %1570 = memref.load %arg1[%1569, %c6_394] : memref<8x80xf32, #tpu.memory_space<smem>>
    %1571 = vector.broadcast %1558 : f32 to vector<32x128xf32>
    %1572 = arith.subf %14, %1571 : vector<32x128xf32>
    %1573 = vector.broadcast %1560 : f32 to vector<32x128xf32>
    %1574 = arith.subf %9, %1573 : vector<32x128xf32>
    %1575 = arith.mulf %1572, %1572 : vector<32x128xf32>
    %1576 = arith.mulf %1574, %1574 : vector<32x128xf32>
    %1577 = arith.addf %1575, %1576 : vector<32x128xf32>
    %1578 = vector.broadcast %1562 : f32 to vector<32x128xf32>
    %1579 = arith.subf %1578, %1577 : vector<32x128xf32>
    %cst_395 = arith.constant 0.166666672 : f32
    %1580 = vector.broadcast %cst_395 : f32 to vector<32x128xf32>
    %1581 = arith.mulf %1579, %1580 : vector<32x128xf32>
    %cst_396 = arith.constant 5.000000e-01 : f32
    %1582 = vector.broadcast %cst_396 : f32 to vector<32x128xf32>
    %1583 = arith.addf %1581, %1582 : vector<32x128xf32>
    %cst_397 = arith.constant 0.000000e+00 : f32
    %cst_398 = arith.constant 1.000000e+00 : f32
    %1584 = vector.broadcast %cst_397 : f32 to vector<32x128xf32>
    %1585 = arith.maximumf %1584, %1583 : vector<32x128xf32>
    %1586 = vector.broadcast %cst_398 : f32 to vector<32x128xf32>
    %1587 = arith.minimumf %1586, %1585 : vector<32x128xf32>
    %1588 = arith.mulf %1587, %1587 : vector<32x128xf32>
    %cst_399 = arith.constant 2.000000e+00 : f32
    %1589 = vector.broadcast %cst_399 : f32 to vector<32x128xf32>
    %1590 = arith.mulf %1589, %1587 : vector<32x128xf32>
    %cst_400 = arith.constant 3.000000e+00 : f32
    %1591 = vector.broadcast %cst_400 : f32 to vector<32x128xf32>
    %1592 = arith.subf %1591, %1590 : vector<32x128xf32>
    %1593 = arith.mulf %1588, %1592 : vector<32x128xf32>
    %1594 = vector.broadcast %1564 : f32 to vector<32x128xf32>
    %1595 = arith.mulf %1594, %1593 : vector<32x128xf32>
    %1596 = vector.broadcast %1566 : f32 to vector<32x128xf32>
    %1597 = arith.mulf %1595, %1596 : vector<32x128xf32>
    %1598 = arith.addf %1553, %1597 : vector<32x128xf32>
    %1599 = vector.broadcast %1568 : f32 to vector<32x128xf32>
    %1600 = arith.mulf %1595, %1599 : vector<32x128xf32>
    %1601 = arith.addf %1554, %1600 : vector<32x128xf32>
    %1602 = vector.broadcast %1570 : f32 to vector<32x128xf32>
    %1603 = arith.mulf %1595, %1602 : vector<32x128xf32>
    %1604 = arith.addf %1555, %1603 : vector<32x128xf32>
    %1605 = arith.addf %1556, %1595 : vector<32x128xf32>
    %1606 = arith.index_cast %1552 : i32 to index
    %c8_401 = arith.constant 8 : index
    %1607 = memref.load %arg1[%1606, %c8_401] : memref<8x80xf32, #tpu.memory_space<smem>>
    %1608 = arith.index_cast %1552 : i32 to index
    %c9_402 = arith.constant 9 : index
    %1609 = memref.load %arg1[%1608, %c9_402] : memref<8x80xf32, #tpu.memory_space<smem>>
    %1610 = arith.index_cast %1552 : i32 to index
    %c10_403 = arith.constant 10 : index
    %1611 = memref.load %arg1[%1610, %c10_403] : memref<8x80xf32, #tpu.memory_space<smem>>
    %1612 = arith.index_cast %1552 : i32 to index
    %c11_404 = arith.constant 11 : index
    %1613 = memref.load %arg1[%1612, %c11_404] : memref<8x80xf32, #tpu.memory_space<smem>>
    %1614 = arith.index_cast %1552 : i32 to index
    %c12_405 = arith.constant 12 : index
    %1615 = memref.load %arg1[%1614, %c12_405] : memref<8x80xf32, #tpu.memory_space<smem>>
    %1616 = arith.index_cast %1552 : i32 to index
    %c13_406 = arith.constant 13 : index
    %1617 = memref.load %arg1[%1616, %c13_406] : memref<8x80xf32, #tpu.memory_space<smem>>
    %1618 = arith.index_cast %1552 : i32 to index
    %c14_407 = arith.constant 14 : index
    %1619 = memref.load %arg1[%1618, %c14_407] : memref<8x80xf32, #tpu.memory_space<smem>>
    %1620 = vector.broadcast %1607 : f32 to vector<32x128xf32>
    %1621 = arith.subf %14, %1620 : vector<32x128xf32>
    %1622 = vector.broadcast %1609 : f32 to vector<32x128xf32>
    %1623 = arith.subf %9, %1622 : vector<32x128xf32>
    %1624 = arith.mulf %1621, %1621 : vector<32x128xf32>
    %1625 = arith.mulf %1623, %1623 : vector<32x128xf32>
    %1626 = arith.addf %1624, %1625 : vector<32x128xf32>
    %1627 = vector.broadcast %1611 : f32 to vector<32x128xf32>
    %1628 = arith.subf %1627, %1626 : vector<32x128xf32>
    %cst_408 = arith.constant 0.166666672 : f32
    %1629 = vector.broadcast %cst_408 : f32 to vector<32x128xf32>
    %1630 = arith.mulf %1628, %1629 : vector<32x128xf32>
    %cst_409 = arith.constant 5.000000e-01 : f32
    %1631 = vector.broadcast %cst_409 : f32 to vector<32x128xf32>
    %1632 = arith.addf %1630, %1631 : vector<32x128xf32>
    %cst_410 = arith.constant 0.000000e+00 : f32
    %cst_411 = arith.constant 1.000000e+00 : f32
    %1633 = vector.broadcast %cst_410 : f32 to vector<32x128xf32>
    %1634 = arith.maximumf %1633, %1632 : vector<32x128xf32>
    %1635 = vector.broadcast %cst_411 : f32 to vector<32x128xf32>
    %1636 = arith.minimumf %1635, %1634 : vector<32x128xf32>
    %1637 = arith.mulf %1636, %1636 : vector<32x128xf32>
    %cst_412 = arith.constant 2.000000e+00 : f32
    %1638 = vector.broadcast %cst_412 : f32 to vector<32x128xf32>
    %1639 = arith.mulf %1638, %1636 : vector<32x128xf32>
    %cst_413 = arith.constant 3.000000e+00 : f32
    %1640 = vector.broadcast %cst_413 : f32 to vector<32x128xf32>
    %1641 = arith.subf %1640, %1639 : vector<32x128xf32>
    %1642 = arith.mulf %1637, %1641 : vector<32x128xf32>
    %1643 = vector.broadcast %1613 : f32 to vector<32x128xf32>
    %1644 = arith.mulf %1643, %1642 : vector<32x128xf32>
    %1645 = vector.broadcast %1615 : f32 to vector<32x128xf32>
    %1646 = arith.mulf %1644, %1645 : vector<32x128xf32>
    %1647 = arith.addf %1598, %1646 : vector<32x128xf32>
    %1648 = vector.broadcast %1617 : f32 to vector<32x128xf32>
    %1649 = arith.mulf %1644, %1648 : vector<32x128xf32>
    %1650 = arith.addf %1601, %1649 : vector<32x128xf32>
    %1651 = vector.broadcast %1619 : f32 to vector<32x128xf32>
    %1652 = arith.mulf %1644, %1651 : vector<32x128xf32>
    %1653 = arith.addf %1604, %1652 : vector<32x128xf32>
    %1654 = arith.addf %1605, %1644 : vector<32x128xf32>
    %1655 = arith.index_cast %1552 : i32 to index
    %c16_414 = arith.constant 16 : index
    %1656 = memref.load %arg1[%1655, %c16_414] : memref<8x80xf32, #tpu.memory_space<smem>>
    %1657 = arith.index_cast %1552 : i32 to index
    %c17_415 = arith.constant 17 : index
    %1658 = memref.load %arg1[%1657, %c17_415] : memref<8x80xf32, #tpu.memory_space<smem>>
    %1659 = arith.index_cast %1552 : i32 to index
    %c18_416 = arith.constant 18 : index
    %1660 = memref.load %arg1[%1659, %c18_416] : memref<8x80xf32, #tpu.memory_space<smem>>
    %1661 = arith.index_cast %1552 : i32 to index
    %c19_417 = arith.constant 19 : index
    %1662 = memref.load %arg1[%1661, %c19_417] : memref<8x80xf32, #tpu.memory_space<smem>>
    %1663 = arith.index_cast %1552 : i32 to index
    %c20_418 = arith.constant 20 : index
    %1664 = memref.load %arg1[%1663, %c20_418] : memref<8x80xf32, #tpu.memory_space<smem>>
    %1665 = arith.index_cast %1552 : i32 to index
    %c21_419 = arith.constant 21 : index
    %1666 = memref.load %arg1[%1665, %c21_419] : memref<8x80xf32, #tpu.memory_space<smem>>
    %1667 = arith.index_cast %1552 : i32 to index
    %c22_420 = arith.constant 22 : index
    %1668 = memref.load %arg1[%1667, %c22_420] : memref<8x80xf32, #tpu.memory_space<smem>>
    %1669 = vector.broadcast %1656 : f32 to vector<32x128xf32>
    %1670 = arith.subf %14, %1669 : vector<32x128xf32>
    %1671 = vector.broadcast %1658 : f32 to vector<32x128xf32>
    %1672 = arith.subf %9, %1671 : vector<32x128xf32>
    %1673 = arith.mulf %1670, %1670 : vector<32x128xf32>
    %1674 = arith.mulf %1672, %1672 : vector<32x128xf32>
    %1675 = arith.addf %1673, %1674 : vector<32x128xf32>
    %1676 = vector.broadcast %1660 : f32 to vector<32x128xf32>
    %1677 = arith.subf %1676, %1675 : vector<32x128xf32>
    %cst_421 = arith.constant 0.166666672 : f32
    %1678 = vector.broadcast %cst_421 : f32 to vector<32x128xf32>
    %1679 = arith.mulf %1677, %1678 : vector<32x128xf32>
    %cst_422 = arith.constant 5.000000e-01 : f32
    %1680 = vector.broadcast %cst_422 : f32 to vector<32x128xf32>
    %1681 = arith.addf %1679, %1680 : vector<32x128xf32>
    %cst_423 = arith.constant 0.000000e+00 : f32
    %cst_424 = arith.constant 1.000000e+00 : f32
    %1682 = vector.broadcast %cst_423 : f32 to vector<32x128xf32>
    %1683 = arith.maximumf %1682, %1681 : vector<32x128xf32>
    %1684 = vector.broadcast %cst_424 : f32 to vector<32x128xf32>
    %1685 = arith.minimumf %1684, %1683 : vector<32x128xf32>
    %1686 = arith.mulf %1685, %1685 : vector<32x128xf32>
    %cst_425 = arith.constant 2.000000e+00 : f32
    %1687 = vector.broadcast %cst_425 : f32 to vector<32x128xf32>
    %1688 = arith.mulf %1687, %1685 : vector<32x128xf32>
    %cst_426 = arith.constant 3.000000e+00 : f32
    %1689 = vector.broadcast %cst_426 : f32 to vector<32x128xf32>
    %1690 = arith.subf %1689, %1688 : vector<32x128xf32>
    %1691 = arith.mulf %1686, %1690 : vector<32x128xf32>
    %1692 = vector.broadcast %1662 : f32 to vector<32x128xf32>
    %1693 = arith.mulf %1692, %1691 : vector<32x128xf32>
    %1694 = vector.broadcast %1664 : f32 to vector<32x128xf32>
    %1695 = arith.mulf %1693, %1694 : vector<32x128xf32>
    %1696 = arith.addf %1647, %1695 : vector<32x128xf32>
    %1697 = vector.broadcast %1666 : f32 to vector<32x128xf32>
    %1698 = arith.mulf %1693, %1697 : vector<32x128xf32>
    %1699 = arith.addf %1650, %1698 : vector<32x128xf32>
    %1700 = vector.broadcast %1668 : f32 to vector<32x128xf32>
    %1701 = arith.mulf %1693, %1700 : vector<32x128xf32>
    %1702 = arith.addf %1653, %1701 : vector<32x128xf32>
    %1703 = arith.addf %1654, %1693 : vector<32x128xf32>
    %1704 = arith.index_cast %1552 : i32 to index
    %c24_427 = arith.constant 24 : index
    %1705 = memref.load %arg1[%1704, %c24_427] : memref<8x80xf32, #tpu.memory_space<smem>>
    %1706 = arith.index_cast %1552 : i32 to index
    %c25_428 = arith.constant 25 : index
    %1707 = memref.load %arg1[%1706, %c25_428] : memref<8x80xf32, #tpu.memory_space<smem>>
    %1708 = arith.index_cast %1552 : i32 to index
    %c26_429 = arith.constant 26 : index
    %1709 = memref.load %arg1[%1708, %c26_429] : memref<8x80xf32, #tpu.memory_space<smem>>
    %1710 = arith.index_cast %1552 : i32 to index
    %c27_430 = arith.constant 27 : index
    %1711 = memref.load %arg1[%1710, %c27_430] : memref<8x80xf32, #tpu.memory_space<smem>>
    %1712 = arith.index_cast %1552 : i32 to index
    %c28_431 = arith.constant 28 : index
    %1713 = memref.load %arg1[%1712, %c28_431] : memref<8x80xf32, #tpu.memory_space<smem>>
    %1714 = arith.index_cast %1552 : i32 to index
    %c29_432 = arith.constant 29 : index
    %1715 = memref.load %arg1[%1714, %c29_432] : memref<8x80xf32, #tpu.memory_space<smem>>
    %1716 = arith.index_cast %1552 : i32 to index
    %c30_433 = arith.constant 30 : index
    %1717 = memref.load %arg1[%1716, %c30_433] : memref<8x80xf32, #tpu.memory_space<smem>>
    %1718 = vector.broadcast %1705 : f32 to vector<32x128xf32>
    %1719 = arith.subf %14, %1718 : vector<32x128xf32>
    %1720 = vector.broadcast %1707 : f32 to vector<32x128xf32>
    %1721 = arith.subf %9, %1720 : vector<32x128xf32>
    %1722 = arith.mulf %1719, %1719 : vector<32x128xf32>
    %1723 = arith.mulf %1721, %1721 : vector<32x128xf32>
    %1724 = arith.addf %1722, %1723 : vector<32x128xf32>
    %1725 = vector.broadcast %1709 : f32 to vector<32x128xf32>
    %1726 = arith.subf %1725, %1724 : vector<32x128xf32>
    %cst_434 = arith.constant 0.166666672 : f32
    %1727 = vector.broadcast %cst_434 : f32 to vector<32x128xf32>
    %1728 = arith.mulf %1726, %1727 : vector<32x128xf32>
    %cst_435 = arith.constant 5.000000e-01 : f32
    %1729 = vector.broadcast %cst_435 : f32 to vector<32x128xf32>
    %1730 = arith.addf %1728, %1729 : vector<32x128xf32>
    %cst_436 = arith.constant 0.000000e+00 : f32
    %cst_437 = arith.constant 1.000000e+00 : f32
    %1731 = vector.broadcast %cst_436 : f32 to vector<32x128xf32>
    %1732 = arith.maximumf %1731, %1730 : vector<32x128xf32>
    %1733 = vector.broadcast %cst_437 : f32 to vector<32x128xf32>
    %1734 = arith.minimumf %1733, %1732 : vector<32x128xf32>
    %1735 = arith.mulf %1734, %1734 : vector<32x128xf32>
    %cst_438 = arith.constant 2.000000e+00 : f32
    %1736 = vector.broadcast %cst_438 : f32 to vector<32x128xf32>
    %1737 = arith.mulf %1736, %1734 : vector<32x128xf32>
    %cst_439 = arith.constant 3.000000e+00 : f32
    %1738 = vector.broadcast %cst_439 : f32 to vector<32x128xf32>
    %1739 = arith.subf %1738, %1737 : vector<32x128xf32>
    %1740 = arith.mulf %1735, %1739 : vector<32x128xf32>
    %1741 = vector.broadcast %1711 : f32 to vector<32x128xf32>
    %1742 = arith.mulf %1741, %1740 : vector<32x128xf32>
    %1743 = vector.broadcast %1713 : f32 to vector<32x128xf32>
    %1744 = arith.mulf %1742, %1743 : vector<32x128xf32>
    %1745 = arith.addf %1696, %1744 : vector<32x128xf32>
    %1746 = vector.broadcast %1715 : f32 to vector<32x128xf32>
    %1747 = arith.mulf %1742, %1746 : vector<32x128xf32>
    %1748 = arith.addf %1699, %1747 : vector<32x128xf32>
    %1749 = vector.broadcast %1717 : f32 to vector<32x128xf32>
    %1750 = arith.mulf %1742, %1749 : vector<32x128xf32>
    %1751 = arith.addf %1702, %1750 : vector<32x128xf32>
    %1752 = arith.addf %1703, %1742 : vector<32x128xf32>
    %1753 = arith.index_cast %1552 : i32 to index
    %c32_440 = arith.constant 32 : index
    %1754 = memref.load %arg1[%1753, %c32_440] : memref<8x80xf32, #tpu.memory_space<smem>>
    %1755 = arith.index_cast %1552 : i32 to index
    %c33_441 = arith.constant 33 : index
    %1756 = memref.load %arg1[%1755, %c33_441] : memref<8x80xf32, #tpu.memory_space<smem>>
    %1757 = arith.index_cast %1552 : i32 to index
    %c34_442 = arith.constant 34 : index
    %1758 = memref.load %arg1[%1757, %c34_442] : memref<8x80xf32, #tpu.memory_space<smem>>
    %1759 = arith.index_cast %1552 : i32 to index
    %c35_443 = arith.constant 35 : index
    %1760 = memref.load %arg1[%1759, %c35_443] : memref<8x80xf32, #tpu.memory_space<smem>>
    %1761 = arith.index_cast %1552 : i32 to index
    %c36_444 = arith.constant 36 : index
    %1762 = memref.load %arg1[%1761, %c36_444] : memref<8x80xf32, #tpu.memory_space<smem>>
    %1763 = arith.index_cast %1552 : i32 to index
    %c37_445 = arith.constant 37 : index
    %1764 = memref.load %arg1[%1763, %c37_445] : memref<8x80xf32, #tpu.memory_space<smem>>
    %1765 = arith.index_cast %1552 : i32 to index
    %c38_446 = arith.constant 38 : index
    %1766 = memref.load %arg1[%1765, %c38_446] : memref<8x80xf32, #tpu.memory_space<smem>>
    %1767 = vector.broadcast %1754 : f32 to vector<32x128xf32>
    %1768 = arith.subf %14, %1767 : vector<32x128xf32>
    %1769 = vector.broadcast %1756 : f32 to vector<32x128xf32>
    %1770 = arith.subf %9, %1769 : vector<32x128xf32>
    %1771 = arith.mulf %1768, %1768 : vector<32x128xf32>
    %1772 = arith.mulf %1770, %1770 : vector<32x128xf32>
    %1773 = arith.addf %1771, %1772 : vector<32x128xf32>
    %1774 = vector.broadcast %1758 : f32 to vector<32x128xf32>
    %1775 = arith.subf %1774, %1773 : vector<32x128xf32>
    %cst_447 = arith.constant 0.166666672 : f32
    %1776 = vector.broadcast %cst_447 : f32 to vector<32x128xf32>
    %1777 = arith.mulf %1775, %1776 : vector<32x128xf32>
    %cst_448 = arith.constant 5.000000e-01 : f32
    %1778 = vector.broadcast %cst_448 : f32 to vector<32x128xf32>
    %1779 = arith.addf %1777, %1778 : vector<32x128xf32>
    %cst_449 = arith.constant 0.000000e+00 : f32
    %cst_450 = arith.constant 1.000000e+00 : f32
    %1780 = vector.broadcast %cst_449 : f32 to vector<32x128xf32>
    %1781 = arith.maximumf %1780, %1779 : vector<32x128xf32>
    %1782 = vector.broadcast %cst_450 : f32 to vector<32x128xf32>
    %1783 = arith.minimumf %1782, %1781 : vector<32x128xf32>
    %1784 = arith.mulf %1783, %1783 : vector<32x128xf32>
    %cst_451 = arith.constant 2.000000e+00 : f32
    %1785 = vector.broadcast %cst_451 : f32 to vector<32x128xf32>
    %1786 = arith.mulf %1785, %1783 : vector<32x128xf32>
    %cst_452 = arith.constant 3.000000e+00 : f32
    %1787 = vector.broadcast %cst_452 : f32 to vector<32x128xf32>
    %1788 = arith.subf %1787, %1786 : vector<32x128xf32>
    %1789 = arith.mulf %1784, %1788 : vector<32x128xf32>
    %1790 = vector.broadcast %1760 : f32 to vector<32x128xf32>
    %1791 = arith.mulf %1790, %1789 : vector<32x128xf32>
    %1792 = vector.broadcast %1762 : f32 to vector<32x128xf32>
    %1793 = arith.mulf %1791, %1792 : vector<32x128xf32>
    %1794 = arith.addf %1745, %1793 : vector<32x128xf32>
    %1795 = vector.broadcast %1764 : f32 to vector<32x128xf32>
    %1796 = arith.mulf %1791, %1795 : vector<32x128xf32>
    %1797 = arith.addf %1748, %1796 : vector<32x128xf32>
    %1798 = vector.broadcast %1766 : f32 to vector<32x128xf32>
    %1799 = arith.mulf %1791, %1798 : vector<32x128xf32>
    %1800 = arith.addf %1751, %1799 : vector<32x128xf32>
    %1801 = arith.addf %1752, %1791 : vector<32x128xf32>
    %1802 = arith.index_cast %1552 : i32 to index
    %c40_453 = arith.constant 40 : index
    %1803 = memref.load %arg1[%1802, %c40_453] : memref<8x80xf32, #tpu.memory_space<smem>>
    %1804 = arith.index_cast %1552 : i32 to index
    %c41_454 = arith.constant 41 : index
    %1805 = memref.load %arg1[%1804, %c41_454] : memref<8x80xf32, #tpu.memory_space<smem>>
    %1806 = arith.index_cast %1552 : i32 to index
    %c42_455 = arith.constant 42 : index
    %1807 = memref.load %arg1[%1806, %c42_455] : memref<8x80xf32, #tpu.memory_space<smem>>
    %1808 = arith.index_cast %1552 : i32 to index
    %c43_456 = arith.constant 43 : index
    %1809 = memref.load %arg1[%1808, %c43_456] : memref<8x80xf32, #tpu.memory_space<smem>>
    %1810 = arith.index_cast %1552 : i32 to index
    %c44_457 = arith.constant 44 : index
    %1811 = memref.load %arg1[%1810, %c44_457] : memref<8x80xf32, #tpu.memory_space<smem>>
    %1812 = arith.index_cast %1552 : i32 to index
    %c45_458 = arith.constant 45 : index
    %1813 = memref.load %arg1[%1812, %c45_458] : memref<8x80xf32, #tpu.memory_space<smem>>
    %1814 = arith.index_cast %1552 : i32 to index
    %c46_459 = arith.constant 46 : index
    %1815 = memref.load %arg1[%1814, %c46_459] : memref<8x80xf32, #tpu.memory_space<smem>>
    %1816 = vector.broadcast %1803 : f32 to vector<32x128xf32>
    %1817 = arith.subf %14, %1816 : vector<32x128xf32>
    %1818 = vector.broadcast %1805 : f32 to vector<32x128xf32>
    %1819 = arith.subf %9, %1818 : vector<32x128xf32>
    %1820 = arith.mulf %1817, %1817 : vector<32x128xf32>
    %1821 = arith.mulf %1819, %1819 : vector<32x128xf32>
    %1822 = arith.addf %1820, %1821 : vector<32x128xf32>
    %1823 = vector.broadcast %1807 : f32 to vector<32x128xf32>
    %1824 = arith.subf %1823, %1822 : vector<32x128xf32>
    %cst_460 = arith.constant 0.166666672 : f32
    %1825 = vector.broadcast %cst_460 : f32 to vector<32x128xf32>
    %1826 = arith.mulf %1824, %1825 : vector<32x128xf32>
    %cst_461 = arith.constant 5.000000e-01 : f32
    %1827 = vector.broadcast %cst_461 : f32 to vector<32x128xf32>
    %1828 = arith.addf %1826, %1827 : vector<32x128xf32>
    %cst_462 = arith.constant 0.000000e+00 : f32
    %cst_463 = arith.constant 1.000000e+00 : f32
    %1829 = vector.broadcast %cst_462 : f32 to vector<32x128xf32>
    %1830 = arith.maximumf %1829, %1828 : vector<32x128xf32>
    %1831 = vector.broadcast %cst_463 : f32 to vector<32x128xf32>
    %1832 = arith.minimumf %1831, %1830 : vector<32x128xf32>
    %1833 = arith.mulf %1832, %1832 : vector<32x128xf32>
    %cst_464 = arith.constant 2.000000e+00 : f32
    %1834 = vector.broadcast %cst_464 : f32 to vector<32x128xf32>
    %1835 = arith.mulf %1834, %1832 : vector<32x128xf32>
    %cst_465 = arith.constant 3.000000e+00 : f32
    %1836 = vector.broadcast %cst_465 : f32 to vector<32x128xf32>
    %1837 = arith.subf %1836, %1835 : vector<32x128xf32>
    %1838 = arith.mulf %1833, %1837 : vector<32x128xf32>
    %1839 = vector.broadcast %1809 : f32 to vector<32x128xf32>
    %1840 = arith.mulf %1839, %1838 : vector<32x128xf32>
    %1841 = vector.broadcast %1811 : f32 to vector<32x128xf32>
    %1842 = arith.mulf %1840, %1841 : vector<32x128xf32>
    %1843 = arith.addf %1794, %1842 : vector<32x128xf32>
    %1844 = vector.broadcast %1813 : f32 to vector<32x128xf32>
    %1845 = arith.mulf %1840, %1844 : vector<32x128xf32>
    %1846 = arith.addf %1797, %1845 : vector<32x128xf32>
    %1847 = vector.broadcast %1815 : f32 to vector<32x128xf32>
    %1848 = arith.mulf %1840, %1847 : vector<32x128xf32>
    %1849 = arith.addf %1800, %1848 : vector<32x128xf32>
    %1850 = arith.addf %1801, %1840 : vector<32x128xf32>
    %1851 = arith.index_cast %1552 : i32 to index
    %c48_466 = arith.constant 48 : index
    %1852 = memref.load %arg1[%1851, %c48_466] : memref<8x80xf32, #tpu.memory_space<smem>>
    %1853 = arith.index_cast %1552 : i32 to index
    %c49_467 = arith.constant 49 : index
    %1854 = memref.load %arg1[%1853, %c49_467] : memref<8x80xf32, #tpu.memory_space<smem>>
    %1855 = arith.index_cast %1552 : i32 to index
    %c50_468 = arith.constant 50 : index
    %1856 = memref.load %arg1[%1855, %c50_468] : memref<8x80xf32, #tpu.memory_space<smem>>
    %1857 = arith.index_cast %1552 : i32 to index
    %c51_469 = arith.constant 51 : index
    %1858 = memref.load %arg1[%1857, %c51_469] : memref<8x80xf32, #tpu.memory_space<smem>>
    %1859 = arith.index_cast %1552 : i32 to index
    %c52_470 = arith.constant 52 : index
    %1860 = memref.load %arg1[%1859, %c52_470] : memref<8x80xf32, #tpu.memory_space<smem>>
    %1861 = arith.index_cast %1552 : i32 to index
    %c53_471 = arith.constant 53 : index
    %1862 = memref.load %arg1[%1861, %c53_471] : memref<8x80xf32, #tpu.memory_space<smem>>
    %1863 = arith.index_cast %1552 : i32 to index
    %c54_472 = arith.constant 54 : index
    %1864 = memref.load %arg1[%1863, %c54_472] : memref<8x80xf32, #tpu.memory_space<smem>>
    %1865 = vector.broadcast %1852 : f32 to vector<32x128xf32>
    %1866 = arith.subf %14, %1865 : vector<32x128xf32>
    %1867 = vector.broadcast %1854 : f32 to vector<32x128xf32>
    %1868 = arith.subf %9, %1867 : vector<32x128xf32>
    %1869 = arith.mulf %1866, %1866 : vector<32x128xf32>
    %1870 = arith.mulf %1868, %1868 : vector<32x128xf32>
    %1871 = arith.addf %1869, %1870 : vector<32x128xf32>
    %1872 = vector.broadcast %1856 : f32 to vector<32x128xf32>
    %1873 = arith.subf %1872, %1871 : vector<32x128xf32>
    %cst_473 = arith.constant 0.166666672 : f32
    %1874 = vector.broadcast %cst_473 : f32 to vector<32x128xf32>
    %1875 = arith.mulf %1873, %1874 : vector<32x128xf32>
    %cst_474 = arith.constant 5.000000e-01 : f32
    %1876 = vector.broadcast %cst_474 : f32 to vector<32x128xf32>
    %1877 = arith.addf %1875, %1876 : vector<32x128xf32>
    %cst_475 = arith.constant 0.000000e+00 : f32
    %cst_476 = arith.constant 1.000000e+00 : f32
    %1878 = vector.broadcast %cst_475 : f32 to vector<32x128xf32>
    %1879 = arith.maximumf %1878, %1877 : vector<32x128xf32>
    %1880 = vector.broadcast %cst_476 : f32 to vector<32x128xf32>
    %1881 = arith.minimumf %1880, %1879 : vector<32x128xf32>
    %1882 = arith.mulf %1881, %1881 : vector<32x128xf32>
    %cst_477 = arith.constant 2.000000e+00 : f32
    %1883 = vector.broadcast %cst_477 : f32 to vector<32x128xf32>
    %1884 = arith.mulf %1883, %1881 : vector<32x128xf32>
    %cst_478 = arith.constant 3.000000e+00 : f32
    %1885 = vector.broadcast %cst_478 : f32 to vector<32x128xf32>
    %1886 = arith.subf %1885, %1884 : vector<32x128xf32>
    %1887 = arith.mulf %1882, %1886 : vector<32x128xf32>
    %1888 = vector.broadcast %1858 : f32 to vector<32x128xf32>
    %1889 = arith.mulf %1888, %1887 : vector<32x128xf32>
    %1890 = vector.broadcast %1860 : f32 to vector<32x128xf32>
    %1891 = arith.mulf %1889, %1890 : vector<32x128xf32>
    %1892 = arith.addf %1843, %1891 : vector<32x128xf32>
    %1893 = vector.broadcast %1862 : f32 to vector<32x128xf32>
    %1894 = arith.mulf %1889, %1893 : vector<32x128xf32>
    %1895 = arith.addf %1846, %1894 : vector<32x128xf32>
    %1896 = vector.broadcast %1864 : f32 to vector<32x128xf32>
    %1897 = arith.mulf %1889, %1896 : vector<32x128xf32>
    %1898 = arith.addf %1849, %1897 : vector<32x128xf32>
    %1899 = arith.addf %1850, %1889 : vector<32x128xf32>
    %1900 = arith.index_cast %1552 : i32 to index
    %c56_479 = arith.constant 56 : index
    %1901 = memref.load %arg1[%1900, %c56_479] : memref<8x80xf32, #tpu.memory_space<smem>>
    %1902 = arith.index_cast %1552 : i32 to index
    %c57_480 = arith.constant 57 : index
    %1903 = memref.load %arg1[%1902, %c57_480] : memref<8x80xf32, #tpu.memory_space<smem>>
    %1904 = arith.index_cast %1552 : i32 to index
    %c58_481 = arith.constant 58 : index
    %1905 = memref.load %arg1[%1904, %c58_481] : memref<8x80xf32, #tpu.memory_space<smem>>
    %1906 = arith.index_cast %1552 : i32 to index
    %c59_482 = arith.constant 59 : index
    %1907 = memref.load %arg1[%1906, %c59_482] : memref<8x80xf32, #tpu.memory_space<smem>>
    %1908 = arith.index_cast %1552 : i32 to index
    %c60_483 = arith.constant 60 : index
    %1909 = memref.load %arg1[%1908, %c60_483] : memref<8x80xf32, #tpu.memory_space<smem>>
    %1910 = arith.index_cast %1552 : i32 to index
    %c61_484 = arith.constant 61 : index
    %1911 = memref.load %arg1[%1910, %c61_484] : memref<8x80xf32, #tpu.memory_space<smem>>
    %1912 = arith.index_cast %1552 : i32 to index
    %c62_485 = arith.constant 62 : index
    %1913 = memref.load %arg1[%1912, %c62_485] : memref<8x80xf32, #tpu.memory_space<smem>>
    %1914 = vector.broadcast %1901 : f32 to vector<32x128xf32>
    %1915 = arith.subf %14, %1914 : vector<32x128xf32>
    %1916 = vector.broadcast %1903 : f32 to vector<32x128xf32>
    %1917 = arith.subf %9, %1916 : vector<32x128xf32>
    %1918 = arith.mulf %1915, %1915 : vector<32x128xf32>
    %1919 = arith.mulf %1917, %1917 : vector<32x128xf32>
    %1920 = arith.addf %1918, %1919 : vector<32x128xf32>
    %1921 = vector.broadcast %1905 : f32 to vector<32x128xf32>
    %1922 = arith.subf %1921, %1920 : vector<32x128xf32>
    %cst_486 = arith.constant 0.166666672 : f32
    %1923 = vector.broadcast %cst_486 : f32 to vector<32x128xf32>
    %1924 = arith.mulf %1922, %1923 : vector<32x128xf32>
    %cst_487 = arith.constant 5.000000e-01 : f32
    %1925 = vector.broadcast %cst_487 : f32 to vector<32x128xf32>
    %1926 = arith.addf %1924, %1925 : vector<32x128xf32>
    %cst_488 = arith.constant 0.000000e+00 : f32
    %cst_489 = arith.constant 1.000000e+00 : f32
    %1927 = vector.broadcast %cst_488 : f32 to vector<32x128xf32>
    %1928 = arith.maximumf %1927, %1926 : vector<32x128xf32>
    %1929 = vector.broadcast %cst_489 : f32 to vector<32x128xf32>
    %1930 = arith.minimumf %1929, %1928 : vector<32x128xf32>
    %1931 = arith.mulf %1930, %1930 : vector<32x128xf32>
    %cst_490 = arith.constant 2.000000e+00 : f32
    %1932 = vector.broadcast %cst_490 : f32 to vector<32x128xf32>
    %1933 = arith.mulf %1932, %1930 : vector<32x128xf32>
    %cst_491 = arith.constant 3.000000e+00 : f32
    %1934 = vector.broadcast %cst_491 : f32 to vector<32x128xf32>
    %1935 = arith.subf %1934, %1933 : vector<32x128xf32>
    %1936 = arith.mulf %1931, %1935 : vector<32x128xf32>
    %1937 = vector.broadcast %1907 : f32 to vector<32x128xf32>
    %1938 = arith.mulf %1937, %1936 : vector<32x128xf32>
    %1939 = vector.broadcast %1909 : f32 to vector<32x128xf32>
    %1940 = arith.mulf %1938, %1939 : vector<32x128xf32>
    %1941 = arith.addf %1892, %1940 : vector<32x128xf32>
    %1942 = vector.broadcast %1911 : f32 to vector<32x128xf32>
    %1943 = arith.mulf %1938, %1942 : vector<32x128xf32>
    %1944 = arith.addf %1895, %1943 : vector<32x128xf32>
    %1945 = vector.broadcast %1913 : f32 to vector<32x128xf32>
    %1946 = arith.mulf %1938, %1945 : vector<32x128xf32>
    %1947 = arith.addf %1898, %1946 : vector<32x128xf32>
    %1948 = arith.addf %1899, %1938 : vector<32x128xf32>
    %1949 = arith.index_cast %1552 : i32 to index
    %c64_492 = arith.constant 64 : index
    %1950 = memref.load %arg1[%1949, %c64_492] : memref<8x80xf32, #tpu.memory_space<smem>>
    %1951 = arith.index_cast %1552 : i32 to index
    %c65_493 = arith.constant 65 : index
    %1952 = memref.load %arg1[%1951, %c65_493] : memref<8x80xf32, #tpu.memory_space<smem>>
    %1953 = arith.index_cast %1552 : i32 to index
    %c66_494 = arith.constant 66 : index
    %1954 = memref.load %arg1[%1953, %c66_494] : memref<8x80xf32, #tpu.memory_space<smem>>
    %1955 = arith.index_cast %1552 : i32 to index
    %c67_495 = arith.constant 67 : index
    %1956 = memref.load %arg1[%1955, %c67_495] : memref<8x80xf32, #tpu.memory_space<smem>>
    %1957 = arith.index_cast %1552 : i32 to index
    %c68_496 = arith.constant 68 : index
    %1958 = memref.load %arg1[%1957, %c68_496] : memref<8x80xf32, #tpu.memory_space<smem>>
    %1959 = arith.index_cast %1552 : i32 to index
    %c69_497 = arith.constant 69 : index
    %1960 = memref.load %arg1[%1959, %c69_497] : memref<8x80xf32, #tpu.memory_space<smem>>
    %1961 = arith.index_cast %1552 : i32 to index
    %c70_498 = arith.constant 70 : index
    %1962 = memref.load %arg1[%1961, %c70_498] : memref<8x80xf32, #tpu.memory_space<smem>>
    %1963 = vector.broadcast %1950 : f32 to vector<32x128xf32>
    %1964 = arith.subf %14, %1963 : vector<32x128xf32>
    %1965 = vector.broadcast %1952 : f32 to vector<32x128xf32>
    %1966 = arith.subf %9, %1965 : vector<32x128xf32>
    %1967 = arith.mulf %1964, %1964 : vector<32x128xf32>
    %1968 = arith.mulf %1966, %1966 : vector<32x128xf32>
    %1969 = arith.addf %1967, %1968 : vector<32x128xf32>
    %1970 = vector.broadcast %1954 : f32 to vector<32x128xf32>
    %1971 = arith.subf %1970, %1969 : vector<32x128xf32>
    %cst_499 = arith.constant 0.166666672 : f32
    %1972 = vector.broadcast %cst_499 : f32 to vector<32x128xf32>
    %1973 = arith.mulf %1971, %1972 : vector<32x128xf32>
    %cst_500 = arith.constant 5.000000e-01 : f32
    %1974 = vector.broadcast %cst_500 : f32 to vector<32x128xf32>
    %1975 = arith.addf %1973, %1974 : vector<32x128xf32>
    %cst_501 = arith.constant 0.000000e+00 : f32
    %cst_502 = arith.constant 1.000000e+00 : f32
    %1976 = vector.broadcast %cst_501 : f32 to vector<32x128xf32>
    %1977 = arith.maximumf %1976, %1975 : vector<32x128xf32>
    %1978 = vector.broadcast %cst_502 : f32 to vector<32x128xf32>
    %1979 = arith.minimumf %1978, %1977 : vector<32x128xf32>
    %1980 = arith.mulf %1979, %1979 : vector<32x128xf32>
    %cst_503 = arith.constant 2.000000e+00 : f32
    %1981 = vector.broadcast %cst_503 : f32 to vector<32x128xf32>
    %1982 = arith.mulf %1981, %1979 : vector<32x128xf32>
    %cst_504 = arith.constant 3.000000e+00 : f32
    %1983 = vector.broadcast %cst_504 : f32 to vector<32x128xf32>
    %1984 = arith.subf %1983, %1982 : vector<32x128xf32>
    %1985 = arith.mulf %1980, %1984 : vector<32x128xf32>
    %1986 = vector.broadcast %1956 : f32 to vector<32x128xf32>
    %1987 = arith.mulf %1986, %1985 : vector<32x128xf32>
    %1988 = vector.broadcast %1958 : f32 to vector<32x128xf32>
    %1989 = arith.mulf %1987, %1988 : vector<32x128xf32>
    %1990 = arith.addf %1941, %1989 : vector<32x128xf32>
    %1991 = vector.broadcast %1960 : f32 to vector<32x128xf32>
    %1992 = arith.mulf %1987, %1991 : vector<32x128xf32>
    %1993 = arith.addf %1944, %1992 : vector<32x128xf32>
    %1994 = vector.broadcast %1962 : f32 to vector<32x128xf32>
    %1995 = arith.mulf %1987, %1994 : vector<32x128xf32>
    %1996 = arith.addf %1947, %1995 : vector<32x128xf32>
    %1997 = arith.addf %1948, %1987 : vector<32x128xf32>
    %1998 = arith.index_cast %1552 : i32 to index
    %c72_505 = arith.constant 72 : index
    %1999 = memref.load %arg1[%1998, %c72_505] : memref<8x80xf32, #tpu.memory_space<smem>>
    %2000 = arith.index_cast %1552 : i32 to index
    %c73_506 = arith.constant 73 : index
    %2001 = memref.load %arg1[%2000, %c73_506] : memref<8x80xf32, #tpu.memory_space<smem>>
    %2002 = arith.index_cast %1552 : i32 to index
    %c74_507 = arith.constant 74 : index
    %2003 = memref.load %arg1[%2002, %c74_507] : memref<8x80xf32, #tpu.memory_space<smem>>
    %2004 = arith.index_cast %1552 : i32 to index
    %c75_508 = arith.constant 75 : index
    %2005 = memref.load %arg1[%2004, %c75_508] : memref<8x80xf32, #tpu.memory_space<smem>>
    %2006 = arith.index_cast %1552 : i32 to index
    %c76_509 = arith.constant 76 : index
    %2007 = memref.load %arg1[%2006, %c76_509] : memref<8x80xf32, #tpu.memory_space<smem>>
    %2008 = arith.index_cast %1552 : i32 to index
    %c77_510 = arith.constant 77 : index
    %2009 = memref.load %arg1[%2008, %c77_510] : memref<8x80xf32, #tpu.memory_space<smem>>
    %2010 = arith.index_cast %1552 : i32 to index
    %c78_511 = arith.constant 78 : index
    %2011 = memref.load %arg1[%2010, %c78_511] : memref<8x80xf32, #tpu.memory_space<smem>>
    %2012 = vector.broadcast %1999 : f32 to vector<32x128xf32>
    %2013 = arith.subf %14, %2012 : vector<32x128xf32>
    %2014 = vector.broadcast %2001 : f32 to vector<32x128xf32>
    %2015 = arith.subf %9, %2014 : vector<32x128xf32>
    %2016 = arith.mulf %2013, %2013 : vector<32x128xf32>
    %2017 = arith.mulf %2015, %2015 : vector<32x128xf32>
    %2018 = arith.addf %2016, %2017 : vector<32x128xf32>
    %2019 = vector.broadcast %2003 : f32 to vector<32x128xf32>
    %2020 = arith.subf %2019, %2018 : vector<32x128xf32>
    %cst_512 = arith.constant 0.166666672 : f32
    %2021 = vector.broadcast %cst_512 : f32 to vector<32x128xf32>
    %2022 = arith.mulf %2020, %2021 : vector<32x128xf32>
    %cst_513 = arith.constant 5.000000e-01 : f32
    %2023 = vector.broadcast %cst_513 : f32 to vector<32x128xf32>
    %2024 = arith.addf %2022, %2023 : vector<32x128xf32>
    %cst_514 = arith.constant 0.000000e+00 : f32
    %cst_515 = arith.constant 1.000000e+00 : f32
    %2025 = vector.broadcast %cst_514 : f32 to vector<32x128xf32>
    %2026 = arith.maximumf %2025, %2024 : vector<32x128xf32>
    %2027 = vector.broadcast %cst_515 : f32 to vector<32x128xf32>
    %2028 = arith.minimumf %2027, %2026 : vector<32x128xf32>
    %2029 = arith.mulf %2028, %2028 : vector<32x128xf32>
    %cst_516 = arith.constant 2.000000e+00 : f32
    %2030 = vector.broadcast %cst_516 : f32 to vector<32x128xf32>
    %2031 = arith.mulf %2030, %2028 : vector<32x128xf32>
    %cst_517 = arith.constant 3.000000e+00 : f32
    %2032 = vector.broadcast %cst_517 : f32 to vector<32x128xf32>
    %2033 = arith.subf %2032, %2031 : vector<32x128xf32>
    %2034 = arith.mulf %2029, %2033 : vector<32x128xf32>
    %2035 = vector.broadcast %2005 : f32 to vector<32x128xf32>
    %2036 = arith.mulf %2035, %2034 : vector<32x128xf32>
    %2037 = vector.broadcast %2007 : f32 to vector<32x128xf32>
    %2038 = arith.mulf %2036, %2037 : vector<32x128xf32>
    %2039 = arith.addf %1990, %2038 : vector<32x128xf32>
    %2040 = vector.broadcast %2009 : f32 to vector<32x128xf32>
    %2041 = arith.mulf %2036, %2040 : vector<32x128xf32>
    %2042 = arith.addf %1993, %2041 : vector<32x128xf32>
    %2043 = vector.broadcast %2011 : f32 to vector<32x128xf32>
    %2044 = arith.mulf %2036, %2043 : vector<32x128xf32>
    %2045 = arith.addf %1996, %2044 : vector<32x128xf32>
    %2046 = arith.addf %1997, %2036 : vector<32x128xf32>
    %2047 = tpu.reciprocal %2046 {approx = true} : vector<32x128xf32> -> vector<32x128xf32>
    %2048 = arith.mulf %2039, %2047 : vector<32x128xf32>
    %c3_518 = arith.constant 3 : index
    %c0_519 = arith.constant 0 : index
    %c0_520 = arith.constant 0 : index
    %c0_521 = arith.constant 0 : index
    %2049 = vector.load %arg2[%c3_518, %c0_519, %c0_520, %c0_521] : memref<4x4x32x128xf32, #tpu.memory_space<vmem>>, vector<1x1x32x128xf32>
    %2050 = vector.shape_cast %2049 : vector<1x1x32x128xf32> to vector<32x128xf32>
    %2051 = vector.shape_cast %2048 : vector<32x128xf32> to vector<1x1x32x128xf32>
    tpu.vector_store %arg2[%c3_518, %c0_519, %c0_520, %c0_521], %2051 {strides = array<i32>} : memref<4x4x32x128xf32, #tpu.memory_space<vmem>>, vector<1x1x32x128xf32>,
    %2052 = arith.mulf %2042, %2047 : vector<32x128xf32>
    %c3_522 = arith.constant 3 : index
    %c1_523 = arith.constant 1 : index
    %c0_524 = arith.constant 0 : index
    %c0_525 = arith.constant 0 : index
    %2053 = vector.load %arg2[%c3_522, %c1_523, %c0_524, %c0_525] : memref<4x4x32x128xf32, #tpu.memory_space<vmem>>, vector<1x1x32x128xf32>
    %2054 = vector.shape_cast %2053 : vector<1x1x32x128xf32> to vector<32x128xf32>
    %2055 = vector.shape_cast %2052 : vector<32x128xf32> to vector<1x1x32x128xf32>
    tpu.vector_store %arg2[%c3_522, %c1_523, %c0_524, %c0_525], %2055 {strides = array<i32>} : memref<4x4x32x128xf32, #tpu.memory_space<vmem>>, vector<1x1x32x128xf32>,
    %2056 = arith.mulf %2045, %2047 : vector<32x128xf32>
    %c3_526 = arith.constant 3 : index
    %c2_527 = arith.constant 2 : index
    %c0_528 = arith.constant 0 : index
    %c0_529 = arith.constant 0 : index
    %2057 = vector.load %arg2[%c3_526, %c2_527, %c0_528, %c0_529] : memref<4x4x32x128xf32, #tpu.memory_space<vmem>>, vector<1x1x32x128xf32>
    %2058 = vector.shape_cast %2057 : vector<1x1x32x128xf32> to vector<32x128xf32>
    %2059 = vector.shape_cast %2056 : vector<32x128xf32> to vector<1x1x32x128xf32>
    tpu.vector_store %arg2[%c3_526, %c2_527, %c0_528, %c0_529], %2059 {strides = array<i32>} : memref<4x4x32x128xf32, #tpu.memory_space<vmem>>, vector<1x1x32x128xf32>,
    %c3_530 = arith.constant 3 : index
    %c3_531 = arith.constant 3 : index
    %c0_532 = arith.constant 0 : index
    %c0_533 = arith.constant 0 : index
    %2060 = vector.load %arg2[%c3_530, %c3_531, %c0_532, %c0_533] : memref<4x4x32x128xf32, #tpu.memory_space<vmem>>, vector<1x1x32x128xf32>
    %2061 = vector.shape_cast %2060 : vector<1x1x32x128xf32> to vector<32x128xf32>
    %2062 = vector.shape_cast %2046 : vector<32x128xf32> to vector<1x1x32x128xf32>
    tpu.vector_store %arg2[%c3_530, %c3_531, %c0_532, %c0_533], %2062 {strides = array<i32>} : memref<4x4x32x128xf32, #tpu.memory_space<vmem>>, vector<1x1x32x128xf32>,
    return
  }
  func.func @transform_0(%arg0: i32) -> (i32, i32) {
    %c0_i32 = arith.constant 0 : i32
    %c0_i32_0 = arith.constant 0 : i32
    %c0_i32_1 = arith.constant 0 : i32
    return %c0_i32, %c0_i32_0 : i32, i32
  }
  func.func @transform_1(%arg0: i32) -> (i32, i32, i32, i32) {
    %c0_i32 = arith.constant 0 : i32
    %c0_i32_0 = arith.constant 0 : i32
    %c0_i32_1 = arith.constant 0 : i32
    %c0_i32_2 = arith.constant 0 : i32
    return %arg0, %c0_i32, %c0_i32_0, %c0_i32_1 : i32, i32, i32, i32
  }
}

</mosaic_0001>

<llo_original>
// kernel: _render.1
$region0: #{_render.1}
  #allocation0 [shape = 'u32[]', space=smem, size = 0x4, offset = 0x4, fixed_abs, tag = 'smem constant byte address 0x4 - core index']
  #allocation1 [shape = 'u32[72,128]{1,0:T(1,128)}', space=vmem, size = 0x9000, scoped, tag = 'internal scratch']
  %s0 = inlined_call_operand.vmem [shape: f32[8,80], index: 0, kind: input, shape index: {}]
  %s1 = inlined_call_operand.vmem [shape: f32[8,4,32,128], index: 1, kind: output, shape index: {}]
  %s2 = sld [smem:[#allocation0]]
  $region41: #{_render.1} parent=0
    _
  %s4 = ssub.s32 1, %s2
  %s5 = scalar_select 0, %s4, %s2
  $region1: #{_render.1} parent=0
    #allocation2 [shape = 'u8[4096]{0}', space=smem, size = 0x1000, scoped, tag = 'input window, operand 0, single buffered']
    #allocation3 [shape = 's32[2]{0}', space=sflag, size = 0x8, scoped, tag = 'scoped memory for _render.1']
    %6 = vsyncpa [#allocation3], 0
    loop: start=0, step=1, limit=4
    $region2: #{_render.1} parent=1 // loop_pre_header
      _
    $region3: #{_render.1} parent=1 // loop_header
      %s8 = sphi 0, %s12
      %p9 = scmp.ge.s32.totalorder %s8, 4
      %s16 = sphi 0, %s16
      %s18 = sphi 0, %s16
      %s19 = sphi 0, %s18
      %s33 = sphi 0, %s19
      %s39 = sphi 0, %s41
      %s42 = sphi 0, %s39
      %s43 = sphi 0, %s42
      %s59 = sphi 0, %s43
    $region4: #{_render.1} parent=1 // loop_header_branch
      %11 = sbr.rel (%p9) target = $region8
    $region5: #{_render.1} parent=1 // loop_body
      %s13 = ssub.s32 %s8, 1
      %s14 = ssub.s32 %s8, 2
      %s15 = sadd.s32 %s8, 1
      %s17 = sadd.s32 %s16, 1
      %p20 = scmp.eq.s32.totalorder %s8, 1
      %p21 = scmp.ne.s32.totalorder %s16, %s18
      %p22 = scmp.eq.s32.totalorder %s8, 0
      %p23 = por %p21, %p22
      %p24 = scmp.ne.s32.totalorder %s16, %s18
      %p25 = scmp.eq.s32.totalorder %s13, 1
      %p26 = por %p24, %p25
      %p27 = scmp.ne.s32.totalorder %s18, %s19
      %p28 = scmp.eq.s32.totalorder %s13, 0
      %p29 = por %p27, %p28
      %p30 = scmp.ne.s32.totalorder %s18, %s19
      %p31 = scmp.eq.s32.totalorder %s14, 1
      %p32 = por %p30, %p31
      %p34 = scmp.ne.s32.totalorder %s19, %s33
      %p35 = scmp.eq.s32.totalorder %s14, 0
      %p36 = por %p34, %p35
      %s37 = ssub.s32 %s8, %s15
      %p38 = scmp.eq.s32.totalorder %s37, 0
      %s40 = sadd.s32 %s39, 1
      %s41 = scalar_select %p38, %s39, %s40
      %p44 = pneg %p38
      %p45 = scmp.eq.s32.totalorder %s8, 1
      %p46 = por %p44, %p45
      %p47 = scmp.ne.s32.totalorder %s39, %s42
      %p48 = scmp.eq.s32.totalorder %s8, 0
      %p49 = por %p47, %p48
      %p50 = scmp.ne.s32.totalorder %s39, %s42
      %p51 = scmp.eq.s32.totalorder %s13, 1
      %p52 = por %p50, %p51
      %p53 = scmp.ne.s32.totalorder %s42, %s43
      %p54 = scmp.eq.s32.totalorder %s13, 0
      %p55 = por %p53, %p54
      %p56 = scmp.ne.s32.totalorder %s42, %s43
      %p57 = scmp.eq.s32.totalorder %s14, 1
      %p58 = por %p56, %p57
      %p60 = scmp.ne.s32.totalorder %s43, %s59
      %p61 = scmp.eq.s32.totalorder %s14, 0
      %p62 = por %p60, %p61
      %p63 = scmp.le.s32.totalorder 1, %s8
      %p64 = scmp.lt.s32.totalorder %s8, 3
      %p65 = pnand %p63, %p64
      %p66 = pneg %p65
      // Predicated region
      $region9: #{_render.1} parent=5 // pred_check
        _
      $region10: #{_render.1} parent=5 // pred_check_branch
        %68 = sbr.rel (%p65) target = $region12
      $region11: #{_render.1} parent=5 // pred_region
        %s69 = ssub.s32 %s8, 1
        // Predicated region
        $region13: #{_render.1} parent=11 // pred_check
          %p70 = pneg %p29
        $region14: #{_render.1} parent=11 // pred_check_branch
          %72 = sbr.rel (%p70) target = $region16
        $region15: #{_render.1} parent=11 // pred_region
          %74 = vsyncadd [#allocation3], 0
          %s76 = sshll.u32 %s0, 4
          %s77 = int_to_ptr.vmem [resolvable:$true] %s76
          %79 = dma.vmem_to_smem %s77, 128, [#allocation2], [#allocation3]
        $region16: #{_render.1} parent=11 // pred_fallthru
          _
      $region12: #{_render.1} parent=5 // pred_fallthru
        _
      %p80 = scmp.lt.s32.totalorder %s8, 2
      // Predicated region
      $region17: #{_render.1} parent=5 // pred_check
        %p81 = pneg %p80
      $region18: #{_render.1} parent=5 // pred_check_branch
        %83 = sbr.rel (%p81) target = $region20
      $region19: #{_render.1} parent=5 // pred_region
        _
      $region20: #{_render.1} parent=5 // pred_fallthru
        _
      %p84 = scmp.le.s32.totalorder 1, %s8
      %p85 = scmp.lt.s32.totalorder %s8, 3
      %p86 = pnand %p84, %p85
      %p87 = pneg %p86
      // Predicated region
      $region21: #{_render.1} parent=5 // pred_check
        _
      $region22: #{_render.1} parent=5 // pred_check_branch
        %89 = sbr.rel (%p86) target = $region24
      $region23: #{_render.1} parent=5 // pred_region
        %s90 = ssub.s32 %s8, 1
        // Predicated region
        $region25: #{_render.1} parent=23 // pred_check
          %p91 = pneg %p29
        $region26: #{_render.1} parent=23 // pred_check_branch
          %93 = sbr.rel (%p91) target = $region28
        $region27: #{_render.1} parent=23 // pred_region
          %95 = dma.done [#allocation3], 128
        $region28: #{_render.1} parent=23 // pred_fallthru
          _
        %96 = sfence
        %p97 = pneg %p29
        %p98 = pneg %p26
        %p99 = pneg %p55
        %p100 = pneg %p52
        %s101 = smul.u32 4, %s13
        %p102 = scmp.lt.s32.totalorder %s101, 7
        %s103 = scalar_select %p102, %s101, 7
        %s104 = smul.addr %s103, 16
        %s105 = smul.addr %s104, 8
        %s106 = scalar_lea.vmem %s1, %s105
        %s107 = smul.u32 4, %s13
        %p108 = scmp.lt.s32.totalorder %s107, 7
        %s109 = scalar_select %p108, %s107, 7
        %s110 = smul.addr %s109, 16
        %s111 = smul.addr %s110, 8
        %s112 = scalar_lea.vmem %s1, %s111
        %s113 = smul.u32 4, %s13
        %v114 = vlaneseq
        %v115 = vshrl.u32 %v114, 7
        %v116 = vadd.s32 %v115, 8
        %v117 = vadd.s32 %v115, 16
        %v118 = vadd.s32 %v115, 24
        %v119 = vlaneseq
        %v120 = vand.u32 %v119, 127
        %v121 = vmul.u32 %v115, 128
        %v122 = vmul.u32 %v116, 128
        %v123 = vmul.u32 %v117, 128
        %v124 = vmul.u32 %v118, 128
        %v125 = vadd.s32 %v121, %v120
        %v126 = vadd.s32 %v122, %v120
        %v127 = vadd.s32 %v123, %v120
        %v128 = vadd.s32 %v124, %v120
        %v129 = vshra.s32 %v125, 6
        %v130 = vshra.s32 %v126, 6
        %v131 = vshra.s32 %v127, 6
        %v132 = vshra.s32 %v128, 6
        %v133 = vcvt.s32.f32 %v129
        %v134 = vcvt.s32.f32 %v130
        %v135 = vcvt.s32.f32 %v131
        %v136 = vcvt.s32.f32 %v132
        %v137 = vmul.f32 %v133, 2.0
        %v138 = vmul.f32 %v134, 2.0
        %v139 = vmul.f32 %v135, 2.0
        %v140 = vmul.f32 %v136, 2.0
        %v141 = vand.u32 %v125, 63
        %v142 = vand.u32 %v126, 63
        %v143 = vand.u32 %v127, 63
        %v144 = vand.u32 %v128, 63
        %v145 = vcvt.s32.f32 %v141
        %v146 = vcvt.s32.f32 %v142
        %v147 = vcvt.s32.f32 %v143
        %v148 = vcvt.s32.f32 %v144
        %v149 = vmul.f32 %v145, 2.0
        %v150 = vmul.f32 %v146, 2.0
        %v151 = vmul.f32 %v147, 2.0
        %v152 = vmul.f32 %v148, 2.0
        %s153 = smul.u32 %s13, 4
        %s154 = smul.u32 %s153, 128
        %s155 = sld [smem:[#allocation2 + %s154]]
        %s156 = sadd.s32 %s154, 1
        %s157 = sld [smem:[#allocation2 + %s156]]
        %s158 = sadd.s32 %s154, 2
        %s159 = sld [smem:[#allocation2 + %s158]]
        %s160 = sadd.s32 %s154, 3
        %s161 = sld [smem:[#allocation2 + %s160]]
        %s162 = sadd.s32 %s154, 4
        %s163 = sld [smem:[#allocation2 + %s162]]
        %s164 = sadd.s32 %s154, 5
        %s165 = sld [smem:[#allocation2 + %s164]]
        %s166 = sadd.s32 %s154, 6
        %s167 = sld [smem:[#allocation2 + %s166]]
        %v168 = vstv %s155
        %v169 = vsub.f32 %v149, %v168
        %v170 = vsub.f32 %v150, %v168
        %v171 = vsub.f32 %v151, %v168
        %v172 = vsub.f32 %v152, %v168
        %v173 = vstv %s157
        %v174 = vsub.f32 %v137, %v173
        %v175 = vsub.f32 %v138, %v173
        %v176 = vsub.f32 %v139, %v173
        %v177 = vsub.f32 %v140, %v173
        %v178 = vmul.f32 %v169, %v169
        %v179 = vmul.f32 %v170, %v170
        %v180 = vmul.f32 %v171, %v171
        %v181 = vmul.f32 %v172, %v172
        %v182 = vmul.f32 %v174, %v174
        %v183 = vmul.f32 %v175, %v175
        %v184 = vmul.f32 %v176, %v176
        %v185 = vmul.f32 %v177, %v177
        %v186 = vadd.f32 %v178, %v182
        %v187 = vadd.f32 %v179, %v183
        %v188 = vadd.f32 %v180, %v184
        %v189 = vadd.f32 %v181, %v185
        %v190 = vstv %s159
        %v191 = vsub.f32 %v190, %v186
        %v192 = vsub.f32 %v190, %v187
        %v193 = vsub.f32 %v190, %v188
        %v194 = vsub.f32 %v190, %v189
        %v195 = vmul.f32 %v191, 0.16666667
        %v196 = vmul.f32 %v192, 0.16666667
        %v197 = vmul.f32 %v193, 0.16666667
        %v198 = vmul.f32 %v194, 0.16666667
        %v199 = vadd.f32 %v195, 0.5
        %v200 = vadd.f32 %v196, 0.5
        %v201 = vadd.f32 %v197, 0.5
        %v202 = vadd.f32 %v198, 0.5
        %v203 = vmax.f32 %v199, 0.0
        %v204 = vmax.f32 %v200, 0.0
        %v205 = vmax.f32 %v201, 0.0
        %v206 = vmax.f32 %v202, 0.0
        %v207 = vmin.f32 %v203, 1.0
        %v208 = vmin.f32 %v204, 1.0
        %v209 = vmin.f32 %v205, 1.0
        %v210 = vmin.f32 %v206, 1.0
        %v211 = vmul.f32 %v207, %v207
        %v212 = vmul.f32 %v208, %v208
        %v213 = vmul.f32 %v209, %v209
        %v214 = vmul.f32 %v210, %v210
        %v215 = vmul.f32 %v207, 2.0
        %v216 = vmul.f32 %v208, 2.0
        %v217 = vmul.f32 %v209, 2.0
        %v218 = vmul.f32 %v210, 2.0
        %v219 = vsub.f32 3.0, %v215
        %v220 = vsub.f32 3.0, %v216
        %v221 = vsub.f32 3.0, %v217
        %v222 = vsub.f32 3.0, %v218
        %v223 = vmul.f32 %v211, %v219
        %v224 = vmul.f32 %v212, %v220
        %v225 = vmul.f32 %v213, %v221
        %v226 = vmul.f32 %v214, %v222
        %v227 = vstv %s161
        %v228 = vmul.f32 %v227, %v223
        %v229 = vmul.f32 %v227, %v224
        %v230 = vmul.f32 %v227, %v225
        %v231 = vmul.f32 %v227, %v226
        %v232 = vstv %s163
        %v233 = vmul.f32 %v228, %v232
        %v234 = vmul.f32 %v229, %v232
        %v235 = vmul.f32 %v230, %v232
        %v236 = vmul.f32 %v231, %v232
        %v237 = vadd.f32 %v233, 0.0
        %v238 = vadd.f32 %v234, 0.0
        %v239 = vadd.f32 %v235, 0.0
        %v240 = vadd.f32 %v236, 0.0
        %v241 = vstv %s165
        %v242 = vmul.f32 %v228, %v241
        %v243 = vmul.f32 %v229, %v241
        %v244 = vmul.f32 %v230, %v241
        %v245 = vmul.f32 %v231, %v241
        %v246 = vadd.f32 %v242, 0.0
        %v247 = vadd.f32 %v243, 0.0
        %v248 = vadd.f32 %v244, 0.0
        %v249 = vadd.f32 %v245, 0.0
        %v250 = vstv %s167
        %v251 = vmul.f32 %v228, %v250
        %v252 = vmul.f32 %v229, %v250
        %v253 = vmul.f32 %v230, %v250
        %v254 = vmul.f32 %v231, %v250
        %v255 = vadd.f32 %v251, 0.0
        %v256 = vadd.f32 %v252, 0.0
        %v257 = vadd.f32 %v253, 0.0
        %v258 = vadd.f32 %v254, 0.0
        %v259 = vadd.f32 %v228, 1e-05
        %v260 = vadd.f32 %v229, 1e-05
        %v261 = vadd.f32 %v230, 1e-05
        %v262 = vadd.f32 %v231, 1e-05
        %s263 = sadd.s32 %s154, 8
        %s264 = sld [smem:[#allocation2 + %s263]]
        %s265 = sadd.s32 %s154, 9
        %s266 = sld [smem:[#allocation2 + %s265]]
        %s267 = sadd.s32 %s154, 10
        %s268 = sld [smem:[#allocation2 + %s267]]
        %s269 = sadd.s32 %s154, 11
        %s270 = sld [smem:[#allocation2 + %s269]]
        %s271 = sadd.s32 %s154, 12
        %s272 = sld [smem:[#allocation2 + %s271]]
        %s273 = sadd.s32 %s154, 13
        %s274 = sld [smem:[#allocation2 + %s273]]
        %s275 = sadd.s32 %s154, 14
        %s276 = sld [smem:[#allocation2 + %s275]]
        %v277 = vstv %s264
        %v278 = vsub.f32 %v149, %v277
        %v279 = vsub.f32 %v150, %v277
        %v280 = vsub.f32 %v151, %v277
        %v281 = vsub.f32 %v152, %v277
        %v282 = vstv %s266
        %v283 = vsub.f32 %v137, %v282
        %v284 = vsub.f32 %v138, %v282
        %v285 = vsub.f32 %v139, %v282
        %v286 = vsub.f32 %v140, %v282
        %v287 = vmul.f32 %v278, %v278
        %v288 = vmul.f32 %v279, %v279
        %v289 = vmul.f32 %v280, %v280
        %v290 = vmul.f32 %v281, %v281
        %v291 = vmul.f32 %v283, %v283
        %v292 = vmul.f32 %v284, %v284
        %v293 = vmul.f32 %v285, %v285
        %v294 = vmul.f32 %v286, %v286
        %v295 = vadd.f32 %v287, %v291
        %v296 = vadd.f32 %v288, %v292
        %v297 = vadd.f32 %v289, %v293
        %v298 = vadd.f32 %v290, %v294
        %v299 = vstv %s268
        %v300 = vsub.f32 %v299, %v295
        %v301 = vsub.f32 %v299, %v296
        %v302 = vsub.f32 %v299, %v297
        %v303 = vsub.f32 %v299, %v298
        %v304 = vmul.f32 %v300, 0.16666667
        %v305 = vmul.f32 %v301, 0.16666667
        %v306 = vmul.f32 %v302, 0.16666667
        %v307 = vmul.f32 %v303, 0.16666667
        %v308 = vadd.f32 %v304, 0.5
        %v309 = vadd.f32 %v305, 0.5
        %v310 = vadd.f32 %v306, 0.5
        %v311 = vadd.f32 %v307, 0.5
        %v312 = vmax.f32 %v308, 0.0
        %v313 = vmax.f32 %v309, 0.0
        %v314 = vmax.f32 %v310, 0.0
        %v315 = vmax.f32 %v311, 0.0
        %v316 = vmin.f32 %v312, 1.0
        %v317 = vmin.f32 %v313, 1.0
        %v318 = vmin.f32 %v314, 1.0
        %v319 = vmin.f32 %v315, 1.0
        %v320 = vmul.f32 %v316, %v316
        %v321 = vmul.f32 %v317, %v317
        %v322 = vmul.f32 %v318, %v318
        %v323 = vmul.f32 %v319, %v319
        %v324 = vmul.f32 %v316, 2.0
        %v325 = vmul.f32 %v317, 2.0
        %v326 = vmul.f32 %v318, 2.0
        %v327 = vmul.f32 %v319, 2.0
        %v328 = vsub.f32 3.0, %v324
        %v329 = vsub.f32 3.0, %v325
        %v330 = vsub.f32 3.0, %v326
        %v331 = vsub.f32 3.0, %v327
        %v332 = vmul.f32 %v320, %v328
        %v333 = vmul.f32 %v321, %v329
        %v334 = vmul.f32 %v322, %v330
        %v335 = vmul.f32 %v323, %v331
        %v336 = vstv %s270
        %v337 = vmul.f32 %v336, %v332
        %v338 = vmul.f32 %v336, %v333
        %v339 = vmul.f32 %v336, %v334
        %v340 = vmul.f32 %v336, %v335
        %v341 = vstv %s272
        %v342 = vmul.f32 %v337, %v341
        %v343 = vmul.f32 %v338, %v341
        %v344 = vmul.f32 %v339, %v341
        %v345 = vmul.f32 %v340, %v341
        %v346 = vadd.f32 %v237, %v342
        %v347 = vadd.f32 %v238, %v343
        %v348 = vadd.f32 %v239, %v344
        %v349 = vadd.f32 %v240, %v345
        %v350 = vstv %s274
        %v351 = vmul.f32 %v337, %v350
        %v352 = vmul.f32 %v338, %v350
        %v353 = vmul.f32 %v339, %v350
        %v354 = vmul.f32 %v340, %v350
        %v355 = vadd.f32 %v246, %v351
        %v356 = vadd.f32 %v247, %v352
        %v357 = vadd.f32 %v248, %v353
        %v358 = vadd.f32 %v249, %v354
        %v359 = vstv %s276
        %v360 = vmul.f32 %v337, %v359
        %v361 = vmul.f32 %v338, %v359
        %v362 = vmul.f32 %v339, %v359
        %v363 = vmul.f32 %v340, %v359
        %v364 = vadd.f32 %v255, %v360
        %v365 = vadd.f32 %v256, %v361
        %v366 = vadd.f32 %v257, %v362
        %v367 = vadd.f32 %v258, %v363
        %v368 = vadd.f32 %v259, %v337
        %v369 = vadd.f32 %v260, %v338
        %v370 = vadd.f32 %v261, %v339
        %v371 = vadd.f32 %v262, %v340
        %s372 = sadd.s32 %s154, 16
        %s373 = sld [smem:[#allocation2 + %s372]]
        %s374 = sadd.s32 %s154, 17
        %s375 = sld [smem:[#allocation2 + %s374]]
        %s376 = sadd.s32 %s154, 18
        %s377 = sld [smem:[#allocation2 + %s376]]
        %s378 = sadd.s32 %s154, 19
        %s379 = sld [smem:[#allocation2 + %s378]]
        %s380 = sadd.s32 %s154, 20
        %s381 = sld [smem:[#allocation2 + %s380]]
        %s382 = sadd.s32 %s154, 21
        %s383 = sld [smem:[#allocation2 + %s382]]
        %s384 = sadd.s32 %s154, 22
        %s385 = sld [smem:[#allocation2 + %s384]]
        %v386 = vstv %s373
        %v387 = vsub.f32 %v149, %v386
        %v388 = vsub.f32 %v150, %v386
        %v389 = vsub.f32 %v151, %v386
        %v390 = vsub.f32 %v152, %v386
        %v391 = vstv %s375
        %v392 = vsub.f32 %v137, %v391
        %v393 = vsub.f32 %v138, %v391
        %v394 = vsub.f32 %v139, %v391
        %v395 = vsub.f32 %v140, %v391
        %v396 = vmul.f32 %v387, %v387
        %v397 = vmul.f32 %v388, %v388
        %v398 = vmul.f32 %v389, %v389
        %v399 = vmul.f32 %v390, %v390
        %v400 = vmul.f32 %v392, %v392
        %v401 = vmul.f32 %v393, %v393
        %v402 = vmul.f32 %v394, %v394
        %v403 = vmul.f32 %v395, %v395
        %v404 = vadd.f32 %v396, %v400
        %v405 = vadd.f32 %v397, %v401
        %v406 = vadd.f32 %v398, %v402
        %v407 = vadd.f32 %v399, %v403
        %v408 = vstv %s377
        %v409 = vsub.f32 %v408, %v404
        %v410 = vsub.f32 %v408, %v405
        %v411 = vsub.f32 %v408, %v406
        %v412 = vsub.f32 %v408, %v407
        %v413 = vmul.f32 %v409, 0.16666667
        %v414 = vmul.f32 %v410, 0.16666667
        %v415 = vmul.f32 %v411, 0.16666667
        %v416 = vmul.f32 %v412, 0.16666667
        %v417 = vadd.f32 %v413, 0.5
        %v418 = vadd.f32 %v414, 0.5
        %v419 = vadd.f32 %v415, 0.5
        %v420 = vadd.f32 %v416, 0.5
        %v421 = vmax.f32 %v417, 0.0
        %v422 = vmax.f32 %v418, 0.0
        %v423 = vmax.f32 %v419, 0.0
        %v424 = vmax.f32 %v420, 0.0
        %v425 = vmin.f32 %v421, 1.0
        %v426 = vmin.f32 %v422, 1.0
        %v427 = vmin.f32 %v423, 1.0
        %v428 = vmin.f32 %v424, 1.0
        %v429 = vmul.f32 %v425, %v425
        %v430 = vmul.f32 %v426, %v426
        %v431 = vmul.f32 %v427, %v427
        %v432 = vmul.f32 %v428, %v428
        %v433 = vmul.f32 %v425, 2.0
        %v434 = vmul.f32 %v426, 2.0
        %v435 = vmul.f32 %v427, 2.0
        %v436 = vmul.f32 %v428, 2.0
        %v437 = vsub.f32 3.0, %v433
        %v438 = vsub.f32 3.0, %v434
        %v439 = vsub.f32 3.0, %v435
        %v440 = vsub.f32 3.0, %v436
        %v441 = vmul.f32 %v429, %v437
        %v442 = vmul.f32 %v430, %v438
        %v443 = vmul.f32 %v431, %v439
        %v444 = vmul.f32 %v432, %v440
        %v445 = vstv %s379
        %v446 = vmul.f32 %v445, %v441
        %v447 = vmul.f32 %v445, %v442
        %v448 = vmul.f32 %v445, %v443
        %v449 = vmul.f32 %v445, %v444
        %v450 = vstv %s381
        %v451 = vmul.f32 %v446, %v450
        %v452 = vmul.f32 %v447, %v450
        %v453 = vmul.f32 %v448, %v450
        %v454 = vmul.f32 %v449, %v450
        %v455 = vadd.f32 %v346, %v451
        %v456 = vadd.f32 %v347, %v452
        %v457 = vadd.f32 %v348, %v453
        %v458 = vadd.f32 %v349, %v454
        %v459 = vstv %s383
        %v460 = vmul.f32 %v446, %v459
        %v461 = vmul.f32 %v447, %v459
        %v462 = vmul.f32 %v448, %v459
        %v463 = vmul.f32 %v449, %v459
        %v464 = vadd.f32 %v355, %v460
        %v465 = vadd.f32 %v356, %v461
        %v466 = vadd.f32 %v357, %v462
        %v467 = vadd.f32 %v358, %v463
        %v468 = vstv %s385
        %v469 = vmul.f32 %v446, %v468
        %v470 = vmul.f32 %v447, %v468
        %v471 = vmul.f32 %v448, %v468
        %v472 = vmul.f32 %v449, %v468
        %v473 = vadd.f32 %v364, %v469
        %v474 = vadd.f32 %v365, %v470
        %v475 = vadd.f32 %v366, %v471
        %v476 = vadd.f32 %v367, %v472
        %v477 = vadd.f32 %v368, %v446
        %v478 = vadd.f32 %v369, %v447
        %v479 = vadd.f32 %v370, %v448
        %v480 = vadd.f32 %v371, %v449
        %s481 = sadd.s32 %s154, 24
        %s482 = sld [smem:[#allocation2 + %s481]]
        %s483 = sadd.s32 %s154, 25
        %s484 = sld [smem:[#allocation2 + %s483]]
        %s485 = sadd.s32 %s154, 26
        %s486 = sld [smem:[#allocation2 + %s485]]
        %s487 = sadd.s32 %s154, 27
        %s488 = sld [smem:[#allocation2 + %s487]]
        %s489 = sadd.s32 %s154, 28
        %s490 = sld [smem:[#allocation2 + %s489]]
        %s491 = sadd.s32 %s154, 29
        %s492 = sld [smem:[#allocation2 + %s491]]
        %s493 = sadd.s32 %s154, 30
        %s494 = sld [smem:[#allocation2 + %s493]]
        %v495 = vstv %s482
        %v496 = vsub.f32 %v149, %v495
        %v497 = vsub.f32 %v150, %v495
        %v498 = vsub.f32 %v151, %v495
        %v499 = vsub.f32 %v152, %v495
        %v500 = vstv %s484
        %v501 = vsub.f32 %v137, %v500
        %v502 = vsub.f32 %v138, %v500
        %v503 = vsub.f32 %v139, %v500
        %v504 = vsub.f32 %v140, %v500
        %v505 = vmul.f32 %v496, %v496
        %v506 = vmul.f32 %v497, %v497
        %v507 = vmul.f32 %v498, %v498
        %v508 = vmul.f32 %v499, %v499
        %v509 = vmul.f32 %v501, %v501
        %v510 = vmul.f32 %v502, %v502
        %v511 = vmul.f32 %v503, %v503
        %v512 = vmul.f32 %v504, %v504
        %v513 = vadd.f32 %v505, %v509
        %v514 = vadd.f32 %v506, %v510
        %v515 = vadd.f32 %v507, %v511
        %v516 = vadd.f32 %v508, %v512
        %v517 = vstv %s486
        %v518 = vsub.f32 %v517, %v513
        %v519 = vsub.f32 %v517, %v514
        %v520 = vsub.f32 %v517, %v515
        %v521 = vsub.f32 %v517, %v516
        %v522 = vmul.f32 %v518, 0.16666667
        %v523 = vmul.f32 %v519, 0.16666667
        %v524 = vmul.f32 %v520, 0.16666667
        %v525 = vmul.f32 %v521, 0.16666667
        %v526 = vadd.f32 %v522, 0.5
        %v527 = vadd.f32 %v523, 0.5
        %v528 = vadd.f32 %v524, 0.5
        %v529 = vadd.f32 %v525, 0.5
        %v530 = vmax.f32 %v526, 0.0
        %v531 = vmax.f32 %v527, 0.0
        %v532 = vmax.f32 %v528, 0.0
        %v533 = vmax.f32 %v529, 0.0
        %v534 = vmin.f32 %v530, 1.0
        %v535 = vmin.f32 %v531, 1.0
        %v536 = vmin.f32 %v532, 1.0
        %v537 = vmin.f32 %v533, 1.0
        %v538 = vmul.f32 %v534, %v534
        %v539 = vmul.f32 %v535, %v535
        %v540 = vmul.f32 %v536, %v536
        %v541 = vmul.f32 %v537, %v537
        %v542 = vmul.f32 %v534, 2.0
        %v543 = vmul.f32 %v535, 2.0
        %v544 = vmul.f32 %v536, 2.0
        %v545 = vmul.f32 %v537, 2.0
        %v546 = vsub.f32 3.0, %v542
        %v547 = vsub.f32 3.0, %v543
        %v548 = vsub.f32 3.0, %v544
        %v549 = vsub.f32 3.0, %v545
        %v550 = vmul.f32 %v538, %v546
        %v551 = vmul.f32 %v539, %v547
        %v552 = vmul.f32 %v540, %v548
        %v553 = vmul.f32 %v541, %v549
        %v554 = vstv %s488
        %v555 = vmul.f32 %v554, %v550
        %v556 = vmul.f32 %v554, %v551
        %v557 = vmul.f32 %v554, %v552
        %v558 = vmul.f32 %v554, %v553
        %v559 = vstv %s490
        %v560 = vmul.f32 %v555, %v559
        %v561 = vmul.f32 %v556, %v559
        %v562 = vmul.f32 %v557, %v559
        %v563 = vmul.f32 %v558, %v559
        %v564 = vadd.f32 %v455, %v560
        %v565 = vadd.f32 %v456, %v561
        %v566 = vadd.f32 %v457, %v562
        %v567 = vadd.f32 %v458, %v563
        %v568 = vstv %s492
        %v569 = vmul.f32 %v555, %v568
        %v570 = vmul.f32 %v556, %v568
        %v571 = vmul.f32 %v557, %v568
        %v572 = vmul.f32 %v558, %v568
        %v573 = vadd.f32 %v464, %v569
        %v574 = vadd.f32 %v465, %v570
        %v575 = vadd.f32 %v466, %v571
        %v576 = vadd.f32 %v467, %v572
        %v577 = vstv %s494
        %v578 = vmul.f32 %v555, %v577
        %v579 = vmul.f32 %v556, %v577
        %v580 = vmul.f32 %v557, %v577
        %v581 = vmul.f32 %v558, %v577
        %v582 = vadd.f32 %v473, %v578
        %v583 = vadd.f32 %v474, %v579
        %v584 = vadd.f32 %v475, %v580
        %v585 = vadd.f32 %v476, %v581
        %v586 = vadd.f32 %v477, %v555
        %v587 = vadd.f32 %v478, %v556
        %v588 = vadd.f32 %v479, %v557
        %v589 = vadd.f32 %v480, %v558
        %s590 = sadd.s32 %s154, 32
        %s591 = sld [smem:[#allocation2 + %s590]]
        %s592 = sadd.s32 %s154, 33
        %s593 = sld [smem:[#allocation2 + %s592]]
        %s594 = sadd.s32 %s154, 34
        %s595 = sld [smem:[#allocation2 + %s594]]
        %s596 = sadd.s32 %s154, 35
        %s597 = sld [smem:[#allocation2 + %s596]]
        %s598 = sadd.s32 %s154, 36
        %s599 = sld [smem:[#allocation2 + %s598]]
        %s600 = sadd.s32 %s154, 37
        %s601 = sld [smem:[#allocation2 + %s600]]
        %s602 = sadd.s32 %s154, 38
        %s603 = sld [smem:[#allocation2 + %s602]]
        %v604 = vstv %s591
        %v605 = vsub.f32 %v149, %v604
        %v606 = vsub.f32 %v150, %v604
        %v607 = vsub.f32 %v151, %v604
        %v608 = vsub.f32 %v152, %v604
        %v609 = vstv %s593
        %v610 = vsub.f32 %v137, %v609
        %v611 = vsub.f32 %v138, %v609
        %v612 = vsub.f32 %v139, %v609
        %v613 = vsub.f32 %v140, %v609
        %v614 = vmul.f32 %v605, %v605
        %v615 = vmul.f32 %v606, %v606
        %v616 = vmul.f32 %v607, %v607
        %v617 = vmul.f32 %v608, %v608
        %v618 = vmul.f32 %v610, %v610
        %v619 = vmul.f32 %v611, %v611
        %v620 = vmul.f32 %v612, %v612
        %v621 = vmul.f32 %v613, %v613
        %v622 = vadd.f32 %v614, %v618
        %v623 = vadd.f32 %v615, %v619
        %v624 = vadd.f32 %v616, %v620
        %v625 = vadd.f32 %v617, %v621
        %v626 = vstv %s595
        %v627 = vsub.f32 %v626, %v622
        %v628 = vsub.f32 %v626, %v623
        %v629 = vsub.f32 %v626, %v624
        %v630 = vsub.f32 %v626, %v625
        %v631 = vmul.f32 %v627, 0.16666667
        %v632 = vmul.f32 %v628, 0.16666667
        %v633 = vmul.f32 %v629, 0.16666667
        %v634 = vmul.f32 %v630, 0.16666667
        %v635 = vadd.f32 %v631, 0.5
        %v636 = vadd.f32 %v632, 0.5
        %v637 = vadd.f32 %v633, 0.5
        %v638 = vadd.f32 %v634, 0.5
        %v639 = vmax.f32 %v635, 0.0
        %v640 = vmax.f32 %v636, 0.0
        %v641 = vmax.f32 %v637, 0.0
        %v642 = vmax.f32 %v638, 0.0
        %v643 = vmin.f32 %v639, 1.0
        %v644 = vmin.f32 %v640, 1.0
        %v645 = vmin.f32 %v641, 1.0
        %v646 = vmin.f32 %v642, 1.0
        %v647 = vmul.f32 %v643, %v643
        %v648 = vmul.f32 %v644, %v644
        %v649 = vmul.f32 %v645, %v645
        %v650 = vmul.f32 %v646, %v646
        %v651 = vmul.f32 %v643, 2.0
        %v652 = vmul.f32 %v644, 2.0
        %v653 = vmul.f32 %v645, 2.0
        %v654 = vmul.f32 %v646, 2.0
        %v655 = vsub.f32 3.0, %v651
        %v656 = vsub.f32 3.0, %v652
        %v657 = vsub.f32 3.0, %v653
        %v658 = vsub.f32 3.0, %v654
        %v659 = vmul.f32 %v647, %v655
        %v660 = vmul.f32 %v648, %v656
        %v661 = vmul.f32 %v649, %v657
        %v662 = vmul.f32 %v650, %v658
        %v663 = vstv %s597
        %v664 = vmul.f32 %v663, %v659
        %v665 = vmul.f32 %v663, %v660
        %v666 = vmul.f32 %v663, %v661
        %v667 = vmul.f32 %v663, %v662
        %v668 = vstv %s599
        %v669 = vmul.f32 %v664, %v668
        %v670 = vmul.f32 %v665, %v668
        %v671 = vmul.f32 %v666, %v668
        %v672 = vmul.f32 %v667, %v668
        %v673 = vadd.f32 %v564, %v669
        %v674 = vadd.f32 %v565, %v670
        %v675 = vadd.f32 %v566, %v671
        %v676 = vadd.f32 %v567, %v672
        %v677 = vstv %s601
        %v678 = vmul.f32 %v664, %v677
        %v679 = vmul.f32 %v665, %v677
        %v680 = vmul.f32 %v666, %v677
        %v681 = vmul.f32 %v667, %v677
        %v682 = vadd.f32 %v573, %v678
        %v683 = vadd.f32 %v574, %v679
        %v684 = vadd.f32 %v575, %v680
        %v685 = vadd.f32 %v576, %v681
        %v686 = vstv %s603
        %v687 = vmul.f32 %v664, %v686
        %v688 = vmul.f32 %v665, %v686
        %v689 = vmul.f32 %v666, %v686
        %v690 = vmul.f32 %v667, %v686
        %v691 = vadd.f32 %v582, %v687
        %v692 = vadd.f32 %v583, %v688
        %v693 = vadd.f32 %v584, %v689
        %v694 = vadd.f32 %v585, %v690
        %v695 = vadd.f32 %v586, %v664
        %v696 = vadd.f32 %v587, %v665
        %v697 = vadd.f32 %v588, %v666
        %v698 = vadd.f32 %v589, %v667
        %s699 = sadd.s32 %s154, 40
        %s700 = sld [smem:[#allocation2 + %s699]]
        %s701 = sadd.s32 %s154, 41
        %s702 = sld [smem:[#allocation2 + %s701]]
        %s703 = sadd.s32 %s154, 42
        %s704 = sld [smem:[#allocation2 + %s703]]
        %s705 = sadd.s32 %s154, 43
        %s706 = sld [smem:[#allocation2 + %s705]]
        %s707 = sadd.s32 %s154, 44
        %s708 = sld [smem:[#allocation2 + %s707]]
        %s709 = sadd.s32 %s154, 45
        %s710 = sld [smem:[#allocation2 + %s709]]
        %s711 = sadd.s32 %s154, 46
        %s712 = sld [smem:[#allocation2 + %s711]]
        %v713 = vstv %s700
        %v714 = vsub.f32 %v149, %v713
        %v715 = vsub.f32 %v150, %v713
        %v716 = vsub.f32 %v151, %v713
        %v717 = vsub.f32 %v152, %v713
        %v718 = vstv %s702
        %v719 = vsub.f32 %v137, %v718
        %v720 = vsub.f32 %v138, %v718
        %v721 = vsub.f32 %v139, %v718
        %v722 = vsub.f32 %v140, %v718
        %v723 = vmul.f32 %v714, %v714
        %v724 = vmul.f32 %v715, %v715
        %v725 = vmul.f32 %v716, %v716
        %v726 = vmul.f32 %v717, %v717
        %v727 = vmul.f32 %v719, %v719
        %v728 = vmul.f32 %v720, %v720
        %v729 = vmul.f32 %v721, %v721
        %v730 = vmul.f32 %v722, %v722
        %v731 = vadd.f32 %v723, %v727
        %v732 = vadd.f32 %v724, %v728
        %v733 = vadd.f32 %v725, %v729
        %v734 = vadd.f32 %v726, %v730
        %v735 = vstv %s704
        %v736 = vsub.f32 %v735, %v731
        %v737 = vsub.f32 %v735, %v732
        %v738 = vsub.f32 %v735, %v733
        %v739 = vsub.f32 %v735, %v734
        %v740 = vmul.f32 %v736, 0.16666667
        %v741 = vmul.f32 %v737, 0.16666667
        %v742 = vmul.f32 %v738, 0.16666667
        %v743 = vmul.f32 %v739, 0.16666667
        %v744 = vadd.f32 %v740, 0.5
        %v745 = vadd.f32 %v741, 0.5
        %v746 = vadd.f32 %v742, 0.5
        %v747 = vadd.f32 %v743, 0.5
        %v748 = vmax.f32 %v744, 0.0
        %v749 = vmax.f32 %v745, 0.0
        %v750 = vmax.f32 %v746, 0.0
        %v751 = vmax.f32 %v747, 0.0
        %v752 = vmin.f32 %v748, 1.0
        %v753 = vmin.f32 %v749, 1.0
        %v754 = vmin.f32 %v750, 1.0
        %v755 = vmin.f32 %v751, 1.0
        %v756 = vmul.f32 %v752, %v752
        %v757 = vmul.f32 %v753, %v753
        %v758 = vmul.f32 %v754, %v754
        %v759 = vmul.f32 %v755, %v755
        %v760 = vmul.f32 %v752, 2.0
        %v761 = vmul.f32 %v753, 2.0
        %v762 = vmul.f32 %v754, 2.0
        %v763 = vmul.f32 %v755, 2.0
        %v764 = vsub.f32 3.0, %v760
        %v765 = vsub.f32 3.0, %v761
        %v766 = vsub.f32 3.0, %v762
        %v767 = vsub.f32 3.0, %v763
        %v768 = vmul.f32 %v756, %v764
        %v769 = vmul.f32 %v757, %v765
        %v770 = vmul.f32 %v758, %v766
        %v771 = vmul.f32 %v759, %v767
        %v772 = vstv %s706
        %v773 = vmul.f32 %v772, %v768
        %v774 = vmul.f32 %v772, %v769
        %v775 = vmul.f32 %v772, %v770
        %v776 = vmul.f32 %v772, %v771
        %v777 = vstv %s708
        %v778 = vmul.f32 %v773, %v777
        %v779 = vmul.f32 %v774, %v777
        %v780 = vmul.f32 %v775, %v777
        %v781 = vmul.f32 %v776, %v777
        %v782 = vadd.f32 %v673, %v778
        %v783 = vadd.f32 %v674, %v779
        %v784 = vadd.f32 %v675, %v780
        %v785 = vadd.f32 %v676, %v781
        %v786 = vstv %s710
        %v787 = vmul.f32 %v773, %v786
        %v788 = vmul.f32 %v774, %v786
        %v789 = vmul.f32 %v775, %v786
        %v790 = vmul.f32 %v776, %v786
        %v791 = vadd.f32 %v682, %v787
        %v792 = vadd.f32 %v683, %v788
        %v793 = vadd.f32 %v684, %v789
        %v794 = vadd.f32 %v685, %v790
        %v795 = vstv %s712
        %v796 = vmul.f32 %v773, %v795
        %v797 = vmul.f32 %v774, %v795
        %v798 = vmul.f32 %v775, %v795
        %v799 = vmul.f32 %v776, %v795
        %v800 = vadd.f32 %v691, %v796
        %v801 = vadd.f32 %v692, %v797
        %v802 = vadd.f32 %v693, %v798
        %v803 = vadd.f32 %v694, %v799
        %v804 = vadd.f32 %v695, %v773
        %v805 = vadd.f32 %v696, %v774
        %v806 = vadd.f32 %v697, %v775
        %v807 = vadd.f32 %v698, %v776
        %s808 = sadd.s32 %s154, 48
        %s809 = sld [smem:[#allocation2 + %s808]]
        %s810 = sadd.s32 %s154, 49
        %s811 = sld [smem:[#allocation2 + %s810]]
        %s812 = sadd.s32 %s154, 50
        %s813 = sld [smem:[#allocation2 + %s812]]
        %s814 = sadd.s32 %s154, 51
        %s815 = sld [smem:[#allocation2 + %s814]]
        %s816 = sadd.s32 %s154, 52
        %s817 = sld [smem:[#allocation2 + %s816]]
        %s818 = sadd.s32 %s154, 53
        %s819 = sld [smem:[#allocation2 + %s818]]
        %s820 = sadd.s32 %s154, 54
        %s821 = sld [smem:[#allocation2 + %s820]]
        %v822 = vstv %s809
        %v823 = vsub.f32 %v149, %v822
        %v824 = vsub.f32 %v150, %v822
        %v825 = vsub.f32 %v151, %v822
        %v826 = vsub.f32 %v152, %v822
        %v827 = vstv %s811
        %v828 = vsub.f32 %v137, %v827
        %v829 = vsub.f32 %v138, %v827
        %v830 = vsub.f32 %v139, %v827
        %v831 = vsub.f32 %v140, %v827
        %v832 = vmul.f32 %v823, %v823
        %v833 = vmul.f32 %v824, %v824
        %v834 = vmul.f32 %v825, %v825
        %v835 = vmul.f32 %v826, %v826
        %v836 = vmul.f32 %v828, %v828
        %v837 = vmul.f32 %v829, %v829
        %v838 = vmul.f32 %v830, %v830
        %v839 = vmul.f32 %v831, %v831
        %v840 = vadd.f32 %v832, %v836
        %v841 = vadd.f32 %v833, %v837
        %v842 = vadd.f32 %v834, %v838
        %v843 = vadd.f32 %v835, %v839
        %v844 = vstv %s813
        %v845 = vsub.f32 %v844, %v840
        %v846 = vsub.f32 %v844, %v841
        %v847 = vsub.f32 %v844, %v842
        %v848 = vsub.f32 %v844, %v843
        %v849 = vmul.f32 %v845, 0.16666667
        %v850 = vmul.f32 %v846, 0.16666667
        %v851 = vmul.f32 %v847, 0.16666667
        %v852 = vmul.f32 %v848, 0.16666667
        %v853 = vadd.f32 %v849, 0.5
        %v854 = vadd.f32 %v850, 0.5
        %v855 = vadd.f32 %v851, 0.5
        %v856 = vadd.f32 %v852, 0.5
        %v857 = vmax.f32 %v853, 0.0
        %v858 = vmax.f32 %v854, 0.0
        %v859 = vmax.f32 %v855, 0.0
        %v860 = vmax.f32 %v856, 0.0
        %v861 = vmin.f32 %v857, 1.0
        %v862 = vmin.f32 %v858, 1.0
        %v863 = vmin.f32 %v859, 1.0
        %v864 = vmin.f32 %v860, 1.0
        %v865 = vmul.f32 %v861, %v861
        %v866 = vmul.f32 %v862, %v862
        %v867 = vmul.f32 %v863, %v863
        %v868 = vmul.f32 %v864, %v864
        %v869 = vmul.f32 %v861, 2.0
        %v870 = vmul.f32 %v862, 2.0
        %v871 = vmul.f32 %v863, 2.0
        %v872 = vmul.f32 %v864, 2.0
        %v873 = vsub.f32 3.0, %v869
        %v874 = vsub.f32 3.0, %v870
        %v875 = vsub.f32 3.0, %v871
        %v876 = vsub.f32 3.0, %v872
        %v877 = vmul.f32 %v865, %v873
        %v878 = vmul.f32 %v866, %v874
        %v879 = vmul.f32 %v867, %v875
        %v880 = vmul.f32 %v868, %v876
        %v881 = vstv %s815
        %v882 = vmul.f32 %v881, %v877
        %v883 = vmul.f32 %v881, %v878
        %v884 = vmul.f32 %v881, %v879
        %v885 = vmul.f32 %v881, %v880
        %v886 = vstv %s817
        %v887 = vmul.f32 %v882, %v886
        %v888 = vmul.f32 %v883, %v886
        %v889 = vmul.f32 %v884, %v886
        %v890 = vmul.f32 %v885, %v886
        %v891 = vadd.f32 %v782, %v887
        %v892 = vadd.f32 %v783, %v888
        %v893 = vadd.f32 %v784, %v889
        %v894 = vadd.f32 %v785, %v890
        %v895 = vstv %s819
        %v896 = vmul.f32 %v882, %v895
        %v897 = vmul.f32 %v883, %v895
        %v898 = vmul.f32 %v884, %v895
        %v899 = vmul.f32 %v885, %v895
        %v900 = vadd.f32 %v791, %v896
        %v901 = vadd.f32 %v792, %v897
        %v902 = vadd.f32 %v793, %v898
        %v903 = vadd.f32 %v794, %v899
        %v904 = vstv %s821
        %v905 = vmul.f32 %v882, %v904
        %v906 = vmul.f32 %v883, %v904
        %v907 = vmul.f32 %v884, %v904
        %v908 = vmul.f32 %v885, %v904
        %v909 = vadd.f32 %v800, %v905
        %v910 = vadd.f32 %v801, %v906
        %v911 = vadd.f32 %v802, %v907
        %v912 = vadd.f32 %v803, %v908
        %v913 = vadd.f32 %v804, %v882
        %v914 = vadd.f32 %v805, %v883
        %v915 = vadd.f32 %v806, %v884
        %v916 = vadd.f32 %v807, %v885
        %s917 = sadd.s32 %s154, 56
        %s918 = sld [smem:[#allocation2 + %s917]]
        %s919 = sadd.s32 %s154, 57
        %s920 = sld [smem:[#allocation2 + %s919]]
        %s921 = sadd.s32 %s154, 58
        %s922 = sld [smem:[#allocation2 + %s921]]
        %s923 = sadd.s32 %s154, 59
        %s924 = sld [smem:[#allocation2 + %s923]]
        %s925 = sadd.s32 %s154, 60
        %s926 = sld [smem:[#allocation2 + %s925]]
        %s927 = sadd.s32 %s154, 61
        %s928 = sld [smem:[#allocation2 + %s927]]
        %s929 = sadd.s32 %s154, 62
        %s930 = sld [smem:[#allocation2 + %s929]]
        %v931 = vstv %s918
        %v932 = vsub.f32 %v149, %v931
        %v933 = vsub.f32 %v150, %v931
        %v934 = vsub.f32 %v151, %v931
        %v935 = vsub.f32 %v152, %v931
        %v936 = vstv %s920
        %v937 = vsub.f32 %v137, %v936
        %v938 = vsub.f32 %v138, %v936
        %v939 = vsub.f32 %v139, %v936
        %v940 = vsub.f32 %v140, %v936
        %v941 = vmul.f32 %v932, %v932
        %v942 = vmul.f32 %v933, %v933
        %v943 = vmul.f32 %v934, %v934
        %v944 = vmul.f32 %v935, %v935
        %v945 = vmul.f32 %v937, %v937
        %v946 = vmul.f32 %v938, %v938
        %v947 = vmul.f32 %v939, %v939
        %v948 = vmul.f32 %v940, %v940
        %v949 = vadd.f32 %v941, %v945
        %v950 = vadd.f32 %v942, %v946
        %v951 = vadd.f32 %v943, %v947
        %v952 = vadd.f32 %v944, %v948
        %v953 = vstv %s922
        %v954 = vsub.f32 %v953, %v949
        %v955 = vsub.f32 %v953, %v950
        %v956 = vsub.f32 %v953, %v951
        %v957 = vsub.f32 %v953, %v952
        %v958 = vmul.f32 %v954, 0.16666667
        %v959 = vmul.f32 %v955, 0.16666667
        %v960 = vmul.f32 %v956, 0.16666667
        %v961 = vmul.f32 %v957, 0.16666667
        %v962 = vadd.f32 %v958, 0.5
        %v963 = vadd.f32 %v959, 0.5
        %v964 = vadd.f32 %v960, 0.5
        %v965 = vadd.f32 %v961, 0.5
        %v966 = vmax.f32 %v962, 0.0
        %v967 = vmax.f32 %v963, 0.0
        %v968 = vmax.f32 %v964, 0.0
        %v969 = vmax.f32 %v965, 0.0
        %v970 = vmin.f32 %v966, 1.0
        %v971 = vmin.f32 %v967, 1.0
        %v972 = vmin.f32 %v968, 1.0
        %v973 = vmin.f32 %v969, 1.0
        %v974 = vmul.f32 %v970, %v970
        %v975 = vmul.f32 %v971, %v971
        %v976 = vmul.f32 %v972, %v972
        %v977 = vmul.f32 %v973, %v973
        %v978 = vmul.f32 %v970, 2.0
        %v979 = vmul.f32 %v971, 2.0
        %v980 = vmul.f32 %v972, 2.0
        %v981 = vmul.f32 %v973, 2.0
        %v982 = vsub.f32 3.0, %v978
        %v983 = vsub.f32 3.0, %v979
        %v984 = vsub.f32 3.0, %v980
        %v985 = vsub.f32 3.0, %v981
        %v986 = vmul.f32 %v974, %v982
        %v987 = vmul.f32 %v975, %v983
        %v988 = vmul.f32 %v976, %v984
        %v989 = vmul.f32 %v977, %v985
        %v990 = vstv %s924
        %v991 = vmul.f32 %v990, %v986
        %v992 = vmul.f32 %v990, %v987
        %v993 = vmul.f32 %v990, %v988
        %v994 = vmul.f32 %v990, %v989
        %v995 = vstv %s926
        %v996 = vmul.f32 %v991, %v995
        %v997 = vmul.f32 %v992, %v995
        %v998 = vmul.f32 %v993, %v995
        %v999 = vmul.f32 %v994, %v995
        %v1000 = vadd.f32 %v891, %v996
        %v1001 = vadd.f32 %v892, %v997
        %v1002 = vadd.f32 %v893, %v998
        %v1003 = vadd.f32 %v894, %v999
        %v1004 = vstv %s928
        %v1005 = vmul.f32 %v991, %v1004
        %v1006 = vmul.f32 %v992, %v1004
        %v1007 = vmul.f32 %v993, %v1004
        %v1008 = vmul.f32 %v994, %v1004
        %v1009 = vadd.f32 %v900, %v1005
        %v1010 = vadd.f32 %v901, %v1006
        %v1011 = vadd.f32 %v902, %v1007
        %v1012 = vadd.f32 %v903, %v1008
        %v1013 = vstv %s930
        %v1014 = vmul.f32 %v991, %v1013
        %v1015 = vmul.f32 %v992, %v1013
        %v1016 = vmul.f32 %v993, %v1013
        %v1017 = vmul.f32 %v994, %v1013
        %v1018 = vadd.f32 %v909, %v1014
        %v1019 = vadd.f32 %v910, %v1015
        %v1020 = vadd.f32 %v911, %v1016
        %v1021 = vadd.f32 %v912, %v1017
        %v1022 = vadd.f32 %v913, %v991
        %v1023 = vadd.f32 %v914, %v992
        %v1024 = vadd.f32 %v915, %v993
        %v1025 = vadd.f32 %v916, %v994
        %s1026 = sadd.s32 %s154, 64
        %s1027 = sld [smem:[#allocation2 + %s1026]]
        %s1028 = sadd.s32 %s154, 65
        %s1029 = sld [smem:[#allocation2 + %s1028]]
        %s1030 = sadd.s32 %s154, 66
        %s1031 = sld [smem:[#allocation2 + %s1030]]
        %s1032 = sadd.s32 %s154, 67
        %s1033 = sld [smem:[#allocation2 + %s1032]]
        %s1034 = sadd.s32 %s154, 68
        %s1035 = sld [smem:[#allocation2 + %s1034]]
        %s1036 = sadd.s32 %s154, 69
        %s1037 = sld [smem:[#allocation2 + %s1036]]
        %s1038 = sadd.s32 %s154, 70
        %s1039 = sld [smem:[#allocation2 + %s1038]]
        %v1040 = vstv %s1027
        %v1041 = vsub.f32 %v149, %v1040
        %v1042 = vsub.f32 %v150, %v1040
        %v1043 = vsub.f32 %v151, %v1040
        %v1044 = vsub.f32 %v152, %v1040
        %v1045 = vstv %s1029
        %v1046 = vsub.f32 %v137, %v1045
        %v1047 = vsub.f32 %v138, %v1045
        %v1048 = vsub.f32 %v139, %v1045
        %v1049 = vsub.f32 %v140, %v1045
        %v1050 = vmul.f32 %v1041, %v1041
        %v1051 = vmul.f32 %v1042, %v1042
        %v1052 = vmul.f32 %v1043, %v1043
        %v1053 = vmul.f32 %v1044, %v1044
        %v1054 = vmul.f32 %v1046, %v1046
        %v1055 = vmul.f32 %v1047, %v1047
        %v1056 = vmul.f32 %v1048, %v1048
        %v1057 = vmul.f32 %v1049, %v1049
        %v1058 = vadd.f32 %v1050, %v1054
        %v1059 = vadd.f32 %v1051, %v1055
        %v1060 = vadd.f32 %v1052, %v1056
        %v1061 = vadd.f32 %v1053, %v1057
        %v1062 = vstv %s1031
        %v1063 = vsub.f32 %v1062, %v1058
        %v1064 = vsub.f32 %v1062, %v1059
        %v1065 = vsub.f32 %v1062, %v1060
        %v1066 = vsub.f32 %v1062, %v1061
        %v1067 = vmul.f32 %v1063, 0.16666667
        %v1068 = vmul.f32 %v1064, 0.16666667
        %v1069 = vmul.f32 %v1065, 0.16666667
        %v1070 = vmul.f32 %v1066, 0.16666667
        %v1071 = vadd.f32 %v1067, 0.5
        %v1072 = vadd.f32 %v1068, 0.5
        %v1073 = vadd.f32 %v1069, 0.5
        %v1074 = vadd.f32 %v1070, 0.5
        %v1075 = vmax.f32 %v1071, 0.0
        %v1076 = vmax.f32 %v1072, 0.0
        %v1077 = vmax.f32 %v1073, 0.0
        %v1078 = vmax.f32 %v1074, 0.0
        %v1079 = vmin.f32 %v1075, 1.0
        %v1080 = vmin.f32 %v1076, 1.0
        %v1081 = vmin.f32 %v1077, 1.0
        %v1082 = vmin.f32 %v1078, 1.0
        %v1083 = vmul.f32 %v1079, %v1079
        %v1084 = vmul.f32 %v1080, %v1080
        %v1085 = vmul.f32 %v1081, %v1081
        %v1086 = vmul.f32 %v1082, %v1082
        %v1087 = vmul.f32 %v1079, 2.0
        %v1088 = vmul.f32 %v1080, 2.0
        %v1089 = vmul.f32 %v1081, 2.0
        %v1090 = vmul.f32 %v1082, 2.0
        %v1091 = vsub.f32 3.0, %v1087
        %v1092 = vsub.f32 3.0, %v1088
        %v1093 = vsub.f32 3.0, %v1089
        %v1094 = vsub.f32 3.0, %v1090
        %v1095 = vmul.f32 %v1083, %v1091
        %v1096 = vmul.f32 %v1084, %v1092
        %v1097 = vmul.f32 %v1085, %v1093
        %v1098 = vmul.f32 %v1086, %v1094
        %v1099 = vstv %s1033
        %v1100 = vmul.f32 %v1099, %v1095
        %v1101 = vmul.f32 %v1099, %v1096
        %v1102 = vmul.f32 %v1099, %v1097
        %v1103 = vmul.f32 %v1099, %v1098
        %v1104 = vstv %s1035
        %v1105 = vmul.f32 %v1100, %v1104
        %v1106 = vmul.f32 %v1101, %v1104
        %v1107 = vmul.f32 %v1102, %v1104
        %v1108 = vmul.f32 %v1103, %v1104
        %v1109 = vadd.f32 %v1000, %v1105
        %v1110 = vadd.f32 %v1001, %v1106
        %v1111 = vadd.f32 %v1002, %v1107
        %v1112 = vadd.f32 %v1003, %v1108
        %v1113 = vstv %s1037
        %v1114 = vmul.f32 %v1100, %v1113
        %v1115 = vmul.f32 %v1101, %v1113
        %v1116 = vmul.f32 %v1102, %v1113
        %v1117 = vmul.f32 %v1103, %v1113
        %v1118 = vadd.f32 %v1009, %v1114
        %v1119 = vadd.f32 %v1010, %v1115
        %v1120 = vadd.f32 %v1011, %v1116
        %v1121 = vadd.f32 %v1012, %v1117
        %v1122 = vstv %s1039
        %v1123 = vmul.f32 %v1100, %v1122
        %v1124 = vmul.f32 %v1101, %v1122
        %v1125 = vmul.f32 %v1102, %v1122
        %v1126 = vmul.f32 %v1103, %v1122
        %v1127 = vadd.f32 %v1018, %v1123
        %v1128 = vadd.f32 %v1019, %v1124
        %v1129 = vadd.f32 %v1020, %v1125
        %v1130 = vadd.f32 %v1021, %v1126
        %v1131 = vadd.f32 %v1022, %v1100
        %v1132 = vadd.f32 %v1023, %v1101
        %v1133 = vadd.f32 %v1024, %v1102
        %v1134 = vadd.f32 %v1025, %v1103
        %s1135 = sadd.s32 %s154, 72
        %s1136 = sld [smem:[#allocation2 + %s1135]]
        %s1137 = sadd.s32 %s154, 73
        %s1138 = sld [smem:[#allocation2 + %s1137]]
        %s1139 = sadd.s32 %s154, 74
        %s1140 = sld [smem:[#allocation2 + %s1139]]
        %s1141 = sadd.s32 %s154, 75
        %s1142 = sld [smem:[#allocation2 + %s1141]]
        %s1143 = sadd.s32 %s154, 76
        %s1144 = sld [smem:[#allocation2 + %s1143]]
        %s1145 = sadd.s32 %s154, 77
        %s1146 = sld [smem:[#allocation2 + %s1145]]
        %s1147 = sadd.s32 %s154, 78
        %s1148 = sld [smem:[#allocation2 + %s1147]]
        %v1149 = vstv %s1136
        %v1150 = vsub.f32 %v149, %v1149
        %v1151 = vsub.f32 %v150, %v1149
        %v1152 = vsub.f32 %v151, %v1149
        %v1153 = vsub.f32 %v152, %v1149
        %v1154 = vstv %s1138
        %v1155 = vsub.f32 %v137, %v1154
        %v1156 = vsub.f32 %v138, %v1154
        %v1157 = vsub.f32 %v139, %v1154
        %v1158 = vsub.f32 %v140, %v1154
        %v1159 = vmul.f32 %v1150, %v1150
        %v1160 = vmul.f32 %v1151, %v1151
        %v1161 = vmul.f32 %v1152, %v1152
        %v1162 = vmul.f32 %v1153, %v1153
        %v1163 = vmul.f32 %v1155, %v1155
        %v1164 = vmul.f32 %v1156, %v1156
        %v1165 = vmul.f32 %v1157, %v1157
        %v1166 = vmul.f32 %v1158, %v1158
        %v1167 = vadd.f32 %v1159, %v1163
        %v1168 = vadd.f32 %v1160, %v1164
        %v1169 = vadd.f32 %v1161, %v1165
        %v1170 = vadd.f32 %v1162, %v1166
        %v1171 = vstv %s1140
        %v1172 = vsub.f32 %v1171, %v1167
        %v1173 = vsub.f32 %v1171, %v1168
        %v1174 = vsub.f32 %v1171, %v1169
        %v1175 = vsub.f32 %v1171, %v1170
        %v1176 = vmul.f32 %v1172, 0.16666667
        %v1177 = vmul.f32 %v1173, 0.16666667
        %v1178 = vmul.f32 %v1174, 0.16666667
        %v1179 = vmul.f32 %v1175, 0.16666667
        %v1180 = vadd.f32 %v1176, 0.5
        %v1181 = vadd.f32 %v1177, 0.5
        %v1182 = vadd.f32 %v1178, 0.5
        %v1183 = vadd.f32 %v1179, 0.5
        %v1184 = vmax.f32 %v1180, 0.0
        %v1185 = vmax.f32 %v1181, 0.0
        %v1186 = vmax.f32 %v1182, 0.0
        %v1187 = vmax.f32 %v1183, 0.0
        %v1188 = vmin.f32 %v1184, 1.0
        %v1189 = vmin.f32 %v1185, 1.0
        %v1190 = vmin.f32 %v1186, 1.0
        %v1191 = vmin.f32 %v1187, 1.0
        %v1192 = vmul.f32 %v1188, %v1188
        %v1193 = vmul.f32 %v1189, %v1189
        %v1194 = vmul.f32 %v1190, %v1190
        %v1195 = vmul.f32 %v1191, %v1191
        %v1196 = vmul.f32 %v1188, 2.0
        %v1197 = vmul.f32 %v1189, 2.0
        %v1198 = vmul.f32 %v1190, 2.0
        %v1199 = vmul.f32 %v1191, 2.0
        %v1200 = vsub.f32 3.0, %v1196
        %v1201 = vsub.f32 3.0, %v1197
        %v1202 = vsub.f32 3.0, %v1198
        %v1203 = vsub.f32 3.0, %v1199
        %v1204 = vmul.f32 %v1192, %v1200
        %v1205 = vmul.f32 %v1193, %v1201
        %v1206 = vmul.f32 %v1194, %v1202
        %v1207 = vmul.f32 %v1195, %v1203
        %v1208 = vstv %s1142
        %v1209 = vmul.f32 %v1208, %v1204
        %v1210 = vmul.f32 %v1208, %v1205
        %v1211 = vmul.f32 %v1208, %v1206
        %v1212 = vmul.f32 %v1208, %v1207
        %v1213 = vstv %s1144
        %v1214 = vmul.f32 %v1209, %v1213
        %v1215 = vmul.f32 %v1210, %v1213
        %v1216 = vmul.f32 %v1211, %v1213
        %v1217 = vmul.f32 %v1212, %v1213
        %v1218 = vadd.f32 %v1109, %v1214
        %v1219 = vadd.f32 %v1110, %v1215
        %v1220 = vadd.f32 %v1111, %v1216
        %v1221 = vadd.f32 %v1112, %v1217
        %v1222 = vstv %s1146
        %v1223 = vmul.f32 %v1209, %v1222
        %v1224 = vmul.f32 %v1210, %v1222
        %v1225 = vmul.f32 %v1211, %v1222
        %v1226 = vmul.f32 %v1212, %v1222
        %v1227 = vadd.f32 %v1118, %v1223
        %v1228 = vadd.f32 %v1119, %v1224
        %v1229 = vadd.f32 %v1120, %v1225
        %v1230 = vadd.f32 %v1121, %v1226
        %v1231 = vstv %s1148
        %v1232 = vmul.f32 %v1209, %v1231
        %v1233 = vmul.f32 %v1210, %v1231
        %v1234 = vmul.f32 %v1211, %v1231
        %v1235 = vmul.f32 %v1212, %v1231
        %v1236 = vadd.f32 %v1127, %v1232
        %v1237 = vadd.f32 %v1128, %v1233
        %v1238 = vadd.f32 %v1129, %v1234
        %v1239 = vadd.f32 %v1130, %v1235
        %v1240 = vadd.f32 %v1131, %v1209
        %v1241 = vadd.f32 %v1132, %v1210
        %v1242 = vadd.f32 %v1133, %v1211
        %v1243 = vadd.f32 %v1134, %v1212
        %v1244 = vrcp.pop %v1240
        %v1245 = vrcp.pop %v1241
        %v1246 = vrcp.pop %v1242
        %v1247 = vrcp.pop %v1243
        %v1248 = vmul.f32 %v1218, %v1244
        %v1249 = vmul.f32 %v1219, %v1245
        %v1250 = vmul.f32 %v1220, %v1246
        %v1251 = vmul.f32 %v1221, %v1247
        %1252 = vst [vmem:[%s112] sm:$0xff] %v1248
        %1253 = vst [vmem:[%s112 + $0x8] sm:$0xff] %v1249
        %1254 = vst [vmem:[%s112 + $0x10] sm:$0xff] %v1250
        %1255 = vst [vmem:[%s112 + $0x18] sm:$0xff] %v1251
        %v1256 = vmul.f32 %v1227, %v1244
        %v1257 = vmul.f32 %v1228, %v1245
        %v1258 = vmul.f32 %v1229, %v1246
        %v1259 = vmul.f32 %v1230, %v1247
        %s1260 = scalar_lea.vmem %s112, 32
        %1261 = vst [vmem:[%s1260] sm:$0xff] %v1256
        %1262 = vst [vmem:[%s1260 + $0x8] sm:$0xff] %v1257
        %1263 = vst [vmem:[%s1260 + $0x10] sm:$0xff] %v1258
        %1264 = vst [vmem:[%s1260 + $0x18] sm:$0xff] %v1259
        %v1265 = vmul.f32 %v1236, %v1244
        %v1266 = vmul.f32 %v1237, %v1245
        %v1267 = vmul.f32 %v1238, %v1246
        %v1268 = vmul.f32 %v1239, %v1247
        %s1269 = scalar_lea.vmem %s112, 64
        %1270 = vst [vmem:[%s1269] sm:$0xff] %v1265
        %1271 = vst [vmem:[%s1269 + $0x8] sm:$0xff] %v1266
        %1272 = vst [vmem:[%s1269 + $0x10] sm:$0xff] %v1267
        %1273 = vst [vmem:[%s1269 + $0x18] sm:$0xff] %v1268
        %s1274 = scalar_lea.vmem %s112, 96
        %1275 = vst [vmem:[%s1274] sm:$0xff] %v1240
        %1276 = vst [vmem:[%s1274 + $0x8] sm:$0xff] %v1241
        %1277 = vst [vmem:[%s1274 + $0x10] sm:$0xff] %v1242
        %1278 = vst [vmem:[%s1274 + $0x18] sm:$0xff] %v1243
        %s1279 = sadd.s32 %s153, 1
        %s1280 = smul.u32 %s1279, 128
        %s1281 = sld [smem:[#allocation2 + %s1280]]
        %s1282 = sadd.s32 %s1280, 1
        %s1283 = sld [smem:[#allocation2 + %s1282]]
        %s1284 = sadd.s32 %s1280, 2
        %s1285 = sld [smem:[#allocation2 + %s1284]]
        %s1286 = sadd.s32 %s1280, 3
        %s1287 = sld [smem:[#allocation2 + %s1286]]
        %s1288 = sadd.s32 %s1280, 4
        %s1289 = sld [smem:[#allocation2 + %s1288]]
        %s1290 = sadd.s32 %s1280, 5
        %s1291 = sld [smem:[#allocation2 + %s1290]]
        %s1292 = sadd.s32 %s1280, 6
        %s1293 = sld [smem:[#allocation2 + %s1292]]
        %v1294 = vstv %s1281
        %v1295 = vsub.f32 %v149, %v1294
        %v1296 = vsub.f32 %v150, %v1294
        %v1297 = vsub.f32 %v151, %v1294
        %v1298 = vsub.f32 %v152, %v1294
        %v1299 = vstv %s1283
        %v1300 = vsub.f32 %v137, %v1299
        %v1301 = vsub.f32 %v138, %v1299
        %v1302 = vsub.f32 %v139, %v1299
        %v1303 = vsub.f32 %v140, %v1299
        %v1304 = vmul.f32 %v1295, %v1295
        %v1305 = vmul.f32 %v1296, %v1296
        %v1306 = vmul.f32 %v1297, %v1297
        %v1307 = vmul.f32 %v1298, %v1298
        %v1308 = vmul.f32 %v1300, %v1300
        %v1309 = vmul.f32 %v1301, %v1301
        %v1310 = vmul.f32 %v1302, %v1302
        %v1311 = vmul.f32 %v1303, %v1303
        %v1312 = vadd.f32 %v1304, %v1308
        %v1313 = vadd.f32 %v1305, %v1309
        %v1314 = vadd.f32 %v1306, %v1310
        %v1315 = vadd.f32 %v1307, %v1311
        %v1316 = vstv %s1285
        %v1317 = vsub.f32 %v1316, %v1312
        %v1318 = vsub.f32 %v1316, %v1313
        %v1319 = vsub.f32 %v1316, %v1314
        %v1320 = vsub.f32 %v1316, %v1315
        %v1321 = vmul.f32 %v1317, 0.16666667
        %v1322 = vmul.f32 %v1318, 0.16666667
        %v1323 = vmul.f32 %v1319, 0.16666667
        %v1324 = vmul.f32 %v1320, 0.16666667
        %v1325 = vadd.f32 %v1321, 0.5
        %v1326 = vadd.f32 %v1322, 0.5
        %v1327 = vadd.f32 %v1323, 0.5
        %v1328 = vadd.f32 %v1324, 0.5
        %v1329 = vmax.f32 %v1325, 0.0
        %v1330 = vmax.f32 %v1326, 0.0
        %v1331 = vmax.f32 %v1327, 0.0
        %v1332 = vmax.f32 %v1328, 0.0
        %v1333 = vmin.f32 %v1329, 1.0
        %v1334 = vmin.f32 %v1330, 1.0
        %v1335 = vmin.f32 %v1331, 1.0
        %v1336 = vmin.f32 %v1332, 1.0
        %v1337 = vmul.f32 %v1333, %v1333
        %v1338 = vmul.f32 %v1334, %v1334
        %v1339 = vmul.f32 %v1335, %v1335
        %v1340 = vmul.f32 %v1336, %v1336
        %v1341 = vmul.f32 %v1333, 2.0
        %v1342 = vmul.f32 %v1334, 2.0
        %v1343 = vmul.f32 %v1335, 2.0
        %v1344 = vmul.f32 %v1336, 2.0
        %v1345 = vsub.f32 3.0, %v1341
        %v1346 = vsub.f32 3.0, %v1342
        %v1347 = vsub.f32 3.0, %v1343
        %v1348 = vsub.f32 3.0, %v1344
        %v1349 = vmul.f32 %v1337, %v1345
        %v1350 = vmul.f32 %v1338, %v1346
        %v1351 = vmul.f32 %v1339, %v1347
        %v1352 = vmul.f32 %v1340, %v1348
        %v1353 = vstv %s1287
        %v1354 = vmul.f32 %v1353, %v1349
        %v1355 = vmul.f32 %v1353, %v1350
        %v1356 = vmul.f32 %v1353, %v1351
        %v1357 = vmul.f32 %v1353, %v1352
        %v1358 = vstv %s1289
        %v1359 = vmul.f32 %v1354, %v1358
        %v1360 = vmul.f32 %v1355, %v1358
        %v1361 = vmul.f32 %v1356, %v1358
        %v1362 = vmul.f32 %v1357, %v1358
        %v1363 = vadd.f32 %v1359, 0.0
        %v1364 = vadd.f32 %v1360, 0.0
        %v1365 = vadd.f32 %v1361, 0.0
        %v1366 = vadd.f32 %v1362, 0.0
        %v1367 = vstv %s1291
        %v1368 = vmul.f32 %v1354, %v1367
        %v1369 = vmul.f32 %v1355, %v1367
        %v1370 = vmul.f32 %v1356, %v1367
        %v1371 = vmul.f32 %v1357, %v1367
        %v1372 = vadd.f32 %v1368, 0.0
        %v1373 = vadd.f32 %v1369, 0.0
        %v1374 = vadd.f32 %v1370, 0.0
        %v1375 = vadd.f32 %v1371, 0.0
        %v1376 = vstv %s1293
        %v1377 = vmul.f32 %v1354, %v1376
        %v1378 = vmul.f32 %v1355, %v1376
        %v1379 = vmul.f32 %v1356, %v1376
        %v1380 = vmul.f32 %v1357, %v1376
        %v1381 = vadd.f32 %v1377, 0.0
        %v1382 = vadd.f32 %v1378, 0.0
        %v1383 = vadd.f32 %v1379, 0.0
        %v1384 = vadd.f32 %v1380, 0.0
        %v1385 = vadd.f32 %v1354, 1e-05
        %v1386 = vadd.f32 %v1355, 1e-05
        %v1387 = vadd.f32 %v1356, 1e-05
        %v1388 = vadd.f32 %v1357, 1e-05
        %s1389 = sadd.s32 %s1280, 8
        %s1390 = sld [smem:[#allocation2 + %s1389]]
        %s1391 = sadd.s32 %s1280, 9
        %s1392 = sld [smem:[#allocation2 + %s1391]]
        %s1393 = sadd.s32 %s1280, 10
        %s1394 = sld [smem:[#allocation2 + %s1393]]
        %s1395 = sadd.s32 %s1280, 11
        %s1396 = sld [smem:[#allocation2 + %s1395]]
        %s1397 = sadd.s32 %s1280, 12
        %s1398 = sld [smem:[#allocation2 + %s1397]]
        %s1399 = sadd.s32 %s1280, 13
        %s1400 = sld [smem:[#allocation2 + %s1399]]
        %s1401 = sadd.s32 %s1280, 14
        %s1402 = sld [smem:[#allocation2 + %s1401]]
        %v1403 = vstv %s1390
        %v1404 = vsub.f32 %v149, %v1403
        %v1405 = vsub.f32 %v150, %v1403
        %v1406 = vsub.f32 %v151, %v1403
        %v1407 = vsub.f32 %v152, %v1403
        %v1408 = vstv %s1392
        %v1409 = vsub.f32 %v137, %v1408
        %v1410 = vsub.f32 %v138, %v1408
        %v1411 = vsub.f32 %v139, %v1408
        %v1412 = vsub.f32 %v140, %v1408
        %v1413 = vmul.f32 %v1404, %v1404
        %v1414 = vmul.f32 %v1405, %v1405
        %v1415 = vmul.f32 %v1406, %v1406
        %v1416 = vmul.f32 %v1407, %v1407
        %v1417 = vmul.f32 %v1409, %v1409
        %v1418 = vmul.f32 %v1410, %v1410
        %v1419 = vmul.f32 %v1411, %v1411
        %v1420 = vmul.f32 %v1412, %v1412
        %v1421 = vadd.f32 %v1413, %v1417
        %v1422 = vadd.f32 %v1414, %v1418
        %v1423 = vadd.f32 %v1415, %v1419
        %v1424 = vadd.f32 %v1416, %v1420
        %v1425 = vstv %s1394
        %v1426 = vsub.f32 %v1425, %v1421
        %v1427 = vsub.f32 %v1425, %v1422
        %v1428 = vsub.f32 %v1425, %v1423
        %v1429 = vsub.f32 %v1425, %v1424
        %v1430 = vmul.f32 %v1426, 0.16666667
        %v1431 = vmul.f32 %v1427, 0.16666667
        %v1432 = vmul.f32 %v1428, 0.16666667
        %v1433 = vmul.f32 %v1429, 0.16666667
        %v1434 = vadd.f32 %v1430, 0.5
        %v1435 = vadd.f32 %v1431, 0.5
        %v1436 = vadd.f32 %v1432, 0.5
        %v1437 = vadd.f32 %v1433, 0.5
        %v1438 = vmax.f32 %v1434, 0.0
        %v1439 = vmax.f32 %v1435, 0.0
        %v1440 = vmax.f32 %v1436, 0.0
        %v1441 = vmax.f32 %v1437, 0.0
        %v1442 = vmin.f32 %v1438, 1.0
        %v1443 = vmin.f32 %v1439, 1.0
        %v1444 = vmin.f32 %v1440, 1.0
        %v1445 = vmin.f32 %v1441, 1.0
        %v1446 = vmul.f32 %v1442, %v1442
        %v1447 = vmul.f32 %v1443, %v1443
        %v1448 = vmul.f32 %v1444, %v1444
        %v1449 = vmul.f32 %v1445, %v1445
        %v1450 = vmul.f32 %v1442, 2.0
        %v1451 = vmul.f32 %v1443, 2.0
        %v1452 = vmul.f32 %v1444, 2.0
        %v1453 = vmul.f32 %v1445, 2.0
        %v1454 = vsub.f32 3.0, %v1450
        %v1455 = vsub.f32 3.0, %v1451
        %v1456 = vsub.f32 3.0, %v1452
        %v1457 = vsub.f32 3.0, %v1453
        %v1458 = vmul.f32 %v1446, %v1454
        %v1459 = vmul.f32 %v1447, %v1455
        %v1460 = vmul.f32 %v1448, %v1456
        %v1461 = vmul.f32 %v1449, %v1457
        %v1462 = vstv %s1396
        %v1463 = vmul.f32 %v1462, %v1458
        %v1464 = vmul.f32 %v1462, %v1459
        %v1465 = vmul.f32 %v1462, %v1460
        %v1466 = vmul.f32 %v1462, %v1461
        %v1467 = vstv %s1398
        %v1468 = vmul.f32 %v1463, %v1467
        %v1469 = vmul.f32 %v1464, %v1467
        %v1470 = vmul.f32 %v1465, %v1467
        %v1471 = vmul.f32 %v1466, %v1467
        %v1472 = vadd.f32 %v1363, %v1468
        %v1473 = vadd.f32 %v1364, %v1469
        %v1474 = vadd.f32 %v1365, %v1470
        %v1475 = vadd.f32 %v1366, %v1471
        %v1476 = vstv %s1400
        %v1477 = vmul.f32 %v1463, %v1476
        %v1478 = vmul.f32 %v1464, %v1476
        %v1479 = vmul.f32 %v1465, %v1476
        %v1480 = vmul.f32 %v1466, %v1476
        %v1481 = vadd.f32 %v1372, %v1477
        %v1482 = vadd.f32 %v1373, %v1478
        %v1483 = vadd.f32 %v1374, %v1479
        %v1484 = vadd.f32 %v1375, %v1480
        %v1485 = vstv %s1402
        %v1486 = vmul.f32 %v1463, %v1485
        %v1487 = vmul.f32 %v1464, %v1485
        %v1488 = vmul.f32 %v1465, %v1485
        %v1489 = vmul.f32 %v1466, %v1485
        %v1490 = vadd.f32 %v1381, %v1486
        %v1491 = vadd.f32 %v1382, %v1487
        %v1492 = vadd.f32 %v1383, %v1488
        %v1493 = vadd.f32 %v1384, %v1489
        %v1494 = vadd.f32 %v1385, %v1463
        %v1495 = vadd.f32 %v1386, %v1464
        %v1496 = vadd.f32 %v1387, %v1465
        %v1497 = vadd.f32 %v1388, %v1466
        %s1498 = sadd.s32 %s1280, 16
        %s1499 = sld [smem:[#allocation2 + %s1498]]
        %s1500 = sadd.s32 %s1280, 17
        %s1501 = sld [smem:[#allocation2 + %s1500]]
        %s1502 = sadd.s32 %s1280, 18
        %s1503 = sld [smem:[#allocation2 + %s1502]]
        %s1504 = sadd.s32 %s1280, 19
        %s1505 = sld [smem:[#allocation2 + %s1504]]
        %s1506 = sadd.s32 %s1280, 20
        %s1507 = sld [smem:[#allocation2 + %s1506]]
        %s1508 = sadd.s32 %s1280, 21
        %s1509 = sld [smem:[#allocation2 + %s1508]]
        %s1510 = sadd.s32 %s1280, 22
        %s1511 = sld [smem:[#allocation2 + %s1510]]
        %v1512 = vstv %s1499
        %v1513 = vsub.f32 %v149, %v1512
        %v1514 = vsub.f32 %v150, %v1512
        %v1515 = vsub.f32 %v151, %v1512
        %v1516 = vsub.f32 %v152, %v1512
        %v1517 = vstv %s1501
        %v1518 = vsub.f32 %v137, %v1517
        %v1519 = vsub.f32 %v138, %v1517
        %v1520 = vsub.f32 %v139, %v1517
        %v1521 = vsub.f32 %v140, %v1517
        %v1522 = vmul.f32 %v1513, %v1513
        %v1523 = vmul.f32 %v1514, %v1514
        %v1524 = vmul.f32 %v1515, %v1515
        %v1525 = vmul.f32 %v1516, %v1516
        %v1526 = vmul.f32 %v1518, %v1518
        %v1527 = vmul.f32 %v1519, %v1519
        %v1528 = vmul.f32 %v1520, %v1520
        %v1529 = vmul.f32 %v1521, %v1521
        %v1530 = vadd.f32 %v1522, %v1526
        %v1531 = vadd.f32 %v1523, %v1527
        %v1532 = vadd.f32 %v1524, %v1528
        %v1533 = vadd.f32 %v1525, %v1529
        %v1534 = vstv %s1503
        %v1535 = vsub.f32 %v1534, %v1530
        %v1536 = vsub.f32 %v1534, %v1531
        %v1537 = vsub.f32 %v1534, %v1532
        %v1538 = vsub.f32 %v1534, %v1533
        %v1539 = vmul.f32 %v1535, 0.16666667
        %v1540 = vmul.f32 %v1536, 0.16666667
        %v1541 = vmul.f32 %v1537, 0.16666667
        %v1542 = vmul.f32 %v1538, 0.16666667
        %v1543 = vadd.f32 %v1539, 0.5
        %v1544 = vadd.f32 %v1540, 0.5
        %v1545 = vadd.f32 %v1541, 0.5
        %v1546 = vadd.f32 %v1542, 0.5
        %v1547 = vmax.f32 %v1543, 0.0
        %v1548 = vmax.f32 %v1544, 0.0
        %v1549 = vmax.f32 %v1545, 0.0
        %v1550 = vmax.f32 %v1546, 0.0
        %v1551 = vmin.f32 %v1547, 1.0
        %v1552 = vmin.f32 %v1548, 1.0
        %v1553 = vmin.f32 %v1549, 1.0
        %v1554 = vmin.f32 %v1550, 1.0
        %v1555 = vmul.f32 %v1551, %v1551
        %v1556 = vmul.f32 %v1552, %v1552
        %v1557 = vmul.f32 %v1553, %v1553
        %v1558 = vmul.f32 %v1554, %v1554
        %v1559 = vmul.f32 %v1551, 2.0
        %v1560 = vmul.f32 %v1552, 2.0
        %v1561 = vmul.f32 %v1553, 2.0
        %v1562 = vmul.f32 %v1554, 2.0
        %v1563 = vsub.f32 3.0, %v1559
        %v1564 = vsub.f32 3.0, %v1560
        %v1565 = vsub.f32 3.0, %v1561
        %v1566 = vsub.f32 3.0, %v1562
        %v1567 = vmul.f32 %v1555, %v1563
        %v1568 = vmul.f32 %v1556, %v1564
        %v1569 = vmul.f32 %v1557, %v1565
        %v1570 = vmul.f32 %v1558, %v1566
        %v1571 = vstv %s1505
        %v1572 = vmul.f32 %v1571, %v1567
        %v1573 = vmul.f32 %v1571, %v1568
        %v1574 = vmul.f32 %v1571, %v1569
        %v1575 = vmul.f32 %v1571, %v1570
        %v1576 = vstv %s1507
        %v1577 = vmul.f32 %v1572, %v1576
        %v1578 = vmul.f32 %v1573, %v1576
        %v1579 = vmul.f32 %v1574, %v1576
        %v1580 = vmul.f32 %v1575, %v1576
        %v1581 = vadd.f32 %v1472, %v1577
        %v1582 = vadd.f32 %v1473, %v1578
        %v1583 = vadd.f32 %v1474, %v1579
        %v1584 = vadd.f32 %v1475, %v1580
        %v1585 = vstv %s1509
        %v1586 = vmul.f32 %v1572, %v1585
        %v1587 = vmul.f32 %v1573, %v1585
        %v1588 = vmul.f32 %v1574, %v1585
        %v1589 = vmul.f32 %v1575, %v1585
        %v1590 = vadd.f32 %v1481, %v1586
        %v1591 = vadd.f32 %v1482, %v1587
        %v1592 = vadd.f32 %v1483, %v1588
        %v1593 = vadd.f32 %v1484, %v1589
        %v1594 = vstv %s1511
        %v1595 = vmul.f32 %v1572, %v1594
        %v1596 = vmul.f32 %v1573, %v1594
        %v1597 = vmul.f32 %v1574, %v1594
        %v1598 = vmul.f32 %v1575, %v1594
        %v1599 = vadd.f32 %v1490, %v1595
        %v1600 = vadd.f32 %v1491, %v1596
        %v1601 = vadd.f32 %v1492, %v1597
        %v1602 = vadd.f32 %v1493, %v1598
        %v1603 = vadd.f32 %v1494, %v1572
        %v1604 = vadd.f32 %v1495, %v1573
        %v1605 = vadd.f32 %v1496, %v1574
        %v1606 = vadd.f32 %v1497, %v1575
        %s1607 = sadd.s32 %s1280, 24
        %s1608 = sld [smem:[#allocation2 + %s1607]]
        %s1609 = sadd.s32 %s1280, 25
        %s1610 = sld [smem:[#allocation2 + %s1609]]
        %s1611 = sadd.s32 %s1280, 26
        %s1612 = sld [smem:[#allocation2 + %s1611]]
        %s1613 = sadd.s32 %s1280, 27
        %s1614 = sld [smem:[#allocation2 + %s1613]]
        %s1615 = sadd.s32 %s1280, 28
        %s1616 = sld [smem:[#allocation2 + %s1615]]
        %s1617 = sadd.s32 %s1280, 29
        %s1618 = sld [smem:[#allocation2 + %s1617]]
        %s1619 = sadd.s32 %s1280, 30
        %s1620 = sld [smem:[#allocation2 + %s1619]]
        %v1621 = vstv %s1608
        %v1622 = vsub.f32 %v149, %v1621
        %v1623 = vsub.f32 %v150, %v1621
        %v1624 = vsub.f32 %v151, %v1621
        %v1625 = vsub.f32 %v152, %v1621
        %v1626 = vstv %s1610
        %v1627 = vsub.f32 %v137, %v1626
        %v1628 = vsub.f32 %v138, %v1626
        %v1629 = vsub.f32 %v139, %v1626
        %v1630 = vsub.f32 %v140, %v1626
        %v1631 = vmul.f32 %v1622, %v1622
        %v1632 = vmul.f32 %v1623, %v1623
        %v1633 = vmul.f32 %v1624, %v1624
        %v1634 = vmul.f32 %v1625, %v1625
        %v1635 = vmul.f32 %v1627, %v1627
        %v1636 = vmul.f32 %v1628, %v1628
        %v1637 = vmul.f32 %v1629, %v1629
        %v1638 = vmul.f32 %v1630, %v1630
        %v1639 = vadd.f32 %v1631, %v1635
        %v1640 = vadd.f32 %v1632, %v1636
        %v1641 = vadd.f32 %v1633, %v1637
        %v1642 = vadd.f32 %v1634, %v1638
        %v1643 = vstv %s1612
        %v1644 = vsub.f32 %v1643, %v1639
        %v1645 = vsub.f32 %v1643, %v1640
        %v1646 = vsub.f32 %v1643, %v1641
        %v1647 = vsub.f32 %v1643, %v1642
        %v1648 = vmul.f32 %v1644, 0.16666667
        %v1649 = vmul.f32 %v1645, 0.16666667
        %v1650 = vmul.f32 %v1646, 0.16666667
        %v1651 = vmul.f32 %v1647, 0.16666667
        %v1652 = vadd.f32 %v1648, 0.5
        %v1653 = vadd.f32 %v1649, 0.5
        %v1654 = vadd.f32 %v1650, 0.5
        %v1655 = vadd.f32 %v1651, 0.5
        %v1656 = vmax.f32 %v1652, 0.0
        %v1657 = vmax.f32 %v1653, 0.0
        %v1658 = vmax.f32 %v1654, 0.0
        %v1659 = vmax.f32 %v1655, 0.0
        %v1660 = vmin.f32 %v1656, 1.0
        %v1661 = vmin.f32 %v1657, 1.0
        %v1662 = vmin.f32 %v1658, 1.0
        %v1663 = vmin.f32 %v1659, 1.0
        %v1664 = vmul.f32 %v1660, %v1660
        %v1665 = vmul.f32 %v1661, %v1661
        %v1666 = vmul.f32 %v1662, %v1662
        %v1667 = vmul.f32 %v1663, %v1663
        %v1668 = vmul.f32 %v1660, 2.0
        %v1669 = vmul.f32 %v1661, 2.0
        %v1670 = vmul.f32 %v1662, 2.0
        %v1671 = vmul.f32 %v1663, 2.0
        %v1672 = vsub.f32 3.0, %v1668
        %v1673 = vsub.f32 3.0, %v1669
        %v1674 = vsub.f32 3.0, %v1670
        %v1675 = vsub.f32 3.0, %v1671
        %v1676 = vmul.f32 %v1664, %v1672
        %v1677 = vmul.f32 %v1665, %v1673
        %v1678 = vmul.f32 %v1666, %v1674
        %v1679 = vmul.f32 %v1667, %v1675
        %v1680 = vstv %s1614
        %v1681 = vmul.f32 %v1680, %v1676
        %v1682 = vmul.f32 %v1680, %v1677
        %v1683 = vmul.f32 %v1680, %v1678
        %v1684 = vmul.f32 %v1680, %v1679
        %v1685 = vstv %s1616
        %v1686 = vmul.f32 %v1681, %v1685
        %v1687 = vmul.f32 %v1682, %v1685
        %v1688 = vmul.f32 %v1683, %v1685
        %v1689 = vmul.f32 %v1684, %v1685
        %v1690 = vadd.f32 %v1581, %v1686
        %v1691 = vadd.f32 %v1582, %v1687
        %v1692 = vadd.f32 %v1583, %v1688
        %v1693 = vadd.f32 %v1584, %v1689
        %v1694 = vstv %s1618
        %v1695 = vmul.f32 %v1681, %v1694
        %v1696 = vmul.f32 %v1682, %v1694
        %v1697 = vmul.f32 %v1683, %v1694
        %v1698 = vmul.f32 %v1684, %v1694
        %v1699 = vadd.f32 %v1590, %v1695
        %v1700 = vadd.f32 %v1591, %v1696
        %v1701 = vadd.f32 %v1592, %v1697
        %v1702 = vadd.f32 %v1593, %v1698
        %v1703 = vstv %s1620
        %v1704 = vmul.f32 %v1681, %v1703
        %v1705 = vmul.f32 %v1682, %v1703
        %v1706 = vmul.f32 %v1683, %v1703
        %v1707 = vmul.f32 %v1684, %v1703
        %v1708 = vadd.f32 %v1599, %v1704
        %v1709 = vadd.f32 %v1600, %v1705
        %v1710 = vadd.f32 %v1601, %v1706
        %v1711 = vadd.f32 %v1602, %v1707
        %v1712 = vadd.f32 %v1603, %v1681
        %v1713 = vadd.f32 %v1604, %v1682
        %v1714 = vadd.f32 %v1605, %v1683
        %v1715 = vadd.f32 %v1606, %v1684
        %s1716 = sadd.s32 %s1280, 32
        %s1717 = sld [smem:[#allocation2 + %s1716]]
        %s1718 = sadd.s32 %s1280, 33
        %s1719 = sld [smem:[#allocation2 + %s1718]]
        %s1720 = sadd.s32 %s1280, 34
        %s1721 = sld [smem:[#allocation2 + %s1720]]
        %s1722 = sadd.s32 %s1280, 35
        %s1723 = sld [smem:[#allocation2 + %s1722]]
        %s1724 = sadd.s32 %s1280, 36
        %s1725 = sld [smem:[#allocation2 + %s1724]]
        %s1726 = sadd.s32 %s1280, 37
        %s1727 = sld [smem:[#allocation2 + %s1726]]
        %s1728 = sadd.s32 %s1280, 38
        %s1729 = sld [smem:[#allocation2 + %s1728]]
        %v1730 = vstv %s1717
        %v1731 = vsub.f32 %v149, %v1730
        %v1732 = vsub.f32 %v150, %v1730
        %v1733 = vsub.f32 %v151, %v1730
        %v1734 = vsub.f32 %v152, %v1730
        %v1735 = vstv %s1719
        %v1736 = vsub.f32 %v137, %v1735
        %v1737 = vsub.f32 %v138, %v1735
        %v1738 = vsub.f32 %v139, %v1735
        %v1739 = vsub.f32 %v140, %v1735
        %v1740 = vmul.f32 %v1731, %v1731
        %v1741 = vmul.f32 %v1732, %v1732
        %v1742 = vmul.f32 %v1733, %v1733
        %v1743 = vmul.f32 %v1734, %v1734
        %v1744 = vmul.f32 %v1736, %v1736
        %v1745 = vmul.f32 %v1737, %v1737
        %v1746 = vmul.f32 %v1738, %v1738
        %v1747 = vmul.f32 %v1739, %v1739
        %v1748 = vadd.f32 %v1740, %v1744
        %v1749 = vadd.f32 %v1741, %v1745
        %v1750 = vadd.f32 %v1742, %v1746
        %v1751 = vadd.f32 %v1743, %v1747
        %v1752 = vstv %s1721
        %v1753 = vsub.f32 %v1752, %v1748
        %v1754 = vsub.f32 %v1752, %v1749
        %v1755 = vsub.f32 %v1752, %v1750
        %v1756 = vsub.f32 %v1752, %v1751
        %v1757 = vmul.f32 %v1753, 0.16666667
        %v1758 = vmul.f32 %v1754, 0.16666667
        %v1759 = vmul.f32 %v1755, 0.16666667
        %v1760 = vmul.f32 %v1756, 0.16666667
        %v1761 = vadd.f32 %v1757, 0.5
        %v1762 = vadd.f32 %v1758, 0.5
        %v1763 = vadd.f32 %v1759, 0.5
        %v1764 = vadd.f32 %v1760, 0.5
        %v1765 = vmax.f32 %v1761, 0.0
        %v1766 = vmax.f32 %v1762, 0.0
        %v1767 = vmax.f32 %v1763, 0.0
        %v1768 = vmax.f32 %v1764, 0.0
        %v1769 = vmin.f32 %v1765, 1.0
        %v1770 = vmin.f32 %v1766, 1.0
        %v1771 = vmin.f32 %v1767, 1.0
        %v1772 = vmin.f32 %v1768, 1.0
        %v1773 = vmul.f32 %v1769, %v1769
        %v1774 = vmul.f32 %v1770, %v1770
        %v1775 = vmul.f32 %v1771, %v1771
        %v1776 = vmul.f32 %v1772, %v1772
        %v1777 = vmul.f32 %v1769, 2.0
        %v1778 = vmul.f32 %v1770, 2.0
        %v1779 = vmul.f32 %v1771, 2.0
        %v1780 = vmul.f32 %v1772, 2.0
        %v1781 = vsub.f32 3.0, %v1777
        %v1782 = vsub.f32 3.0, %v1778
        %v1783 = vsub.f32 3.0, %v1779
        %v1784 = vsub.f32 3.0, %v1780
        %v1785 = vmul.f32 %v1773, %v1781
        %v1786 = vmul.f32 %v1774, %v1782
        %v1787 = vmul.f32 %v1775, %v1783
        %v1788 = vmul.f32 %v1776, %v1784
        %v1789 = vstv %s1723
        %v1790 = vmul.f32 %v1789, %v1785
        %v1791 = vmul.f32 %v1789, %v1786
        %v1792 = vmul.f32 %v1789, %v1787
        %v1793 = vmul.f32 %v1789, %v1788
        %v1794 = vstv %s1725
        %v1795 = vmul.f32 %v1790, %v1794
        %v1796 = vmul.f32 %v1791, %v1794
        %v1797 = vmul.f32 %v1792, %v1794
        %v1798 = vmul.f32 %v1793, %v1794
        %v1799 = vadd.f32 %v1690, %v1795
        %v1800 = vadd.f32 %v1691, %v1796
        %v1801 = vadd.f32 %v1692, %v1797
        %v1802 = vadd.f32 %v1693, %v1798
        %v1803 = vstv %s1727
        %v1804 = vmul.f32 %v1790, %v1803
        %v1805 = vmul.f32 %v1791, %v1803
        %v1806 = vmul.f32 %v1792, %v1803
        %v1807 = vmul.f32 %v1793, %v1803
        %v1808 = vadd.f32 %v1699, %v1804
        %v1809 = vadd.f32 %v1700, %v1805
        %v1810 = vadd.f32 %v1701, %v1806
        %v1811 = vadd.f32 %v1702, %v1807
        %v1812 = vstv %s1729
        %v1813 = vmul.f32 %v1790, %v1812
        %v1814 = vmul.f32 %v1791, %v1812
        %v1815 = vmul.f32 %v1792, %v1812
        %v1816 = vmul.f32 %v1793, %v1812
        %v1817 = vadd.f32 %v1708, %v1813
        %v1818 = vadd.f32 %v1709, %v1814
        %v1819 = vadd.f32 %v1710, %v1815
        %v1820 = vadd.f32 %v1711, %v1816
        %v1821 = vadd.f32 %v1712, %v1790
        %v1822 = vadd.f32 %v1713, %v1791
        %v1823 = vadd.f32 %v1714, %v1792
        %v1824 = vadd.f32 %v1715, %v1793
        %s1825 = sadd.s32 %s1280, 40
        %s1826 = sld [smem:[#allocation2 + %s1825]]
        %s1827 = sadd.s32 %s1280, 41
        %s1828 = sld [smem:[#allocation2 + %s1827]]
        %s1829 = sadd.s32 %s1280, 42
        %s1830 = sld [smem:[#allocation2 + %s1829]]
        %s1831 = sadd.s32 %s1280, 43
        %s1832 = sld [smem:[#allocation2 + %s1831]]
        %s1833 = sadd.s32 %s1280, 44
        %s1834 = sld [smem:[#allocation2 + %s1833]]
        %s1835 = sadd.s32 %s1280, 45
        %s1836 = sld [smem:[#allocation2 + %s1835]]
        %s1837 = sadd.s32 %s1280, 46
        %s1838 = sld [smem:[#allocation2 + %s1837]]
        %v1839 = vstv %s1826
        %v1840 = vsub.f32 %v149, %v1839
        %v1841 = vsub.f32 %v150, %v1839
        %v1842 = vsub.f32 %v151, %v1839
        %v1843 = vsub.f32 %v152, %v1839
        %v1844 = vstv %s1828
        %v1845 = vsub.f32 %v137, %v1844
        %v1846 = vsub.f32 %v138, %v1844
        %v1847 = vsub.f32 %v139, %v1844
        %v1848 = vsub.f32 %v140, %v1844
        %v1849 = vmul.f32 %v1840, %v1840
        %v1850 = vmul.f32 %v1841, %v1841
        %v1851 = vmul.f32 %v1842, %v1842
        %v1852 = vmul.f32 %v1843, %v1843
        %v1853 = vmul.f32 %v1845, %v1845
        %v1854 = vmul.f32 %v1846, %v1846
        %v1855 = vmul.f32 %v1847, %v1847
        %v1856 = vmul.f32 %v1848, %v1848
        %v1857 = vadd.f32 %v1849, %v1853
        %v1858 = vadd.f32 %v1850, %v1854
        %v1859 = vadd.f32 %v1851, %v1855
        %v1860 = vadd.f32 %v1852, %v1856
        %v1861 = vstv %s1830
        %v1862 = vsub.f32 %v1861, %v1857
        %v1863 = vsub.f32 %v1861, %v1858
        %v1864 = vsub.f32 %v1861, %v1859
        %v1865 = vsub.f32 %v1861, %v1860
        %v1866 = vmul.f32 %v1862, 0.16666667
        %v1867 = vmul.f32 %v1863, 0.16666667
        %v1868 = vmul.f32 %v1864, 0.16666667
        %v1869 = vmul.f32 %v1865, 0.16666667
        %v1870 = vadd.f32 %v1866, 0.5
        %v1871 = vadd.f32 %v1867, 0.5
        %v1872 = vadd.f32 %v1868, 0.5
        %v1873 = vadd.f32 %v1869, 0.5
        %v1874 = vmax.f32 %v1870, 0.0
        %v1875 = vmax.f32 %v1871, 0.0
        %v1876 = vmax.f32 %v1872, 0.0
        %v1877 = vmax.f32 %v1873, 0.0
        %v1878 = vmin.f32 %v1874, 1.0
        %v1879 = vmin.f32 %v1875, 1.0
        %v1880 = vmin.f32 %v1876, 1.0
        %v1881 = vmin.f32 %v1877, 1.0
        %v1882 = vmul.f32 %v1878, %v1878
        %v1883 = vmul.f32 %v1879, %v1879
        %v1884 = vmul.f32 %v1880, %v1880
        %v1885 = vmul.f32 %v1881, %v1881
        %v1886 = vmul.f32 %v1878, 2.0
        %v1887 = vmul.f32 %v1879, 2.0
        %v1888 = vmul.f32 %v1880, 2.0
        %v1889 = vmul.f32 %v1881, 2.0
        %v1890 = vsub.f32 3.0, %v1886
        %v1891 = vsub.f32 3.0, %v1887
        %v1892 = vsub.f32 3.0, %v1888
        %v1893 = vsub.f32 3.0, %v1889
        %v1894 = vmul.f32 %v1882, %v1890
        %v1895 = vmul.f32 %v1883, %v1891
        %v1896 = vmul.f32 %v1884, %v1892
        %v1897 = vmul.f32 %v1885, %v1893
        %v1898 = vstv %s1832
        %v1899 = vmul.f32 %v1898, %v1894
        %v1900 = vmul.f32 %v1898, %v1895
        %v1901 = vmul.f32 %v1898, %v1896
        %v1902 = vmul.f32 %v1898, %v1897
        %v1903 = vstv %s1834
        %v1904 = vmul.f32 %v1899, %v1903
        %v1905 = vmul.f32 %v1900, %v1903
        %v1906 = vmul.f32 %v1901, %v1903
        %v1907 = vmul.f32 %v1902, %v1903
        %v1908 = vadd.f32 %v1799, %v1904
        %v1909 = vadd.f32 %v1800, %v1905
        %v1910 = vadd.f32 %v1801, %v1906
        %v1911 = vadd.f32 %v1802, %v1907
        %v1912 = vstv %s1836
        %v1913 = vmul.f32 %v1899, %v1912
        %v1914 = vmul.f32 %v1900, %v1912
        %v1915 = vmul.f32 %v1901, %v1912
        %v1916 = vmul.f32 %v1902, %v1912
        %v1917 = vadd.f32 %v1808, %v1913
        %v1918 = vadd.f32 %v1809, %v1914
        %v1919 = vadd.f32 %v1810, %v1915
        %v1920 = vadd.f32 %v1811, %v1916
        %v1921 = vstv %s1838
        %v1922 = vmul.f32 %v1899, %v1921
        %v1923 = vmul.f32 %v1900, %v1921
        %v1924 = vmul.f32 %v1901, %v1921
        %v1925 = vmul.f32 %v1902, %v1921
        %v1926 = vadd.f32 %v1817, %v1922
        %v1927 = vadd.f32 %v1818, %v1923
        %v1928 = vadd.f32 %v1819, %v1924
        %v1929 = vadd.f32 %v1820, %v1925
        %v1930 = vadd.f32 %v1821, %v1899
        %v1931 = vadd.f32 %v1822, %v1900
        %v1932 = vadd.f32 %v1823, %v1901
        %v1933 = vadd.f32 %v1824, %v1902
        %s1934 = sadd.s32 %s1280, 48
        %s1935 = sld [smem:[#allocation2 + %s1934]]
        %s1936 = sadd.s32 %s1280, 49
        %s1937 = sld [smem:[#allocation2 + %s1936]]
        %s1938 = sadd.s32 %s1280, 50
        %s1939 = sld [smem:[#allocation2 + %s1938]]
        %s1940 = sadd.s32 %s1280, 51
        %s1941 = sld [smem:[#allocation2 + %s1940]]
        %s1942 = sadd.s32 %s1280, 52
        %s1943 = sld [smem:[#allocation2 + %s1942]]
        %s1944 = sadd.s32 %s1280, 53
        %s1945 = sld [smem:[#allocation2 + %s1944]]
        %s1946 = sadd.s32 %s1280, 54
        %s1947 = sld [smem:[#allocation2 + %s1946]]
        %v1948 = vstv %s1935
        %v1949 = vsub.f32 %v149, %v1948
        %v1950 = vsub.f32 %v150, %v1948
        %v1951 = vsub.f32 %v151, %v1948
        %v1952 = vsub.f32 %v152, %v1948
        %v1953 = vstv %s1937
        %v1954 = vsub.f32 %v137, %v1953
        %v1955 = vsub.f32 %v138, %v1953
        %v1956 = vsub.f32 %v139, %v1953
        %v1957 = vsub.f32 %v140, %v1953
        %v1958 = vmul.f32 %v1949, %v1949
        %v1959 = vmul.f32 %v1950, %v1950
        %v1960 = vmul.f32 %v1951, %v1951
        %v1961 = vmul.f32 %v1952, %v1952
        %v1962 = vmul.f32 %v1954, %v1954
        %v1963 = vmul.f32 %v1955, %v1955
        %v1964 = vmul.f32 %v1956, %v1956
        %v1965 = vmul.f32 %v1957, %v1957
        %v1966 = vadd.f32 %v1958, %v1962
        %v1967 = vadd.f32 %v1959, %v1963
        %v1968 = vadd.f32 %v1960, %v1964
        %v1969 = vadd.f32 %v1961, %v1965
        %v1970 = vstv %s1939
        %v1971 = vsub.f32 %v1970, %v1966
        %v1972 = vsub.f32 %v1970, %v1967
        %v1973 = vsub.f32 %v1970, %v1968
        %v1974 = vsub.f32 %v1970, %v1969
        %v1975 = vmul.f32 %v1971, 0.16666667
        %v1976 = vmul.f32 %v1972, 0.16666667
        %v1977 = vmul.f32 %v1973, 0.16666667
        %v1978 = vmul.f32 %v1974, 0.16666667
        %v1979 = vadd.f32 %v1975, 0.5
        %v1980 = vadd.f32 %v1976, 0.5
        %v1981 = vadd.f32 %v1977, 0.5
        %v1982 = vadd.f32 %v1978, 0.5
        %v1983 = vmax.f32 %v1979, 0.0
        %v1984 = vmax.f32 %v1980, 0.0
        %v1985 = vmax.f32 %v1981, 0.0
        %v1986 = vmax.f32 %v1982, 0.0
        %v1987 = vmin.f32 %v1983, 1.0
        %v1988 = vmin.f32 %v1984, 1.0
        %v1989 = vmin.f32 %v1985, 1.0
        %v1990 = vmin.f32 %v1986, 1.0
        %v1991 = vmul.f32 %v1987, %v1987
        %v1992 = vmul.f32 %v1988, %v1988
        %v1993 = vmul.f32 %v1989, %v1989
        %v1994 = vmul.f32 %v1990, %v1990
        %v1995 = vmul.f32 %v1987, 2.0
        %v1996 = vmul.f32 %v1988, 2.0
        %v1997 = vmul.f32 %v1989, 2.0
        %v1998 = vmul.f32 %v1990, 2.0
        %v1999 = vsub.f32 3.0, %v1995
        %v2000 = vsub.f32 3.0, %v1996
        %v2001 = vsub.f32 3.0, %v1997
        %v2002 = vsub.f32 3.0, %v1998
        %v2003 = vmul.f32 %v1991, %v1999
        %v2004 = vmul.f32 %v1992, %v2000
        %v2005 = vmul.f32 %v1993, %v2001
        %v2006 = vmul.f32 %v1994, %v2002
        %v2007 = vstv %s1941
        %v2008 = vmul.f32 %v2007, %v2003
        %v2009 = vmul.f32 %v2007, %v2004
        %v2010 = vmul.f32 %v2007, %v2005
        %v2011 = vmul.f32 %v2007, %v2006
        %v2012 = vstv %s1943
        %v2013 = vmul.f32 %v2008, %v2012
        %v2014 = vmul.f32 %v2009, %v2012
        %v2015 = vmul.f32 %v2010, %v2012
        %v2016 = vmul.f32 %v2011, %v2012
        %v2017 = vadd.f32 %v1908, %v2013
        %v2018 = vadd.f32 %v1909, %v2014
        %v2019 = vadd.f32 %v1910, %v2015
        %v2020 = vadd.f32 %v1911, %v2016
        %v2021 = vstv %s1945
        %v2022 = vmul.f32 %v2008, %v2021
        %v2023 = vmul.f32 %v2009, %v2021
        %v2024 = vmul.f32 %v2010, %v2021
        %v2025 = vmul.f32 %v2011, %v2021
        %v2026 = vadd.f32 %v1917, %v2022
        %v2027 = vadd.f32 %v1918, %v2023
        %v2028 = vadd.f32 %v1919, %v2024
        %v2029 = vadd.f32 %v1920, %v2025
        %v2030 = vstv %s1947
        %v2031 = vmul.f32 %v2008, %v2030
        %v2032 = vmul.f32 %v2009, %v2030
        %v2033 = vmul.f32 %v2010, %v2030
        %v2034 = vmul.f32 %v2011, %v2030
        %v2035 = vadd.f32 %v1926, %v2031
        %v2036 = vadd.f32 %v1927, %v2032
        %v2037 = vadd.f32 %v1928, %v2033
        %v2038 = vadd.f32 %v1929, %v2034
        %v2039 = vadd.f32 %v1930, %v2008
        %v2040 = vadd.f32 %v1931, %v2009
        %v2041 = vadd.f32 %v1932, %v2010
        %v2042 = vadd.f32 %v1933, %v2011
        %s2043 = sadd.s32 %s1280, 56
        %s2044 = sld [smem:[#allocation2 + %s2043]]
        %s2045 = sadd.s32 %s1280, 57
        %s2046 = sld [smem:[#allocation2 + %s2045]]
        %s2047 = sadd.s32 %s1280, 58
        %s2048 = sld [smem:[#allocation2 + %s2047]]
        %s2049 = sadd.s32 %s1280, 59
        %s2050 = sld [smem:[#allocation2 + %s2049]]
        %s2051 = sadd.s32 %s1280, 60
        %s2052 = sld [smem:[#allocation2 + %s2051]]
        %s2053 = sadd.s32 %s1280, 61
        %s2054 = sld [smem:[#allocation2 + %s2053]]
        %s2055 = sadd.s32 %s1280, 62
        %s2056 = sld [smem:[#allocation2 + %s2055]]
        %v2057 = vstv %s2044
        %v2058 = vsub.f32 %v149, %v2057
        %v2059 = vsub.f32 %v150, %v2057
        %v2060 = vsub.f32 %v151, %v2057
        %v2061 = vsub.f32 %v152, %v2057
        %v2062 = vstv %s2046
        %v2063 = vsub.f32 %v137, %v2062
        %v2064 = vsub.f32 %v138, %v2062
        %v2065 = vsub.f32 %v139, %v2062
        %v2066 = vsub.f32 %v140, %v2062
        %v2067 = vmul.f32 %v2058, %v2058
        %v2068 = vmul.f32 %v2059, %v2059
        %v2069 = vmul.f32 %v2060, %v2060
        %v2070 = vmul.f32 %v2061, %v2061
        %v2071 = vmul.f32 %v2063, %v2063
        %v2072 = vmul.f32 %v2064, %v2064
        %v2073 = vmul.f32 %v2065, %v2065
        %v2074 = vmul.f32 %v2066, %v2066
        %v2075 = vadd.f32 %v2067, %v2071
        %v2076 = vadd.f32 %v2068, %v2072
        %v2077 = vadd.f32 %v2069, %v2073
        %v2078 = vadd.f32 %v2070, %v2074
        %v2079 = vstv %s2048
        %v2080 = vsub.f32 %v2079, %v2075
        %v2081 = vsub.f32 %v2079, %v2076
        %v2082 = vsub.f32 %v2079, %v2077
        %v2083 = vsub.f32 %v2079, %v2078
        %v2084 = vmul.f32 %v2080, 0.16666667
        %v2085 = vmul.f32 %v2081, 0.16666667
        %v2086 = vmul.f32 %v2082, 0.16666667
        %v2087 = vmul.f32 %v2083, 0.16666667
        %v2088 = vadd.f32 %v2084, 0.5
        %v2089 = vadd.f32 %v2085, 0.5
        %v2090 = vadd.f32 %v2086, 0.5
        %v2091 = vadd.f32 %v2087, 0.5
        %v2092 = vmax.f32 %v2088, 0.0
        %v2093 = vmax.f32 %v2089, 0.0
        %v2094 = vmax.f32 %v2090, 0.0
        %v2095 = vmax.f32 %v2091, 0.0
        %v2096 = vmin.f32 %v2092, 1.0
        %v2097 = vmin.f32 %v2093, 1.0
        %v2098 = vmin.f32 %v2094, 1.0
        %v2099 = vmin.f32 %v2095, 1.0
        %v2100 = vmul.f32 %v2096, %v2096
        %v2101 = vmul.f32 %v2097, %v2097
        %v2102 = vmul.f32 %v2098, %v2098
        %v2103 = vmul.f32 %v2099, %v2099
        %v2104 = vmul.f32 %v2096, 2.0
        %v2105 = vmul.f32 %v2097, 2.0
        %v2106 = vmul.f32 %v2098, 2.0
        %v2107 = vmul.f32 %v2099, 2.0
        %v2108 = vsub.f32 3.0, %v2104
        %v2109 = vsub.f32 3.0, %v2105
        %v2110 = vsub.f32 3.0, %v2106
        %v2111 = vsub.f32 3.0, %v2107
        %v2112 = vmul.f32 %v2100, %v2108
        %v2113 = vmul.f32 %v2101, %v2109
        %v2114 = vmul.f32 %v2102, %v2110
        %v2115 = vmul.f32 %v2103, %v2111
        %v2116 = vstv %s2050
        %v2117 = vmul.f32 %v2116, %v2112
        %v2118 = vmul.f32 %v2116, %v2113
        %v2119 = vmul.f32 %v2116, %v2114
        %v2120 = vmul.f32 %v2116, %v2115
        %v2121 = vstv %s2052
        %v2122 = vmul.f32 %v2117, %v2121
        %v2123 = vmul.f32 %v2118, %v2121
        %v2124 = vmul.f32 %v2119, %v2121
        %v2125 = vmul.f32 %v2120, %v2121
        %v2126 = vadd.f32 %v2017, %v2122
        %v2127 = vadd.f32 %v2018, %v2123
        %v2128 = vadd.f32 %v2019, %v2124
        %v2129 = vadd.f32 %v2020, %v2125
        %v2130 = vstv %s2054
        %v2131 = vmul.f32 %v2117, %v2130
        %v2132 = vmul.f32 %v2118, %v2130
        %v2133 = vmul.f32 %v2119, %v2130
        %v2134 = vmul.f32 %v2120, %v2130
        %v2135 = vadd.f32 %v2026, %v2131
        %v2136 = vadd.f32 %v2027, %v2132
        %v2137 = vadd.f32 %v2028, %v2133
        %v2138 = vadd.f32 %v2029, %v2134
        %v2139 = vstv %s2056
        %v2140 = vmul.f32 %v2117, %v2139
        %v2141 = vmul.f32 %v2118, %v2139
        %v2142 = vmul.f32 %v2119, %v2139
        %v2143 = vmul.f32 %v2120, %v2139
        %v2144 = vadd.f32 %v2035, %v2140
        %v2145 = vadd.f32 %v2036, %v2141
        %v2146 = vadd.f32 %v2037, %v2142
        %v2147 = vadd.f32 %v2038, %v2143
        %v2148 = vadd.f32 %v2039, %v2117
        %v2149 = vadd.f32 %v2040, %v2118
        %v2150 = vadd.f32 %v2041, %v2119
        %v2151 = vadd.f32 %v2042, %v2120
        %s2152 = sadd.s32 %s1280, 64
        %s2153 = sld [smem:[#allocation2 + %s2152]]
        %s2154 = sadd.s32 %s1280, 65
        %s2155 = sld [smem:[#allocation2 + %s2154]]
        %s2156 = sadd.s32 %s1280, 66
        %s2157 = sld [smem:[#allocation2 + %s2156]]
        %s2158 = sadd.s32 %s1280, 67
        %s2159 = sld [smem:[#allocation2 + %s2158]]
        %s2160 = sadd.s32 %s1280, 68
        %s2161 = sld [smem:[#allocation2 + %s2160]]
        %s2162 = sadd.s32 %s1280, 69
        %s2163 = sld [smem:[#allocation2 + %s2162]]
        %s2164 = sadd.s32 %s1280, 70
        %s2165 = sld [smem:[#allocation2 + %s2164]]
        %v2166 = vstv %s2153
        %v2167 = vsub.f32 %v149, %v2166
        %v2168 = vsub.f32 %v150, %v2166
        %v2169 = vsub.f32 %v151, %v2166
        %v2170 = vsub.f32 %v152, %v2166
        %v2171 = vstv %s2155
        %v2172 = vsub.f32 %v137, %v2171
        %v2173 = vsub.f32 %v138, %v2171
        %v2174 = vsub.f32 %v139, %v2171
        %v2175 = vsub.f32 %v140, %v2171
        %v2176 = vmul.f32 %v2167, %v2167
        %v2177 = vmul.f32 %v2168, %v2168
        %v2178 = vmul.f32 %v2169, %v2169
        %v2179 = vmul.f32 %v2170, %v2170
        %v2180 = vmul.f32 %v2172, %v2172
        %v2181 = vmul.f32 %v2173, %v2173
        %v2182 = vmul.f32 %v2174, %v2174
        %v2183 = vmul.f32 %v2175, %v2175
        %v2184 = vadd.f32 %v2176, %v2180
        %v2185 = vadd.f32 %v2177, %v2181
        %v2186 = vadd.f32 %v2178, %v2182
        %v2187 = vadd.f32 %v2179, %v2183
        %v2188 = vstv %s2157
        %v2189 = vsub.f32 %v2188, %v2184
        %v2190 = vsub.f32 %v2188, %v2185
        %v2191 = vsub.f32 %v2188, %v2186
        %v2192 = vsub.f32 %v2188, %v2187
        %v2193 = vmul.f32 %v2189, 0.16666667
        %v2194 = vmul.f32 %v2190, 0.16666667
        %v2195 = vmul.f32 %v2191, 0.16666667
        %v2196 = vmul.f32 %v2192, 0.16666667
        %v2197 = vadd.f32 %v2193, 0.5
        %v2198 = vadd.f32 %v2194, 0.5
        %v2199 = vadd.f32 %v2195, 0.5
        %v2200 = vadd.f32 %v2196, 0.5
        %v2201 = vmax.f32 %v2197, 0.0
        %v2202 = vmax.f32 %v2198, 0.0
        %v2203 = vmax.f32 %v2199, 0.0
        %v2204 = vmax.f32 %v2200, 0.0
        %v2205 = vmin.f32 %v2201, 1.0
        %v2206 = vmin.f32 %v2202, 1.0
        %v2207 = vmin.f32 %v2203, 1.0
        %v2208 = vmin.f32 %v2204, 1.0
        %v2209 = vmul.f32 %v2205, %v2205
        %v2210 = vmul.f32 %v2206, %v2206
        %v2211 = vmul.f32 %v2207, %v2207
        %v2212 = vmul.f32 %v2208, %v2208
        %v2213 = vmul.f32 %v2205, 2.0
        %v2214 = vmul.f32 %v2206, 2.0
        %v2215 = vmul.f32 %v2207, 2.0
        %v2216 = vmul.f32 %v2208, 2.0
        %v2217 = vsub.f32 3.0, %v2213
        %v2218 = vsub.f32 3.0, %v2214
        %v2219 = vsub.f32 3.0, %v2215
        %v2220 = vsub.f32 3.0, %v2216
        %v2221 = vmul.f32 %v2209, %v2217
        %v2222 = vmul.f32 %v2210, %v2218
        %v2223 = vmul.f32 %v2211, %v2219
        %v2224 = vmul.f32 %v2212, %v2220
        %v2225 = vstv %s2159
        %v2226 = vmul.f32 %v2225, %v2221
        %v2227 = vmul.f32 %v2225, %v2222
        %v2228 = vmul.f32 %v2225, %v2223
        %v2229 = vmul.f32 %v2225, %v2224
        %v2230 = vstv %s2161
        %v2231 = vmul.f32 %v2226, %v2230
        %v2232 = vmul.f32 %v2227, %v2230
        %v2233 = vmul.f32 %v2228, %v2230
        %v2234 = vmul.f32 %v2229, %v2230
        %v2235 = vadd.f32 %v2126, %v2231
        %v2236 = vadd.f32 %v2127, %v2232
        %v2237 = vadd.f32 %v2128, %v2233
        %v2238 = vadd.f32 %v2129, %v2234
        %v2239 = vstv %s2163
        %v2240 = vmul.f32 %v2226, %v2239
        %v2241 = vmul.f32 %v2227, %v2239
        %v2242 = vmul.f32 %v2228, %v2239
        %v2243 = vmul.f32 %v2229, %v2239
        %v2244 = vadd.f32 %v2135, %v2240
        %v2245 = vadd.f32 %v2136, %v2241
        %v2246 = vadd.f32 %v2137, %v2242
        %v2247 = vadd.f32 %v2138, %v2243
        %v2248 = vstv %s2165
        %v2249 = vmul.f32 %v2226, %v2248
        %v2250 = vmul.f32 %v2227, %v2248
        %v2251 = vmul.f32 %v2228, %v2248
        %v2252 = vmul.f32 %v2229, %v2248
        %v2253 = vadd.f32 %v2144, %v2249
        %v2254 = vadd.f32 %v2145, %v2250
        %v2255 = vadd.f32 %v2146, %v2251
        %v2256 = vadd.f32 %v2147, %v2252
        %v2257 = vadd.f32 %v2148, %v2226
        %v2258 = vadd.f32 %v2149, %v2227
        %v2259 = vadd.f32 %v2150, %v2228
        %v2260 = vadd.f32 %v2151, %v2229
        %s2261 = sadd.s32 %s1280, 72
        %s2262 = sld [smem:[#allocation2 + %s2261]]
        %s2263 = sadd.s32 %s1280, 73
        %s2264 = sld [smem:[#allocation2 + %s2263]]
        %s2265 = sadd.s32 %s1280, 74
        %s2266 = sld [smem:[#allocation2 + %s2265]]
        %s2267 = sadd.s32 %s1280, 75
        %s2268 = sld [smem:[#allocation2 + %s2267]]
        %s2269 = sadd.s32 %s1280, 76
        %s2270 = sld [smem:[#allocation2 + %s2269]]
        %s2271 = sadd.s32 %s1280, 77
        %s2272 = sld [smem:[#allocation2 + %s2271]]
        %s2273 = sadd.s32 %s1280, 78
        %s2274 = sld [smem:[#allocation2 + %s2273]]
        %v2275 = vstv %s2262
        %v2276 = vsub.f32 %v149, %v2275
        %v2277 = vsub.f32 %v150, %v2275
        %v2278 = vsub.f32 %v151, %v2275
        %v2279 = vsub.f32 %v152, %v2275
        %v2280 = vstv %s2264
        %v2281 = vsub.f32 %v137, %v2280
        %v2282 = vsub.f32 %v138, %v2280
        %v2283 = vsub.f32 %v139, %v2280
        %v2284 = vsub.f32 %v140, %v2280
        %v2285 = vmul.f32 %v2276, %v2276
        %v2286 = vmul.f32 %v2277, %v2277
        %v2287 = vmul.f32 %v2278, %v2278
        %v2288 = vmul.f32 %v2279, %v2279
        %v2289 = vmul.f32 %v2281, %v2281
        %v2290 = vmul.f32 %v2282, %v2282
        %v2291 = vmul.f32 %v2283, %v2283
        %v2292 = vmul.f32 %v2284, %v2284
        %v2293 = vadd.f32 %v2285, %v2289
        %v2294 = vadd.f32 %v2286, %v2290
        %v2295 = vadd.f32 %v2287, %v2291
        %v2296 = vadd.f32 %v2288, %v2292
        %v2297 = vstv %s2266
        %v2298 = vsub.f32 %v2297, %v2293
        %v2299 = vsub.f32 %v2297, %v2294
        %v2300 = vsub.f32 %v2297, %v2295
        %v2301 = vsub.f32 %v2297, %v2296
        %v2302 = vmul.f32 %v2298, 0.16666667
        %v2303 = vmul.f32 %v2299, 0.16666667
        %v2304 = vmul.f32 %v2300, 0.16666667
        %v2305 = vmul.f32 %v2301, 0.16666667
        %v2306 = vadd.f32 %v2302, 0.5
        %v2307 = vadd.f32 %v2303, 0.5
        %v2308 = vadd.f32 %v2304, 0.5
        %v2309 = vadd.f32 %v2305, 0.5
        %v2310 = vmax.f32 %v2306, 0.0
        %v2311 = vmax.f32 %v2307, 0.0
        %v2312 = vmax.f32 %v2308, 0.0
        %v2313 = vmax.f32 %v2309, 0.0
        %v2314 = vmin.f32 %v2310, 1.0
        %v2315 = vmin.f32 %v2311, 1.0
        %v2316 = vmin.f32 %v2312, 1.0
        %v2317 = vmin.f32 %v2313, 1.0
        %v2318 = vmul.f32 %v2314, %v2314
        %v2319 = vmul.f32 %v2315, %v2315
        %v2320 = vmul.f32 %v2316, %v2316
        %v2321 = vmul.f32 %v2317, %v2317
        %v2322 = vmul.f32 %v2314, 2.0
        %v2323 = vmul.f32 %v2315, 2.0
        %v2324 = vmul.f32 %v2316, 2.0
        %v2325 = vmul.f32 %v2317, 2.0
        %v2326 = vsub.f32 3.0, %v2322
        %v2327 = vsub.f32 3.0, %v2323
        %v2328 = vsub.f32 3.0, %v2324
        %v2329 = vsub.f32 3.0, %v2325
        %v2330 = vmul.f32 %v2318, %v2326
        %v2331 = vmul.f32 %v2319, %v2327
        %v2332 = vmul.f32 %v2320, %v2328
        %v2333 = vmul.f32 %v2321, %v2329
        %v2334 = vstv %s2268
        %v2335 = vmul.f32 %v2334, %v2330
        %v2336 = vmul.f32 %v2334, %v2331
        %v2337 = vmul.f32 %v2334, %v2332
        %v2338 = vmul.f32 %v2334, %v2333
        %v2339 = vstv %s2270
        %v2340 = vmul.f32 %v2335, %v2339
        %v2341 = vmul.f32 %v2336, %v2339
        %v2342 = vmul.f32 %v2337, %v2339
        %v2343 = vmul.f32 %v2338, %v2339
        %v2344 = vadd.f32 %v2235, %v2340
        %v2345 = vadd.f32 %v2236, %v2341
        %v2346 = vadd.f32 %v2237, %v2342
        %v2347 = vadd.f32 %v2238, %v2343
        %v2348 = vstv %s2272
        %v2349 = vmul.f32 %v2335, %v2348
        %v2350 = vmul.f32 %v2336, %v2348
        %v2351 = vmul.f32 %v2337, %v2348
        %v2352 = vmul.f32 %v2338, %v2348
        %v2353 = vadd.f32 %v2244, %v2349
        %v2354 = vadd.f32 %v2245, %v2350
        %v2355 = vadd.f32 %v2246, %v2351
        %v2356 = vadd.f32 %v2247, %v2352
        %v2357 = vstv %s2274
        %v2358 = vmul.f32 %v2335, %v2357
        %v2359 = vmul.f32 %v2336, %v2357
        %v2360 = vmul.f32 %v2337, %v2357
        %v2361 = vmul.f32 %v2338, %v2357
        %v2362 = vadd.f32 %v2253, %v2358
        %v2363 = vadd.f32 %v2254, %v2359
        %v2364 = vadd.f32 %v2255, %v2360
        %v2365 = vadd.f32 %v2256, %v2361
        %v2366 = vadd.f32 %v2257, %v2335
        %v2367 = vadd.f32 %v2258, %v2336
        %v2368 = vadd.f32 %v2259, %v2337
        %v2369 = vadd.f32 %v2260, %v2338
        %v2370 = vrcp.pop %v2366
        %v2371 = vrcp.pop %v2367
        %v2372 = vrcp.pop %v2368
        %v2373 = vrcp.pop %v2369
        %v2374 = vmul.f32 %v2344, %v2370
        %v2375 = vmul.f32 %v2345, %v2371
        %v2376 = vmul.f32 %v2346, %v2372
        %v2377 = vmul.f32 %v2347, %v2373
        %s2378 = scalar_lea.vmem %s112, 128
        %2379 = vst [vmem:[%s2378] sm:$0xff] %v2374
        %2380 = vst [vmem:[%s2378 + $0x8] sm:$0xff] %v2375
        %2381 = vst [vmem:[%s2378 + $0x10] sm:$0xff] %v2376
        %2382 = vst [vmem:[%s2378 + $0x18] sm:$0xff] %v2377
        %v2383 = vmul.f32 %v2353, %v2370
        %v2384 = vmul.f32 %v2354, %v2371
        %v2385 = vmul.f32 %v2355, %v2372
        %v2386 = vmul.f32 %v2356, %v2373
        %s2387 = scalar_lea.vmem %s112, 160
        %2388 = vst [vmem:[%s2387] sm:$0xff] %v2383
        %2389 = vst [vmem:[%s2387 + $0x8] sm:$0xff] %v2384
        %2390 = vst [vmem:[%s2387 + $0x10] sm:$0xff] %v2385
        %2391 = vst [vmem:[%s2387 + $0x18] sm:$0xff] %v2386
        %v2392 = vmul.f32 %v2362, %v2370
        %v2393 = vmul.f32 %v2363, %v2371
        %v2394 = vmul.f32 %v2364, %v2372
        %v2395 = vmul.f32 %v2365, %v2373
        %s2396 = scalar_lea.vmem %s112, 192
        %2397 = vst [vmem:[%s2396] sm:$0xff] %v2392
        %2398 = vst [vmem:[%s2396 + $0x8] sm:$0xff] %v2393
        %2399 = vst [vmem:[%s2396 + $0x10] sm:$0xff] %v2394
        %2400 = vst [vmem:[%s2396 + $0x18] sm:$0xff] %v2395
        %s2401 = scalar_lea.vmem %s112, 224
        %2402 = vst [vmem:[%s2401] sm:$0xff] %v2366
        %2403 = vst [vmem:[%s2401 + $0x8] sm:$0xff] %v2367
        %2404 = vst [vmem:[%s2401 + $0x10] sm:$0xff] %v2368
        %2405 = vst [vmem:[%s2401 + $0x18] sm:$0xff] %v2369
        %s2406 = sadd.s32 %s153, 2
        %s2407 = smul.u32 %s2406, 128
        %s2408 = sld [smem:[#allocation2 + %s2407]]
        %s2409 = sadd.s32 %s2407, 1
        %s2410 = sld [smem:[#allocation2 + %s2409]]
        %s2411 = sadd.s32 %s2407, 2
        %s2412 = sld [smem:[#allocation2 + %s2411]]
        %s2413 = sadd.s32 %s2407, 3
        %s2414 = sld [smem:[#allocation2 + %s2413]]
        %s2415 = sadd.s32 %s2407, 4
        %s2416 = sld [smem:[#allocation2 + %s2415]]
        %s2417 = sadd.s32 %s2407, 5
        %s2418 = sld [smem:[#allocation2 + %s2417]]
        %s2419 = sadd.s32 %s2407, 6
        %s2420 = sld [smem:[#allocation2 + %s2419]]
        %v2421 = vstv %s2408
        %v2422 = vsub.f32 %v149, %v2421
        %v2423 = vsub.f32 %v150, %v2421
        %v2424 = vsub.f32 %v151, %v2421
        %v2425 = vsub.f32 %v152, %v2421
        %v2426 = vstv %s2410
        %v2427 = vsub.f32 %v137, %v2426
        %v2428 = vsub.f32 %v138, %v2426
        %v2429 = vsub.f32 %v139, %v2426
        %v2430 = vsub.f32 %v140, %v2426
        %v2431 = vmul.f32 %v2422, %v2422
        %v2432 = vmul.f32 %v2423, %v2423
        %v2433 = vmul.f32 %v2424, %v2424
        %v2434 = vmul.f32 %v2425, %v2425
        %v2435 = vmul.f32 %v2427, %v2427
        %v2436 = vmul.f32 %v2428, %v2428
        %v2437 = vmul.f32 %v2429, %v2429
        %v2438 = vmul.f32 %v2430, %v2430
        %v2439 = vadd.f32 %v2431, %v2435
        %v2440 = vadd.f32 %v2432, %v2436
        %v2441 = vadd.f32 %v2433, %v2437
        %v2442 = vadd.f32 %v2434, %v2438
        %v2443 = vstv %s2412
        %v2444 = vsub.f32 %v2443, %v2439
        %v2445 = vsub.f32 %v2443, %v2440
        %v2446 = vsub.f32 %v2443, %v2441
        %v2447 = vsub.f32 %v2443, %v2442
        %v2448 = vmul.f32 %v2444, 0.16666667
        %v2449 = vmul.f32 %v2445, 0.16666667
        %v2450 = vmul.f32 %v2446, 0.16666667
        %v2451 = vmul.f32 %v2447, 0.16666667
        %v2452 = vadd.f32 %v2448, 0.5
        %v2453 = vadd.f32 %v2449, 0.5
        %v2454 = vadd.f32 %v2450, 0.5
        %v2455 = vadd.f32 %v2451, 0.5
        %v2456 = vmax.f32 %v2452, 0.0
        %v2457 = vmax.f32 %v2453, 0.0
        %v2458 = vmax.f32 %v2454, 0.0
        %v2459 = vmax.f32 %v2455, 0.0
        %v2460 = vmin.f32 %v2456, 1.0
        %v2461 = vmin.f32 %v2457, 1.0
        %v2462 = vmin.f32 %v2458, 1.0
        %v2463 = vmin.f32 %v2459, 1.0
        %v2464 = vmul.f32 %v2460, %v2460
        %v2465 = vmul.f32 %v2461, %v2461
        %v2466 = vmul.f32 %v2462, %v2462
        %v2467 = vmul.f32 %v2463, %v2463
        %v2468 = vmul.f32 %v2460, 2.0
        %v2469 = vmul.f32 %v2461, 2.0
        %v2470 = vmul.f32 %v2462, 2.0
        %v2471 = vmul.f32 %v2463, 2.0
        %v2472 = vsub.f32 3.0, %v2468
        %v2473 = vsub.f32 3.0, %v2469
        %v2474 = vsub.f32 3.0, %v2470
        %v2475 = vsub.f32 3.0, %v2471
        %v2476 = vmul.f32 %v2464, %v2472
        %v2477 = vmul.f32 %v2465, %v2473
        %v2478 = vmul.f32 %v2466, %v2474
        %v2479 = vmul.f32 %v2467, %v2475
        %v2480 = vstv %s2414
        %v2481 = vmul.f32 %v2480, %v2476
        %v2482 = vmul.f32 %v2480, %v2477
        %v2483 = vmul.f32 %v2480, %v2478
        %v2484 = vmul.f32 %v2480, %v2479
        %v2485 = vstv %s2416
        %v2486 = vmul.f32 %v2481, %v2485
        %v2487 = vmul.f32 %v2482, %v2485
        %v2488 = vmul.f32 %v2483, %v2485
        %v2489 = vmul.f32 %v2484, %v2485
        %v2490 = vadd.f32 %v2486, 0.0
        %v2491 = vadd.f32 %v2487, 0.0
        %v2492 = vadd.f32 %v2488, 0.0
        %v2493 = vadd.f32 %v2489, 0.0
        %v2494 = vstv %s2418
        %v2495 = vmul.f32 %v2481, %v2494
        %v2496 = vmul.f32 %v2482, %v2494
        %v2497 = vmul.f32 %v2483, %v2494
        %v2498 = vmul.f32 %v2484, %v2494
        %v2499 = vadd.f32 %v2495, 0.0
        %v2500 = vadd.f32 %v2496, 0.0
        %v2501 = vadd.f32 %v2497, 0.0
        %v2502 = vadd.f32 %v2498, 0.0
        %v2503 = vstv %s2420
        %v2504 = vmul.f32 %v2481, %v2503
        %v2505 = vmul.f32 %v2482, %v2503
        %v2506 = vmul.f32 %v2483, %v2503
        %v2507 = vmul.f32 %v2484, %v2503
        %v2508 = vadd.f32 %v2504, 0.0
        %v2509 = vadd.f32 %v2505, 0.0
        %v2510 = vadd.f32 %v2506, 0.0
        %v2511 = vadd.f32 %v2507, 0.0
        %v2512 = vadd.f32 %v2481, 1e-05
        %v2513 = vadd.f32 %v2482, 1e-05
        %v2514 = vadd.f32 %v2483, 1e-05
        %v2515 = vadd.f32 %v2484, 1e-05
        %s2516 = sadd.s32 %s2407, 8
        %s2517 = sld [smem:[#allocation2 + %s2516]]
        %s2518 = sadd.s32 %s2407, 9
        %s2519 = sld [smem:[#allocation2 + %s2518]]
        %s2520 = sadd.s32 %s2407, 10
        %s2521 = sld [smem:[#allocation2 + %s2520]]
        %s2522 = sadd.s32 %s2407, 11
        %s2523 = sld [smem:[#allocation2 + %s2522]]
        %s2524 = sadd.s32 %s2407, 12
        %s2525 = sld [smem:[#allocation2 + %s2524]]
        %s2526 = sadd.s32 %s2407, 13
        %s2527 = sld [smem:[#allocation2 + %s2526]]
        %s2528 = sadd.s32 %s2407, 14
        %s2529 = sld [smem:[#allocation2 + %s2528]]
        %v2530 = vstv %s2517
        %v2531 = vsub.f32 %v149, %v2530
        %v2532 = vsub.f32 %v150, %v2530
        %v2533 = vsub.f32 %v151, %v2530
        %v2534 = vsub.f32 %v152, %v2530
        %v2535 = vstv %s2519
        %v2536 = vsub.f32 %v137, %v2535
        %v2537 = vsub.f32 %v138, %v2535
        %v2538 = vsub.f32 %v139, %v2535
        %v2539 = vsub.f32 %v140, %v2535
        %v2540 = vmul.f32 %v2531, %v2531
        %v2541 = vmul.f32 %v2532, %v2532
        %v2542 = vmul.f32 %v2533, %v2533
        %v2543 = vmul.f32 %v2534, %v2534
        %v2544 = vmul.f32 %v2536, %v2536
        %v2545 = vmul.f32 %v2537, %v2537
        %v2546 = vmul.f32 %v2538, %v2538
        %v2547 = vmul.f32 %v2539, %v2539
        %v2548 = vadd.f32 %v2540, %v2544
        %v2549 = vadd.f32 %v2541, %v2545
        %v2550 = vadd.f32 %v2542, %v2546
        %v2551 = vadd.f32 %v2543, %v2547
        %v2552 = vstv %s2521
        %v2553 = vsub.f32 %v2552, %v2548
        %v2554 = vsub.f32 %v2552, %v2549
        %v2555 = vsub.f32 %v2552, %v2550
        %v2556 = vsub.f32 %v2552, %v2551
        %v2557 = vmul.f32 %v2553, 0.16666667
        %v2558 = vmul.f32 %v2554, 0.16666667
        %v2559 = vmul.f32 %v2555, 0.16666667
        %v2560 = vmul.f32 %v2556, 0.16666667
        %v2561 = vadd.f32 %v2557, 0.5
        %v2562 = vadd.f32 %v2558, 0.5
        %v2563 = vadd.f32 %v2559, 0.5
        %v2564 = vadd.f32 %v2560, 0.5
        %v2565 = vmax.f32 %v2561, 0.0
        %v2566 = vmax.f32 %v2562, 0.0
        %v2567 = vmax.f32 %v2563, 0.0
        %v2568 = vmax.f32 %v2564, 0.0
        %v2569 = vmin.f32 %v2565, 1.0
        %v2570 = vmin.f32 %v2566, 1.0
        %v2571 = vmin.f32 %v2567, 1.0
        %v2572 = vmin.f32 %v2568, 1.0
        %v2573 = vmul.f32 %v2569, %v2569
        %v2574 = vmul.f32 %v2570, %v2570
        %v2575 = vmul.f32 %v2571, %v2571
        %v2576 = vmul.f32 %v2572, %v2572
        %v2577 = vmul.f32 %v2569, 2.0
        %v2578 = vmul.f32 %v2570, 2.0
        %v2579 = vmul.f32 %v2571, 2.0
        %v2580 = vmul.f32 %v2572, 2.0
        %v2581 = vsub.f32 3.0, %v2577
        %v2582 = vsub.f32 3.0, %v2578
        %v2583 = vsub.f32 3.0, %v2579
        %v2584 = vsub.f32 3.0, %v2580
        %v2585 = vmul.f32 %v2573, %v2581
        %v2586 = vmul.f32 %v2574, %v2582
        %v2587 = vmul.f32 %v2575, %v2583
        %v2588 = vmul.f32 %v2576, %v2584
        %v2589 = vstv %s2523
        %v2590 = vmul.f32 %v2589, %v2585
        %v2591 = vmul.f32 %v2589, %v2586
        %v2592 = vmul.f32 %v2589, %v2587
        %v2593 = vmul.f32 %v2589, %v2588
        %v2594 = vstv %s2525
        %v2595 = vmul.f32 %v2590, %v2594
        %v2596 = vmul.f32 %v2591, %v2594
        %v2597 = vmul.f32 %v2592, %v2594
        %v2598 = vmul.f32 %v2593, %v2594
        %v2599 = vadd.f32 %v2490, %v2595
        %v2600 = vadd.f32 %v2491, %v2596
        %v2601 = vadd.f32 %v2492, %v2597
        %v2602 = vadd.f32 %v2493, %v2598
        %v2603 = vstv %s2527
        %v2604 = vmul.f32 %v2590, %v2603
        %v2605 = vmul.f32 %v2591, %v2603
        %v2606 = vmul.f32 %v2592, %v2603
        %v2607 = vmul.f32 %v2593, %v2603
        %v2608 = vadd.f32 %v2499, %v2604
        %v2609 = vadd.f32 %v2500, %v2605
        %v2610 = vadd.f32 %v2501, %v2606
        %v2611 = vadd.f32 %v2502, %v2607
        %v2612 = vstv %s2529
        %v2613 = vmul.f32 %v2590, %v2612
        %v2614 = vmul.f32 %v2591, %v2612
        %v2615 = vmul.f32 %v2592, %v2612
        %v2616 = vmul.f32 %v2593, %v2612
        %v2617 = vadd.f32 %v2508, %v2613
        %v2618 = vadd.f32 %v2509, %v2614
        %v2619 = vadd.f32 %v2510, %v2615
        %v2620 = vadd.f32 %v2511, %v2616
        %v2621 = vadd.f32 %v2512, %v2590
        %v2622 = vadd.f32 %v2513, %v2591
        %v2623 = vadd.f32 %v2514, %v2592
        %v2624 = vadd.f32 %v2515, %v2593
        %s2625 = sadd.s32 %s2407, 16
        %s2626 = sld [smem:[#allocation2 + %s2625]]
        %s2627 = sadd.s32 %s2407, 17
        %s2628 = sld [smem:[#allocation2 + %s2627]]
        %s2629 = sadd.s32 %s2407, 18
        %s2630 = sld [smem:[#allocation2 + %s2629]]
        %s2631 = sadd.s32 %s2407, 19
        %s2632 = sld [smem:[#allocation2 + %s2631]]
        %s2633 = sadd.s32 %s2407, 20
        %s2634 = sld [smem:[#allocation2 + %s2633]]
        %s2635 = sadd.s32 %s2407, 21
        %s2636 = sld [smem:[#allocation2 + %s2635]]
        %s2637 = sadd.s32 %s2407, 22
        %s2638 = sld [smem:[#allocation2 + %s2637]]
        %v2639 = vstv %s2626
        %v2640 = vsub.f32 %v149, %v2639
        %v2641 = vsub.f32 %v150, %v2639
        %v2642 = vsub.f32 %v151, %v2639
        %v2643 = vsub.f32 %v152, %v2639
        %v2644 = vstv %s2628
        %v2645 = vsub.f32 %v137, %v2644
        %v2646 = vsub.f32 %v138, %v2644
        %v2647 = vsub.f32 %v139, %v2644
        %v2648 = vsub.f32 %v140, %v2644
        %v2649 = vmul.f32 %v2640, %v2640
        %v2650 = vmul.f32 %v2641, %v2641
        %v2651 = vmul.f32 %v2642, %v2642
        %v2652 = vmul.f32 %v2643, %v2643
        %v2653 = vmul.f32 %v2645, %v2645
        %v2654 = vmul.f32 %v2646, %v2646
        %v2655 = vmul.f32 %v2647, %v2647
        %v2656 = vmul.f32 %v2648, %v2648
        %v2657 = vadd.f32 %v2649, %v2653
        %v2658 = vadd.f32 %v2650, %v2654
        %v2659 = vadd.f32 %v2651, %v2655
        %v2660 = vadd.f32 %v2652, %v2656
        %v2661 = vstv %s2630
        %v2662 = vsub.f32 %v2661, %v2657
        %v2663 = vsub.f32 %v2661, %v2658
        %v2664 = vsub.f32 %v2661, %v2659
        %v2665 = vsub.f32 %v2661, %v2660
        %v2666 = vmul.f32 %v2662, 0.16666667
        %v2667 = vmul.f32 %v2663, 0.16666667
        %v2668 = vmul.f32 %v2664, 0.16666667
        %v2669 = vmul.f32 %v2665, 0.16666667
        %v2670 = vadd.f32 %v2666, 0.5
        %v2671 = vadd.f32 %v2667, 0.5
        %v2672 = vadd.f32 %v2668, 0.5
        %v2673 = vadd.f32 %v2669, 0.5
        %v2674 = vmax.f32 %v2670, 0.0
        %v2675 = vmax.f32 %v2671, 0.0
        %v2676 = vmax.f32 %v2672, 0.0
        %v2677 = vmax.f32 %v2673, 0.0
        %v2678 = vmin.f32 %v2674, 1.0
        %v2679 = vmin.f32 %v2675, 1.0
        %v2680 = vmin.f32 %v2676, 1.0
        %v2681 = vmin.f32 %v2677, 1.0
        %v2682 = vmul.f32 %v2678, %v2678
        %v2683 = vmul.f32 %v2679, %v2679
        %v2684 = vmul.f32 %v2680, %v2680
        %v2685 = vmul.f32 %v2681, %v2681
        %v2686 = vmul.f32 %v2678, 2.0
        %v2687 = vmul.f32 %v2679, 2.0
        %v2688 = vmul.f32 %v2680, 2.0
        %v2689 = vmul.f32 %v2681, 2.0
        %v2690 = vsub.f32 3.0, %v2686
        %v2691 = vsub.f32 3.0, %v2687
        %v2692 = vsub.f32 3.0, %v2688
        %v2693 = vsub.f32 3.0, %v2689
        %v2694 = vmul.f32 %v2682, %v2690
        %v2695 = vmul.f32 %v2683, %v2691
        %v2696 = vmul.f32 %v2684, %v2692
        %v2697 = vmul.f32 %v2685, %v2693
        %v2698 = vstv %s2632
        %v2699 = vmul.f32 %v2698, %v2694
        %v2700 = vmul.f32 %v2698, %v2695
        %v2701 = vmul.f32 %v2698, %v2696
        %v2702 = vmul.f32 %v2698, %v2697
        %v2703 = vstv %s2634
        %v2704 = vmul.f32 %v2699, %v2703
        %v2705 = vmul.f32 %v2700, %v2703
        %v2706 = vmul.f32 %v2701, %v2703
        %v2707 = vmul.f32 %v2702, %v2703
        %v2708 = vadd.f32 %v2599, %v2704
        %v2709 = vadd.f32 %v2600, %v2705
        %v2710 = vadd.f32 %v2601, %v2706
        %v2711 = vadd.f32 %v2602, %v2707
        %v2712 = vstv %s2636
        %v2713 = vmul.f32 %v2699, %v2712
        %v2714 = vmul.f32 %v2700, %v2712
        %v2715 = vmul.f32 %v2701, %v2712
        %v2716 = vmul.f32 %v2702, %v2712
        %v2717 = vadd.f32 %v2608, %v2713
        %v2718 = vadd.f32 %v2609, %v2714
        %v2719 = vadd.f32 %v2610, %v2715
        %v2720 = vadd.f32 %v2611, %v2716
        %v2721 = vstv %s2638
        %v2722 = vmul.f32 %v2699, %v2721
        %v2723 = vmul.f32 %v2700, %v2721
        %v2724 = vmul.f32 %v2701, %v2721
        %v2725 = vmul.f32 %v2702, %v2721
        %v2726 = vadd.f32 %v2617, %v2722
        %v2727 = vadd.f32 %v2618, %v2723
        %v2728 = vadd.f32 %v2619, %v2724
        %v2729 = vadd.f32 %v2620, %v2725
        %v2730 = vadd.f32 %v2621, %v2699
        %v2731 = vadd.f32 %v2622, %v2700
        %v2732 = vadd.f32 %v2623, %v2701
        %v2733 = vadd.f32 %v2624, %v2702
        %s2734 = sadd.s32 %s2407, 24
        %s2735 = sld [smem:[#allocation2 + %s2734]]
        %s2736 = sadd.s32 %s2407, 25
        %s2737 = sld [smem:[#allocation2 + %s2736]]
        %s2738 = sadd.s32 %s2407, 26
        %s2739 = sld [smem:[#allocation2 + %s2738]]
        %s2740 = sadd.s32 %s2407, 27
        %s2741 = sld [smem:[#allocation2 + %s2740]]
        %s2742 = sadd.s32 %s2407, 28
        %s2743 = sld [smem:[#allocation2 + %s2742]]
        %s2744 = sadd.s32 %s2407, 29
        %s2745 = sld [smem:[#allocation2 + %s2744]]
        %s2746 = sadd.s32 %s2407, 30
        %s2747 = sld [smem:[#allocation2 + %s2746]]
        %v2748 = vstv %s2735
        %v2749 = vsub.f32 %v149, %v2748
        %v2750 = vsub.f32 %v150, %v2748
        %v2751 = vsub.f32 %v151, %v2748
        %v2752 = vsub.f32 %v152, %v2748
        %v2753 = vstv %s2737
        %v2754 = vsub.f32 %v137, %v2753
        %v2755 = vsub.f32 %v138, %v2753
        %v2756 = vsub.f32 %v139, %v2753
        %v2757 = vsub.f32 %v140, %v2753
        %v2758 = vmul.f32 %v2749, %v2749
        %v2759 = vmul.f32 %v2750, %v2750
        %v2760 = vmul.f32 %v2751, %v2751
        %v2761 = vmul.f32 %v2752, %v2752
        %v2762 = vmul.f32 %v2754, %v2754
        %v2763 = vmul.f32 %v2755, %v2755
        %v2764 = vmul.f32 %v2756, %v2756
        %v2765 = vmul.f32 %v2757, %v2757
        %v2766 = vadd.f32 %v2758, %v2762
        %v2767 = vadd.f32 %v2759, %v2763
        %v2768 = vadd.f32 %v2760, %v2764
        %v2769 = vadd.f32 %v2761, %v2765
        %v2770 = vstv %s2739
        %v2771 = vsub.f32 %v2770, %v2766
        %v2772 = vsub.f32 %v2770, %v2767
        %v2773 = vsub.f32 %v2770, %v2768
        %v2774 = vsub.f32 %v2770, %v2769
        %v2775 = vmul.f32 %v2771, 0.16666667
        %v2776 = vmul.f32 %v2772, 0.16666667
        %v2777 = vmul.f32 %v2773, 0.16666667
        %v2778 = vmul.f32 %v2774, 0.16666667
        %v2779 = vadd.f32 %v2775, 0.5
        %v2780 = vadd.f32 %v2776, 0.5
        %v2781 = vadd.f32 %v2777, 0.5
        %v2782 = vadd.f32 %v2778, 0.5
        %v2783 = vmax.f32 %v2779, 0.0
        %v2784 = vmax.f32 %v2780, 0.0
        %v2785 = vmax.f32 %v2781, 0.0
        %v2786 = vmax.f32 %v2782, 0.0
        %v2787 = vmin.f32 %v2783, 1.0
        %v2788 = vmin.f32 %v2784, 1.0
        %v2789 = vmin.f32 %v2785, 1.0
        %v2790 = vmin.f32 %v2786, 1.0
        %v2791 = vmul.f32 %v2787, %v2787
        %v2792 = vmul.f32 %v2788, %v2788
        %v2793 = vmul.f32 %v2789, %v2789
        %v2794 = vmul.f32 %v2790, %v2790
        %v2795 = vmul.f32 %v2787, 2.0
        %v2796 = vmul.f32 %v2788, 2.0
        %v2797 = vmul.f32 %v2789, 2.0
        %v2798 = vmul.f32 %v2790, 2.0
        %v2799 = vsub.f32 3.0, %v2795
        %v2800 = vsub.f32 3.0, %v2796
        %v2801 = vsub.f32 3.0, %v2797
        %v2802 = vsub.f32 3.0, %v2798
        %v2803 = vmul.f32 %v2791, %v2799
        %v2804 = vmul.f32 %v2792, %v2800
        %v2805 = vmul.f32 %v2793, %v2801
        %v2806 = vmul.f32 %v2794, %v2802
        %v2807 = vstv %s2741
        %v2808 = vmul.f32 %v2807, %v2803
        %v2809 = vmul.f32 %v2807, %v2804
        %v2810 = vmul.f32 %v2807, %v2805
        %v2811 = vmul.f32 %v2807, %v2806
        %v2812 = vstv %s2743
        %v2813 = vmul.f32 %v2808, %v2812
        %v2814 = vmul.f32 %v2809, %v2812
        %v2815 = vmul.f32 %v2810, %v2812
        %v2816 = vmul.f32 %v2811, %v2812
        %v2817 = vadd.f32 %v2708, %v2813
        %v2818 = vadd.f32 %v2709, %v2814
        %v2819 = vadd.f32 %v2710, %v2815
        %v2820 = vadd.f32 %v2711, %v2816
        %v2821 = vstv %s2745
        %v2822 = vmul.f32 %v2808, %v2821
        %v2823 = vmul.f32 %v2809, %v2821
        %v2824 = vmul.f32 %v2810, %v2821
        %v2825 = vmul.f32 %v2811, %v2821
        %v2826 = vadd.f32 %v2717, %v2822
        %v2827 = vadd.f32 %v2718, %v2823
        %v2828 = vadd.f32 %v2719, %v2824
        %v2829 = vadd.f32 %v2720, %v2825
        %v2830 = vstv %s2747
        %v2831 = vmul.f32 %v2808, %v2830
        %v2832 = vmul.f32 %v2809, %v2830
        %v2833 = vmul.f32 %v2810, %v2830
        %v2834 = vmul.f32 %v2811, %v2830
        %v2835 = vadd.f32 %v2726, %v2831
        %v2836 = vadd.f32 %v2727, %v2832
        %v2837 = vadd.f32 %v2728, %v2833
        %v2838 = vadd.f32 %v2729, %v2834
        %v2839 = vadd.f32 %v2730, %v2808
        %v2840 = vadd.f32 %v2731, %v2809
        %v2841 = vadd.f32 %v2732, %v2810
        %v2842 = vadd.f32 %v2733, %v2811
        %s2843 = sadd.s32 %s2407, 32
        %s2844 = sld [smem:[#allocation2 + %s2843]]
        %s2845 = sadd.s32 %s2407, 33
        %s2846 = sld [smem:[#allocation2 + %s2845]]
        %s2847 = sadd.s32 %s2407, 34
        %s2848 = sld [smem:[#allocation2 + %s2847]]
        %s2849 = sadd.s32 %s2407, 35
        %s2850 = sld [smem:[#allocation2 + %s2849]]
        %s2851 = sadd.s32 %s2407, 36
        %s2852 = sld [smem:[#allocation2 + %s2851]]
        %s2853 = sadd.s32 %s2407, 37
        %s2854 = sld [smem:[#allocation2 + %s2853]]
        %s2855 = sadd.s32 %s2407, 38
        %s2856 = sld [smem:[#allocation2 + %s2855]]
        %v2857 = vstv %s2844
        %v2858 = vsub.f32 %v149, %v2857
        %v2859 = vsub.f32 %v150, %v2857
        %v2860 = vsub.f32 %v151, %v2857
        %v2861 = vsub.f32 %v152, %v2857
        %v2862 = vstv %s2846
        %v2863 = vsub.f32 %v137, %v2862
        %v2864 = vsub.f32 %v138, %v2862
        %v2865 = vsub.f32 %v139, %v2862
        %v2866 = vsub.f32 %v140, %v2862
        %v2867 = vmul.f32 %v2858, %v2858
        %v2868 = vmul.f32 %v2859, %v2859
        %v2869 = vmul.f32 %v2860, %v2860
        %v2870 = vmul.f32 %v2861, %v2861
        %v2871 = vmul.f32 %v2863, %v2863
        %v2872 = vmul.f32 %v2864, %v2864
        %v2873 = vmul.f32 %v2865, %v2865
        %v2874 = vmul.f32 %v2866, %v2866
        %v2875 = vadd.f32 %v2867, %v2871
        %v2876 = vadd.f32 %v2868, %v2872
        %v2877 = vadd.f32 %v2869, %v2873
        %v2878 = vadd.f32 %v2870, %v2874
        %v2879 = vstv %s2848
        %v2880 = vsub.f32 %v2879, %v2875
        %v2881 = vsub.f32 %v2879, %v2876
        %v2882 = vsub.f32 %v2879, %v2877
        %v2883 = vsub.f32 %v2879, %v2878
        %v2884 = vmul.f32 %v2880, 0.16666667
        %v2885 = vmul.f32 %v2881, 0.16666667
        %v2886 = vmul.f32 %v2882, 0.16666667
        %v2887 = vmul.f32 %v2883, 0.16666667
        %v2888 = vadd.f32 %v2884, 0.5
        %v2889 = vadd.f32 %v2885, 0.5
        %v2890 = vadd.f32 %v2886, 0.5
        %v2891 = vadd.f32 %v2887, 0.5
        %v2892 = vmax.f32 %v2888, 0.0
        %v2893 = vmax.f32 %v2889, 0.0
        %v2894 = vmax.f32 %v2890, 0.0
        %v2895 = vmax.f32 %v2891, 0.0
        %v2896 = vmin.f32 %v2892, 1.0
        %v2897 = vmin.f32 %v2893, 1.0
        %v2898 = vmin.f32 %v2894, 1.0
        %v2899 = vmin.f32 %v2895, 1.0
        %v2900 = vmul.f32 %v2896, %v2896
        %v2901 = vmul.f32 %v2897, %v2897
        %v2902 = vmul.f32 %v2898, %v2898
        %v2903 = vmul.f32 %v2899, %v2899
        %v2904 = vmul.f32 %v2896, 2.0
        %v2905 = vmul.f32 %v2897, 2.0
        %v2906 = vmul.f32 %v2898, 2.0
        %v2907 = vmul.f32 %v2899, 2.0
        %v2908 = vsub.f32 3.0, %v2904
        %v2909 = vsub.f32 3.0, %v2905
        %v2910 = vsub.f32 3.0, %v2906
        %v2911 = vsub.f32 3.0, %v2907
        %v2912 = vmul.f32 %v2900, %v2908
        %v2913 = vmul.f32 %v2901, %v2909
        %v2914 = vmul.f32 %v2902, %v2910
        %v2915 = vmul.f32 %v2903, %v2911
        %v2916 = vstv %s2850
        %v2917 = vmul.f32 %v2916, %v2912
        %v2918 = vmul.f32 %v2916, %v2913
        %v2919 = vmul.f32 %v2916, %v2914
        %v2920 = vmul.f32 %v2916, %v2915
        %v2921 = vstv %s2852
        %v2922 = vmul.f32 %v2917, %v2921
        %v2923 = vmul.f32 %v2918, %v2921
        %v2924 = vmul.f32 %v2919, %v2921
        %v2925 = vmul.f32 %v2920, %v2921
        %v2926 = vadd.f32 %v2817, %v2922
        %v2927 = vadd.f32 %v2818, %v2923
        %v2928 = vadd.f32 %v2819, %v2924
        %v2929 = vadd.f32 %v2820, %v2925
        %v2930 = vstv %s2854
        %v2931 = vmul.f32 %v2917, %v2930
        %v2932 = vmul.f32 %v2918, %v2930
        %v2933 = vmul.f32 %v2919, %v2930
        %v2934 = vmul.f32 %v2920, %v2930
        %v2935 = vadd.f32 %v2826, %v2931
        %v2936 = vadd.f32 %v2827, %v2932
        %v2937 = vadd.f32 %v2828, %v2933
        %v2938 = vadd.f32 %v2829, %v2934
        %v2939 = vstv %s2856
        %v2940 = vmul.f32 %v2917, %v2939
        %v2941 = vmul.f32 %v2918, %v2939
        %v2942 = vmul.f32 %v2919, %v2939
        %v2943 = vmul.f32 %v2920, %v2939
        %v2944 = vadd.f32 %v2835, %v2940
        %v2945 = vadd.f32 %v2836, %v2941
        %v2946 = vadd.f32 %v2837, %v2942
        %v2947 = vadd.f32 %v2838, %v2943
        %v2948 = vadd.f32 %v2839, %v2917
        %v2949 = vadd.f32 %v2840, %v2918
        %v2950 = vadd.f32 %v2841, %v2919
        %v2951 = vadd.f32 %v2842, %v2920
        %s2952 = sadd.s32 %s2407, 40
        %s2953 = sld [smem:[#allocation2 + %s2952]]
        %s2954 = sadd.s32 %s2407, 41
        %s2955 = sld [smem:[#allocation2 + %s2954]]
        %s2956 = sadd.s32 %s2407, 42
        %s2957 = sld [smem:[#allocation2 + %s2956]]
        %s2958 = sadd.s32 %s2407, 43
        %s2959 = sld [smem:[#allocation2 + %s2958]]
        %s2960 = sadd.s32 %s2407, 44
        %s2961 = sld [smem:[#allocation2 + %s2960]]
        %s2962 = sadd.s32 %s2407, 45
        %s2963 = sld [smem:[#allocation2 + %s2962]]
        %s2964 = sadd.s32 %s2407, 46
        %s2965 = sld [smem:[#allocation2 + %s2964]]
        %v2966 = vstv %s2953
        %v2967 = vsub.f32 %v149, %v2966
        %v2968 = vsub.f32 %v150, %v2966
        %v2969 = vsub.f32 %v151, %v2966
        %v2970 = vsub.f32 %v152, %v2966
        %v2971 = vstv %s2955
        %v2972 = vsub.f32 %v137, %v2971
        %v2973 = vsub.f32 %v138, %v2971
        %v2974 = vsub.f32 %v139, %v2971
        %v2975 = vsub.f32 %v140, %v2971
        %v2976 = vmul.f32 %v2967, %v2967
        %v2977 = vmul.f32 %v2968, %v2968
        %v2978 = vmul.f32 %v2969, %v2969
        %v2979 = vmul.f32 %v2970, %v2970
        %v2980 = vmul.f32 %v2972, %v2972
        %v2981 = vmul.f32 %v2973, %v2973
        %v2982 = vmul.f32 %v2974, %v2974
        %v2983 = vmul.f32 %v2975, %v2975
        %v2984 = vadd.f32 %v2976, %v2980
        %v2985 = vadd.f32 %v2977, %v2981
        %v2986 = vadd.f32 %v2978, %v2982
        %v2987 = vadd.f32 %v2979, %v2983
        %v2988 = vstv %s2957
        %v2989 = vsub.f32 %v2988, %v2984
        %v2990 = vsub.f32 %v2988, %v2985
        %v2991 = vsub.f32 %v2988, %v2986
        %v2992 = vsub.f32 %v2988, %v2987
        %v2993 = vmul.f32 %v2989, 0.16666667
        %v2994 = vmul.f32 %v2990, 0.16666667
        %v2995 = vmul.f32 %v2991, 0.16666667
        %v2996 = vmul.f32 %v2992, 0.16666667
        %v2997 = vadd.f32 %v2993, 0.5
        %v2998 = vadd.f32 %v2994, 0.5
        %v2999 = vadd.f32 %v2995, 0.5
        %v3000 = vadd.f32 %v2996, 0.5
        %v3001 = vmax.f32 %v2997, 0.0
        %v3002 = vmax.f32 %v2998, 0.0
        %v3003 = vmax.f32 %v2999, 0.0
        %v3004 = vmax.f32 %v3000, 0.0
        %v3005 = vmin.f32 %v3001, 1.0
        %v3006 = vmin.f32 %v3002, 1.0
        %v3007 = vmin.f32 %v3003, 1.0
        %v3008 = vmin.f32 %v3004, 1.0
        %v3009 = vmul.f32 %v3005, %v3005
        %v3010 = vmul.f32 %v3006, %v3006
        %v3011 = vmul.f32 %v3007, %v3007
        %v3012 = vmul.f32 %v3008, %v3008
        %v3013 = vmul.f32 %v3005, 2.0
        %v3014 = vmul.f32 %v3006, 2.0
        %v3015 = vmul.f32 %v3007, 2.0
        %v3016 = vmul.f32 %v3008, 2.0
        %v3017 = vsub.f32 3.0, %v3013
        %v3018 = vsub.f32 3.0, %v3014
        %v3019 = vsub.f32 3.0, %v3015
        %v3020 = vsub.f32 3.0, %v3016
        %v3021 = vmul.f32 %v3009, %v3017
        %v3022 = vmul.f32 %v3010, %v3018
        %v3023 = vmul.f32 %v3011, %v3019
        %v3024 = vmul.f32 %v3012, %v3020
        %v3025 = vstv %s2959
        %v3026 = vmul.f32 %v3025, %v3021
        %v3027 = vmul.f32 %v3025, %v3022
        %v3028 = vmul.f32 %v3025, %v3023
        %v3029 = vmul.f32 %v3025, %v3024
        %v3030 = vstv %s2961
        %v3031 = vmul.f32 %v3026, %v3030
        %v3032 = vmul.f32 %v3027, %v3030
        %v3033 = vmul.f32 %v3028, %v3030
        %v3034 = vmul.f32 %v3029, %v3030
        %v3035 = vadd.f32 %v2926, %v3031
        %v3036 = vadd.f32 %v2927, %v3032
        %v3037 = vadd.f32 %v2928, %v3033
        %v3038 = vadd.f32 %v2929, %v3034
        %v3039 = vstv %s2963
        %v3040 = vmul.f32 %v3026, %v3039
        %v3041 = vmul.f32 %v3027, %v3039
        %v3042 = vmul.f32 %v3028, %v3039
        %v3043 = vmul.f32 %v3029, %v3039
        %v3044 = vadd.f32 %v2935, %v3040
        %v3045 = vadd.f32 %v2936, %v3041
        %v3046 = vadd.f32 %v2937, %v3042
        %v3047 = vadd.f32 %v2938, %v3043
        %v3048 = vstv %s2965
        %v3049 = vmul.f32 %v3026, %v3048
        %v3050 = vmul.f32 %v3027, %v3048
        %v3051 = vmul.f32 %v3028, %v3048
        %v3052 = vmul.f32 %v3029, %v3048
        %v3053 = vadd.f32 %v2944, %v3049
        %v3054 = vadd.f32 %v2945, %v3050
        %v3055 = vadd.f32 %v2946, %v3051
        %v3056 = vadd.f32 %v2947, %v3052
        %v3057 = vadd.f32 %v2948, %v3026
        %v3058 = vadd.f32 %v2949, %v3027
        %v3059 = vadd.f32 %v2950, %v3028
        %v3060 = vadd.f32 %v2951, %v3029
        %s3061 = sadd.s32 %s2407, 48
        %s3062 = sld [smem:[#allocation2 + %s3061]]
        %s3063 = sadd.s32 %s2407, 49
        %s3064 = sld [smem:[#allocation2 + %s3063]]
        %s3065 = sadd.s32 %s2407, 50
        %s3066 = sld [smem:[#allocation2 + %s3065]]
        %s3067 = sadd.s32 %s2407, 51
        %s3068 = sld [smem:[#allocation2 + %s3067]]
        %s3069 = sadd.s32 %s2407, 52
        %s3070 = sld [smem:[#allocation2 + %s3069]]
        %s3071 = sadd.s32 %s2407, 53
        %s3072 = sld [smem:[#allocation2 + %s3071]]
        %s3073 = sadd.s32 %s2407, 54
        %s3074 = sld [smem:[#allocation2 + %s3073]]
        %v3075 = vstv %s3062
        %v3076 = vsub.f32 %v149, %v3075
        %v3077 = vsub.f32 %v150, %v3075
        %v3078 = vsub.f32 %v151, %v3075
        %v3079 = vsub.f32 %v152, %v3075
        %v3080 = vstv %s3064
        %v3081 = vsub.f32 %v137, %v3080
        %v3082 = vsub.f32 %v138, %v3080
        %v3083 = vsub.f32 %v139, %v3080
        %v3084 = vsub.f32 %v140, %v3080
        %v3085 = vmul.f32 %v3076, %v3076
        %v3086 = vmul.f32 %v3077, %v3077
        %v3087 = vmul.f32 %v3078, %v3078
        %v3088 = vmul.f32 %v3079, %v3079
        %v3089 = vmul.f32 %v3081, %v3081
        %v3090 = vmul.f32 %v3082, %v3082
        %v3091 = vmul.f32 %v3083, %v3083
        %v3092 = vmul.f32 %v3084, %v3084
        %v3093 = vadd.f32 %v3085, %v3089
        %v3094 = vadd.f32 %v3086, %v3090
        %v3095 = vadd.f32 %v3087, %v3091
        %v3096 = vadd.f32 %v3088, %v3092
        %v3097 = vstv %s3066
        %v3098 = vsub.f32 %v3097, %v3093
        %v3099 = vsub.f32 %v3097, %v3094
        %v3100 = vsub.f32 %v3097, %v3095
        %v3101 = vsub.f32 %v3097, %v3096
        %v3102 = vmul.f32 %v3098, 0.16666667
        %v3103 = vmul.f32 %v3099, 0.16666667
        %v3104 = vmul.f32 %v3100, 0.16666667
        %v3105 = vmul.f32 %v3101, 0.16666667
        %v3106 = vadd.f32 %v3102, 0.5
        %v3107 = vadd.f32 %v3103, 0.5
        %v3108 = vadd.f32 %v3104, 0.5
        %v3109 = vadd.f32 %v3105, 0.5
        %v3110 = vmax.f32 %v3106, 0.0
        %v3111 = vmax.f32 %v3107, 0.0
        %v3112 = vmax.f32 %v3108, 0.0
        %v3113 = vmax.f32 %v3109, 0.0
        %v3114 = vmin.f32 %v3110, 1.0
        %v3115 = vmin.f32 %v3111, 1.0
        %v3116 = vmin.f32 %v3112, 1.0
        %v3117 = vmin.f32 %v3113, 1.0
        %v3118 = vmul.f32 %v3114, %v3114
        %v3119 = vmul.f32 %v3115, %v3115
        %v3120 = vmul.f32 %v3116, %v3116
        %v3121 = vmul.f32 %v3117, %v3117
        %v3122 = vmul.f32 %v3114, 2.0
        %v3123 = vmul.f32 %v3115, 2.0
        %v3124 = vmul.f32 %v3116, 2.0
        %v3125 = vmul.f32 %v3117, 2.0
        %v3126 = vsub.f32 3.0, %v3122
        %v3127 = vsub.f32 3.0, %v3123
        %v3128 = vsub.f32 3.0, %v3124
        %v3129 = vsub.f32 3.0, %v3125
        %v3130 = vmul.f32 %v3118, %v3126
        %v3131 = vmul.f32 %v3119, %v3127
        %v3132 = vmul.f32 %v3120, %v3128
        %v3133 = vmul.f32 %v3121, %v3129
        %v3134 = vstv %s3068
        %v3135 = vmul.f32 %v3134, %v3130
        %v3136 = vmul.f32 %v3134, %v3131
        %v3137 = vmul.f32 %v3134, %v3132
        %v3138 = vmul.f32 %v3134, %v3133
        %v3139 = vstv %s3070
        %v3140 = vmul.f32 %v3135, %v3139
        %v3141 = vmul.f32 %v3136, %v3139
        %v3142 = vmul.f32 %v3137, %v3139
        %v3143 = vmul.f32 %v3138, %v3139
        %v3144 = vadd.f32 %v3035, %v3140
        %v3145 = vadd.f32 %v3036, %v3141
        %v3146 = vadd.f32 %v3037, %v3142
        %v3147 = vadd.f32 %v3038, %v3143
        %v3148 = vstv %s3072
        %v3149 = vmul.f32 %v3135, %v3148
        %v3150 = vmul.f32 %v3136, %v3148
        %v3151 = vmul.f32 %v3137, %v3148
        %v3152 = vmul.f32 %v3138, %v3148
        %v3153 = vadd.f32 %v3044, %v3149
        %v3154 = vadd.f32 %v3045, %v3150
        %v3155 = vadd.f32 %v3046, %v3151
        %v3156 = vadd.f32 %v3047, %v3152
        %v3157 = vstv %s3074
        %v3158 = vmul.f32 %v3135, %v3157
        %v3159 = vmul.f32 %v3136, %v3157
        %v3160 = vmul.f32 %v3137, %v3157
        %v3161 = vmul.f32 %v3138, %v3157
        %v3162 = vadd.f32 %v3053, %v3158
        %v3163 = vadd.f32 %v3054, %v3159
        %v3164 = vadd.f32 %v3055, %v3160
        %v3165 = vadd.f32 %v3056, %v3161
        %v3166 = vadd.f32 %v3057, %v3135
        %v3167 = vadd.f32 %v3058, %v3136
        %v3168 = vadd.f32 %v3059, %v3137
        %v3169 = vadd.f32 %v3060, %v3138
        %s3170 = sadd.s32 %s2407, 56
        %s3171 = sld [smem:[#allocation2 + %s3170]]
        %s3172 = sadd.s32 %s2407, 57
        %s3173 = sld [smem:[#allocation2 + %s3172]]
        %s3174 = sadd.s32 %s2407, 58
        %s3175 = sld [smem:[#allocation2 + %s3174]]
        %s3176 = sadd.s32 %s2407, 59
        %s3177 = sld [smem:[#allocation2 + %s3176]]
        %s3178 = sadd.s32 %s2407, 60
        %s3179 = sld [smem:[#allocation2 + %s3178]]
        %s3180 = sadd.s32 %s2407, 61
        %s3181 = sld [smem:[#allocation2 + %s3180]]
        %s3182 = sadd.s32 %s2407, 62
        %s3183 = sld [smem:[#allocation2 + %s3182]]
        %v3184 = vstv %s3171
        %v3185 = vsub.f32 %v149, %v3184
        %v3186 = vsub.f32 %v150, %v3184
        %v3187 = vsub.f32 %v151, %v3184
        %v3188 = vsub.f32 %v152, %v3184
        %v3189 = vstv %s3173
        %v3190 = vsub.f32 %v137, %v3189
        %v3191 = vsub.f32 %v138, %v3189
        %v3192 = vsub.f32 %v139, %v3189
        %v3193 = vsub.f32 %v140, %v3189
        %v3194 = vmul.f32 %v3185, %v3185
        %v3195 = vmul.f32 %v3186, %v3186
        %v3196 = vmul.f32 %v3187, %v3187
        %v3197 = vmul.f32 %v3188, %v3188
        %v3198 = vmul.f32 %v3190, %v3190
        %v3199 = vmul.f32 %v3191, %v3191
        %v3200 = vmul.f32 %v3192, %v3192
        %v3201 = vmul.f32 %v3193, %v3193
        %v3202 = vadd.f32 %v3194, %v3198
        %v3203 = vadd.f32 %v3195, %v3199
        %v3204 = vadd.f32 %v3196, %v3200
        %v3205 = vadd.f32 %v3197, %v3201
        %v3206 = vstv %s3175
        %v3207 = vsub.f32 %v3206, %v3202
        %v3208 = vsub.f32 %v3206, %v3203
        %v3209 = vsub.f32 %v3206, %v3204
        %v3210 = vsub.f32 %v3206, %v3205
        %v3211 = vmul.f32 %v3207, 0.16666667
        %v3212 = vmul.f32 %v3208, 0.16666667
        %v3213 = vmul.f32 %v3209, 0.16666667
        %v3214 = vmul.f32 %v3210, 0.16666667
        %v3215 = vadd.f32 %v3211, 0.5
        %v3216 = vadd.f32 %v3212, 0.5
        %v3217 = vadd.f32 %v3213, 0.5
        %v3218 = vadd.f32 %v3214, 0.5
        %v3219 = vmax.f32 %v3215, 0.0
        %v3220 = vmax.f32 %v3216, 0.0
        %v3221 = vmax.f32 %v3217, 0.0
        %v3222 = vmax.f32 %v3218, 0.0
        %v3223 = vmin.f32 %v3219, 1.0
        %v3224 = vmin.f32 %v3220, 1.0
        %v3225 = vmin.f32 %v3221, 1.0
        %v3226 = vmin.f32 %v3222, 1.0
        %v3227 = vmul.f32 %v3223, %v3223
        %v3228 = vmul.f32 %v3224, %v3224
        %v3229 = vmul.f32 %v3225, %v3225
        %v3230 = vmul.f32 %v3226, %v3226
        %v3231 = vmul.f32 %v3223, 2.0
        %v3232 = vmul.f32 %v3224, 2.0
        %v3233 = vmul.f32 %v3225, 2.0
        %v3234 = vmul.f32 %v3226, 2.0
        %v3235 = vsub.f32 3.0, %v3231
        %v3236 = vsub.f32 3.0, %v3232
        %v3237 = vsub.f32 3.0, %v3233
        %v3238 = vsub.f32 3.0, %v3234
        %v3239 = vmul.f32 %v3227, %v3235
        %v3240 = vmul.f32 %v3228, %v3236
        %v3241 = vmul.f32 %v3229, %v3237
        %v3242 = vmul.f32 %v3230, %v3238
        %v3243 = vstv %s3177
        %v3244 = vmul.f32 %v3243, %v3239
        %v3245 = vmul.f32 %v3243, %v3240
        %v3246 = vmul.f32 %v3243, %v3241
        %v3247 = vmul.f32 %v3243, %v3242
        %v3248 = vstv %s3179
        %v3249 = vmul.f32 %v3244, %v3248
        %v3250 = vmul.f32 %v3245, %v3248
        %v3251 = vmul.f32 %v3246, %v3248
        %v3252 = vmul.f32 %v3247, %v3248
        %v3253 = vadd.f32 %v3144, %v3249
        %v3254 = vadd.f32 %v3145, %v3250
        %v3255 = vadd.f32 %v3146, %v3251
        %v3256 = vadd.f32 %v3147, %v3252
        %v3257 = vstv %s3181
        %v3258 = vmul.f32 %v3244, %v3257
        %v3259 = vmul.f32 %v3245, %v3257
        %v3260 = vmul.f32 %v3246, %v3257
        %v3261 = vmul.f32 %v3247, %v3257
        %v3262 = vadd.f32 %v3153, %v3258
        %v3263 = vadd.f32 %v3154, %v3259
        %v3264 = vadd.f32 %v3155, %v3260
        %v3265 = vadd.f32 %v3156, %v3261
        %v3266 = vstv %s3183
        %v3267 = vmul.f32 %v3244, %v3266
        %v3268 = vmul.f32 %v3245, %v3266
        %v3269 = vmul.f32 %v3246, %v3266
        %v3270 = vmul.f32 %v3247, %v3266
        %v3271 = vadd.f32 %v3162, %v3267
        %v3272 = vadd.f32 %v3163, %v3268
        %v3273 = vadd.f32 %v3164, %v3269
        %v3274 = vadd.f32 %v3165, %v3270
        %v3275 = vadd.f32 %v3166, %v3244
        %v3276 = vadd.f32 %v3167, %v3245
        %v3277 = vadd.f32 %v3168, %v3246
        %v3278 = vadd.f32 %v3169, %v3247
        %s3279 = sadd.s32 %s2407, 64
        %s3280 = sld [smem:[#allocation2 + %s3279]]
        %s3281 = sadd.s32 %s2407, 65
        %s3282 = sld [smem:[#allocation2 + %s3281]]
        %s3283 = sadd.s32 %s2407, 66
        %s3284 = sld [smem:[#allocation2 + %s3283]]
        %s3285 = sadd.s32 %s2407, 67
        %s3286 = sld [smem:[#allocation2 + %s3285]]
        %s3287 = sadd.s32 %s2407, 68
        %s3288 = sld [smem:[#allocation2 + %s3287]]
        %s3289 = sadd.s32 %s2407, 69
        %s3290 = sld [smem:[#allocation2 + %s3289]]
        %s3291 = sadd.s32 %s2407, 70
        %s3292 = sld [smem:[#allocation2 + %s3291]]
        %v3293 = vstv %s3280
        %v3294 = vsub.f32 %v149, %v3293
        %v3295 = vsub.f32 %v150, %v3293
        %v3296 = vsub.f32 %v151, %v3293
        %v3297 = vsub.f32 %v152, %v3293
        %v3298 = vstv %s3282
        %v3299 = vsub.f32 %v137, %v3298
        %v3300 = vsub.f32 %v138, %v3298
        %v3301 = vsub.f32 %v139, %v3298
        %v3302 = vsub.f32 %v140, %v3298
        %v3303 = vmul.f32 %v3294, %v3294
        %v3304 = vmul.f32 %v3295, %v3295
        %v3305 = vmul.f32 %v3296, %v3296
        %v3306 = vmul.f32 %v3297, %v3297
        %v3307 = vmul.f32 %v3299, %v3299
        %v3308 = vmul.f32 %v3300, %v3300
        %v3309 = vmul.f32 %v3301, %v3301
        %v3310 = vmul.f32 %v3302, %v3302
        %v3311 = vadd.f32 %v3303, %v3307
        %v3312 = vadd.f32 %v3304, %v3308
        %v3313 = vadd.f32 %v3305, %v3309
        %v3314 = vadd.f32 %v3306, %v3310
        %v3315 = vstv %s3284
        %v3316 = vsub.f32 %v3315, %v3311
        %v3317 = vsub.f32 %v3315, %v3312
        %v3318 = vsub.f32 %v3315, %v3313
        %v3319 = vsub.f32 %v3315, %v3314
        %v3320 = vmul.f32 %v3316, 0.16666667
        %v3321 = vmul.f32 %v3317, 0.16666667
        %v3322 = vmul.f32 %v3318, 0.16666667
        %v3323 = vmul.f32 %v3319, 0.16666667
        %v3324 = vadd.f32 %v3320, 0.5
        %v3325 = vadd.f32 %v3321, 0.5
        %v3326 = vadd.f32 %v3322, 0.5
        %v3327 = vadd.f32 %v3323, 0.5
        %v3328 = vmax.f32 %v3324, 0.0
        %v3329 = vmax.f32 %v3325, 0.0
        %v3330 = vmax.f32 %v3326, 0.0
        %v3331 = vmax.f32 %v3327, 0.0
        %v3332 = vmin.f32 %v3328, 1.0
        %v3333 = vmin.f32 %v3329, 1.0
        %v3334 = vmin.f32 %v3330, 1.0
        %v3335 = vmin.f32 %v3331, 1.0
        %v3336 = vmul.f32 %v3332, %v3332
        %v3337 = vmul.f32 %v3333, %v3333
        %v3338 = vmul.f32 %v3334, %v3334
        %v3339 = vmul.f32 %v3335, %v3335
        %v3340 = vmul.f32 %v3332, 2.0
        %v3341 = vmul.f32 %v3333, 2.0
        %v3342 = vmul.f32 %v3334, 2.0
        %v3343 = vmul.f32 %v3335, 2.0
        %v3344 = vsub.f32 3.0, %v3340
        %v3345 = vsub.f32 3.0, %v3341
        %v3346 = vsub.f32 3.0, %v3342
        %v3347 = vsub.f32 3.0, %v3343
        %v3348 = vmul.f32 %v3336, %v3344
        %v3349 = vmul.f32 %v3337, %v3345
        %v3350 = vmul.f32 %v3338, %v3346
        %v3351 = vmul.f32 %v3339, %v3347
        %v3352 = vstv %s3286
        %v3353 = vmul.f32 %v3352, %v3348
        %v3354 = vmul.f32 %v3352, %v3349
        %v3355 = vmul.f32 %v3352, %v3350
        %v3356 = vmul.f32 %v3352, %v3351
        %v3357 = vstv %s3288
        %v3358 = vmul.f32 %v3353, %v3357
        %v3359 = vmul.f32 %v3354, %v3357
        %v3360 = vmul.f32 %v3355, %v3357
        %v3361 = vmul.f32 %v3356, %v3357
        %v3362 = vadd.f32 %v3253, %v3358
        %v3363 = vadd.f32 %v3254, %v3359
        %v3364 = vadd.f32 %v3255, %v3360
        %v3365 = vadd.f32 %v3256, %v3361
        %v3366 = vstv %s3290
        %v3367 = vmul.f32 %v3353, %v3366
        %v3368 = vmul.f32 %v3354, %v3366
        %v3369 = vmul.f32 %v3355, %v3366
        %v3370 = vmul.f32 %v3356, %v3366
        %v3371 = vadd.f32 %v3262, %v3367
        %v3372 = vadd.f32 %v3263, %v3368
        %v3373 = vadd.f32 %v3264, %v3369
        %v3374 = vadd.f32 %v3265, %v3370
        %v3375 = vstv %s3292
        %v3376 = vmul.f32 %v3353, %v3375
        %v3377 = vmul.f32 %v3354, %v3375
        %v3378 = vmul.f32 %v3355, %v3375
        %v3379 = vmul.f32 %v3356, %v3375
        %v3380 = vadd.f32 %v3271, %v3376
        %v3381 = vadd.f32 %v3272, %v3377
        %v3382 = vadd.f32 %v3273, %v3378
        %v3383 = vadd.f32 %v3274, %v3379
        %v3384 = vadd.f32 %v3275, %v3353
        %v3385 = vadd.f32 %v3276, %v3354
        %v3386 = vadd.f32 %v3277, %v3355
        %v3387 = vadd.f32 %v3278, %v3356
        %s3388 = sadd.s32 %s2407, 72
        %s3389 = sld [smem:[#allocation2 + %s3388]]
        %s3390 = sadd.s32 %s2407, 73
        %s3391 = sld [smem:[#allocation2 + %s3390]]
        %s3392 = sadd.s32 %s2407, 74
        %s3393 = sld [smem:[#allocation2 + %s3392]]
        %s3394 = sadd.s32 %s2407, 75
        %s3395 = sld [smem:[#allocation2 + %s3394]]
        %s3396 = sadd.s32 %s2407, 76
        %s3397 = sld [smem:[#allocation2 + %s3396]]
        %s3398 = sadd.s32 %s2407, 77
        %s3399 = sld [smem:[#allocation2 + %s3398]]
        %s3400 = sadd.s32 %s2407, 78
        %s3401 = sld [smem:[#allocation2 + %s3400]]
        %v3402 = vstv %s3389
        %v3403 = vsub.f32 %v149, %v3402
        %v3404 = vsub.f32 %v150, %v3402
        %v3405 = vsub.f32 %v151, %v3402
        %v3406 = vsub.f32 %v152, %v3402
        %v3407 = vstv %s3391
        %v3408 = vsub.f32 %v137, %v3407
        %v3409 = vsub.f32 %v138, %v3407
        %v3410 = vsub.f32 %v139, %v3407
        %v3411 = vsub.f32 %v140, %v3407
        %v3412 = vmul.f32 %v3403, %v3403
        %v3413 = vmul.f32 %v3404, %v3404
        %v3414 = vmul.f32 %v3405, %v3405
        %v3415 = vmul.f32 %v3406, %v3406
        %v3416 = vmul.f32 %v3408, %v3408
        %v3417 = vmul.f32 %v3409, %v3409
        %v3418 = vmul.f32 %v3410, %v3410
        %v3419 = vmul.f32 %v3411, %v3411
        %v3420 = vadd.f32 %v3412, %v3416
        %v3421 = vadd.f32 %v3413, %v3417
        %v3422 = vadd.f32 %v3414, %v3418
        %v3423 = vadd.f32 %v3415, %v3419
        %v3424 = vstv %s3393
        %v3425 = vsub.f32 %v3424, %v3420
        %v3426 = vsub.f32 %v3424, %v3421
        %v3427 = vsub.f32 %v3424, %v3422
        %v3428 = vsub.f32 %v3424, %v3423
        %v3429 = vmul.f32 %v3425, 0.16666667
        %v3430 = vmul.f32 %v3426, 0.16666667
        %v3431 = vmul.f32 %v3427, 0.16666667
        %v3432 = vmul.f32 %v3428, 0.16666667
        %v3433 = vadd.f32 %v3429, 0.5
        %v3434 = vadd.f32 %v3430, 0.5
        %v3435 = vadd.f32 %v3431, 0.5
        %v3436 = vadd.f32 %v3432, 0.5
        %v3437 = vmax.f32 %v3433, 0.0
        %v3438 = vmax.f32 %v3434, 0.0
        %v3439 = vmax.f32 %v3435, 0.0
        %v3440 = vmax.f32 %v3436, 0.0
        %v3441 = vmin.f32 %v3437, 1.0
        %v3442 = vmin.f32 %v3438, 1.0
        %v3443 = vmin.f32 %v3439, 1.0
        %v3444 = vmin.f32 %v3440, 1.0
        %v3445 = vmul.f32 %v3441, %v3441
        %v3446 = vmul.f32 %v3442, %v3442
        %v3447 = vmul.f32 %v3443, %v3443
        %v3448 = vmul.f32 %v3444, %v3444
        %v3449 = vmul.f32 %v3441, 2.0
        %v3450 = vmul.f32 %v3442, 2.0
        %v3451 = vmul.f32 %v3443, 2.0
        %v3452 = vmul.f32 %v3444, 2.0
        %v3453 = vsub.f32 3.0, %v3449
        %v3454 = vsub.f32 3.0, %v3450
        %v3455 = vsub.f32 3.0, %v3451
        %v3456 = vsub.f32 3.0, %v3452
        %v3457 = vmul.f32 %v3445, %v3453
        %v3458 = vmul.f32 %v3446, %v3454
        %v3459 = vmul.f32 %v3447, %v3455
        %v3460 = vmul.f32 %v3448, %v3456
        %v3461 = vstv %s3395
        %v3462 = vmul.f32 %v3461, %v3457
        %v3463 = vmul.f32 %v3461, %v3458
        %v3464 = vmul.f32 %v3461, %v3459
        %v3465 = vmul.f32 %v3461, %v3460
        %v3466 = vstv %s3397
        %v3467 = vmul.f32 %v3462, %v3466
        %v3468 = vmul.f32 %v3463, %v3466
        %v3469 = vmul.f32 %v3464, %v3466
        %v3470 = vmul.f32 %v3465, %v3466
        %v3471 = vadd.f32 %v3362, %v3467
        %v3472 = vadd.f32 %v3363, %v3468
        %v3473 = vadd.f32 %v3364, %v3469
        %v3474 = vadd.f32 %v3365, %v3470
        %v3475 = vstv %s3399
        %v3476 = vmul.f32 %v3462, %v3475
        %v3477 = vmul.f32 %v3463, %v3475
        %v3478 = vmul.f32 %v3464, %v3475
        %v3479 = vmul.f32 %v3465, %v3475
        %v3480 = vadd.f32 %v3371, %v3476
        %v3481 = vadd.f32 %v3372, %v3477
        %v3482 = vadd.f32 %v3373, %v3478
        %v3483 = vadd.f32 %v3374, %v3479
        %v3484 = vstv %s3401
        %v3485 = vmul.f32 %v3462, %v3484
        %v3486 = vmul.f32 %v3463, %v3484
        %v3487 = vmul.f32 %v3464, %v3484
        %v3488 = vmul.f32 %v3465, %v3484
        %v3489 = vadd.f32 %v3380, %v3485
        %v3490 = vadd.f32 %v3381, %v3486
        %v3491 = vadd.f32 %v3382, %v3487
        %v3492 = vadd.f32 %v3383, %v3488
        %v3493 = vadd.f32 %v3384, %v3462
        %v3494 = vadd.f32 %v3385, %v3463
        %v3495 = vadd.f32 %v3386, %v3464
        %v3496 = vadd.f32 %v3387, %v3465
        %v3497 = vrcp.pop %v3493
        %v3498 = vrcp.pop %v3494
        %v3499 = vrcp.pop %v3495
        %v3500 = vrcp.pop %v3496
        %v3501 = vmul.f32 %v3471, %v3497
        %v3502 = vmul.f32 %v3472, %v3498
        %v3503 = vmul.f32 %v3473, %v3499
        %v3504 = vmul.f32 %v3474, %v3500
        %s3505 = scalar_lea.vmem %s112, 256
        %3506 = vst [vmem:[%s3505] sm:$0xff] %v3501
        %3507 = vst [vmem:[%s3505 + $0x8] sm:$0xff] %v3502
        %3508 = vst [vmem:[%s3505 + $0x10] sm:$0xff] %v3503
        %3509 = vst [vmem:[%s3505 + $0x18] sm:$0xff] %v3504
        %v3510 = vmul.f32 %v3480, %v3497
        %v3511 = vmul.f32 %v3481, %v3498
        %v3512 = vmul.f32 %v3482, %v3499
        %v3513 = vmul.f32 %v3483, %v3500
        %s3514 = scalar_lea.vmem %s112, 288
        %3515 = vst [vmem:[%s3514] sm:$0xff] %v3510
        %3516 = vst [vmem:[%s3514 + $0x8] sm:$0xff] %v3511
        %3517 = vst [vmem:[%s3514 + $0x10] sm:$0xff] %v3512
        %3518 = vst [vmem:[%s3514 + $0x18] sm:$0xff] %v3513
        %v3519 = vmul.f32 %v3489, %v3497
        %v3520 = vmul.f32 %v3490, %v3498
        %v3521 = vmul.f32 %v3491, %v3499
        %v3522 = vmul.f32 %v3492, %v3500
        %s3523 = scalar_lea.vmem %s112, 320
        %3524 = vst [vmem:[%s3523] sm:$0xff] %v3519
        %3525 = vst [vmem:[%s3523 + $0x8] sm:$0xff] %v3520
        %3526 = vst [vmem:[%s3523 + $0x10] sm:$0xff] %v3521
        %3527 = vst [vmem:[%s3523 + $0x18] sm:$0xff] %v3522
        %s3528 = scalar_lea.vmem %s112, 352
        %3529 = vst [vmem:[%s3528] sm:$0xff] %v3493
        %3530 = vst [vmem:[%s3528 + $0x8] sm:$0xff] %v3494
        %3531 = vst [vmem:[%s3528 + $0x10] sm:$0xff] %v3495
        %3532 = vst [vmem:[%s3528 + $0x18] sm:$0xff] %v3496
        %s3533 = sadd.s32 %s153, 3
        %s3534 = smul.u32 %s3533, 128
        %s3535 = sld [smem:[#allocation2 + %s3534]]
        %s3536 = sadd.s32 %s3534, 1
        %s3537 = sld [smem:[#allocation2 + %s3536]]
        %s3538 = sadd.s32 %s3534, 2
        %s3539 = sld [smem:[#allocation2 + %s3538]]
        %s3540 = sadd.s32 %s3534, 3
        %s3541 = sld [smem:[#allocation2 + %s3540]]
        %s3542 = sadd.s32 %s3534, 4
        %s3543 = sld [smem:[#allocation2 + %s3542]]
        %s3544 = sadd.s32 %s3534, 5
        %s3545 = sld [smem:[#allocation2 + %s3544]]
        %s3546 = sadd.s32 %s3534, 6
        %s3547 = sld [smem:[#allocation2 + %s3546]]
        %v3548 = vstv %s3535
        %v3549 = vsub.f32 %v149, %v3548
        %v3550 = vsub.f32 %v150, %v3548
        %v3551 = vsub.f32 %v151, %v3548
        %v3552 = vsub.f32 %v152, %v3548
        %v3553 = vstv %s3537
        %v3554 = vsub.f32 %v137, %v3553
        %v3555 = vsub.f32 %v138, %v3553
        %v3556 = vsub.f32 %v139, %v3553
        %v3557 = vsub.f32 %v140, %v3553
        %v3558 = vmul.f32 %v3549, %v3549
        %v3559 = vmul.f32 %v3550, %v3550
        %v3560 = vmul.f32 %v3551, %v3551
        %v3561 = vmul.f32 %v3552, %v3552
        %v3562 = vmul.f32 %v3554, %v3554
        %v3563 = vmul.f32 %v3555, %v3555
        %v3564 = vmul.f32 %v3556, %v3556
        %v3565 = vmul.f32 %v3557, %v3557
        %v3566 = vadd.f32 %v3558, %v3562
        %v3567 = vadd.f32 %v3559, %v3563
        %v3568 = vadd.f32 %v3560, %v3564
        %v3569 = vadd.f32 %v3561, %v3565
        %v3570 = vstv %s3539
        %v3571 = vsub.f32 %v3570, %v3566
        %v3572 = vsub.f32 %v3570, %v3567
        %v3573 = vsub.f32 %v3570, %v3568
        %v3574 = vsub.f32 %v3570, %v3569
        %v3575 = vmul.f32 %v3571, 0.16666667
        %v3576 = vmul.f32 %v3572, 0.16666667
        %v3577 = vmul.f32 %v3573, 0.16666667
        %v3578 = vmul.f32 %v3574, 0.16666667
        %v3579 = vadd.f32 %v3575, 0.5
        %v3580 = vadd.f32 %v3576, 0.5
        %v3581 = vadd.f32 %v3577, 0.5
        %v3582 = vadd.f32 %v3578, 0.5
        %v3583 = vmax.f32 %v3579, 0.0
        %v3584 = vmax.f32 %v3580, 0.0
        %v3585 = vmax.f32 %v3581, 0.0
        %v3586 = vmax.f32 %v3582, 0.0
        %v3587 = vmin.f32 %v3583, 1.0
        %v3588 = vmin.f32 %v3584, 1.0
        %v3589 = vmin.f32 %v3585, 1.0
        %v3590 = vmin.f32 %v3586, 1.0
        %v3591 = vmul.f32 %v3587, %v3587
        %v3592 = vmul.f32 %v3588, %v3588
        %v3593 = vmul.f32 %v3589, %v3589
        %v3594 = vmul.f32 %v3590, %v3590
        %v3595 = vmul.f32 %v3587, 2.0
        %v3596 = vmul.f32 %v3588, 2.0
        %v3597 = vmul.f32 %v3589, 2.0
        %v3598 = vmul.f32 %v3590, 2.0
        %v3599 = vsub.f32 3.0, %v3595
        %v3600 = vsub.f32 3.0, %v3596
        %v3601 = vsub.f32 3.0, %v3597
        %v3602 = vsub.f32 3.0, %v3598
        %v3603 = vmul.f32 %v3591, %v3599
        %v3604 = vmul.f32 %v3592, %v3600
        %v3605 = vmul.f32 %v3593, %v3601
        %v3606 = vmul.f32 %v3594, %v3602
        %v3607 = vstv %s3541
        %v3608 = vmul.f32 %v3607, %v3603
        %v3609 = vmul.f32 %v3607, %v3604
        %v3610 = vmul.f32 %v3607, %v3605
        %v3611 = vmul.f32 %v3607, %v3606
        %v3612 = vstv %s3543
        %v3613 = vmul.f32 %v3608, %v3612
        %v3614 = vmul.f32 %v3609, %v3612
        %v3615 = vmul.f32 %v3610, %v3612
        %v3616 = vmul.f32 %v3611, %v3612
        %v3617 = vadd.f32 %v3613, 0.0
        %v3618 = vadd.f32 %v3614, 0.0
        %v3619 = vadd.f32 %v3615, 0.0
        %v3620 = vadd.f32 %v3616, 0.0
        %v3621 = vstv %s3545
        %v3622 = vmul.f32 %v3608, %v3621
        %v3623 = vmul.f32 %v3609, %v3621
        %v3624 = vmul.f32 %v3610, %v3621
        %v3625 = vmul.f32 %v3611, %v3621
        %v3626 = vadd.f32 %v3622, 0.0
        %v3627 = vadd.f32 %v3623, 0.0
        %v3628 = vadd.f32 %v3624, 0.0
        %v3629 = vadd.f32 %v3625, 0.0
        %v3630 = vstv %s3547
        %v3631 = vmul.f32 %v3608, %v3630
        %v3632 = vmul.f32 %v3609, %v3630
        %v3633 = vmul.f32 %v3610, %v3630
        %v3634 = vmul.f32 %v3611, %v3630
        %v3635 = vadd.f32 %v3631, 0.0
        %v3636 = vadd.f32 %v3632, 0.0
        %v3637 = vadd.f32 %v3633, 0.0
        %v3638 = vadd.f32 %v3634, 0.0
        %v3639 = vadd.f32 %v3608, 1e-05
        %v3640 = vadd.f32 %v3609, 1e-05
        %v3641 = vadd.f32 %v3610, 1e-05
        %v3642 = vadd.f32 %v3611, 1e-05
        %s3643 = sadd.s32 %s3534, 8
        %s3644 = sld [smem:[#allocation2 + %s3643]]
        %s3645 = sadd.s32 %s3534, 9
        %s3646 = sld [smem:[#allocation2 + %s3645]]
        %s3647 = sadd.s32 %s3534, 10
        %s3648 = sld [smem:[#allocation2 + %s3647]]
        %s3649 = sadd.s32 %s3534, 11
        %s3650 = sld [smem:[#allocation2 + %s3649]]
        %s3651 = sadd.s32 %s3534, 12
        %s3652 = sld [smem:[#allocation2 + %s3651]]
        %s3653 = sadd.s32 %s3534, 13
        %s3654 = sld [smem:[#allocation2 + %s3653]]
        %s3655 = sadd.s32 %s3534, 14
        %s3656 = sld [smem:[#allocation2 + %s3655]]
        %v3657 = vstv %s3644
        %v3658 = vsub.f32 %v149, %v3657
        %v3659 = vsub.f32 %v150, %v3657
        %v3660 = vsub.f32 %v151, %v3657
        %v3661 = vsub.f32 %v152, %v3657
        %v3662 = vstv %s3646
        %v3663 = vsub.f32 %v137, %v3662
        %v3664 = vsub.f32 %v138, %v3662
        %v3665 = vsub.f32 %v139, %v3662
        %v3666 = vsub.f32 %v140, %v3662
        %v3667 = vmul.f32 %v3658, %v3658
        %v3668 = vmul.f32 %v3659, %v3659
        %v3669 = vmul.f32 %v3660, %v3660
        %v3670 = vmul.f32 %v3661, %v3661
        %v3671 = vmul.f32 %v3663, %v3663
        %v3672 = vmul.f32 %v3664, %v3664
        %v3673 = vmul.f32 %v3665, %v3665
        %v3674 = vmul.f32 %v3666, %v3666
        %v3675 = vadd.f32 %v3667, %v3671
        %v3676 = vadd.f32 %v3668, %v3672
        %v3677 = vadd.f32 %v3669, %v3673
        %v3678 = vadd.f32 %v3670, %v3674
        %v3679 = vstv %s3648
        %v3680 = vsub.f32 %v3679, %v3675
        %v3681 = vsub.f32 %v3679, %v3676
        %v3682 = vsub.f32 %v3679, %v3677
        %v3683 = vsub.f32 %v3679, %v3678
        %v3684 = vmul.f32 %v3680, 0.16666667
        %v3685 = vmul.f32 %v3681, 0.16666667
        %v3686 = vmul.f32 %v3682, 0.16666667
        %v3687 = vmul.f32 %v3683, 0.16666667
        %v3688 = vadd.f32 %v3684, 0.5
        %v3689 = vadd.f32 %v3685, 0.5
        %v3690 = vadd.f32 %v3686, 0.5
        %v3691 = vadd.f32 %v3687, 0.5
        %v3692 = vmax.f32 %v3688, 0.0
        %v3693 = vmax.f32 %v3689, 0.0
        %v3694 = vmax.f32 %v3690, 0.0
        %v3695 = vmax.f32 %v3691, 0.0
        %v3696 = vmin.f32 %v3692, 1.0
        %v3697 = vmin.f32 %v3693, 1.0
        %v3698 = vmin.f32 %v3694, 1.0
        %v3699 = vmin.f32 %v3695, 1.0
        %v3700 = vmul.f32 %v3696, %v3696
        %v3701 = vmul.f32 %v3697, %v3697
        %v3702 = vmul.f32 %v3698, %v3698
        %v3703 = vmul.f32 %v3699, %v3699
        %v3704 = vmul.f32 %v3696, 2.0
        %v3705 = vmul.f32 %v3697, 2.0
        %v3706 = vmul.f32 %v3698, 2.0
        %v3707 = vmul.f32 %v3699, 2.0
        %v3708 = vsub.f32 3.0, %v3704
        %v3709 = vsub.f32 3.0, %v3705
        %v3710 = vsub.f32 3.0, %v3706
        %v3711 = vsub.f32 3.0, %v3707
        %v3712 = vmul.f32 %v3700, %v3708
        %v3713 = vmul.f32 %v3701, %v3709
        %v3714 = vmul.f32 %v3702, %v3710
        %v3715 = vmul.f32 %v3703, %v3711
        %v3716 = vstv %s3650
        %v3717 = vmul.f32 %v3716, %v3712
        %v3718 = vmul.f32 %v3716, %v3713
        %v3719 = vmul.f32 %v3716, %v3714
        %v3720 = vmul.f32 %v3716, %v3715
        %v3721 = vstv %s3652
        %v3722 = vmul.f32 %v3717, %v3721
        %v3723 = vmul.f32 %v3718, %v3721
        %v3724 = vmul.f32 %v3719, %v3721
        %v3725 = vmul.f32 %v3720, %v3721
        %v3726 = vadd.f32 %v3617, %v3722
        %v3727 = vadd.f32 %v3618, %v3723
        %v3728 = vadd.f32 %v3619, %v3724
        %v3729 = vadd.f32 %v3620, %v3725
        %v3730 = vstv %s3654
        %v3731 = vmul.f32 %v3717, %v3730
        %v3732 = vmul.f32 %v3718, %v3730
        %v3733 = vmul.f32 %v3719, %v3730
        %v3734 = vmul.f32 %v3720, %v3730
        %v3735 = vadd.f32 %v3626, %v3731
        %v3736 = vadd.f32 %v3627, %v3732
        %v3737 = vadd.f32 %v3628, %v3733
        %v3738 = vadd.f32 %v3629, %v3734
        %v3739 = vstv %s3656
        %v3740 = vmul.f32 %v3717, %v3739
        %v3741 = vmul.f32 %v3718, %v3739
        %v3742 = vmul.f32 %v3719, %v3739
        %v3743 = vmul.f32 %v3720, %v3739
        %v3744 = vadd.f32 %v3635, %v3740
        %v3745 = vadd.f32 %v3636, %v3741
        %v3746 = vadd.f32 %v3637, %v3742
        %v3747 = vadd.f32 %v3638, %v3743
        %v3748 = vadd.f32 %v3639, %v3717
        %v3749 = vadd.f32 %v3640, %v3718
        %v3750 = vadd.f32 %v3641, %v3719
        %v3751 = vadd.f32 %v3642, %v3720
        %s3752 = sadd.s32 %s3534, 16
        %s3753 = sld [smem:[#allocation2 + %s3752]]
        %s3754 = sadd.s32 %s3534, 17
        %s3755 = sld [smem:[#allocation2 + %s3754]]
        %s3756 = sadd.s32 %s3534, 18
        %s3757 = sld [smem:[#allocation2 + %s3756]]
        %s3758 = sadd.s32 %s3534, 19
        %s3759 = sld [smem:[#allocation2 + %s3758]]
        %s3760 = sadd.s32 %s3534, 20
        %s3761 = sld [smem:[#allocation2 + %s3760]]
        %s3762 = sadd.s32 %s3534, 21
        %s3763 = sld [smem:[#allocation2 + %s3762]]
        %s3764 = sadd.s32 %s3534, 22
        %s3765 = sld [smem:[#allocation2 + %s3764]]
        %v3766 = vstv %s3753
        %v3767 = vsub.f32 %v149, %v3766
        %v3768 = vsub.f32 %v150, %v3766
        %v3769 = vsub.f32 %v151, %v3766
        %v3770 = vsub.f32 %v152, %v3766
        %v3771 = vstv %s3755
        %v3772 = vsub.f32 %v137, %v3771
        %v3773 = vsub.f32 %v138, %v3771
        %v3774 = vsub.f32 %v139, %v3771
        %v3775 = vsub.f32 %v140, %v3771
        %v3776 = vmul.f32 %v3767, %v3767
        %v3777 = vmul.f32 %v3768, %v3768
        %v3778 = vmul.f32 %v3769, %v3769
        %v3779 = vmul.f32 %v3770, %v3770
        %v3780 = vmul.f32 %v3772, %v3772
        %v3781 = vmul.f32 %v3773, %v3773
        %v3782 = vmul.f32 %v3774, %v3774
        %v3783 = vmul.f32 %v3775, %v3775
        %v3784 = vadd.f32 %v3776, %v3780
        %v3785 = vadd.f32 %v3777, %v3781
        %v3786 = vadd.f32 %v3778, %v3782
        %v3787 = vadd.f32 %v3779, %v3783
        %v3788 = vstv %s3757
        %v3789 = vsub.f32 %v3788, %v3784
        %v3790 = vsub.f32 %v3788, %v3785
        %v3791 = vsub.f32 %v3788, %v3786
        %v3792 = vsub.f32 %v3788, %v3787
        %v3793 = vmul.f32 %v3789, 0.16666667
        %v3794 = vmul.f32 %v3790, 0.16666667
        %v3795 = vmul.f32 %v3791, 0.16666667
        %v3796 = vmul.f32 %v3792, 0.16666667
        %v3797 = vadd.f32 %v3793, 0.5
        %v3798 = vadd.f32 %v3794, 0.5
        %v3799 = vadd.f32 %v3795, 0.5
        %v3800 = vadd.f32 %v3796, 0.5
        %v3801 = vmax.f32 %v3797, 0.0
        %v3802 = vmax.f32 %v3798, 0.0
        %v3803 = vmax.f32 %v3799, 0.0
        %v3804 = vmax.f32 %v3800, 0.0
        %v3805 = vmin.f32 %v3801, 1.0
        %v3806 = vmin.f32 %v3802, 1.0
        %v3807 = vmin.f32 %v3803, 1.0
        %v3808 = vmin.f32 %v3804, 1.0
        %v3809 = vmul.f32 %v3805, %v3805
        %v3810 = vmul.f32 %v3806, %v3806
        %v3811 = vmul.f32 %v3807, %v3807
        %v3812 = vmul.f32 %v3808, %v3808
        %v3813 = vmul.f32 %v3805, 2.0
        %v3814 = vmul.f32 %v3806, 2.0
        %v3815 = vmul.f32 %v3807, 2.0
        %v3816 = vmul.f32 %v3808, 2.0
        %v3817 = vsub.f32 3.0, %v3813
        %v3818 = vsub.f32 3.0, %v3814
        %v3819 = vsub.f32 3.0, %v3815
        %v3820 = vsub.f32 3.0, %v3816
        %v3821 = vmul.f32 %v3809, %v3817
        %v3822 = vmul.f32 %v3810, %v3818
        %v3823 = vmul.f32 %v3811, %v3819
        %v3824 = vmul.f32 %v3812, %v3820
        %v3825 = vstv %s3759
        %v3826 = vmul.f32 %v3825, %v3821
        %v3827 = vmul.f32 %v3825, %v3822
        %v3828 = vmul.f32 %v3825, %v3823
        %v3829 = vmul.f32 %v3825, %v3824
        %v3830 = vstv %s3761
        %v3831 = vmul.f32 %v3826, %v3830
        %v3832 = vmul.f32 %v3827, %v3830
        %v3833 = vmul.f32 %v3828, %v3830
        %v3834 = vmul.f32 %v3829, %v3830
        %v3835 = vadd.f32 %v3726, %v3831
        %v3836 = vadd.f32 %v3727, %v3832
        %v3837 = vadd.f32 %v3728, %v3833
        %v3838 = vadd.f32 %v3729, %v3834
        %v3839 = vstv %s3763
        %v3840 = vmul.f32 %v3826, %v3839
        %v3841 = vmul.f32 %v3827, %v3839
        %v3842 = vmul.f32 %v3828, %v3839
        %v3843 = vmul.f32 %v3829, %v3839
        %v3844 = vadd.f32 %v3735, %v3840
        %v3845 = vadd.f32 %v3736, %v3841
        %v3846 = vadd.f32 %v3737, %v3842
        %v3847 = vadd.f32 %v3738, %v3843
        %v3848 = vstv %s3765
        %v3849 = vmul.f32 %v3826, %v3848
        %v3850 = vmul.f32 %v3827, %v3848
        %v3851 = vmul.f32 %v3828, %v3848
        %v3852 = vmul.f32 %v3829, %v3848
        %v3853 = vadd.f32 %v3744, %v3849
        %v3854 = vadd.f32 %v3745, %v3850
        %v3855 = vadd.f32 %v3746, %v3851
        %v3856 = vadd.f32 %v3747, %v3852
        %v3857 = vadd.f32 %v3748, %v3826
        %v3858 = vadd.f32 %v3749, %v3827
        %v3859 = vadd.f32 %v3750, %v3828
        %v3860 = vadd.f32 %v3751, %v3829
        %s3861 = sadd.s32 %s3534, 24
        %s3862 = sld [smem:[#allocation2 + %s3861]]
        %s3863 = sadd.s32 %s3534, 25
        %s3864 = sld [smem:[#allocation2 + %s3863]]
        %s3865 = sadd.s32 %s3534, 26
        %s3866 = sld [smem:[#allocation2 + %s3865]]
        %s3867 = sadd.s32 %s3534, 27
        %s3868 = sld [smem:[#allocation2 + %s3867]]
        %s3869 = sadd.s32 %s3534, 28
        %s3870 = sld [smem:[#allocation2 + %s3869]]
        %s3871 = sadd.s32 %s3534, 29
        %s3872 = sld [smem:[#allocation2 + %s3871]]
        %s3873 = sadd.s32 %s3534, 30
        %s3874 = sld [smem:[#allocation2 + %s3873]]
        %v3875 = vstv %s3862
        %v3876 = vsub.f32 %v149, %v3875
        %v3877 = vsub.f32 %v150, %v3875
        %v3878 = vsub.f32 %v151, %v3875
        %v3879 = vsub.f32 %v152, %v3875
        %v3880 = vstv %s3864
        %v3881 = vsub.f32 %v137, %v3880
        %v3882 = vsub.f32 %v138, %v3880
        %v3883 = vsub.f32 %v139, %v3880
        %v3884 = vsub.f32 %v140, %v3880
        %v3885 = vmul.f32 %v3876, %v3876
        %v3886 = vmul.f32 %v3877, %v3877
        %v3887 = vmul.f32 %v3878, %v3878
        %v3888 = vmul.f32 %v3879, %v3879
        %v3889 = vmul.f32 %v3881, %v3881
        %v3890 = vmul.f32 %v3882, %v3882
        %v3891 = vmul.f32 %v3883, %v3883
        %v3892 = vmul.f32 %v3884, %v3884
        %v3893 = vadd.f32 %v3885, %v3889
        %v3894 = vadd.f32 %v3886, %v3890
        %v3895 = vadd.f32 %v3887, %v3891
        %v3896 = vadd.f32 %v3888, %v3892
        %v3897 = vstv %s3866
        %v3898 = vsub.f32 %v3897, %v3893
        %v3899 = vsub.f32 %v3897, %v3894
        %v3900 = vsub.f32 %v3897, %v3895
        %v3901 = vsub.f32 %v3897, %v3896
        %v3902 = vmul.f32 %v3898, 0.16666667
        %v3903 = vmul.f32 %v3899, 0.16666667
        %v3904 = vmul.f32 %v3900, 0.16666667
        %v3905 = vmul.f32 %v3901, 0.16666667
        %v3906 = vadd.f32 %v3902, 0.5
        %v3907 = vadd.f32 %v3903, 0.5
        %v3908 = vadd.f32 %v3904, 0.5
        %v3909 = vadd.f32 %v3905, 0.5
        %v3910 = vmax.f32 %v3906, 0.0
        %v3911 = vmax.f32 %v3907, 0.0
        %v3912 = vmax.f32 %v3908, 0.0
        %v3913 = vmax.f32 %v3909, 0.0
        %v3914 = vmin.f32 %v3910, 1.0
        %v3915 = vmin.f32 %v3911, 1.0
        %v3916 = vmin.f32 %v3912, 1.0
        %v3917 = vmin.f32 %v3913, 1.0
        %v3918 = vmul.f32 %v3914, %v3914
        %v3919 = vmul.f32 %v3915, %v3915
        %v3920 = vmul.f32 %v3916, %v3916
        %v3921 = vmul.f32 %v3917, %v3917
        %v3922 = vmul.f32 %v3914, 2.0
        %v3923 = vmul.f32 %v3915, 2.0
        %v3924 = vmul.f32 %v3916, 2.0
        %v3925 = vmul.f32 %v3917, 2.0
        %v3926 = vsub.f32 3.0, %v3922
        %v3927 = vsub.f32 3.0, %v3923
        %v3928 = vsub.f32 3.0, %v3924
        %v3929 = vsub.f32 3.0, %v3925
        %v3930 = vmul.f32 %v3918, %v3926
        %v3931 = vmul.f32 %v3919, %v3927
        %v3932 = vmul.f32 %v3920, %v3928
        %v3933 = vmul.f32 %v3921, %v3929
        %v3934 = vstv %s3868
        %v3935 = vmul.f32 %v3934, %v3930
        %v3936 = vmul.f32 %v3934, %v3931
        %v3937 = vmul.f32 %v3934, %v3932
        %v3938 = vmul.f32 %v3934, %v3933
        %v3939 = vstv %s3870
        %v3940 = vmul.f32 %v3935, %v3939
        %v3941 = vmul.f32 %v3936, %v3939
        %v3942 = vmul.f32 %v3937, %v3939
        %v3943 = vmul.f32 %v3938, %v3939
        %v3944 = vadd.f32 %v3835, %v3940
        %v3945 = vadd.f32 %v3836, %v3941
        %v3946 = vadd.f32 %v3837, %v3942
        %v3947 = vadd.f32 %v3838, %v3943
        %v3948 = vstv %s3872
        %v3949 = vmul.f32 %v3935, %v3948
        %v3950 = vmul.f32 %v3936, %v3948
        %v3951 = vmul.f32 %v3937, %v3948
        %v3952 = vmul.f32 %v3938, %v3948
        %v3953 = vadd.f32 %v3844, %v3949
        %v3954 = vadd.f32 %v3845, %v3950
        %v3955 = vadd.f32 %v3846, %v3951
        %v3956 = vadd.f32 %v3847, %v3952
        %v3957 = vstv %s3874
        %v3958 = vmul.f32 %v3935, %v3957
        %v3959 = vmul.f32 %v3936, %v3957
        %v3960 = vmul.f32 %v3937, %v3957
        %v3961 = vmul.f32 %v3938, %v3957
        %v3962 = vadd.f32 %v3853, %v3958
        %v3963 = vadd.f32 %v3854, %v3959
        %v3964 = vadd.f32 %v3855, %v3960
        %v3965 = vadd.f32 %v3856, %v3961
        %v3966 = vadd.f32 %v3857, %v3935
        %v3967 = vadd.f32 %v3858, %v3936
        %v3968 = vadd.f32 %v3859, %v3937
        %v3969 = vadd.f32 %v3860, %v3938
        %s3970 = sadd.s32 %s3534, 32
        %s3971 = sld [smem:[#allocation2 + %s3970]]
        %s3972 = sadd.s32 %s3534, 33
        %s3973 = sld [smem:[#allocation2 + %s3972]]
        %s3974 = sadd.s32 %s3534, 34
        %s3975 = sld [smem:[#allocation2 + %s3974]]
        %s3976 = sadd.s32 %s3534, 35
        %s3977 = sld [smem:[#allocation2 + %s3976]]
        %s3978 = sadd.s32 %s3534, 36
        %s3979 = sld [smem:[#allocation2 + %s3978]]
        %s3980 = sadd.s32 %s3534, 37
        %s3981 = sld [smem:[#allocation2 + %s3980]]
        %s3982 = sadd.s32 %s3534, 38
        %s3983 = sld [smem:[#allocation2 + %s3982]]
        %v3984 = vstv %s3971
        %v3985 = vsub.f32 %v149, %v3984
        %v3986 = vsub.f32 %v150, %v3984
        %v3987 = vsub.f32 %v151, %v3984
        %v3988 = vsub.f32 %v152, %v3984
        %v3989 = vstv %s3973
        %v3990 = vsub.f32 %v137, %v3989
        %v3991 = vsub.f32 %v138, %v3989
        %v3992 = vsub.f32 %v139, %v3989
        %v3993 = vsub.f32 %v140, %v3989
        %v3994 = vmul.f32 %v3985, %v3985
        %v3995 = vmul.f32 %v3986, %v3986
        %v3996 = vmul.f32 %v3987, %v3987
        %v3997 = vmul.f32 %v3988, %v3988
        %v3998 = vmul.f32 %v3990, %v3990
        %v3999 = vmul.f32 %v3991, %v3991
        %v4000 = vmul.f32 %v3992, %v3992
        %v4001 = vmul.f32 %v3993, %v3993
        %v4002 = vadd.f32 %v3994, %v3998
        %v4003 = vadd.f32 %v3995, %v3999
        %v4004 = vadd.f32 %v3996, %v4000
        %v4005 = vadd.f32 %v3997, %v4001
        %v4006 = vstv %s3975
        %v4007 = vsub.f32 %v4006, %v4002
        %v4008 = vsub.f32 %v4006, %v4003
        %v4009 = vsub.f32 %v4006, %v4004
        %v4010 = vsub.f32 %v4006, %v4005
        %v4011 = vmul.f32 %v4007, 0.16666667
        %v4012 = vmul.f32 %v4008, 0.16666667
        %v4013 = vmul.f32 %v4009, 0.16666667
        %v4014 = vmul.f32 %v4010, 0.16666667
        %v4015 = vadd.f32 %v4011, 0.5
        %v4016 = vadd.f32 %v4012, 0.5
        %v4017 = vadd.f32 %v4013, 0.5
        %v4018 = vadd.f32 %v4014, 0.5
        %v4019 = vmax.f32 %v4015, 0.0
        %v4020 = vmax.f32 %v4016, 0.0
        %v4021 = vmax.f32 %v4017, 0.0
        %v4022 = vmax.f32 %v4018, 0.0
        %v4023 = vmin.f32 %v4019, 1.0
        %v4024 = vmin.f32 %v4020, 1.0
        %v4025 = vmin.f32 %v4021, 1.0
        %v4026 = vmin.f32 %v4022, 1.0
        %v4027 = vmul.f32 %v4023, %v4023
        %v4028 = vmul.f32 %v4024, %v4024
        %v4029 = vmul.f32 %v4025, %v4025
        %v4030 = vmul.f32 %v4026, %v4026
        %v4031 = vmul.f32 %v4023, 2.0
        %v4032 = vmul.f32 %v4024, 2.0
        %v4033 = vmul.f32 %v4025, 2.0
        %v4034 = vmul.f32 %v4026, 2.0
        %v4035 = vsub.f32 3.0, %v4031
        %v4036 = vsub.f32 3.0, %v4032
        %v4037 = vsub.f32 3.0, %v4033
        %v4038 = vsub.f32 3.0, %v4034
        %v4039 = vmul.f32 %v4027, %v4035
        %v4040 = vmul.f32 %v4028, %v4036
        %v4041 = vmul.f32 %v4029, %v4037
        %v4042 = vmul.f32 %v4030, %v4038
        %v4043 = vstv %s3977
        %v4044 = vmul.f32 %v4043, %v4039
        %v4045 = vmul.f32 %v4043, %v4040
        %v4046 = vmul.f32 %v4043, %v4041
        %v4047 = vmul.f32 %v4043, %v4042
        %v4048 = vstv %s3979
        %v4049 = vmul.f32 %v4044, %v4048
        %v4050 = vmul.f32 %v4045, %v4048
        %v4051 = vmul.f32 %v4046, %v4048
        %v4052 = vmul.f32 %v4047, %v4048
        %v4053 = vadd.f32 %v3944, %v4049
        %v4054 = vadd.f32 %v3945, %v4050
        %v4055 = vadd.f32 %v3946, %v4051
        %v4056 = vadd.f32 %v3947, %v4052
        %v4057 = vstv %s3981
        %v4058 = vmul.f32 %v4044, %v4057
        %v4059 = vmul.f32 %v4045, %v4057
        %v4060 = vmul.f32 %v4046, %v4057
        %v4061 = vmul.f32 %v4047, %v4057
        %v4062 = vadd.f32 %v3953, %v4058
        %v4063 = vadd.f32 %v3954, %v4059
        %v4064 = vadd.f32 %v3955, %v4060
        %v4065 = vadd.f32 %v3956, %v4061
        %v4066 = vstv %s3983
        %v4067 = vmul.f32 %v4044, %v4066
        %v4068 = vmul.f32 %v4045, %v4066
        %v4069 = vmul.f32 %v4046, %v4066
        %v4070 = vmul.f32 %v4047, %v4066
        %v4071 = vadd.f32 %v3962, %v4067
        %v4072 = vadd.f32 %v3963, %v4068
        %v4073 = vadd.f32 %v3964, %v4069
        %v4074 = vadd.f32 %v3965, %v4070
        %v4075 = vadd.f32 %v3966, %v4044
        %v4076 = vadd.f32 %v3967, %v4045
        %v4077 = vadd.f32 %v3968, %v4046
        %v4078 = vadd.f32 %v3969, %v4047
        %s4079 = sadd.s32 %s3534, 40
        %s4080 = sld [smem:[#allocation2 + %s4079]]
        %s4081 = sadd.s32 %s3534, 41
        %s4082 = sld [smem:[#allocation2 + %s4081]]
        %s4083 = sadd.s32 %s3534, 42
        %s4084 = sld [smem:[#allocation2 + %s4083]]
        %s4085 = sadd.s32 %s3534, 43
        %s4086 = sld [smem:[#allocation2 + %s4085]]
        %s4087 = sadd.s32 %s3534, 44
        %s4088 = sld [smem:[#allocation2 + %s4087]]
        %s4089 = sadd.s32 %s3534, 45
        %s4090 = sld [smem:[#allocation2 + %s4089]]
        %s4091 = sadd.s32 %s3534, 46
        %s4092 = sld [smem:[#allocation2 + %s4091]]
        %v4093 = vstv %s4080
        %v4094 = vsub.f32 %v149, %v4093
        %v4095 = vsub.f32 %v150, %v4093
        %v4096 = vsub.f32 %v151, %v4093
        %v4097 = vsub.f32 %v152, %v4093
        %v4098 = vstv %s4082
        %v4099 = vsub.f32 %v137, %v4098
        %v4100 = vsub.f32 %v138, %v4098
        %v4101 = vsub.f32 %v139, %v4098
        %v4102 = vsub.f32 %v140, %v4098
        %v4103 = vmul.f32 %v4094, %v4094
        %v4104 = vmul.f32 %v4095, %v4095
        %v4105 = vmul.f32 %v4096, %v4096
        %v4106 = vmul.f32 %v4097, %v4097
        %v4107 = vmul.f32 %v4099, %v4099
        %v4108 = vmul.f32 %v4100, %v4100
        %v4109 = vmul.f32 %v4101, %v4101
        %v4110 = vmul.f32 %v4102, %v4102
        %v4111 = vadd.f32 %v4103, %v4107
        %v4112 = vadd.f32 %v4104, %v4108
        %v4113 = vadd.f32 %v4105, %v4109
        %v4114 = vadd.f32 %v4106, %v4110
        %v4115 = vstv %s4084
        %v4116 = vsub.f32 %v4115, %v4111
        %v4117 = vsub.f32 %v4115, %v4112
        %v4118 = vsub.f32 %v4115, %v4113
        %v4119 = vsub.f32 %v4115, %v4114
        %v4120 = vmul.f32 %v4116, 0.16666667
        %v4121 = vmul.f32 %v4117, 0.16666667
        %v4122 = vmul.f32 %v4118, 0.16666667
        %v4123 = vmul.f32 %v4119, 0.16666667
        %v4124 = vadd.f32 %v4120, 0.5
        %v4125 = vadd.f32 %v4121, 0.5
        %v4126 = vadd.f32 %v4122, 0.5
        %v4127 = vadd.f32 %v4123, 0.5
        %v4128 = vmax.f32 %v4124, 0.0
        %v4129 = vmax.f32 %v4125, 0.0
        %v4130 = vmax.f32 %v4126, 0.0
        %v4131 = vmax.f32 %v4127, 0.0
        %v4132 = vmin.f32 %v4128, 1.0
        %v4133 = vmin.f32 %v4129, 1.0
        %v4134 = vmin.f32 %v4130, 1.0
        %v4135 = vmin.f32 %v4131, 1.0
        %v4136 = vmul.f32 %v4132, %v4132
        %v4137 = vmul.f32 %v4133, %v4133
        %v4138 = vmul.f32 %v4134, %v4134
        %v4139 = vmul.f32 %v4135, %v4135
        %v4140 = vmul.f32 %v4132, 2.0
        %v4141 = vmul.f32 %v4133, 2.0
        %v4142 = vmul.f32 %v4134, 2.0
        %v4143 = vmul.f32 %v4135, 2.0
        %v4144 = vsub.f32 3.0, %v4140
        %v4145 = vsub.f32 3.0, %v4141
        %v4146 = vsub.f32 3.0, %v4142
        %v4147 = vsub.f32 3.0, %v4143
        %v4148 = vmul.f32 %v4136, %v4144
        %v4149 = vmul.f32 %v4137, %v4145
        %v4150 = vmul.f32 %v4138, %v4146
        %v4151 = vmul.f32 %v4139, %v4147
        %v4152 = vstv %s4086
        %v4153 = vmul.f32 %v4152, %v4148
        %v4154 = vmul.f32 %v4152, %v4149
        %v4155 = vmul.f32 %v4152, %v4150
        %v4156 = vmul.f32 %v4152, %v4151
        %v4157 = vstv %s4088
        %v4158 = vmul.f32 %v4153, %v4157
        %v4159 = vmul.f32 %v4154, %v4157
        %v4160 = vmul.f32 %v4155, %v4157
        %v4161 = vmul.f32 %v4156, %v4157
        %v4162 = vadd.f32 %v4053, %v4158
        %v4163 = vadd.f32 %v4054, %v4159
        %v4164 = vadd.f32 %v4055, %v4160
        %v4165 = vadd.f32 %v4056, %v4161
        %v4166 = vstv %s4090
        %v4167 = vmul.f32 %v4153, %v4166
        %v4168 = vmul.f32 %v4154, %v4166
        %v4169 = vmul.f32 %v4155, %v4166
        %v4170 = vmul.f32 %v4156, %v4166
        %v4171 = vadd.f32 %v4062, %v4167
        %v4172 = vadd.f32 %v4063, %v4168
        %v4173 = vadd.f32 %v4064, %v4169
        %v4174 = vadd.f32 %v4065, %v4170
        %v4175 = vstv %s4092
        %v4176 = vmul.f32 %v4153, %v4175
        %v4177 = vmul.f32 %v4154, %v4175
        %v4178 = vmul.f32 %v4155, %v4175
        %v4179 = vmul.f32 %v4156, %v4175
        %v4180 = vadd.f32 %v4071, %v4176
        %v4181 = vadd.f32 %v4072, %v4177
        %v4182 = vadd.f32 %v4073, %v4178
        %v4183 = vadd.f32 %v4074, %v4179
        %v4184 = vadd.f32 %v4075, %v4153
        %v4185 = vadd.f32 %v4076, %v4154
        %v4186 = vadd.f32 %v4077, %v4155
        %v4187 = vadd.f32 %v4078, %v4156
        %s4188 = sadd.s32 %s3534, 48
        %s4189 = sld [smem:[#allocation2 + %s4188]]
        %s4190 = sadd.s32 %s3534, 49
        %s4191 = sld [smem:[#allocation2 + %s4190]]
        %s4192 = sadd.s32 %s3534, 50
        %s4193 = sld [smem:[#allocation2 + %s4192]]
        %s4194 = sadd.s32 %s3534, 51
        %s4195 = sld [smem:[#allocation2 + %s4194]]
        %s4196 = sadd.s32 %s3534, 52
        %s4197 = sld [smem:[#allocation2 + %s4196]]
        %s4198 = sadd.s32 %s3534, 53
        %s4199 = sld [smem:[#allocation2 + %s4198]]
        %s4200 = sadd.s32 %s3534, 54
        %s4201 = sld [smem:[#allocation2 + %s4200]]
        %v4202 = vstv %s4189
        %v4203 = vsub.f32 %v149, %v4202
        %v4204 = vsub.f32 %v150, %v4202
        %v4205 = vsub.f32 %v151, %v4202
        %v4206 = vsub.f32 %v152, %v4202
        %v4207 = vstv %s4191
        %v4208 = vsub.f32 %v137, %v4207
        %v4209 = vsub.f32 %v138, %v4207
        %v4210 = vsub.f32 %v139, %v4207
        %v4211 = vsub.f32 %v140, %v4207
        %v4212 = vmul.f32 %v4203, %v4203
        %v4213 = vmul.f32 %v4204, %v4204
        %v4214 = vmul.f32 %v4205, %v4205
        %v4215 = vmul.f32 %v4206, %v4206
        %v4216 = vmul.f32 %v4208, %v4208
        %v4217 = vmul.f32 %v4209, %v4209
        %v4218 = vmul.f32 %v4210, %v4210
        %v4219 = vmul.f32 %v4211, %v4211
        %v4220 = vadd.f32 %v4212, %v4216
        %v4221 = vadd.f32 %v4213, %v4217
        %v4222 = vadd.f32 %v4214, %v4218
        %v4223 = vadd.f32 %v4215, %v4219
        %v4224 = vstv %s4193
        %v4225 = vsub.f32 %v4224, %v4220
        %v4226 = vsub.f32 %v4224, %v4221
        %v4227 = vsub.f32 %v4224, %v4222
        %v4228 = vsub.f32 %v4224, %v4223
        %v4229 = vmul.f32 %v4225, 0.16666667
        %v4230 = vmul.f32 %v4226, 0.16666667
        %v4231 = vmul.f32 %v4227, 0.16666667
        %v4232 = vmul.f32 %v4228, 0.16666667
        %v4233 = vadd.f32 %v4229, 0.5
        %v4234 = vadd.f32 %v4230, 0.5
        %v4235 = vadd.f32 %v4231, 0.5
        %v4236 = vadd.f32 %v4232, 0.5
        %v4237 = vmax.f32 %v4233, 0.0
        %v4238 = vmax.f32 %v4234, 0.0
        %v4239 = vmax.f32 %v4235, 0.0
        %v4240 = vmax.f32 %v4236, 0.0
        %v4241 = vmin.f32 %v4237, 1.0
        %v4242 = vmin.f32 %v4238, 1.0
        %v4243 = vmin.f32 %v4239, 1.0
        %v4244 = vmin.f32 %v4240, 1.0
        %v4245 = vmul.f32 %v4241, %v4241
        %v4246 = vmul.f32 %v4242, %v4242
        %v4247 = vmul.f32 %v4243, %v4243
        %v4248 = vmul.f32 %v4244, %v4244
        %v4249 = vmul.f32 %v4241, 2.0
        %v4250 = vmul.f32 %v4242, 2.0
        %v4251 = vmul.f32 %v4243, 2.0
        %v4252 = vmul.f32 %v4244, 2.0
        %v4253 = vsub.f32 3.0, %v4249
        %v4254 = vsub.f32 3.0, %v4250
        %v4255 = vsub.f32 3.0, %v4251
        %v4256 = vsub.f32 3.0, %v4252
        %v4257 = vmul.f32 %v4245, %v4253
        %v4258 = vmul.f32 %v4246, %v4254
        %v4259 = vmul.f32 %v4247, %v4255
        %v4260 = vmul.f32 %v4248, %v4256
        %v4261 = vstv %s4195
        %v4262 = vmul.f32 %v4261, %v4257
        %v4263 = vmul.f32 %v4261, %v4258
        %v4264 = vmul.f32 %v4261, %v4259
        %v4265 = vmul.f32 %v4261, %v4260
        %v4266 = vstv %s4197
        %v4267 = vmul.f32 %v4262, %v4266
        %v4268 = vmul.f32 %v4263, %v4266
        %v4269 = vmul.f32 %v4264, %v4266
        %v4270 = vmul.f32 %v4265, %v4266
        %v4271 = vadd.f32 %v4162, %v4267
        %v4272 = vadd.f32 %v4163, %v4268
        %v4273 = vadd.f32 %v4164, %v4269
        %v4274 = vadd.f32 %v4165, %v4270
        %v4275 = vstv %s4199
        %v4276 = vmul.f32 %v4262, %v4275
        %v4277 = vmul.f32 %v4263, %v4275
        %v4278 = vmul.f32 %v4264, %v4275
        %v4279 = vmul.f32 %v4265, %v4275
        %v4280 = vadd.f32 %v4171, %v4276
        %v4281 = vadd.f32 %v4172, %v4277
        %v4282 = vadd.f32 %v4173, %v4278
        %v4283 = vadd.f32 %v4174, %v4279
        %v4284 = vstv %s4201
        %v4285 = vmul.f32 %v4262, %v4284
        %v4286 = vmul.f32 %v4263, %v4284
        %v4287 = vmul.f32 %v4264, %v4284
        %v4288 = vmul.f32 %v4265, %v4284
        %v4289 = vadd.f32 %v4180, %v4285
        %v4290 = vadd.f32 %v4181, %v4286
        %v4291 = vadd.f32 %v4182, %v4287
        %v4292 = vadd.f32 %v4183, %v4288
        %v4293 = vadd.f32 %v4184, %v4262
        %v4294 = vadd.f32 %v4185, %v4263
        %v4295 = vadd.f32 %v4186, %v4264
        %v4296 = vadd.f32 %v4187, %v4265
        %s4297 = sadd.s32 %s3534, 56
        %s4298 = sld [smem:[#allocation2 + %s4297]]
        %s4299 = sadd.s32 %s3534, 57
        %s4300 = sld [smem:[#allocation2 + %s4299]]
        %s4301 = sadd.s32 %s3534, 58
        %s4302 = sld [smem:[#allocation2 + %s4301]]
        %s4303 = sadd.s32 %s3534, 59
        %s4304 = sld [smem:[#allocation2 + %s4303]]
        %s4305 = sadd.s32 %s3534, 60
        %s4306 = sld [smem:[#allocation2 + %s4305]]
        %s4307 = sadd.s32 %s3534, 61
        %s4308 = sld [smem:[#allocation2 + %s4307]]
        %s4309 = sadd.s32 %s3534, 62
        %s4310 = sld [smem:[#allocation2 + %s4309]]
        %v4311 = vstv %s4298
        %v4312 = vsub.f32 %v149, %v4311
        %v4313 = vsub.f32 %v150, %v4311
        %v4314 = vsub.f32 %v151, %v4311
        %v4315 = vsub.f32 %v152, %v4311
        %v4316 = vstv %s4300
        %v4317 = vsub.f32 %v137, %v4316
        %v4318 = vsub.f32 %v138, %v4316
        %v4319 = vsub.f32 %v139, %v4316
        %v4320 = vsub.f32 %v140, %v4316
        %v4321 = vmul.f32 %v4312, %v4312
        %v4322 = vmul.f32 %v4313, %v4313
        %v4323 = vmul.f32 %v4314, %v4314
        %v4324 = vmul.f32 %v4315, %v4315
        %v4325 = vmul.f32 %v4317, %v4317
        %v4326 = vmul.f32 %v4318, %v4318
        %v4327 = vmul.f32 %v4319, %v4319
        %v4328 = vmul.f32 %v4320, %v4320
        %v4329 = vadd.f32 %v4321, %v4325
        %v4330 = vadd.f32 %v4322, %v4326
        %v4331 = vadd.f32 %v4323, %v4327
        %v4332 = vadd.f32 %v4324, %v4328
        %v4333 = vstv %s4302
        %v4334 = vsub.f32 %v4333, %v4329
        %v4335 = vsub.f32 %v4333, %v4330
        %v4336 = vsub.f32 %v4333, %v4331
        %v4337 = vsub.f32 %v4333, %v4332
        %v4338 = vmul.f32 %v4334, 0.16666667
        %v4339 = vmul.f32 %v4335, 0.16666667
        %v4340 = vmul.f32 %v4336, 0.16666667
        %v4341 = vmul.f32 %v4337, 0.16666667
        %v4342 = vadd.f32 %v4338, 0.5
        %v4343 = vadd.f32 %v4339, 0.5
        %v4344 = vadd.f32 %v4340, 0.5
        %v4345 = vadd.f32 %v4341, 0.5
        %v4346 = vmax.f32 %v4342, 0.0
        %v4347 = vmax.f32 %v4343, 0.0
        %v4348 = vmax.f32 %v4344, 0.0
        %v4349 = vmax.f32 %v4345, 0.0
        %v4350 = vmin.f32 %v4346, 1.0
        %v4351 = vmin.f32 %v4347, 1.0
        %v4352 = vmin.f32 %v4348, 1.0
        %v4353 = vmin.f32 %v4349, 1.0
        %v4354 = vmul.f32 %v4350, %v4350
        %v4355 = vmul.f32 %v4351, %v4351
        %v4356 = vmul.f32 %v4352, %v4352
        %v4357 = vmul.f32 %v4353, %v4353
        %v4358 = vmul.f32 %v4350, 2.0
        %v4359 = vmul.f32 %v4351, 2.0
        %v4360 = vmul.f32 %v4352, 2.0
        %v4361 = vmul.f32 %v4353, 2.0
        %v4362 = vsub.f32 3.0, %v4358
        %v4363 = vsub.f32 3.0, %v4359
        %v4364 = vsub.f32 3.0, %v4360
        %v4365 = vsub.f32 3.0, %v4361
        %v4366 = vmul.f32 %v4354, %v4362
        %v4367 = vmul.f32 %v4355, %v4363
        %v4368 = vmul.f32 %v4356, %v4364
        %v4369 = vmul.f32 %v4357, %v4365
        %v4370 = vstv %s4304
        %v4371 = vmul.f32 %v4370, %v4366
        %v4372 = vmul.f32 %v4370, %v4367
        %v4373 = vmul.f32 %v4370, %v4368
        %v4374 = vmul.f32 %v4370, %v4369
        %v4375 = vstv %s4306
        %v4376 = vmul.f32 %v4371, %v4375
        %v4377 = vmul.f32 %v4372, %v4375
        %v4378 = vmul.f32 %v4373, %v4375
        %v4379 = vmul.f32 %v4374, %v4375
        %v4380 = vadd.f32 %v4271, %v4376
        %v4381 = vadd.f32 %v4272, %v4377
        %v4382 = vadd.f32 %v4273, %v4378
        %v4383 = vadd.f32 %v4274, %v4379
        %v4384 = vstv %s4308
        %v4385 = vmul.f32 %v4371, %v4384
        %v4386 = vmul.f32 %v4372, %v4384
        %v4387 = vmul.f32 %v4373, %v4384
        %v4388 = vmul.f32 %v4374, %v4384
        %v4389 = vadd.f32 %v4280, %v4385
        %v4390 = vadd.f32 %v4281, %v4386
        %v4391 = vadd.f32 %v4282, %v4387
        %v4392 = vadd.f32 %v4283, %v4388
        %v4393 = vstv %s4310
        %v4394 = vmul.f32 %v4371, %v4393
        %v4395 = vmul.f32 %v4372, %v4393
        %v4396 = vmul.f32 %v4373, %v4393
        %v4397 = vmul.f32 %v4374, %v4393
        %v4398 = vadd.f32 %v4289, %v4394
        %v4399 = vadd.f32 %v4290, %v4395
        %v4400 = vadd.f32 %v4291, %v4396
        %v4401 = vadd.f32 %v4292, %v4397
        %v4402 = vadd.f32 %v4293, %v4371
        %v4403 = vadd.f32 %v4294, %v4372
        %v4404 = vadd.f32 %v4295, %v4373
        %v4405 = vadd.f32 %v4296, %v4374
        %s4406 = sadd.s32 %s3534, 64
        %s4407 = sld [smem:[#allocation2 + %s4406]]
        %s4408 = sadd.s32 %s3534, 65
        %s4409 = sld [smem:[#allocation2 + %s4408]]
        %s4410 = sadd.s32 %s3534, 66
        %s4411 = sld [smem:[#allocation2 + %s4410]]
        %s4412 = sadd.s32 %s3534, 67
        %s4413 = sld [smem:[#allocation2 + %s4412]]
        %s4414 = sadd.s32 %s3534, 68
        %s4415 = sld [smem:[#allocation2 + %s4414]]
        %s4416 = sadd.s32 %s3534, 69
        %s4417 = sld [smem:[#allocation2 + %s4416]]
        %s4418 = sadd.s32 %s3534, 70
        %s4419 = sld [smem:[#allocation2 + %s4418]]
        %v4420 = vstv %s4407
        %v4421 = vsub.f32 %v149, %v4420
        %v4422 = vsub.f32 %v150, %v4420
        %v4423 = vsub.f32 %v151, %v4420
        %v4424 = vsub.f32 %v152, %v4420
        %v4425 = vstv %s4409
        %v4426 = vsub.f32 %v137, %v4425
        %v4427 = vsub.f32 %v138, %v4425
        %v4428 = vsub.f32 %v139, %v4425
        %v4429 = vsub.f32 %v140, %v4425
        %v4430 = vmul.f32 %v4421, %v4421
        %v4431 = vmul.f32 %v4422, %v4422
        %v4432 = vmul.f32 %v4423, %v4423
        %v4433 = vmul.f32 %v4424, %v4424
        %v4434 = vmul.f32 %v4426, %v4426
        %v4435 = vmul.f32 %v4427, %v4427
        %v4436 = vmul.f32 %v4428, %v4428
        %v4437 = vmul.f32 %v4429, %v4429
        %v4438 = vadd.f32 %v4430, %v4434
        %v4439 = vadd.f32 %v4431, %v4435
        %v4440 = vadd.f32 %v4432, %v4436
        %v4441 = vadd.f32 %v4433, %v4437
        %v4442 = vstv %s4411
        %v4443 = vsub.f32 %v4442, %v4438
        %v4444 = vsub.f32 %v4442, %v4439
        %v4445 = vsub.f32 %v4442, %v4440
        %v4446 = vsub.f32 %v4442, %v4441
        %v4447 = vmul.f32 %v4443, 0.16666667
        %v4448 = vmul.f32 %v4444, 0.16666667
        %v4449 = vmul.f32 %v4445, 0.16666667
        %v4450 = vmul.f32 %v4446, 0.16666667
        %v4451 = vadd.f32 %v4447, 0.5
        %v4452 = vadd.f32 %v4448, 0.5
        %v4453 = vadd.f32 %v4449, 0.5
        %v4454 = vadd.f32 %v4450, 0.5
        %v4455 = vmax.f32 %v4451, 0.0
        %v4456 = vmax.f32 %v4452, 0.0
        %v4457 = vmax.f32 %v4453, 0.0
        %v4458 = vmax.f32 %v4454, 0.0
        %v4459 = vmin.f32 %v4455, 1.0
        %v4460 = vmin.f32 %v4456, 1.0
        %v4461 = vmin.f32 %v4457, 1.0
        %v4462 = vmin.f32 %v4458, 1.0
        %v4463 = vmul.f32 %v4459, %v4459
        %v4464 = vmul.f32 %v4460, %v4460
        %v4465 = vmul.f32 %v4461, %v4461
        %v4466 = vmul.f32 %v4462, %v4462
        %v4467 = vmul.f32 %v4459, 2.0
        %v4468 = vmul.f32 %v4460, 2.0
        %v4469 = vmul.f32 %v4461, 2.0
        %v4470 = vmul.f32 %v4462, 2.0
        %v4471 = vsub.f32 3.0, %v4467
        %v4472 = vsub.f32 3.0, %v4468
        %v4473 = vsub.f32 3.0, %v4469
        %v4474 = vsub.f32 3.0, %v4470
        %v4475 = vmul.f32 %v4463, %v4471
        %v4476 = vmul.f32 %v4464, %v4472
        %v4477 = vmul.f32 %v4465, %v4473
        %v4478 = vmul.f32 %v4466, %v4474
        %v4479 = vstv %s4413
        %v4480 = vmul.f32 %v4479, %v4475
        %v4481 = vmul.f32 %v4479, %v4476
        %v4482 = vmul.f32 %v4479, %v4477
        %v4483 = vmul.f32 %v4479, %v4478
        %v4484 = vstv %s4415
        %v4485 = vmul.f32 %v4480, %v4484
        %v4486 = vmul.f32 %v4481, %v4484
        %v4487 = vmul.f32 %v4482, %v4484
        %v4488 = vmul.f32 %v4483, %v4484
        %v4489 = vadd.f32 %v4380, %v4485
        %v4490 = vadd.f32 %v4381, %v4486
        %v4491 = vadd.f32 %v4382, %v4487
        %v4492 = vadd.f32 %v4383, %v4488
        %v4493 = vstv %s4417
        %v4494 = vmul.f32 %v4480, %v4493
        %v4495 = vmul.f32 %v4481, %v4493
        %v4496 = vmul.f32 %v4482, %v4493
        %v4497 = vmul.f32 %v4483, %v4493
        %v4498 = vadd.f32 %v4389, %v4494
        %v4499 = vadd.f32 %v4390, %v4495
        %v4500 = vadd.f32 %v4391, %v4496
        %v4501 = vadd.f32 %v4392, %v4497
        %v4502 = vstv %s4419
        %v4503 = vmul.f32 %v4480, %v4502
        %v4504 = vmul.f32 %v4481, %v4502
        %v4505 = vmul.f32 %v4482, %v4502
        %v4506 = vmul.f32 %v4483, %v4502
        %v4507 = vadd.f32 %v4398, %v4503
        %v4508 = vadd.f32 %v4399, %v4504
        %v4509 = vadd.f32 %v4400, %v4505
        %v4510 = vadd.f32 %v4401, %v4506
        %v4511 = vadd.f32 %v4402, %v4480
        %v4512 = vadd.f32 %v4403, %v4481
        %v4513 = vadd.f32 %v4404, %v4482
        %v4514 = vadd.f32 %v4405, %v4483
        %s4515 = sadd.s32 %s3534, 72
        %s4516 = sld [smem:[#allocation2 + %s4515]]
        %s4517 = sadd.s32 %s3534, 73
        %s4518 = sld [smem:[#allocation2 + %s4517]]
        %s4519 = sadd.s32 %s3534, 74
        %s4520 = sld [smem:[#allocation2 + %s4519]]
        %s4521 = sadd.s32 %s3534, 75
        %s4522 = sld [smem:[#allocation2 + %s4521]]
        %s4523 = sadd.s32 %s3534, 76
        %s4524 = sld [smem:[#allocation2 + %s4523]]
        %s4525 = sadd.s32 %s3534, 77
        %s4526 = sld [smem:[#allocation2 + %s4525]]
        %s4527 = sadd.s32 %s3534, 78
        %s4528 = sld [smem:[#allocation2 + %s4527]]
        %v4529 = vstv %s4516
        %v4530 = vsub.f32 %v149, %v4529
        %v4531 = vsub.f32 %v150, %v4529
        %v4532 = vsub.f32 %v151, %v4529
        %v4533 = vsub.f32 %v152, %v4529
        %v4534 = vstv %s4518
        %v4535 = vsub.f32 %v137, %v4534
        %v4536 = vsub.f32 %v138, %v4534
        %v4537 = vsub.f32 %v139, %v4534
        %v4538 = vsub.f32 %v140, %v4534
        %v4539 = vmul.f32 %v4530, %v4530
        %v4540 = vmul.f32 %v4531, %v4531
        %v4541 = vmul.f32 %v4532, %v4532
        %v4542 = vmul.f32 %v4533, %v4533
        %v4543 = vmul.f32 %v4535, %v4535
        %v4544 = vmul.f32 %v4536, %v4536
        %v4545 = vmul.f32 %v4537, %v4537
        %v4546 = vmul.f32 %v4538, %v4538
        %v4547 = vadd.f32 %v4539, %v4543
        %v4548 = vadd.f32 %v4540, %v4544
        %v4549 = vadd.f32 %v4541, %v4545
        %v4550 = vadd.f32 %v4542, %v4546
        %v4551 = vstv %s4520
        %v4552 = vsub.f32 %v4551, %v4547
        %v4553 = vsub.f32 %v4551, %v4548
        %v4554 = vsub.f32 %v4551, %v4549
        %v4555 = vsub.f32 %v4551, %v4550
        %v4556 = vmul.f32 %v4552, 0.16666667
        %v4557 = vmul.f32 %v4553, 0.16666667
        %v4558 = vmul.f32 %v4554, 0.16666667
        %v4559 = vmul.f32 %v4555, 0.16666667
        %v4560 = vadd.f32 %v4556, 0.5
        %v4561 = vadd.f32 %v4557, 0.5
        %v4562 = vadd.f32 %v4558, 0.5
        %v4563 = vadd.f32 %v4559, 0.5
        %v4564 = vmax.f32 %v4560, 0.0
        %v4565 = vmax.f32 %v4561, 0.0
        %v4566 = vmax.f32 %v4562, 0.0
        %v4567 = vmax.f32 %v4563, 0.0
        %v4568 = vmin.f32 %v4564, 1.0
        %v4569 = vmin.f32 %v4565, 1.0
        %v4570 = vmin.f32 %v4566, 1.0
        %v4571 = vmin.f32 %v4567, 1.0
        %v4572 = vmul.f32 %v4568, %v4568
        %v4573 = vmul.f32 %v4569, %v4569
        %v4574 = vmul.f32 %v4570, %v4570
        %v4575 = vmul.f32 %v4571, %v4571
        %v4576 = vmul.f32 %v4568, 2.0
        %v4577 = vmul.f32 %v4569, 2.0
        %v4578 = vmul.f32 %v4570, 2.0
        %v4579 = vmul.f32 %v4571, 2.0
        %v4580 = vsub.f32 3.0, %v4576
        %v4581 = vsub.f32 3.0, %v4577
        %v4582 = vsub.f32 3.0, %v4578
        %v4583 = vsub.f32 3.0, %v4579
        %v4584 = vmul.f32 %v4572, %v4580
        %v4585 = vmul.f32 %v4573, %v4581
        %v4586 = vmul.f32 %v4574, %v4582
        %v4587 = vmul.f32 %v4575, %v4583
        %v4588 = vstv %s4522
        %v4589 = vmul.f32 %v4588, %v4584
        %v4590 = vmul.f32 %v4588, %v4585
        %v4591 = vmul.f32 %v4588, %v4586
        %v4592 = vmul.f32 %v4588, %v4587
        %v4593 = vstv %s4524
        %v4594 = vmul.f32 %v4589, %v4593
        %v4595 = vmul.f32 %v4590, %v4593
        %v4596 = vmul.f32 %v4591, %v4593
        %v4597 = vmul.f32 %v4592, %v4593
        %v4598 = vadd.f32 %v4489, %v4594
        %v4599 = vadd.f32 %v4490, %v4595
        %v4600 = vadd.f32 %v4491, %v4596
        %v4601 = vadd.f32 %v4492, %v4597
        %v4602 = vstv %s4526
        %v4603 = vmul.f32 %v4589, %v4602
        %v4604 = vmul.f32 %v4590, %v4602
        %v4605 = vmul.f32 %v4591, %v4602
        %v4606 = vmul.f32 %v4592, %v4602
        %v4607 = vadd.f32 %v4498, %v4603
        %v4608 = vadd.f32 %v4499, %v4604
        %v4609 = vadd.f32 %v4500, %v4605
        %v4610 = vadd.f32 %v4501, %v4606
        %v4611 = vstv %s4528
        %v4612 = vmul.f32 %v4589, %v4611
        %v4613 = vmul.f32 %v4590, %v4611
        %v4614 = vmul.f32 %v4591, %v4611
        %v4615 = vmul.f32 %v4592, %v4611
        %v4616 = vadd.f32 %v4507, %v4612
        %v4617 = vadd.f32 %v4508, %v4613
        %v4618 = vadd.f32 %v4509, %v4614
        %v4619 = vadd.f32 %v4510, %v4615
        %v4620 = vadd.f32 %v4511, %v4589
        %v4621 = vadd.f32 %v4512, %v4590
        %v4622 = vadd.f32 %v4513, %v4591
        %v4623 = vadd.f32 %v4514, %v4592
        %v4624 = vrcp.pop %v4620
        %v4625 = vrcp.pop %v4621
        %v4626 = vrcp.pop %v4622
        %v4627 = vrcp.pop %v4623
        %v4628 = vmul.f32 %v4598, %v4624
        %v4629 = vmul.f32 %v4599, %v4625
        %v4630 = vmul.f32 %v4600, %v4626
        %v4631 = vmul.f32 %v4601, %v4627
        %s4632 = scalar_lea.vmem %s112, 384
        %4633 = vst [vmem:[%s4632] sm:$0xff] %v4628
        %4634 = vst [vmem:[%s4632 + $0x8] sm:$0xff] %v4629
        %4635 = vst [vmem:[%s4632 + $0x10] sm:$0xff] %v4630
        %4636 = vst [vmem:[%s4632 + $0x18] sm:$0xff] %v4631
        %v4637 = vmul.f32 %v4607, %v4624
        %v4638 = vmul.f32 %v4608, %v4625
        %v4639 = vmul.f32 %v4609, %v4626
        %v4640 = vmul.f32 %v4610, %v4627
        %s4641 = scalar_lea.vmem %s112, 416
        %4642 = vst [vmem:[%s4641] sm:$0xff] %v4637
        %4643 = vst [vmem:[%s4641 + $0x8] sm:$0xff] %v4638
        %4644 = vst [vmem:[%s4641 + $0x10] sm:$0xff] %v4639
        %4645 = vst [vmem:[%s4641 + $0x18] sm:$0xff] %v4640
        %v4646 = vmul.f32 %v4616, %v4624
        %v4647 = vmul.f32 %v4617, %v4625
        %v4648 = vmul.f32 %v4618, %v4626
        %v4649 = vmul.f32 %v4619, %v4627
        %s4650 = scalar_lea.vmem %s112, 448
        %4651 = vst [vmem:[%s4650] sm:$0xff] %v4646
        %4652 = vst [vmem:[%s4650 + $0x8] sm:$0xff] %v4647
        %4653 = vst [vmem:[%s4650 + $0x10] sm:$0xff] %v4648
        %4654 = vst [vmem:[%s4650 + $0x18] sm:$0xff] %v4649
        %s4655 = scalar_lea.vmem %s112, 480
        %4656 = vst [vmem:[%s4655] sm:$0xff] %v4620
        %4657 = vst [vmem:[%s4655 + $0x8] sm:$0xff] %v4621
        %4658 = vst [vmem:[%s4655 + $0x10] sm:$0xff] %v4622
        %4659 = vst [vmem:[%s4655 + $0x18] sm:$0xff] %v4623
        %s4660 = smul.u32 4, %s13
        %p4661 = scmp.lt.s32.totalorder %s4660, 7
        %s4662 = scalar_select %p4661, %s4660, 7
        %s4663 = smul.addr %s4662, 16
        %s4664 = smul.addr %s4663, 8
        %s4665 = scalar_lea.vmem %s1, %s4664
        // Predicated region
        $region29: #{_render.1} parent=23 // pred_check
          %p4666 = pneg %p52
        $region30: #{_render.1} parent=23 // pred_check_branch
          %4668 = sbr.rel (%p4666) target = $region32
        $region31: #{_render.1} parent=23 // pred_region
          %s4669 = smul.u32 4, %s13
        $region32: #{_render.1} parent=23 // pred_fallthru
          _
      $region24: #{_render.1} parent=5 // pred_fallthru
        _
      %p4670 = scmp.le.s32.totalorder 2, %s8
      // Predicated region
      $region33: #{_render.1} parent=5 // pred_check
        %p4671 = pneg %p4670
      $region34: #{_render.1} parent=5 // pred_check_branch
        %4673 = sbr.rel (%p4671) target = $region36
      $region35: #{_render.1} parent=5 // pred_region
        %s4674 = ssub.s32 %s8, 2
        // Predicated region
        $region37: #{_render.1} parent=35 // pred_check
          %p4675 = pneg %p58
        $region38: #{_render.1} parent=35 // pred_check_branch
          %4677 = sbr.rel (%p4675) target = $region40
        $region39: #{_render.1} parent=35 // pred_region
          %s4678 = smul.u32 4, %s14
          %p4679 = scmp.lt.s32.totalorder %s4678, 7
          %s4680 = scalar_select %p4679, %s4678, 7
          %s4681 = smul.addr %s4680, 16
          %s4682 = smul.addr %s4681, 8
          %s4683 = scalar_lea.vmem %s1, %s4682
        $region40: #{_render.1} parent=35 // pred_fallthru
          _
      $region36: #{_render.1} parent=5 // pred_fallthru
        _
    $region6: #{_render.1} parent=1 // loop_footer
      %s12 = sadd.s32 1, %s8
    $region7: #{_render.1} parent=1 // loop_footer_branch
      %7 = sbr.rel target = $region3
    $region8: #{_render.1} parent=1 // loop_exit
      _
    %4684 = vsyncpa [#allocation3], 1
    %s4685 = scalar_lea.sflag [#allocation3], 1
    %4686 = vsyncpa %s4685, 1

</llo_original>
